<compile_context>
chip_gen: v7x
topology: tpu7x:2x2x1
jax: 0.10.0
libtpu: 0.0.40
codegen_flags: <defaults>
</compile_context>

<pallas_src>
import functools

import jax
import jax.numpy as jnp
from jax.experimental import pallas as pl
from jax.experimental.pallas import tpu as pltpu

# ----------------------------- model sizes -----------------------------------
B = 2
H = 32                 # hidden size
NUM_HEADS = 2
HEAD_DIM = H // NUM_HEADS
MLP_HIDDEN = 4 * H
L_IMG = 16
L_TXT = 8
L_TOT = L_IMG + L_TXT

LN_EPS = 1e-6          # nn.LayerNorm(eps=1e-6, elementwise_affine=False)
RMS_EPS = 1e-6         # Flux RMSNorm eps

MXU_DTYPE = jnp.bfloat16   # matmul operand dtype; accumulation is always f32


# ----------------------------- fused Pallas kernel ---------------------------
def _fused_kernel(
    # data
    img_ref, txt_ref, vec_ref, pe_d_ref, pe_o_ref,
    # QKNorm scales + RoPE pair-swap matrix
    iqs_ref, iks_ref, tqs_ref, tks_ref, perm_ref,
    # weights (all full-block VMEM residents)
    imod_w_ref, imod_b_ref, tmod_w_ref, tmod_b_ref,
    iqkv_w_ref, iqkv_b_ref, tqkv_w_ref, tqkv_b_ref,
    iproj_w_ref, iproj_b_ref, tproj_w_ref, tproj_b_ref,
    imlp_w1_ref, imlp_b1_ref, imlp_w2_ref, imlp_b2_ref,
    tmlp_w1_ref, tmlp_b1_ref, tmlp_w2_ref, tmlp_b2_ref,
    # outputs
    img_out_ref, txt_out_ref,
    # VMEM scratch
    k_buf, v_buf, iattn_buf, tattn_buf,
):
  f32 = jnp.float32
  D = HEAD_DIM
  inv_sqrt_d = 1.0 / (D ** 0.5)

  def mm(a, b):
    # MXU matmul: bf16 operands, f32 accumulate.
    return jnp.dot(a.astype(MXU_DTYPE), b.astype(MXU_DTYPE),
                   preferred_element_type=f32)

  def layernorm_mod(x, sc, sh):
    # (1 + scale) * LayerNorm(x) + shift   (no affine, eps=1e-6), f32 math.
    mu = jnp.mean(x, axis=-1, keepdims=True)
    var = jnp.mean((x - mu) ** 2, axis=-1, keepdims=True)
    xn = (x - mu) * jax.lax.rsqrt(var + LN_EPS)
    return (1.0 + sc) * xn + sh

  def rmsnorm(x, scale):
    return x * jax.lax.rsqrt(jnp.mean(x * x, axis=-1, keepdims=True) + RMS_EPS) * scale

  perm = perm_ref[...]       # (D, D) pair-swap permutation

  def rope(x, ped, peo):
    # rope(x) = diag * x + off * pair_swap(x).  Pair swap kept as an exact f32
    # permutation matmul (tiny, known-good lowering).
    # TODO(synk): replace with an XLU lane swizzle (pltpu.roll) to take it off
    # the MXU path entirely.
    return ped * x + peo * jnp.dot(x, perm, preferred_element_type=f32)

  # ---- modulation: Linear(SiLU(vec)) once for the whole batch ---------------
  v = vec_ref[...]
  sv = v * jax.nn.sigmoid(v)
  img_mod = mm(sv, imod_w_ref[...]) + imod_b_ref[...]     # (B, 6H)
  txt_mod = mm(sv, tmod_w_ref[...]) + tmod_b_ref[...]     # (B, 6H)

  iqs = iqs_ref[...]; iks = iks_ref[...]                  # (1, D)
  tqs = tqs_ref[...]; tks = tks_ref[...]

  for b in range(B):
    # modulation chunks: shift1, scale1, gate1, shift2, scale2, gate2
    im_sh1 = img_mod[b:b + 1, 0 * H:1 * H]; im_sc1 = img_mod[b:b + 1, 1 * H:2 * H]
    im_g1 = img_mod[b:b + 1, 2 * H:3 * H]; im_sh2 = img_mod[b:b + 1, 3 * H:4 * H]
    im_sc2 = img_mod[b:b + 1, 4 * H:5 * H]; im_g2 = img_mod[b:b + 1, 5 * H:6 * H]
    tx_sh1 = txt_mod[b:b + 1, 0 * H:1 * H]; tx_sc1 = txt_mod[b:b + 1, 1 * H:2 * H]
    tx_g1 = txt_mod[b:b + 1, 2 * H:3 * H]; tx_sh2 = txt_mod[b:b + 1, 3 * H:4 * H]
    tx_sc2 = txt_mod[b:b + 1, 4 * H:5 * H]; tx_g2 = txt_mod[b:b + 1, 5 * H:6 * H]

    img_in = img_ref[b]                                   # (L_IMG, H)
    txt_in = txt_ref[b]                                   # (L_TXT, H)
    ped = pe_d_ref[b]                                     # (L_TOT, D)
    peo = pe_o_ref[b]
    ped_t, peo_t = ped[:L_TXT], peo[:L_TXT]
    ped_i, peo_i = ped[L_TXT:], peo[L_TXT:]

    # ---- txt QKV + QK-norm + RoPE: computed ONCE, reused by both passes -----
    txt_qkv = mm(layernorm_mod(txt_in, tx_sc1, tx_sh1),
                 tqkv_w_ref[...]) + tqkv_b_ref[...]       # (L_TXT, 3H)
    txt_q_roped = []
    for h in range(NUM_HEADS):
      tq = txt_qkv[:, h * D:(h + 1) * D]
      tk = txt_qkv[:, H + h * D:H + (h + 1) * D]
      tv = txt_qkv[:, 2 * H + h * D:2 * H + (h + 1) * D]
      txt_q_roped.append(rope(rmsnorm(tq, tqs), ped_t, peo_t))
      # txt rows of the concatenated K/V slabs (head h occupies rows
      # [h*L_TOT, (h+1)*L_TOT); txt occupies the first L_TXT of them).
      k_buf[h * L_TOT:h * L_TOT + L_TXT, :] = rope(rmsnorm(tk, tks), ped_t, peo_t)
      v_buf[h * L_TOT:h * L_TOT + L_TXT, :] = tv

    def attention_pass(img_x, need_txt):
      """img LN+mod+QKV, QK-norm+RoPE, SDPA on the concatenated (txt, img) seq.

      Returns (img_attn (L_IMG, H), txt_attn (L_TXT, H) or None).  Query rows
      are independent, so the pre-step (need_txt=False) skips txt queries.
      """
      img_qkv = mm(layernorm_mod(img_x, im_sc1, im_sh1),
                   iqkv_w_ref[...]) + iqkv_b_ref[...]     # (L_IMG, 3H)
      for h in range(NUM_HEADS):
        iq = img_qkv[:, h * D:(h + 1) * D]
        ik = img_qkv[:, H + h * D:H + (h + 1) * D]
        iv = img_qkv[:, 2 * H + h * D:2 * H + (h + 1) * D]
        iq_r = rope(rmsnorm(iq, iqs), ped_i, peo_i)
        k_buf[h * L_TOT + L_TXT:(h + 1) * L_TOT, :] = rope(rmsnorm(ik, iks), ped_i, peo_i)
        v_buf[h * L_TOT + L_TXT:(h + 1) * L_TOT, :] = iv

        k_full = k_buf[h * L_TOT:(h + 1) * L_TOT, :]      # (L_TOT, D)
        v_full = v_buf[h * L_TOT:(h + 1) * L_TOT, :]

        def sdpa(q_rows):
          s = jax.lax.dot_general(
              q_rows.astype(MXU_DTYPE), k_full.astype(MXU_DTYPE),
              (((1,), (1,)), ((), ())),
              preferred_element_type=f32) * inv_sqrt_d
          s = s - jnp.max(s, axis=-1, keepdims=True)
          p = jnp.exp(s)
          p = p * pl.reciprocal(jnp.sum(p, axis=-1, keepdims=True), approx=True)
          return mm(p, v_full)

        iattn_buf[:, h * D:(h + 1) * D] = sdpa(iq_r)
        if need_txt:
          tattn_buf[:, h * D:(h + 1) * D] = sdpa(txt_q_roped[h])

      img_attn = iattn_buf[...]
      txt_attn = tattn_buf[...] if need_txt else None
      return img_attn, txt_attn

    # ---- processor pre-step (lora / ip_adapters empty => no-ops) ------------
    img_attn0, _ = attention_pass(img_in, need_txt=False)
    img1 = img_in + im_g1 * img_attn0

    # ---- DoubleStreamBlock forward on (img1, txt, vec, pe) -------------------
    img_attn, txt_attn = attention_pass(img1, need_txt=True)

    img2 = img1 + im_g1 * (mm(img_attn, iproj_w_ref[...]) + iproj_b_ref[...])
    hid_i = mm(layernorm_mod(img2, im_sc2, im_sh2), imlp_w1_ref[...]) + imlp_b1_ref[...]
    hid_i = jax.nn.gelu(hid_i, approximate=True)
    img_out_ref[b] = img2 + im_g2 * (mm(hid_i, imlp_w2_ref[...]) + imlp_b2_ref[...])

    txt2 = txt_in + tx_g1 * (mm(txt_attn, tproj_w_ref[...]) + tproj_b_ref[...])
    hid_t = mm(layernorm_mod(txt2, tx_sc2, tx_sh2), tmlp_w1_ref[...]) + tmlp_b1_ref[...]
    hid_t = jax.nn.gelu(hid_t, approximate=True)
    txt_out_ref[b] = txt2 + tx_g2 * (mm(hid_t, tmlp_w2_ref[...]) + tmlp_b2_ref[...])


# ----------------------------- JAX wrapper ------------------------------------
def pe_to_diag_off(pe):
  # expand (B,1,L,D/2,2,2) rotation matrices into two (B, L, D) factor maps:
  #   rope(x) = diag * x + off * pair_swap(x)
  pe = pe[:, 0]
  diag = jnp.stack([pe[..., 0, 0], pe[..., 1, 1]], axis=-1)
  off = jnp.stack([pe[..., 0, 1], pe[..., 1, 0]], axis=-1)
  bsz, seq, half, _ = diag.shape
  return diag.reshape(bsz, seq, 2 * half), off.reshape(bsz, seq, 2 * half)


def pair_swap_matrix(d):
  idx = jnp.arange(d)
  return jnp.zeros((d, d), jnp.float32).at[idx, idx ^ 1].set(1.0)


def make_rope_pe(bsz, seq, d):
  # pe: (B, 1, L, D/2, 2, 2) of per-pair 2x2 rotation matrices (Flux layout)
  pos = jnp.arange(seq, dtype=jnp.float32)[:, None]
  dim_i = jnp.arange(d // 2, dtype=jnp.float32)[None, :]
  theta = pos / (10000.0 ** (2.0 * dim_i / d))
  cos, sin = jnp.cos(theta), jnp.sin(theta)
  rot = jnp.stack(
      [jnp.stack([cos, -sin], axis=-1), jnp.stack([sin, cos], axis=-1)],
      axis=-2)                                            # (L, D/2, 2, 2)
  return jnp.broadcast_to(rot[None, None], (bsz, 1, seq, d // 2, 2, 2))


def double_stream_mixer_forward(params, img, txt, vec, pe):
  pe_diag, pe_off = pe_to_diag_off(pe)
  perm = pair_swap_matrix(HEAD_DIM)

  def b2d(x):                      # bias / scale vectors as (1, n) rows
    return x.reshape(1, -1)

  return pl.pallas_call(
      _fused_kernel,
      out_shape=(jax.ShapeDtypeStruct((B, L_IMG, H), jnp.float32),
                 jax.ShapeDtypeStruct((B, L_TXT, H), jnp.float32)),
      scratch_shapes=[
          pltpu.VMEM((NUM_HEADS * L_TOT, HEAD_DIM), jnp.float32),  # K slab
          pltpu.VMEM((NUM_HEADS * L_TOT, HEAD_DIM), jnp.float32),  # V slab
          pltpu.VMEM((L_IMG, H), jnp.float32),                     # img attn out
          pltpu.VMEM((L_TXT, H), jnp.float32),                     # txt attn out
      ],
  )(
      img, txt, vec, pe_diag, pe_off,
      b2d(params['img_q_scale']), b2d(params['img_k_scale']),
      b2d(params['txt_q_scale']), b2d(params['txt_k_scale']),
      perm,
      params['img_mod_w'], b2d(params['img_mod_b']),
      params['txt_mod_w'], b2d(params['txt_mod_b']),
      params['img_qkv_w'], b2d(params['img_qkv_b']),
      params['txt_qkv_w'], b2d(params['txt_qkv_b']),
      params['img_proj_w'], b2d(params['img_proj_b']),
      params['txt_proj_w'], b2d(params['txt_proj_b']),
      params['img_mlp_w1'], b2d(params['img_mlp_b1']),
      params['img_mlp_w2'], b2d(params['img_mlp_b2']),
      params['txt_mlp_w1'], b2d(params['txt_mlp_b1']),
      params['txt_mlp_w2'], b2d(params['txt_mlp_b2']),
  )


# ----------------------------- param init -------------------------------------
def init_params(key):
  keys = iter(jax.random.split(key, 40))

  def w(shape, scale=0.05):
    return scale * jax.random.normal(next(keys), shape, jnp.float32)

  return {
      # weights stored as (in, out): y = x @ W + b  (== torch Linear W.T)
      'img_mod_w': w((H, 6 * H)), 'img_mod_b': w((6 * H,), 0.02),
      'txt_mod_w': w((H, 6 * H)), 'txt_mod_b': w((6 * H,), 0.02),
      'img_qkv_w': w((H, 3 * H)), 'img_qkv_b': w((3 * H,), 0.02),
      'txt_qkv_w': w((H, 3 * H)), 'txt_qkv_b': w((3 * H,), 0.02),
      'img_q_scale': jnp.ones((HEAD_DIM,), jnp.float32),   # RMSNorm scales
      'img_k_scale': jnp.ones((HEAD_DIM,), jnp.float32),
      'txt_q_scale': jnp.ones((HEAD_DIM,), jnp.float32),
      'txt_k_scale': jnp.ones((HEAD_DIM,), jnp.float32),
      'img_proj_w': w((H, H)), 'img_proj_b': w((H,), 0.02),
      'txt_proj_w': w((H, H)), 'txt_proj_b': w((H,), 0.02),
      'img_mlp_w1': w((H, MLP_HIDDEN)), 'img_mlp_b1': w((MLP_HIDDEN,), 0.02),
      'img_mlp_w2': w((MLP_HIDDEN, H)), 'img_mlp_b2': w((H,), 0.02),
      'txt_mlp_w1': w((H, MLP_HIDDEN)), 'txt_mlp_b1': w((MLP_HIDDEN,), 0.02),
      'txt_mlp_w2': w((MLP_HIDDEN, H)), 'txt_mlp_b2': w((H,), 0.02),
  }


# ----------------------------- main -------------------------------------------
if __name__ == "__main__":
  key = jax.random.PRNGKey(0)
  k_param, k_img, k_txt, k_vec = jax.random.split(key, 4)

  params = init_params(k_param)
  img = jax.random.normal(k_img, (B, L_IMG, H), jnp.float32)
  txt = jax.random.normal(k_txt, (B, L_TXT, H), jnp.float32)
  vec = jax.random.normal(k_vec, (B, H), jnp.float32)
  pe = make_rope_pe(B, L_TOT, HEAD_DIM)

  fwd = jax.jit(functools.partial(double_stream_mixer_forward, params))
  img_out, txt_out = fwd(img, txt, vec, pe)
  jax.block_until_ready((img_out, txt_out))

  assert img_out.shape == (B, L_IMG, H) and txt_out.shape == (B, L_TXT, H)
  assert bool(jnp.all(jnp.isfinite(img_out))) and bool(jnp.all(jnp.isfinite(txt_out)))
  print("KERNEL_OK")
</pallas_src>

<mosaic_0001>
module attributes {stable_mosaic.version = 11 : i64} {
  func.func @_fused_kernel(%arg0: memref<2x16x32xf32, #tpu.memory_space<vmem>>, %arg1: memref<2x8x32xf32, #tpu.memory_space<vmem>>, %arg2: memref<2x32xf32, #tpu.memory_space<vmem>>, %arg3: memref<2x24x16xf32, #tpu.memory_space<vmem>>, %arg4: memref<2x24x16xf32, #tpu.memory_space<vmem>>, %arg5: memref<1x16xf32, #tpu.memory_space<vmem>>, %arg6: memref<1x16xf32, #tpu.memory_space<vmem>>, %arg7: memref<1x16xf32, #tpu.memory_space<vmem>>, %arg8: memref<1x16xf32, #tpu.memory_space<vmem>>, %arg9: memref<16x16xf32, #tpu.memory_space<vmem>>, %arg10: memref<32x192xf32, #tpu.memory_space<vmem>>, %arg11: memref<1x192xf32, #tpu.memory_space<vmem>>, %arg12: memref<32x192xf32, #tpu.memory_space<vmem>>, %arg13: memref<1x192xf32, #tpu.memory_space<vmem>>, %arg14: memref<32x96xf32, #tpu.memory_space<vmem>>, %arg15: memref<1x96xf32, #tpu.memory_space<vmem>>, %arg16: memref<32x96xf32, #tpu.memory_space<vmem>>, %arg17: memref<1x96xf32, #tpu.memory_space<vmem>>, %arg18: memref<32x32xf32, #tpu.memory_space<vmem>>, %arg19: memref<1x32xf32, #tpu.memory_space<vmem>>, %arg20: memref<32x32xf32, #tpu.memory_space<vmem>>, %arg21: memref<1x32xf32, #tpu.memory_space<vmem>>, %arg22: memref<32x128xf32, #tpu.memory_space<vmem>>, %arg23: memref<1x128xf32, #tpu.memory_space<vmem>>, %arg24: memref<128x32xf32, #tpu.memory_space<vmem>>, %arg25: memref<1x32xf32, #tpu.memory_space<vmem>>, %arg26: memref<32x128xf32, #tpu.memory_space<vmem>>, %arg27: memref<1x128xf32, #tpu.memory_space<vmem>>, %arg28: memref<128x32xf32, #tpu.memory_space<vmem>>, %arg29: memref<1x32xf32, #tpu.memory_space<vmem>>, %arg30: memref<2x16x32xf32, #tpu.memory_space<vmem>>, %arg31: memref<2x8x32xf32, #tpu.memory_space<vmem>>, %arg32: memref<48x16xf32, #tpu.memory_space<vmem>>, %arg33: memref<48x16xf32, #tpu.memory_space<vmem>>, %arg34: memref<16x32xf32, #tpu.memory_space<vmem>>, %arg35: memref<8x32xf32, #tpu.memory_space<vmem>>) attributes {dimension_semantics = [], scalar_prefetch = 0 : i64, scratch_operands = 4 : i64, tpu.core_type = #tpu.core_type<tc>} {
    %c0 = arith.constant 0 : index
    %c0_0 = arith.constant 0 : index
    %0 = vector.load %arg9[%c0, %c0_0] : memref<16x16xf32, #tpu.memory_space<vmem>>, vector<16x16xf32>
    %c0_1 = arith.constant 0 : index
    %c0_2 = arith.constant 0 : index
    %1 = vector.load %arg2[%c0_1, %c0_2] : memref<2x32xf32, #tpu.memory_space<vmem>>, vector<2x32xf32>
    %2 = arith.negf %1 : vector<2x32xf32>
    %3 = math.exp %2 : vector<2x32xf32>
    %cst = arith.constant 1.000000e+00 : f32
    %4 = vector.broadcast %cst : f32 to vector<2x32xf32>
    %5 = arith.addf %4, %3 : vector<2x32xf32>
    %6 = arith.divf %4, %5 : vector<2x32xf32>
    %7 = arith.mulf %1, %6 : vector<2x32xf32>
    %c0_3 = arith.constant 0 : index
    %c0_4 = arith.constant 0 : index
    %8 = vector.load %arg10[%c0_3, %c0_4] : memref<32x192xf32, #tpu.memory_space<vmem>>, vector<32x192xf32>
    %9 = arith.truncf %7 : vector<2x32xf32> to vector<2x32xbf16>
    %10 = arith.truncf %8 : vector<32x192xf32> to vector<32x192xbf16>
    %cst_5 = arith.constant dense<0.000000e+00> : vector<2x192xf32>
    %11 = tpu.matmul %9, %10, %cst_5 {dimension_numbers = #tpu.dot_dimension_numbers<[1], [0], [0], [1], [0, 0, 1, 1], [], []>} : vector<2x32xbf16>, vector<32x192xbf16>, vector<2x192xf32> -> vector<2x192xf32>
    %c0_6 = arith.constant 0 : index
    %c0_7 = arith.constant 0 : index
    %12 = vector.load %arg11[%c0_6, %c0_7] : memref<1x192xf32, #tpu.memory_space<vmem>>, vector<1x192xf32>
    %13 = vector.broadcast %12 : vector<1x192xf32> to vector<2x192xf32>
    %14 = arith.addf %11, %13 : vector<2x192xf32>
    %c0_8 = arith.constant 0 : index
    %c0_9 = arith.constant 0 : index
    %15 = vector.load %arg12[%c0_8, %c0_9] : memref<32x192xf32, #tpu.memory_space<vmem>>, vector<32x192xf32>
    %16 = arith.truncf %7 : vector<2x32xf32> to vector<2x32xbf16>
    %17 = arith.truncf %15 : vector<32x192xf32> to vector<32x192xbf16>
    %cst_10 = arith.constant dense<0.000000e+00> : vector<2x192xf32>
    %18 = tpu.matmul %16, %17, %cst_10 {dimension_numbers = #tpu.dot_dimension_numbers<[1], [0], [0], [1], [0, 0, 1, 1], [], []>} : vector<2x32xbf16>, vector<32x192xbf16>, vector<2x192xf32> -> vector<2x192xf32>
    %c0_11 = arith.constant 0 : index
    %c0_12 = arith.constant 0 : index
    %19 = vector.load %arg13[%c0_11, %c0_12] : memref<1x192xf32, #tpu.memory_space<vmem>>, vector<1x192xf32>
    %20 = vector.broadcast %19 : vector<1x192xf32> to vector<2x192xf32>
    %21 = arith.addf %18, %20 : vector<2x192xf32>
    %c0_13 = arith.constant 0 : index
    %c0_14 = arith.constant 0 : index
    %22 = vector.load %arg5[%c0_13, %c0_14] : memref<1x16xf32, #tpu.memory_space<vmem>>, vector<1x16xf32>
    %c0_15 = arith.constant 0 : index
    %c0_16 = arith.constant 0 : index
    %23 = vector.load %arg6[%c0_15, %c0_16] : memref<1x16xf32, #tpu.memory_space<vmem>>, vector<1x16xf32>
    %c0_17 = arith.constant 0 : index
    %c0_18 = arith.constant 0 : index
    %24 = vector.load %arg7[%c0_17, %c0_18] : memref<1x16xf32, #tpu.memory_space<vmem>>, vector<1x16xf32>
    %c0_19 = arith.constant 0 : index
    %c0_20 = arith.constant 0 : index
    %25 = vector.load %arg8[%c0_19, %c0_20] : memref<1x16xf32, #tpu.memory_space<vmem>>, vector<1x16xf32>
    %26 = vector.extract_strided_slice %14 {offsets = [0, 0], sizes = [1, 32], strides = [1, 1]} : vector<2x192xf32> to vector<1x32xf32>
    %27 = vector.extract_strided_slice %14 {offsets = [0, 32], sizes = [1, 32], strides = [1, 1]} : vector<2x192xf32> to vector<1x32xf32>
    %28 = vector.extract_strided_slice %14 {offsets = [0, 64], sizes = [1, 32], strides = [1, 1]} : vector<2x192xf32> to vector<1x32xf32>
    %29 = vector.extract_strided_slice %14 {offsets = [0, 96], sizes = [1, 32], strides = [1, 1]} : vector<2x192xf32> to vector<1x32xf32>
    %30 = vector.extract_strided_slice %14 {offsets = [0, 128], sizes = [1, 32], strides = [1, 1]} : vector<2x192xf32> to vector<1x32xf32>
    %31 = vector.extract_strided_slice %14 {offsets = [0, 160], sizes = [1, 32], strides = [1, 1]} : vector<2x192xf32> to vector<1x32xf32>
    %32 = vector.extract_strided_slice %21 {offsets = [0, 0], sizes = [1, 32], strides = [1, 1]} : vector<2x192xf32> to vector<1x32xf32>
    %33 = vector.extract_strided_slice %21 {offsets = [0, 32], sizes = [1, 32], strides = [1, 1]} : vector<2x192xf32> to vector<1x32xf32>
    %34 = vector.extract_strided_slice %21 {offsets = [0, 64], sizes = [1, 32], strides = [1, 1]} : vector<2x192xf32> to vector<1x32xf32>
    %35 = vector.extract_strided_slice %21 {offsets = [0, 96], sizes = [1, 32], strides = [1, 1]} : vector<2x192xf32> to vector<1x32xf32>
    %36 = vector.extract_strided_slice %21 {offsets = [0, 128], sizes = [1, 32], strides = [1, 1]} : vector<2x192xf32> to vector<1x32xf32>
    %37 = vector.extract_strided_slice %21 {offsets = [0, 160], sizes = [1, 32], strides = [1, 1]} : vector<2x192xf32> to vector<1x32xf32>
    %c0_21 = arith.constant 0 : index
    %c0_22 = arith.constant 0 : index
    %c0_23 = arith.constant 0 : index
    %38 = vector.load %arg0[%c0_21, %c0_22, %c0_23] : memref<2x16x32xf32, #tpu.memory_space<vmem>>, vector<1x16x32xf32>
    %39 = vector.shape_cast %38 : vector<1x16x32xf32> to vector<16x32xf32>
    %c0_24 = arith.constant 0 : index
    %c0_25 = arith.constant 0 : index
    %c0_26 = arith.constant 0 : index
    %40 = vector.load %arg1[%c0_24, %c0_25, %c0_26] : memref<2x8x32xf32, #tpu.memory_space<vmem>>, vector<1x8x32xf32>
    %41 = vector.shape_cast %40 : vector<1x8x32xf32> to vector<8x32xf32>
    %c0_27 = arith.constant 0 : index
    %c0_28 = arith.constant 0 : index
    %c0_29 = arith.constant 0 : index
    %42 = vector.load %arg3[%c0_27, %c0_28, %c0_29] : memref<2x24x16xf32, #tpu.memory_space<vmem>>, vector<1x24x16xf32>
    %43 = vector.shape_cast %42 : vector<1x24x16xf32> to vector<24x16xf32>
    %c0_30 = arith.constant 0 : index
    %c0_31 = arith.constant 0 : index
    %c0_32 = arith.constant 0 : index
    %44 = vector.load %arg4[%c0_30, %c0_31, %c0_32] : memref<2x24x16xf32, #tpu.memory_space<vmem>>, vector<1x24x16xf32>
    %45 = vector.shape_cast %44 : vector<1x24x16xf32> to vector<24x16xf32>
    %46 = vector.extract_strided_slice %43 {offsets = [0, 0], sizes = [8, 16], strides = [1, 1]} : vector<24x16xf32> to vector<8x16xf32>
    %47 = vector.extract_strided_slice %45 {offsets = [0, 0], sizes = [8, 16], strides = [1, 1]} : vector<24x16xf32> to vector<8x16xf32>
    %48 = vector.extract_strided_slice %43 {offsets = [8, 0], sizes = [16, 16], strides = [1, 1]} : vector<24x16xf32> to vector<16x16xf32>
    %49 = vector.extract_strided_slice %45 {offsets = [8, 0], sizes = [16, 16], strides = [1, 1]} : vector<24x16xf32> to vector<16x16xf32>
    %cst_33 = arith.constant dense<0.000000e+00> : vector<8xf32>
    %50 = vector.multi_reduction <add>, %41, %cst_33 [1] : vector<8x32xf32> to vector<8xf32>
    %51 = vector.shape_cast %50 : vector<8xf32> to vector<8x1xf32>
    %cst_34 = arith.constant 3.200000e+01 : f32
    %52 = vector.broadcast %cst_34 : f32 to vector<8x1xf32>
    %53 = arith.divf %51, %52 : vector<8x1xf32>
    %54 = vector.broadcast %53 : vector<8x1xf32> to vector<8x32xf32>
    %55 = arith.subf %41, %54 : vector<8x32xf32>
    %56 = arith.mulf %55, %55 : vector<8x32xf32>
    %cst_35 = arith.constant dense<0.000000e+00> : vector<8xf32>
    %57 = vector.multi_reduction <add>, %56, %cst_35 [1] : vector<8x32xf32> to vector<8xf32>
    %58 = vector.shape_cast %57 : vector<8xf32> to vector<8x1xf32>
    %cst_36 = arith.constant 3.200000e+01 : f32
    %59 = vector.broadcast %cst_36 : f32 to vector<8x1xf32>
    %60 = arith.divf %58, %59 : vector<8x1xf32>
    %61 = vector.broadcast %53 : vector<8x1xf32> to vector<8x32xf32>
    %62 = arith.subf %41, %61 : vector<8x32xf32>
    %cst_37 = arith.constant 9.99999997E-7 : f32
    %63 = vector.broadcast %cst_37 : f32 to vector<8x1xf32>
    %64 = arith.addf %60, %63 : vector<8x1xf32>
    %65 = math.rsqrt %64 : vector<8x1xf32>
    %66 = vector.broadcast %65 : vector<8x1xf32> to vector<8x32xf32>
    %67 = arith.mulf %62, %66 : vector<8x32xf32>
    %cst_38 = arith.constant 1.000000e+00 : f32
    %68 = vector.broadcast %cst_38 : f32 to vector<1x32xf32>
    %69 = arith.addf %68, %33 : vector<1x32xf32>
    %70 = vector.broadcast %69 : vector<1x32xf32> to vector<8x32xf32>
    %71 = arith.mulf %70, %67 : vector<8x32xf32>
    %72 = vector.broadcast %32 : vector<1x32xf32> to vector<8x32xf32>
    %73 = arith.addf %71, %72 : vector<8x32xf32>
    %c0_39 = arith.constant 0 : index
    %c0_40 = arith.constant 0 : index
    %74 = vector.load %arg16[%c0_39, %c0_40] : memref<32x96xf32, #tpu.memory_space<vmem>>, vector<32x96xf32>
    %75 = arith.truncf %73 : vector<8x32xf32> to vector<8x32xbf16>
    %76 = arith.truncf %74 : vector<32x96xf32> to vector<32x96xbf16>
    %cst_41 = arith.constant dense<0.000000e+00> : vector<8x96xf32>
    %77 = tpu.matmul %75, %76, %cst_41 {dimension_numbers = #tpu.dot_dimension_numbers<[1], [0], [0], [1], [0, 0, 1, 1], [], []>} : vector<8x32xbf16>, vector<32x96xbf16>, vector<8x96xf32> -> vector<8x96xf32>
    %c0_42 = arith.constant 0 : index
    %c0_43 = arith.constant 0 : index
    %78 = vector.load %arg17[%c0_42, %c0_43] : memref<1x96xf32, #tpu.memory_space<vmem>>, vector<1x96xf32>
    %79 = vector.broadcast %78 : vector<1x96xf32> to vector<8x96xf32>
    %80 = arith.addf %77, %79 : vector<8x96xf32>
    %81 = vector.extract_strided_slice %80 {offsets = [0, 0], sizes = [8, 16], strides = [1, 1]} : vector<8x96xf32> to vector<8x16xf32>
    %82 = vector.extract_strided_slice %80 {offsets = [0, 32], sizes = [8, 16], strides = [1, 1]} : vector<8x96xf32> to vector<8x16xf32>
    %83 = vector.extract_strided_slice %80 {offsets = [0, 64], sizes = [8, 16], strides = [1, 1]} : vector<8x96xf32> to vector<8x16xf32>
    %84 = arith.mulf %81, %81 : vector<8x16xf32>
    %cst_44 = arith.constant dense<0.000000e+00> : vector<8xf32>
    %85 = vector.multi_reduction <add>, %84, %cst_44 [1] : vector<8x16xf32> to vector<8xf32>
    %86 = vector.shape_cast %85 : vector<8xf32> to vector<8x1xf32>
    %cst_45 = arith.constant 1.600000e+01 : f32
    %87 = vector.broadcast %cst_45 : f32 to vector<8x1xf32>
    %88 = arith.divf %86, %87 : vector<8x1xf32>
    %cst_46 = arith.constant 9.99999997E-7 : f32
    %89 = vector.broadcast %cst_46 : f32 to vector<8x1xf32>
    %90 = arith.addf %88, %89 : vector<8x1xf32>
    %91 = math.rsqrt %90 : vector<8x1xf32>
    %92 = vector.broadcast %91 : vector<8x1xf32> to vector<8x16xf32>
    %93 = arith.mulf %81, %92 : vector<8x16xf32>
    %94 = vector.broadcast %24 : vector<1x16xf32> to vector<8x16xf32>
    %95 = arith.mulf %93, %94 : vector<8x16xf32>
    %96 = arith.mulf %46, %95 : vector<8x16xf32>
    %cst_47 = arith.constant dense<0.000000e+00> : vector<8x16xf32>
    %97 = tpu.matmul %95, %0, %cst_47 {dimension_numbers = #tpu.dot_dimension_numbers<[1], [0], [0], [1], [0, 0, 1, 1], [], []>} : vector<8x16xf32>, vector<16x16xf32>, vector<8x16xf32> -> vector<8x16xf32>
    %98 = arith.mulf %47, %97 : vector<8x16xf32>
    %99 = arith.addf %96, %98 : vector<8x16xf32>
    %100 = arith.mulf %82, %82 : vector<8x16xf32>
    %cst_48 = arith.constant dense<0.000000e+00> : vector<8xf32>
    %101 = vector.multi_reduction <add>, %100, %cst_48 [1] : vector<8x16xf32> to vector<8xf32>
    %102 = vector.shape_cast %101 : vector<8xf32> to vector<8x1xf32>
    %cst_49 = arith.constant 1.600000e+01 : f32
    %103 = vector.broadcast %cst_49 : f32 to vector<8x1xf32>
    %104 = arith.divf %102, %103 : vector<8x1xf32>
    %cst_50 = arith.constant 9.99999997E-7 : f32
    %105 = vector.broadcast %cst_50 : f32 to vector<8x1xf32>
    %106 = arith.addf %104, %105 : vector<8x1xf32>
    %107 = math.rsqrt %106 : vector<8x1xf32>
    %108 = vector.broadcast %107 : vector<8x1xf32> to vector<8x16xf32>
    %109 = arith.mulf %82, %108 : vector<8x16xf32>
    %110 = vector.broadcast %25 : vector<1x16xf32> to vector<8x16xf32>
    %111 = arith.mulf %109, %110 : vector<8x16xf32>
    %112 = arith.mulf %46, %111 : vector<8x16xf32>
    %cst_51 = arith.constant dense<0.000000e+00> : vector<8x16xf32>
    %113 = tpu.matmul %111, %0, %cst_51 {dimension_numbers = #tpu.dot_dimension_numbers<[1], [0], [0], [1], [0, 0, 1, 1], [], []>} : vector<8x16xf32>, vector<16x16xf32>, vector<8x16xf32> -> vector<8x16xf32>
    %114 = arith.mulf %47, %113 : vector<8x16xf32>
    %115 = arith.addf %112, %114 : vector<8x16xf32>
    %c0_52 = arith.constant 0 : index
    %c0_53 = arith.constant 0 : index
    %116 = vector.load %arg32[%c0_52, %c0_53] : memref<48x16xf32, #tpu.memory_space<vmem>>, vector<8x16xf32>
    tpu.vector_store %arg32[%c0_52, %c0_53], %115 {strides = array<i32>} : memref<48x16xf32, #tpu.memory_space<vmem>>, vector<8x16xf32>,
    %c0_54 = arith.constant 0 : index
    %c0_55 = arith.constant 0 : index
    %117 = vector.load %arg33[%c0_54, %c0_55] : memref<48x16xf32, #tpu.memory_space<vmem>>, vector<8x16xf32>
    tpu.vector_store %arg33[%c0_54, %c0_55], %83 {strides = array<i32>} : memref<48x16xf32, #tpu.memory_space<vmem>>, vector<8x16xf32>,
    %118 = vector.extract_strided_slice %80 {offsets = [0, 16], sizes = [8, 16], strides = [1, 1]} : vector<8x96xf32> to vector<8x16xf32>
    %119 = vector.extract_strided_slice %80 {offsets = [0, 48], sizes = [8, 16], strides = [1, 1]} : vector<8x96xf32> to vector<8x16xf32>
    %120 = vector.extract_strided_slice %80 {offsets = [0, 80], sizes = [8, 16], strides = [1, 1]} : vector<8x96xf32> to vector<8x16xf32>
    %121 = arith.mulf %118, %118 : vector<8x16xf32>
    %cst_56 = arith.constant dense<0.000000e+00> : vector<8xf32>
    %122 = vector.multi_reduction <add>, %121, %cst_56 [1] : vector<8x16xf32> to vector<8xf32>
    %123 = vector.shape_cast %122 : vector<8xf32> to vector<8x1xf32>
    %cst_57 = arith.constant 1.600000e+01 : f32
    %124 = vector.broadcast %cst_57 : f32 to vector<8x1xf32>
    %125 = arith.divf %123, %124 : vector<8x1xf32>
    %cst_58 = arith.constant 9.99999997E-7 : f32
    %126 = vector.broadcast %cst_58 : f32 to vector<8x1xf32>
    %127 = arith.addf %125, %126 : vector<8x1xf32>
    %128 = math.rsqrt %127 : vector<8x1xf32>
    %129 = vector.broadcast %128 : vector<8x1xf32> to vector<8x16xf32>
    %130 = arith.mulf %118, %129 : vector<8x16xf32>
    %131 = vector.broadcast %24 : vector<1x16xf32> to vector<8x16xf32>
    %132 = arith.mulf %130, %131 : vector<8x16xf32>
    %133 = arith.mulf %46, %132 : vector<8x16xf32>
    %cst_59 = arith.constant dense<0.000000e+00> : vector<8x16xf32>
    %134 = tpu.matmul %132, %0, %cst_59 {dimension_numbers = #tpu.dot_dimension_numbers<[1], [0], [0], [1], [0, 0, 1, 1], [], []>} : vector<8x16xf32>, vector<16x16xf32>, vector<8x16xf32> -> vector<8x16xf32>
    %135 = arith.mulf %47, %134 : vector<8x16xf32>
    %136 = arith.addf %133, %135 : vector<8x16xf32>
    %137 = arith.mulf %119, %119 : vector<8x16xf32>
    %cst_60 = arith.constant dense<0.000000e+00> : vector<8xf32>
    %138 = vector.multi_reduction <add>, %137, %cst_60 [1] : vector<8x16xf32> to vector<8xf32>
    %139 = vector.shape_cast %138 : vector<8xf32> to vector<8x1xf32>
    %cst_61 = arith.constant 1.600000e+01 : f32
    %140 = vector.broadcast %cst_61 : f32 to vector<8x1xf32>
    %141 = arith.divf %139, %140 : vector<8x1xf32>
    %cst_62 = arith.constant 9.99999997E-7 : f32
    %142 = vector.broadcast %cst_62 : f32 to vector<8x1xf32>
    %143 = arith.addf %141, %142 : vector<8x1xf32>
    %144 = math.rsqrt %143 : vector<8x1xf32>
    %145 = vector.broadcast %144 : vector<8x1xf32> to vector<8x16xf32>
    %146 = arith.mulf %119, %145 : vector<8x16xf32>
    %147 = vector.broadcast %25 : vector<1x16xf32> to vector<8x16xf32>
    %148 = arith.mulf %146, %147 : vector<8x16xf32>
    %149 = arith.mulf %46, %148 : vector<8x16xf32>
    %cst_63 = arith.constant dense<0.000000e+00> : vector<8x16xf32>
    %150 = tpu.matmul %148, %0, %cst_63 {dimension_numbers = #tpu.dot_dimension_numbers<[1], [0], [0], [1], [0, 0, 1, 1], [], []>} : vector<8x16xf32>, vector<16x16xf32>, vector<8x16xf32> -> vector<8x16xf32>
    %151 = arith.mulf %47, %150 : vector<8x16xf32>
    %152 = arith.addf %149, %151 : vector<8x16xf32>
    %c24 = arith.constant 24 : index
    %c0_64 = arith.constant 0 : index
    %153 = vector.load %arg32[%c24, %c0_64] : memref<48x16xf32, #tpu.memory_space<vmem>>, vector<8x16xf32>
    tpu.vector_store %arg32[%c24, %c0_64], %152 {strides = array<i32>} : memref<48x16xf32, #tpu.memory_space<vmem>>, vector<8x16xf32>,
    %c24_65 = arith.constant 24 : index
    %c0_66 = arith.constant 0 : index
    %154 = vector.load %arg33[%c24_65, %c0_66] : memref<48x16xf32, #tpu.memory_space<vmem>>, vector<8x16xf32>
    tpu.vector_store %arg33[%c24_65, %c0_66], %120 {strides = array<i32>} : memref<48x16xf32, #tpu.memory_space<vmem>>, vector<8x16xf32>,
    %cst_67 = arith.constant dense<0.000000e+00> : vector<16xf32>
    %155 = vector.multi_reduction <add>, %39, %cst_67 [1] : vector<16x32xf32> to vector<16xf32>
    %156 = vector.shape_cast %155 : vector<16xf32> to vector<16x1xf32>
    %cst_68 = arith.constant 3.200000e+01 : f32
    %157 = vector.broadcast %cst_68 : f32 to vector<16x1xf32>
    %158 = arith.divf %156, %157 : vector<16x1xf32>
    %159 = vector.broadcast %158 : vector<16x1xf32> to vector<16x32xf32>
    %160 = arith.subf %39, %159 : vector<16x32xf32>
    %161 = arith.mulf %160, %160 : vector<16x32xf32>
    %cst_69 = arith.constant dense<0.000000e+00> : vector<16xf32>
    %162 = vector.multi_reduction <add>, %161, %cst_69 [1] : vector<16x32xf32> to vector<16xf32>
    %163 = vector.shape_cast %162 : vector<16xf32> to vector<16x1xf32>
    %cst_70 = arith.constant 3.200000e+01 : f32
    %164 = vector.broadcast %cst_70 : f32 to vector<16x1xf32>
    %165 = arith.divf %163, %164 : vector<16x1xf32>
    %166 = vector.broadcast %158 : vector<16x1xf32> to vector<16x32xf32>
    %167 = arith.subf %39, %166 : vector<16x32xf32>
    %cst_71 = arith.constant 9.99999997E-7 : f32
    %168 = vector.broadcast %cst_71 : f32 to vector<16x1xf32>
    %169 = arith.addf %165, %168 : vector<16x1xf32>
    %170 = math.rsqrt %169 : vector<16x1xf32>
    %171 = vector.broadcast %170 : vector<16x1xf32> to vector<16x32xf32>
    %172 = arith.mulf %167, %171 : vector<16x32xf32>
    %cst_72 = arith.constant 1.000000e+00 : f32
    %173 = vector.broadcast %cst_72 : f32 to vector<1x32xf32>
    %174 = arith.addf %173, %27 : vector<1x32xf32>
    %175 = vector.broadcast %174 : vector<1x32xf32> to vector<16x32xf32>
    %176 = arith.mulf %175, %172 : vector<16x32xf32>
    %177 = vector.broadcast %26 : vector<1x32xf32> to vector<16x32xf32>
    %178 = arith.addf %176, %177 : vector<16x32xf32>
    %c0_73 = arith.constant 0 : index
    %c0_74 = arith.constant 0 : index
    %179 = vector.load %arg14[%c0_73, %c0_74] : memref<32x96xf32, #tpu.memory_space<vmem>>, vector<32x96xf32>
    %180 = arith.truncf %178 : vector<16x32xf32> to vector<16x32xbf16>
    %181 = arith.truncf %179 : vector<32x96xf32> to vector<32x96xbf16>
    %cst_75 = arith.constant dense<0.000000e+00> : vector<16x96xf32>
    %182 = tpu.matmul %180, %181, %cst_75 {dimension_numbers = #tpu.dot_dimension_numbers<[1], [0], [0], [1], [0, 0, 1, 1], [], []>} : vector<16x32xbf16>, vector<32x96xbf16>, vector<16x96xf32> -> vector<16x96xf32>
    %c0_76 = arith.constant 0 : index
    %c0_77 = arith.constant 0 : index
    %183 = vector.load %arg15[%c0_76, %c0_77] : memref<1x96xf32, #tpu.memory_space<vmem>>, vector<1x96xf32>
    %184 = vector.broadcast %183 : vector<1x96xf32> to vector<16x96xf32>
    %185 = arith.addf %182, %184 : vector<16x96xf32>
    %186 = vector.extract_strided_slice %185 {offsets = [0, 0], sizes = [16, 16], strides = [1, 1]} : vector<16x96xf32> to vector<16x16xf32>
    %187 = vector.extract_strided_slice %185 {offsets = [0, 32], sizes = [16, 16], strides = [1, 1]} : vector<16x96xf32> to vector<16x16xf32>
    %188 = vector.extract_strided_slice %185 {offsets = [0, 64], sizes = [16, 16], strides = [1, 1]} : vector<16x96xf32> to vector<16x16xf32>
    %189 = arith.mulf %186, %186 : vector<16x16xf32>
    %cst_78 = arith.constant dense<0.000000e+00> : vector<16xf32>
    %190 = vector.multi_reduction <add>, %189, %cst_78 [1] : vector<16x16xf32> to vector<16xf32>
    %191 = vector.shape_cast %190 : vector<16xf32> to vector<16x1xf32>
    %cst_79 = arith.constant 1.600000e+01 : f32
    %192 = vector.broadcast %cst_79 : f32 to vector<16x1xf32>
    %193 = arith.divf %191, %192 : vector<16x1xf32>
    %cst_80 = arith.constant 9.99999997E-7 : f32
    %194 = vector.broadcast %cst_80 : f32 to vector<16x1xf32>
    %195 = arith.addf %193, %194 : vector<16x1xf32>
    %196 = math.rsqrt %195 : vector<16x1xf32>
    %197 = vector.broadcast %196 : vector<16x1xf32> to vector<16x16xf32>
    %198 = arith.mulf %186, %197 : vector<16x16xf32>
    %199 = vector.broadcast %22 : vector<1x16xf32> to vector<16x16xf32>
    %200 = arith.mulf %198, %199 : vector<16x16xf32>
    %201 = arith.mulf %48, %200 : vector<16x16xf32>
    %cst_81 = arith.constant dense<0.000000e+00> : vector<16x16xf32>
    %202 = tpu.matmul %200, %0, %cst_81 {dimension_numbers = #tpu.dot_dimension_numbers<[1], [0], [0], [1], [0, 0, 1, 1], [], []>} : vector<16x16xf32>, vector<16x16xf32>, vector<16x16xf32> -> vector<16x16xf32>
    %203 = arith.mulf %49, %202 : vector<16x16xf32>
    %204 = arith.addf %201, %203 : vector<16x16xf32>
    %205 = arith.mulf %187, %187 : vector<16x16xf32>
    %cst_82 = arith.constant dense<0.000000e+00> : vector<16xf32>
    %206 = vector.multi_reduction <add>, %205, %cst_82 [1] : vector<16x16xf32> to vector<16xf32>
    %207 = vector.shape_cast %206 : vector<16xf32> to vector<16x1xf32>
    %cst_83 = arith.constant 1.600000e+01 : f32
    %208 = vector.broadcast %cst_83 : f32 to vector<16x1xf32>
    %209 = arith.divf %207, %208 : vector<16x1xf32>
    %cst_84 = arith.constant 9.99999997E-7 : f32
    %210 = vector.broadcast %cst_84 : f32 to vector<16x1xf32>
    %211 = arith.addf %209, %210 : vector<16x1xf32>
    %212 = math.rsqrt %211 : vector<16x1xf32>
    %213 = vector.broadcast %212 : vector<16x1xf32> to vector<16x16xf32>
    %214 = arith.mulf %187, %213 : vector<16x16xf32>
    %215 = vector.broadcast %23 : vector<1x16xf32> to vector<16x16xf32>
    %216 = arith.mulf %214, %215 : vector<16x16xf32>
    %217 = arith.mulf %48, %216 : vector<16x16xf32>
    %cst_85 = arith.constant dense<0.000000e+00> : vector<16x16xf32>
    %218 = tpu.matmul %216, %0, %cst_85 {dimension_numbers = #tpu.dot_dimension_numbers<[1], [0], [0], [1], [0, 0, 1, 1], [], []>} : vector<16x16xf32>, vector<16x16xf32>, vector<16x16xf32> -> vector<16x16xf32>
    %219 = arith.mulf %49, %218 : vector<16x16xf32>
    %220 = arith.addf %217, %219 : vector<16x16xf32>
    %c8 = arith.constant 8 : index
    %c0_86 = arith.constant 0 : index
    %221 = vector.load %arg32[%c8, %c0_86] : memref<48x16xf32, #tpu.memory_space<vmem>>, vector<16x16xf32>
    tpu.vector_store %arg32[%c8, %c0_86], %220 {strides = array<i32>} : memref<48x16xf32, #tpu.memory_space<vmem>>, vector<16x16xf32>,
    %c8_87 = arith.constant 8 : index
    %c0_88 = arith.constant 0 : index
    %222 = vector.load %arg33[%c8_87, %c0_88] : memref<48x16xf32, #tpu.memory_space<vmem>>, vector<16x16xf32>
    tpu.vector_store %arg33[%c8_87, %c0_88], %188 {strides = array<i32>} : memref<48x16xf32, #tpu.memory_space<vmem>>, vector<16x16xf32>,
    %c0_89 = arith.constant 0 : index
    %c0_90 = arith.constant 0 : index
    %223 = vector.load %arg32[%c0_89, %c0_90] : memref<48x16xf32, #tpu.memory_space<vmem>>, vector<24x16xf32>
    %c0_91 = arith.constant 0 : index
    %c0_92 = arith.constant 0 : index
    %224 = vector.load %arg33[%c0_91, %c0_92] : memref<48x16xf32, #tpu.memory_space<vmem>>, vector<24x16xf32>
    %225 = arith.truncf %204 : vector<16x16xf32> to vector<16x16xbf16>
    %226 = arith.truncf %223 : vector<24x16xf32> to vector<24x16xbf16>
    %cst_93 = arith.constant dense<0.000000e+00> : vector<16x24xf32>
    %227 = tpu.matmul %225, %226, %cst_93 {dimension_numbers = #tpu.dot_dimension_numbers<[1], [1], [0], [0], [0, 0, 1, 0], [], []>} : vector<16x16xbf16>, vector<24x16xbf16>, vector<16x24xf32> -> vector<16x24xf32>
    %cst_94 = arith.constant 2.500000e-01 : f32
    %228 = vector.broadcast %cst_94 : f32 to vector<16x24xf32>
    %229 = arith.mulf %227, %228 : vector<16x24xf32>
    %cst_95 = arith.constant dense<0xFF800000> : vector<16xf32>
    %230 = vector.multi_reduction <maximumf>, %229, %cst_95 [1] : vector<16x24xf32> to vector<16xf32>
    %231 = vector.shape_cast %230 : vector<16xf32> to vector<16x1xf32>
    %232 = vector.broadcast %231 : vector<16x1xf32> to vector<16x24xf32>
    %233 = arith.subf %229, %232 : vector<16x24xf32>
    %234 = math.exp %233 : vector<16x24xf32>
    %cst_96 = arith.constant dense<0.000000e+00> : vector<16xf32>
    %235 = vector.multi_reduction <add>, %234, %cst_96 [1] : vector<16x24xf32> to vector<16xf32>
    %236 = vector.shape_cast %235 : vector<16xf32> to vector<16x1xf32>
    %237 = tpu.reciprocal %236 {approx = true} : vector<16x1xf32> -> vector<16x1xf32>
    %238 = vector.broadcast %237 : vector<16x1xf32> to vector<16x24xf32>
    %239 = arith.mulf %234, %238 : vector<16x24xf32>
    %240 = arith.truncf %239 : vector<16x24xf32> to vector<16x24xbf16>
    %241 = arith.truncf %224 : vector<24x16xf32> to vector<24x16xbf16>
    %cst_97 = arith.constant dense<0.000000e+00> : vector<16x16xf32>
    %242 = tpu.matmul %240, %241, %cst_97 {dimension_numbers = #tpu.dot_dimension_numbers<[1], [0], [0], [1], [0, 0, 1, 1], [], []>} : vector<16x24xbf16>, vector<24x16xbf16>, vector<16x16xf32> -> vector<16x16xf32>
    %c0_98 = arith.constant 0 : index
    %c0_99 = arith.constant 0 : index
    %243 = vector.load %arg34[%c0_98, %c0_99] : memref<16x32xf32, #tpu.memory_space<vmem>>, vector<16x16xf32>
    tpu.vector_store %arg34[%c0_98, %c0_99], %242 {strides = array<i32>} : memref<16x32xf32, #tpu.memory_space<vmem>>, vector<16x16xf32>,
    %244 = vector.extract_strided_slice %185 {offsets = [0, 16], sizes = [16, 16], strides = [1, 1]} : vector<16x96xf32> to vector<16x16xf32>
    %245 = vector.extract_strided_slice %185 {offsets = [0, 48], sizes = [16, 16], strides = [1, 1]} : vector<16x96xf32> to vector<16x16xf32>
    %246 = vector.extract_strided_slice %185 {offsets = [0, 80], sizes = [16, 16], strides = [1, 1]} : vector<16x96xf32> to vector<16x16xf32>
    %247 = arith.mulf %244, %244 : vector<16x16xf32>
    %cst_100 = arith.constant dense<0.000000e+00> : vector<16xf32>
    %248 = vector.multi_reduction <add>, %247, %cst_100 [1] : vector<16x16xf32> to vector<16xf32>
    %249 = vector.shape_cast %248 : vector<16xf32> to vector<16x1xf32>
    %cst_101 = arith.constant 1.600000e+01 : f32
    %250 = vector.broadcast %cst_101 : f32 to vector<16x1xf32>
    %251 = arith.divf %249, %250 : vector<16x1xf32>
    %cst_102 = arith.constant 9.99999997E-7 : f32
    %252 = vector.broadcast %cst_102 : f32 to vector<16x1xf32>
    %253 = arith.addf %251, %252 : vector<16x1xf32>
    %254 = math.rsqrt %253 : vector<16x1xf32>
    %255 = vector.broadcast %254 : vector<16x1xf32> to vector<16x16xf32>
    %256 = arith.mulf %244, %255 : vector<16x16xf32>
    %257 = vector.broadcast %22 : vector<1x16xf32> to vector<16x16xf32>
    %258 = arith.mulf %256, %257 : vector<16x16xf32>
    %259 = arith.mulf %48, %258 : vector<16x16xf32>
    %cst_103 = arith.constant dense<0.000000e+00> : vector<16x16xf32>
    %260 = tpu.matmul %258, %0, %cst_103 {dimension_numbers = #tpu.dot_dimension_numbers<[1], [0], [0], [1], [0, 0, 1, 1], [], []>} : vector<16x16xf32>, vector<16x16xf32>, vector<16x16xf32> -> vector<16x16xf32>
    %261 = arith.mulf %49, %260 : vector<16x16xf32>
    %262 = arith.addf %259, %261 : vector<16x16xf32>
    %263 = arith.mulf %245, %245 : vector<16x16xf32>
    %cst_104 = arith.constant dense<0.000000e+00> : vector<16xf32>
    %264 = vector.multi_reduction <add>, %263, %cst_104 [1] : vector<16x16xf32> to vector<16xf32>
    %265 = vector.shape_cast %264 : vector<16xf32> to vector<16x1xf32>
    %cst_105 = arith.constant 1.600000e+01 : f32
    %266 = vector.broadcast %cst_105 : f32 to vector<16x1xf32>
    %267 = arith.divf %265, %266 : vector<16x1xf32>
    %cst_106 = arith.constant 9.99999997E-7 : f32
    %268 = vector.broadcast %cst_106 : f32 to vector<16x1xf32>
    %269 = arith.addf %267, %268 : vector<16x1xf32>
    %270 = math.rsqrt %269 : vector<16x1xf32>
    %271 = vector.broadcast %270 : vector<16x1xf32> to vector<16x16xf32>
    %272 = arith.mulf %245, %271 : vector<16x16xf32>
    %273 = vector.broadcast %23 : vector<1x16xf32> to vector<16x16xf32>
    %274 = arith.mulf %272, %273 : vector<16x16xf32>
    %275 = arith.mulf %48, %274 : vector<16x16xf32>
    %cst_107 = arith.constant dense<0.000000e+00> : vector<16x16xf32>
    %276 = tpu.matmul %274, %0, %cst_107 {dimension_numbers = #tpu.dot_dimension_numbers<[1], [0], [0], [1], [0, 0, 1, 1], [], []>} : vector<16x16xf32>, vector<16x16xf32>, vector<16x16xf32> -> vector<16x16xf32>
    %277 = arith.mulf %49, %276 : vector<16x16xf32>
    %278 = arith.addf %275, %277 : vector<16x16xf32>
    %c32 = arith.constant 32 : index
    %c0_108 = arith.constant 0 : index
    %279 = vector.load %arg32[%c32, %c0_108] : memref<48x16xf32, #tpu.memory_space<vmem>>, vector<16x16xf32>
    tpu.vector_store %arg32[%c32, %c0_108], %278 {strides = array<i32>} : memref<48x16xf32, #tpu.memory_space<vmem>>, vector<16x16xf32>,
    %c32_109 = arith.constant 32 : index
    %c0_110 = arith.constant 0 : index
    %280 = vector.load %arg33[%c32_109, %c0_110] : memref<48x16xf32, #tpu.memory_space<vmem>>, vector<16x16xf32>
    tpu.vector_store %arg33[%c32_109, %c0_110], %246 {strides = array<i32>} : memref<48x16xf32, #tpu.memory_space<vmem>>, vector<16x16xf32>,
    %c24_111 = arith.constant 24 : index
    %c0_112 = arith.constant 0 : index
    %281 = vector.load %arg32[%c24_111, %c0_112] : memref<48x16xf32, #tpu.memory_space<vmem>>, vector<24x16xf32>
    %c24_113 = arith.constant 24 : index
    %c0_114 = arith.constant 0 : index
    %282 = vector.load %arg33[%c24_113, %c0_114] : memref<48x16xf32, #tpu.memory_space<vmem>>, vector<24x16xf32>
    %283 = arith.truncf %262 : vector<16x16xf32> to vector<16x16xbf16>
    %284 = arith.truncf %281 : vector<24x16xf32> to vector<24x16xbf16>
    %cst_115 = arith.constant dense<0.000000e+00> : vector<16x24xf32>
    %285 = tpu.matmul %283, %284, %cst_115 {dimension_numbers = #tpu.dot_dimension_numbers<[1], [1], [0], [0], [0, 0, 1, 0], [], []>} : vector<16x16xbf16>, vector<24x16xbf16>, vector<16x24xf32> -> vector<16x24xf32>
    %cst_116 = arith.constant 2.500000e-01 : f32
    %286 = vector.broadcast %cst_116 : f32 to vector<16x24xf32>
    %287 = arith.mulf %285, %286 : vector<16x24xf32>
    %cst_117 = arith.constant dense<0xFF800000> : vector<16xf32>
    %288 = vector.multi_reduction <maximumf>, %287, %cst_117 [1] : vector<16x24xf32> to vector<16xf32>
    %289 = vector.shape_cast %288 : vector<16xf32> to vector<16x1xf32>
    %290 = vector.broadcast %289 : vector<16x1xf32> to vector<16x24xf32>
    %291 = arith.subf %287, %290 : vector<16x24xf32>
    %292 = math.exp %291 : vector<16x24xf32>
    %cst_118 = arith.constant dense<0.000000e+00> : vector<16xf32>
    %293 = vector.multi_reduction <add>, %292, %cst_118 [1] : vector<16x24xf32> to vector<16xf32>
    %294 = vector.shape_cast %293 : vector<16xf32> to vector<16x1xf32>
    %295 = tpu.reciprocal %294 {approx = true} : vector<16x1xf32> -> vector<16x1xf32>
    %296 = vector.broadcast %295 : vector<16x1xf32> to vector<16x24xf32>
    %297 = arith.mulf %292, %296 : vector<16x24xf32>
    %298 = arith.truncf %297 : vector<16x24xf32> to vector<16x24xbf16>
    %299 = arith.truncf %282 : vector<24x16xf32> to vector<24x16xbf16>
    %cst_119 = arith.constant dense<0.000000e+00> : vector<16x16xf32>
    %300 = tpu.matmul %298, %299, %cst_119 {dimension_numbers = #tpu.dot_dimension_numbers<[1], [0], [0], [1], [0, 0, 1, 1], [], []>} : vector<16x24xbf16>, vector<24x16xbf16>, vector<16x16xf32> -> vector<16x16xf32>
    %c0_120 = arith.constant 0 : index
    %c16 = arith.constant 16 : index
    %301 = vector.load %arg34[%c0_120, %c16] : memref<16x32xf32, #tpu.memory_space<vmem>>, vector<16x16xf32>
    tpu.vector_store %arg34[%c0_120, %c16], %300 {strides = array<i32>} : memref<16x32xf32, #tpu.memory_space<vmem>>, vector<16x16xf32>,
    %c0_121 = arith.constant 0 : index
    %c0_122 = arith.constant 0 : index
    %302 = vector.load %arg34[%c0_121, %c0_122] : memref<16x32xf32, #tpu.memory_space<vmem>>, vector<16x32xf32>
    %303 = vector.broadcast %28 : vector<1x32xf32> to vector<16x32xf32>
    %304 = arith.mulf %303, %302 : vector<16x32xf32>
    %305 = arith.addf %39, %304 : vector<16x32xf32>
    %cst_123 = arith.constant dense<0.000000e+00> : vector<16xf32>
    %306 = vector.multi_reduction <add>, %305, %cst_123 [1] : vector<16x32xf32> to vector<16xf32>
    %307 = vector.shape_cast %306 : vector<16xf32> to vector<16x1xf32>
    %cst_124 = arith.constant 3.200000e+01 : f32
    %308 = vector.broadcast %cst_124 : f32 to vector<16x1xf32>
    %309 = arith.divf %307, %308 : vector<16x1xf32>
    %310 = vector.broadcast %309 : vector<16x1xf32> to vector<16x32xf32>
    %311 = arith.subf %305, %310 : vector<16x32xf32>
    %312 = arith.mulf %311, %311 : vector<16x32xf32>
    %cst_125 = arith.constant dense<0.000000e+00> : vector<16xf32>
    %313 = vector.multi_reduction <add>, %312, %cst_125 [1] : vector<16x32xf32> to vector<16xf32>
    %314 = vector.shape_cast %313 : vector<16xf32> to vector<16x1xf32>
    %cst_126 = arith.constant 3.200000e+01 : f32
    %315 = vector.broadcast %cst_126 : f32 to vector<16x1xf32>
    %316 = arith.divf %314, %315 : vector<16x1xf32>
    %317 = vector.broadcast %309 : vector<16x1xf32> to vector<16x32xf32>
    %318 = arith.subf %305, %317 : vector<16x32xf32>
    %cst_127 = arith.constant 9.99999997E-7 : f32
    %319 = vector.broadcast %cst_127 : f32 to vector<16x1xf32>
    %320 = arith.addf %316, %319 : vector<16x1xf32>
    %321 = math.rsqrt %320 : vector<16x1xf32>
    %322 = vector.broadcast %321 : vector<16x1xf32> to vector<16x32xf32>
    %323 = arith.mulf %318, %322 : vector<16x32xf32>
    %cst_128 = arith.constant 1.000000e+00 : f32
    %324 = vector.broadcast %cst_128 : f32 to vector<1x32xf32>
    %325 = arith.addf %324, %27 : vector<1x32xf32>
    %326 = vector.broadcast %325 : vector<1x32xf32> to vector<16x32xf32>
    %327 = arith.mulf %326, %323 : vector<16x32xf32>
    %328 = vector.broadcast %26 : vector<1x32xf32> to vector<16x32xf32>
    %329 = arith.addf %327, %328 : vector<16x32xf32>
    %c0_129 = arith.constant 0 : index
    %c0_130 = arith.constant 0 : index
    %330 = vector.load %arg14[%c0_129, %c0_130] : memref<32x96xf32, #tpu.memory_space<vmem>>, vector<32x96xf32>
    %331 = arith.truncf %329 : vector<16x32xf32> to vector<16x32xbf16>
    %332 = arith.truncf %330 : vector<32x96xf32> to vector<32x96xbf16>
    %cst_131 = arith.constant dense<0.000000e+00> : vector<16x96xf32>
    %333 = tpu.matmul %331, %332, %cst_131 {dimension_numbers = #tpu.dot_dimension_numbers<[1], [0], [0], [1], [0, 0, 1, 1], [], []>} : vector<16x32xbf16>, vector<32x96xbf16>, vector<16x96xf32> -> vector<16x96xf32>
    %c0_132 = arith.constant 0 : index
    %c0_133 = arith.constant 0 : index
    %334 = vector.load %arg15[%c0_132, %c0_133] : memref<1x96xf32, #tpu.memory_space<vmem>>, vector<1x96xf32>
    %335 = vector.broadcast %334 : vector<1x96xf32> to vector<16x96xf32>
    %336 = arith.addf %333, %335 : vector<16x96xf32>
    %337 = vector.extract_strided_slice %336 {offsets = [0, 0], sizes = [16, 16], strides = [1, 1]} : vector<16x96xf32> to vector<16x16xf32>
    %338 = vector.extract_strided_slice %336 {offsets = [0, 32], sizes = [16, 16], strides = [1, 1]} : vector<16x96xf32> to vector<16x16xf32>
    %339 = vector.extract_strided_slice %336 {offsets = [0, 64], sizes = [16, 16], strides = [1, 1]} : vector<16x96xf32> to vector<16x16xf32>
    %340 = arith.mulf %337, %337 : vector<16x16xf32>
    %cst_134 = arith.constant dense<0.000000e+00> : vector<16xf32>
    %341 = vector.multi_reduction <add>, %340, %cst_134 [1] : vector<16x16xf32> to vector<16xf32>
    %342 = vector.shape_cast %341 : vector<16xf32> to vector<16x1xf32>
    %cst_135 = arith.constant 1.600000e+01 : f32
    %343 = vector.broadcast %cst_135 : f32 to vector<16x1xf32>
    %344 = arith.divf %342, %343 : vector<16x1xf32>
    %cst_136 = arith.constant 9.99999997E-7 : f32
    %345 = vector.broadcast %cst_136 : f32 to vector<16x1xf32>
    %346 = arith.addf %344, %345 : vector<16x1xf32>
    %347 = math.rsqrt %346 : vector<16x1xf32>
    %348 = vector.broadcast %347 : vector<16x1xf32> to vector<16x16xf32>
    %349 = arith.mulf %337, %348 : vector<16x16xf32>
    %350 = vector.broadcast %22 : vector<1x16xf32> to vector<16x16xf32>
    %351 = arith.mulf %349, %350 : vector<16x16xf32>
    %352 = arith.mulf %48, %351 : vector<16x16xf32>
    %cst_137 = arith.constant dense<0.000000e+00> : vector<16x16xf32>
    %353 = tpu.matmul %351, %0, %cst_137 {dimension_numbers = #tpu.dot_dimension_numbers<[1], [0], [0], [1], [0, 0, 1, 1], [], []>} : vector<16x16xf32>, vector<16x16xf32>, vector<16x16xf32> -> vector<16x16xf32>
    %354 = arith.mulf %49, %353 : vector<16x16xf32>
    %355 = arith.addf %352, %354 : vector<16x16xf32>
    %356 = arith.mulf %338, %338 : vector<16x16xf32>
    %cst_138 = arith.constant dense<0.000000e+00> : vector<16xf32>
    %357 = vector.multi_reduction <add>, %356, %cst_138 [1] : vector<16x16xf32> to vector<16xf32>
    %358 = vector.shape_cast %357 : vector<16xf32> to vector<16x1xf32>
    %cst_139 = arith.constant 1.600000e+01 : f32
    %359 = vector.broadcast %cst_139 : f32 to vector<16x1xf32>
    %360 = arith.divf %358, %359 : vector<16x1xf32>
    %cst_140 = arith.constant 9.99999997E-7 : f32
    %361 = vector.broadcast %cst_140 : f32 to vector<16x1xf32>
    %362 = arith.addf %360, %361 : vector<16x1xf32>
    %363 = math.rsqrt %362 : vector<16x1xf32>
    %364 = vector.broadcast %363 : vector<16x1xf32> to vector<16x16xf32>
    %365 = arith.mulf %338, %364 : vector<16x16xf32>
    %366 = vector.broadcast %23 : vector<1x16xf32> to vector<16x16xf32>
    %367 = arith.mulf %365, %366 : vector<16x16xf32>
    %368 = arith.mulf %48, %367 : vector<16x16xf32>
    %cst_141 = arith.constant dense<0.000000e+00> : vector<16x16xf32>
    %369 = tpu.matmul %367, %0, %cst_141 {dimension_numbers = #tpu.dot_dimension_numbers<[1], [0], [0], [1], [0, 0, 1, 1], [], []>} : vector<16x16xf32>, vector<16x16xf32>, vector<16x16xf32> -> vector<16x16xf32>
    %370 = arith.mulf %49, %369 : vector<16x16xf32>
    %371 = arith.addf %368, %370 : vector<16x16xf32>
    %c8_142 = arith.constant 8 : index
    %c0_143 = arith.constant 0 : index
    %372 = vector.load %arg32[%c8_142, %c0_143] : memref<48x16xf32, #tpu.memory_space<vmem>>, vector<16x16xf32>
    tpu.vector_store %arg32[%c8_142, %c0_143], %371 {strides = array<i32>} : memref<48x16xf32, #tpu.memory_space<vmem>>, vector<16x16xf32>,
    %c8_144 = arith.constant 8 : index
    %c0_145 = arith.constant 0 : index
    %373 = vector.load %arg33[%c8_144, %c0_145] : memref<48x16xf32, #tpu.memory_space<vmem>>, vector<16x16xf32>
    tpu.vector_store %arg33[%c8_144, %c0_145], %339 {strides = array<i32>} : memref<48x16xf32, #tpu.memory_space<vmem>>, vector<16x16xf32>,
    %c0_146 = arith.constant 0 : index
    %c0_147 = arith.constant 0 : index
    %374 = vector.load %arg32[%c0_146, %c0_147] : memref<48x16xf32, #tpu.memory_space<vmem>>, vector<24x16xf32>
    %c0_148 = arith.constant 0 : index
    %c0_149 = arith.constant 0 : index
    %375 = vector.load %arg33[%c0_148, %c0_149] : memref<48x16xf32, #tpu.memory_space<vmem>>, vector<24x16xf32>
    %376 = arith.truncf %355 : vector<16x16xf32> to vector<16x16xbf16>
    %377 = arith.truncf %374 : vector<24x16xf32> to vector<24x16xbf16>
    %cst_150 = arith.constant dense<0.000000e+00> : vector<16x24xf32>
    %378 = tpu.matmul %376, %377, %cst_150 {dimension_numbers = #tpu.dot_dimension_numbers<[1], [1], [0], [0], [0, 0, 1, 0], [], []>} : vector<16x16xbf16>, vector<24x16xbf16>, vector<16x24xf32> -> vector<16x24xf32>
    %cst_151 = arith.constant 2.500000e-01 : f32
    %379 = vector.broadcast %cst_151 : f32 to vector<16x24xf32>
    %380 = arith.mulf %378, %379 : vector<16x24xf32>
    %cst_152 = arith.constant dense<0xFF800000> : vector<16xf32>
    %381 = vector.multi_reduction <maximumf>, %380, %cst_152 [1] : vector<16x24xf32> to vector<16xf32>
    %382 = vector.shape_cast %381 : vector<16xf32> to vector<16x1xf32>
    %383 = vector.broadcast %382 : vector<16x1xf32> to vector<16x24xf32>
    %384 = arith.subf %380, %383 : vector<16x24xf32>
    %385 = math.exp %384 : vector<16x24xf32>
    %cst_153 = arith.constant dense<0.000000e+00> : vector<16xf32>
    %386 = vector.multi_reduction <add>, %385, %cst_153 [1] : vector<16x24xf32> to vector<16xf32>
    %387 = vector.shape_cast %386 : vector<16xf32> to vector<16x1xf32>
    %388 = tpu.reciprocal %387 {approx = true} : vector<16x1xf32> -> vector<16x1xf32>
    %389 = vector.broadcast %388 : vector<16x1xf32> to vector<16x24xf32>
    %390 = arith.mulf %385, %389 : vector<16x24xf32>
    %391 = arith.truncf %390 : vector<16x24xf32> to vector<16x24xbf16>
    %392 = arith.truncf %375 : vector<24x16xf32> to vector<24x16xbf16>
    %cst_154 = arith.constant dense<0.000000e+00> : vector<16x16xf32>
    %393 = tpu.matmul %391, %392, %cst_154 {dimension_numbers = #tpu.dot_dimension_numbers<[1], [0], [0], [1], [0, 0, 1, 1], [], []>} : vector<16x24xbf16>, vector<24x16xbf16>, vector<16x16xf32> -> vector<16x16xf32>
    %c0_155 = arith.constant 0 : index
    %c0_156 = arith.constant 0 : index
    %394 = vector.load %arg34[%c0_155, %c0_156] : memref<16x32xf32, #tpu.memory_space<vmem>>, vector<16x16xf32>
    tpu.vector_store %arg34[%c0_155, %c0_156], %393 {strides = array<i32>} : memref<16x32xf32, #tpu.memory_space<vmem>>, vector<16x16xf32>,
    %395 = arith.truncf %99 : vector<8x16xf32> to vector<8x16xbf16>
    %396 = arith.truncf %374 : vector<24x16xf32> to vector<24x16xbf16>
    %cst_157 = arith.constant dense<0.000000e+00> : vector<8x24xf32>
    %397 = tpu.matmul %395, %396, %cst_157 {dimension_numbers = #tpu.dot_dimension_numbers<[1], [1], [0], [0], [0, 0, 1, 0], [], []>} : vector<8x16xbf16>, vector<24x16xbf16>, vector<8x24xf32> -> vector<8x24xf32>
    %cst_158 = arith.constant 2.500000e-01 : f32
    %398 = vector.broadcast %cst_158 : f32 to vector<8x24xf32>
    %399 = arith.mulf %397, %398 : vector<8x24xf32>
    %cst_159 = arith.constant dense<0xFF800000> : vector<8xf32>
    %400 = vector.multi_reduction <maximumf>, %399, %cst_159 [1] : vector<8x24xf32> to vector<8xf32>
    %401 = vector.shape_cast %400 : vector<8xf32> to vector<8x1xf32>
    %402 = vector.broadcast %401 : vector<8x1xf32> to vector<8x24xf32>
    %403 = arith.subf %399, %402 : vector<8x24xf32>
    %404 = math.exp %403 : vector<8x24xf32>
    %cst_160 = arith.constant dense<0.000000e+00> : vector<8xf32>
    %405 = vector.multi_reduction <add>, %404, %cst_160 [1] : vector<8x24xf32> to vector<8xf32>
    %406 = vector.shape_cast %405 : vector<8xf32> to vector<8x1xf32>
    %407 = tpu.reciprocal %406 {approx = true} : vector<8x1xf32> -> vector<8x1xf32>
    %408 = vector.broadcast %407 : vector<8x1xf32> to vector<8x24xf32>
    %409 = arith.mulf %404, %408 : vector<8x24xf32>
    %410 = arith.truncf %409 : vector<8x24xf32> to vector<8x24xbf16>
    %411 = arith.truncf %375 : vector<24x16xf32> to vector<24x16xbf16>
    %cst_161 = arith.constant dense<0.000000e+00> : vector<8x16xf32>
    %412 = tpu.matmul %410, %411, %cst_161 {dimension_numbers = #tpu.dot_dimension_numbers<[1], [0], [0], [1], [0, 0, 1, 1], [], []>} : vector<8x24xbf16>, vector<24x16xbf16>, vector<8x16xf32> -> vector<8x16xf32>
    %c0_162 = arith.constant 0 : index
    %c0_163 = arith.constant 0 : index
    %413 = vector.load %arg35[%c0_162, %c0_163] : memref<8x32xf32, #tpu.memory_space<vmem>>, vector<8x16xf32>
    tpu.vector_store %arg35[%c0_162, %c0_163], %412 {strides = array<i32>} : memref<8x32xf32, #tpu.memory_space<vmem>>, vector<8x16xf32>,
    %414 = vector.extract_strided_slice %336 {offsets = [0, 16], sizes = [16, 16], strides = [1, 1]} : vector<16x96xf32> to vector<16x16xf32>
    %415 = vector.extract_strided_slice %336 {offsets = [0, 48], sizes = [16, 16], strides = [1, 1]} : vector<16x96xf32> to vector<16x16xf32>
    %416 = vector.extract_strided_slice %336 {offsets = [0, 80], sizes = [16, 16], strides = [1, 1]} : vector<16x96xf32> to vector<16x16xf32>
    %417 = arith.mulf %414, %414 : vector<16x16xf32>
    %cst_164 = arith.constant dense<0.000000e+00> : vector<16xf32>
    %418 = vector.multi_reduction <add>, %417, %cst_164 [1] : vector<16x16xf32> to vector<16xf32>
    %419 = vector.shape_cast %418 : vector<16xf32> to vector<16x1xf32>
    %cst_165 = arith.constant 1.600000e+01 : f32
    %420 = vector.broadcast %cst_165 : f32 to vector<16x1xf32>
    %421 = arith.divf %419, %420 : vector<16x1xf32>
    %cst_166 = arith.constant 9.99999997E-7 : f32
    %422 = vector.broadcast %cst_166 : f32 to vector<16x1xf32>
    %423 = arith.addf %421, %422 : vector<16x1xf32>
    %424 = math.rsqrt %423 : vector<16x1xf32>
    %425 = vector.broadcast %424 : vector<16x1xf32> to vector<16x16xf32>
    %426 = arith.mulf %414, %425 : vector<16x16xf32>
    %427 = vector.broadcast %22 : vector<1x16xf32> to vector<16x16xf32>
    %428 = arith.mulf %426, %427 : vector<16x16xf32>
    %429 = arith.mulf %48, %428 : vector<16x16xf32>
    %cst_167 = arith.constant dense<0.000000e+00> : vector<16x16xf32>
    %430 = tpu.matmul %428, %0, %cst_167 {dimension_numbers = #tpu.dot_dimension_numbers<[1], [0], [0], [1], [0, 0, 1, 1], [], []>} : vector<16x16xf32>, vector<16x16xf32>, vector<16x16xf32> -> vector<16x16xf32>
    %431 = arith.mulf %49, %430 : vector<16x16xf32>
    %432 = arith.addf %429, %431 : vector<16x16xf32>
    %433 = arith.mulf %415, %415 : vector<16x16xf32>
    %cst_168 = arith.constant dense<0.000000e+00> : vector<16xf32>
    %434 = vector.multi_reduction <add>, %433, %cst_168 [1] : vector<16x16xf32> to vector<16xf32>
    %435 = vector.shape_cast %434 : vector<16xf32> to vector<16x1xf32>
    %cst_169 = arith.constant 1.600000e+01 : f32
    %436 = vector.broadcast %cst_169 : f32 to vector<16x1xf32>
    %437 = arith.divf %435, %436 : vector<16x1xf32>
    %cst_170 = arith.constant 9.99999997E-7 : f32
    %438 = vector.broadcast %cst_170 : f32 to vector<16x1xf32>
    %439 = arith.addf %437, %438 : vector<16x1xf32>
    %440 = math.rsqrt %439 : vector<16x1xf32>
    %441 = vector.broadcast %440 : vector<16x1xf32> to vector<16x16xf32>
    %442 = arith.mulf %415, %441 : vector<16x16xf32>
    %443 = vector.broadcast %23 : vector<1x16xf32> to vector<16x16xf32>
    %444 = arith.mulf %442, %443 : vector<16x16xf32>
    %445 = arith.mulf %48, %444 : vector<16x16xf32>
    %cst_171 = arith.constant dense<0.000000e+00> : vector<16x16xf32>
    %446 = tpu.matmul %444, %0, %cst_171 {dimension_numbers = #tpu.dot_dimension_numbers<[1], [0], [0], [1], [0, 0, 1, 1], [], []>} : vector<16x16xf32>, vector<16x16xf32>, vector<16x16xf32> -> vector<16x16xf32>
    %447 = arith.mulf %49, %446 : vector<16x16xf32>
    %448 = arith.addf %445, %447 : vector<16x16xf32>
    %c32_172 = arith.constant 32 : index
    %c0_173 = arith.constant 0 : index
    %449 = vector.load %arg32[%c32_172, %c0_173] : memref<48x16xf32, #tpu.memory_space<vmem>>, vector<16x16xf32>
    tpu.vector_store %arg32[%c32_172, %c0_173], %448 {strides = array<i32>} : memref<48x16xf32, #tpu.memory_space<vmem>>, vector<16x16xf32>,
    %c32_174 = arith.constant 32 : index
    %c0_175 = arith.constant 0 : index
    %450 = vector.load %arg33[%c32_174, %c0_175] : memref<48x16xf32, #tpu.memory_space<vmem>>, vector<16x16xf32>
    tpu.vector_store %arg33[%c32_174, %c0_175], %416 {strides = array<i32>} : memref<48x16xf32, #tpu.memory_space<vmem>>, vector<16x16xf32>,
    %c24_176 = arith.constant 24 : index
    %c0_177 = arith.constant 0 : index
    %451 = vector.load %arg32[%c24_176, %c0_177] : memref<48x16xf32, #tpu.memory_space<vmem>>, vector<24x16xf32>
    %c24_178 = arith.constant 24 : index
    %c0_179 = arith.constant 0 : index
    %452 = vector.load %arg33[%c24_178, %c0_179] : memref<48x16xf32, #tpu.memory_space<vmem>>, vector<24x16xf32>
    %453 = arith.truncf %432 : vector<16x16xf32> to vector<16x16xbf16>
    %454 = arith.truncf %451 : vector<24x16xf32> to vector<24x16xbf16>
    %cst_180 = arith.constant dense<0.000000e+00> : vector<16x24xf32>
    %455 = tpu.matmul %453, %454, %cst_180 {dimension_numbers = #tpu.dot_dimension_numbers<[1], [1], [0], [0], [0, 0, 1, 0], [], []>} : vector<16x16xbf16>, vector<24x16xbf16>, vector<16x24xf32> -> vector<16x24xf32>
    %cst_181 = arith.constant 2.500000e-01 : f32
    %456 = vector.broadcast %cst_181 : f32 to vector<16x24xf32>
    %457 = arith.mulf %455, %456 : vector<16x24xf32>
    %cst_182 = arith.constant dense<0xFF800000> : vector<16xf32>
    %458 = vector.multi_reduction <maximumf>, %457, %cst_182 [1] : vector<16x24xf32> to vector<16xf32>
    %459 = vector.shape_cast %458 : vector<16xf32> to vector<16x1xf32>
    %460 = vector.broadcast %459 : vector<16x1xf32> to vector<16x24xf32>
    %461 = arith.subf %457, %460 : vector<16x24xf32>
    %462 = math.exp %461 : vector<16x24xf32>
    %cst_183 = arith.constant dense<0.000000e+00> : vector<16xf32>
    %463 = vector.multi_reduction <add>, %462, %cst_183 [1] : vector<16x24xf32> to vector<16xf32>
    %464 = vector.shape_cast %463 : vector<16xf32> to vector<16x1xf32>
    %465 = tpu.reciprocal %464 {approx = true} : vector<16x1xf32> -> vector<16x1xf32>
    %466 = vector.broadcast %465 : vector<16x1xf32> to vector<16x24xf32>
    %467 = arith.mulf %462, %466 : vector<16x24xf32>
    %468 = arith.truncf %467 : vector<16x24xf32> to vector<16x24xbf16>
    %469 = arith.truncf %452 : vector<24x16xf32> to vector<24x16xbf16>
    %cst_184 = arith.constant dense<0.000000e+00> : vector<16x16xf32>
    %470 = tpu.matmul %468, %469, %cst_184 {dimension_numbers = #tpu.dot_dimension_numbers<[1], [0], [0], [1], [0, 0, 1, 1], [], []>} : vector<16x24xbf16>, vector<24x16xbf16>, vector<16x16xf32> -> vector<16x16xf32>
    %c0_185 = arith.constant 0 : index
    %c16_186 = arith.constant 16 : index
    %471 = vector.load %arg34[%c0_185, %c16_186] : memref<16x32xf32, #tpu.memory_space<vmem>>, vector<16x16xf32>
    tpu.vector_store %arg34[%c0_185, %c16_186], %470 {strides = array<i32>} : memref<16x32xf32, #tpu.memory_space<vmem>>, vector<16x16xf32>,
    %472 = arith.truncf %136 : vector<8x16xf32> to vector<8x16xbf16>
    %473 = arith.truncf %451 : vector<24x16xf32> to vector<24x16xbf16>
    %cst_187 = arith.constant dense<0.000000e+00> : vector<8x24xf32>
    %474 = tpu.matmul %472, %473, %cst_187 {dimension_numbers = #tpu.dot_dimension_numbers<[1], [1], [0], [0], [0, 0, 1, 0], [], []>} : vector<8x16xbf16>, vector<24x16xbf16>, vector<8x24xf32> -> vector<8x24xf32>
    %cst_188 = arith.constant 2.500000e-01 : f32
    %475 = vector.broadcast %cst_188 : f32 to vector<8x24xf32>
    %476 = arith.mulf %474, %475 : vector<8x24xf32>
    %cst_189 = arith.constant dense<0xFF800000> : vector<8xf32>
    %477 = vector.multi_reduction <maximumf>, %476, %cst_189 [1] : vector<8x24xf32> to vector<8xf32>
    %478 = vector.shape_cast %477 : vector<8xf32> to vector<8x1xf32>
    %479 = vector.broadcast %478 : vector<8x1xf32> to vector<8x24xf32>
    %480 = arith.subf %476, %479 : vector<8x24xf32>
    %481 = math.exp %480 : vector<8x24xf32>
    %cst_190 = arith.constant dense<0.000000e+00> : vector<8xf32>
    %482 = vector.multi_reduction <add>, %481, %cst_190 [1] : vector<8x24xf32> to vector<8xf32>
    %483 = vector.shape_cast %482 : vector<8xf32> to vector<8x1xf32>
    %484 = tpu.reciprocal %483 {approx = true} : vector<8x1xf32> -> vector<8x1xf32>
    %485 = vector.broadcast %484 : vector<8x1xf32> to vector<8x24xf32>
    %486 = arith.mulf %481, %485 : vector<8x24xf32>
    %487 = arith.truncf %486 : vector<8x24xf32> to vector<8x24xbf16>
    %488 = arith.truncf %452 : vector<24x16xf32> to vector<24x16xbf16>
    %cst_191 = arith.constant dense<0.000000e+00> : vector<8x16xf32>
    %489 = tpu.matmul %487, %488, %cst_191 {dimension_numbers = #tpu.dot_dimension_numbers<[1], [0], [0], [1], [0, 0, 1, 1], [], []>} : vector<8x24xbf16>, vector<24x16xbf16>, vector<8x16xf32> -> vector<8x16xf32>
    %c0_192 = arith.constant 0 : index
    %c16_193 = arith.constant 16 : index
    %490 = vector.load %arg35[%c0_192, %c16_193] : memref<8x32xf32, #tpu.memory_space<vmem>>, vector<8x16xf32>
    tpu.vector_store %arg35[%c0_192, %c16_193], %489 {strides = array<i32>} : memref<8x32xf32, #tpu.memory_space<vmem>>, vector<8x16xf32>,
    %c0_194 = arith.constant 0 : index
    %c0_195 = arith.constant 0 : index
    %491 = vector.load %arg34[%c0_194, %c0_195] : memref<16x32xf32, #tpu.memory_space<vmem>>, vector<16x32xf32>
    %c0_196 = arith.constant 0 : index
    %c0_197 = arith.constant 0 : index
    %492 = vector.load %arg35[%c0_196, %c0_197] : memref<8x32xf32, #tpu.memory_space<vmem>>, vector<8x32xf32>
    %c0_198 = arith.constant 0 : index
    %c0_199 = arith.constant 0 : index
    %493 = vector.load %arg18[%c0_198, %c0_199] : memref<32x32xf32, #tpu.memory_space<vmem>>, vector<32x32xf32>
    %494 = arith.truncf %491 : vector<16x32xf32> to vector<16x32xbf16>
    %495 = arith.truncf %493 : vector<32x32xf32> to vector<32x32xbf16>
    %cst_200 = arith.constant dense<0.000000e+00> : vector<16x32xf32>
    %496 = tpu.matmul %494, %495, %cst_200 {dimension_numbers = #tpu.dot_dimension_numbers<[1], [0], [0], [1], [0, 0, 1, 1], [], []>} : vector<16x32xbf16>, vector<32x32xbf16>, vector<16x32xf32> -> vector<16x32xf32>
    %c0_201 = arith.constant 0 : index
    %c0_202 = arith.constant 0 : index
    %497 = vector.load %arg19[%c0_201, %c0_202] : memref<1x32xf32, #tpu.memory_space<vmem>>, vector<1x32xf32>
    %498 = vector.broadcast %497 : vector<1x32xf32> to vector<16x32xf32>
    %499 = arith.addf %496, %498 : vector<16x32xf32>
    %500 = vector.broadcast %28 : vector<1x32xf32> to vector<16x32xf32>
    %501 = arith.mulf %500, %499 : vector<16x32xf32>
    %502 = arith.addf %305, %501 : vector<16x32xf32>
    %cst_203 = arith.constant dense<0.000000e+00> : vector<16xf32>
    %503 = vector.multi_reduction <add>, %502, %cst_203 [1] : vector<16x32xf32> to vector<16xf32>
    %504 = vector.shape_cast %503 : vector<16xf32> to vector<16x1xf32>
    %cst_204 = arith.constant 3.200000e+01 : f32
    %505 = vector.broadcast %cst_204 : f32 to vector<16x1xf32>
    %506 = arith.divf %504, %505 : vector<16x1xf32>
    %507 = vector.broadcast %506 : vector<16x1xf32> to vector<16x32xf32>
    %508 = arith.subf %502, %507 : vector<16x32xf32>
    %509 = arith.mulf %508, %508 : vector<16x32xf32>
    %cst_205 = arith.constant dense<0.000000e+00> : vector<16xf32>
    %510 = vector.multi_reduction <add>, %509, %cst_205 [1] : vector<16x32xf32> to vector<16xf32>
    %511 = vector.shape_cast %510 : vector<16xf32> to vector<16x1xf32>
    %cst_206 = arith.constant 3.200000e+01 : f32
    %512 = vector.broadcast %cst_206 : f32 to vector<16x1xf32>
    %513 = arith.divf %511, %512 : vector<16x1xf32>
    %514 = vector.broadcast %506 : vector<16x1xf32> to vector<16x32xf32>
    %515 = arith.subf %502, %514 : vector<16x32xf32>
    %cst_207 = arith.constant 9.99999997E-7 : f32
    %516 = vector.broadcast %cst_207 : f32 to vector<16x1xf32>
    %517 = arith.addf %513, %516 : vector<16x1xf32>
    %518 = math.rsqrt %517 : vector<16x1xf32>
    %519 = vector.broadcast %518 : vector<16x1xf32> to vector<16x32xf32>
    %520 = arith.mulf %515, %519 : vector<16x32xf32>
    %cst_208 = arith.constant 1.000000e+00 : f32
    %521 = vector.broadcast %cst_208 : f32 to vector<1x32xf32>
    %522 = arith.addf %521, %30 : vector<1x32xf32>
    %523 = vector.broadcast %522 : vector<1x32xf32> to vector<16x32xf32>
    %524 = arith.mulf %523, %520 : vector<16x32xf32>
    %525 = vector.broadcast %29 : vector<1x32xf32> to vector<16x32xf32>
    %526 = arith.addf %524, %525 : vector<16x32xf32>
    %c0_209 = arith.constant 0 : index
    %c0_210 = arith.constant 0 : index
    %527 = vector.load %arg22[%c0_209, %c0_210] : memref<32x128xf32, #tpu.memory_space<vmem>>, vector<32x128xf32>
    %528 = arith.truncf %526 : vector<16x32xf32> to vector<16x32xbf16>
    %529 = arith.truncf %527 : vector<32x128xf32> to vector<32x128xbf16>
    %cst_211 = arith.constant dense<0.000000e+00> : vector<16x128xf32>
    %530 = tpu.matmul %528, %529, %cst_211 {dimension_numbers = #tpu.dot_dimension_numbers<[1], [0], [0], [1], [0, 0, 1, 1], [], []>} : vector<16x32xbf16>, vector<32x128xbf16>, vector<16x128xf32> -> vector<16x128xf32>
    %c0_212 = arith.constant 0 : index
    %c0_213 = arith.constant 0 : index
    %531 = vector.load %arg23[%c0_212, %c0_213] : memref<1x128xf32, #tpu.memory_space<vmem>>, vector<1x128xf32>
    %532 = vector.broadcast %531 : vector<1x128xf32> to vector<16x128xf32>
    %533 = arith.addf %530, %532 : vector<16x128xf32>
    %534 = arith.mulf %533, %533 : vector<16x128xf32>
    %535 = arith.mulf %533, %534 : vector<16x128xf32>
    %cst_214 = arith.constant 4.471500e-02 : f32
    %536 = vector.broadcast %cst_214 : f32 to vector<16x128xf32>
    %537 = arith.mulf %536, %535 : vector<16x128xf32>
    %538 = arith.addf %533, %537 : vector<16x128xf32>
    %cst_215 = arith.constant 0.797884583 : f32
    %539 = vector.broadcast %cst_215 : f32 to vector<16x128xf32>
    %540 = arith.mulf %539, %538 : vector<16x128xf32>
    %541 = math.tanh %540 : vector<16x128xf32>
    %cst_216 = arith.constant 1.000000e+00 : f32
    %542 = vector.broadcast %cst_216 : f32 to vector<16x128xf32>
    %543 = arith.addf %542, %541 : vector<16x128xf32>
    %cst_217 = arith.constant 5.000000e-01 : f32
    %544 = vector.broadcast %cst_217 : f32 to vector<16x128xf32>
    %545 = arith.mulf %544, %543 : vector<16x128xf32>
    %546 = arith.mulf %533, %545 : vector<16x128xf32>
    %c0_218 = arith.constant 0 : index
    %c0_219 = arith.constant 0 : index
    %547 = vector.load %arg24[%c0_218, %c0_219] : memref<128x32xf32, #tpu.memory_space<vmem>>, vector<128x32xf32>
    %548 = arith.truncf %546 : vector<16x128xf32> to vector<16x128xbf16>
    %549 = arith.truncf %547 : vector<128x32xf32> to vector<128x32xbf16>
    %cst_220 = arith.constant dense<0.000000e+00> : vector<16x32xf32>
    %550 = tpu.matmul %548, %549, %cst_220 {dimension_numbers = #tpu.dot_dimension_numbers<[1], [0], [0], [1], [0, 0, 1, 1], [], []>} : vector<16x128xbf16>, vector<128x32xbf16>, vector<16x32xf32> -> vector<16x32xf32>
    %c0_221 = arith.constant 0 : index
    %c0_222 = arith.constant 0 : index
    %551 = vector.load %arg25[%c0_221, %c0_222] : memref<1x32xf32, #tpu.memory_space<vmem>>, vector<1x32xf32>
    %552 = vector.broadcast %551 : vector<1x32xf32> to vector<16x32xf32>
    %553 = arith.addf %550, %552 : vector<16x32xf32>
    %554 = vector.broadcast %31 : vector<1x32xf32> to vector<16x32xf32>
    %555 = arith.mulf %554, %553 : vector<16x32xf32>
    %556 = arith.addf %502, %555 : vector<16x32xf32>
    %c0_223 = arith.constant 0 : index
    %c0_224 = arith.constant 0 : index
    %c0_225 = arith.constant 0 : index
    %557 = vector.load %arg30[%c0_223, %c0_224, %c0_225] : memref<2x16x32xf32, #tpu.memory_space<vmem>>, vector<1x16x32xf32>
    %558 = vector.shape_cast %557 : vector<1x16x32xf32> to vector<16x32xf32>
    %559 = vector.shape_cast %556 : vector<16x32xf32> to vector<1x16x32xf32>
    tpu.vector_store %arg30[%c0_223, %c0_224, %c0_225], %559 {strides = array<i32>} : memref<2x16x32xf32, #tpu.memory_space<vmem>>, vector<1x16x32xf32>,
    %c0_226 = arith.constant 0 : index
    %c0_227 = arith.constant 0 : index
    %560 = vector.load %arg20[%c0_226, %c0_227] : memref<32x32xf32, #tpu.memory_space<vmem>>, vector<32x32xf32>
    %561 = arith.truncf %492 : vector<8x32xf32> to vector<8x32xbf16>
    %562 = arith.truncf %560 : vector<32x32xf32> to vector<32x32xbf16>
    %cst_228 = arith.constant dense<0.000000e+00> : vector<8x32xf32>
    %563 = tpu.matmul %561, %562, %cst_228 {dimension_numbers = #tpu.dot_dimension_numbers<[1], [0], [0], [1], [0, 0, 1, 1], [], []>} : vector<8x32xbf16>, vector<32x32xbf16>, vector<8x32xf32> -> vector<8x32xf32>
    %c0_229 = arith.constant 0 : index
    %c0_230 = arith.constant 0 : index
    %564 = vector.load %arg21[%c0_229, %c0_230] : memref<1x32xf32, #tpu.memory_space<vmem>>, vector<1x32xf32>
    %565 = vector.broadcast %564 : vector<1x32xf32> to vector<8x32xf32>
    %566 = arith.addf %563, %565 : vector<8x32xf32>
    %567 = vector.broadcast %34 : vector<1x32xf32> to vector<8x32xf32>
    %568 = arith.mulf %567, %566 : vector<8x32xf32>
    %569 = arith.addf %41, %568 : vector<8x32xf32>
    %cst_231 = arith.constant dense<0.000000e+00> : vector<8xf32>
    %570 = vector.multi_reduction <add>, %569, %cst_231 [1] : vector<8x32xf32> to vector<8xf32>
    %571 = vector.shape_cast %570 : vector<8xf32> to vector<8x1xf32>
    %cst_232 = arith.constant 3.200000e+01 : f32
    %572 = vector.broadcast %cst_232 : f32 to vector<8x1xf32>
    %573 = arith.divf %571, %572 : vector<8x1xf32>
    %574 = vector.broadcast %573 : vector<8x1xf32> to vector<8x32xf32>
    %575 = arith.subf %569, %574 : vector<8x32xf32>
    %576 = arith.mulf %575, %575 : vector<8x32xf32>
    %cst_233 = arith.constant dense<0.000000e+00> : vector<8xf32>
    %577 = vector.multi_reduction <add>, %576, %cst_233 [1] : vector<8x32xf32> to vector<8xf32>
    %578 = vector.shape_cast %577 : vector<8xf32> to vector<8x1xf32>
    %cst_234 = arith.constant 3.200000e+01 : f32
    %579 = vector.broadcast %cst_234 : f32 to vector<8x1xf32>
    %580 = arith.divf %578, %579 : vector<8x1xf32>
    %581 = vector.broadcast %573 : vector<8x1xf32> to vector<8x32xf32>
    %582 = arith.subf %569, %581 : vector<8x32xf32>
    %cst_235 = arith.constant 9.99999997E-7 : f32
    %583 = vector.broadcast %cst_235 : f32 to vector<8x1xf32>
    %584 = arith.addf %580, %583 : vector<8x1xf32>
    %585 = math.rsqrt %584 : vector<8x1xf32>
    %586 = vector.broadcast %585 : vector<8x1xf32> to vector<8x32xf32>
    %587 = arith.mulf %582, %586 : vector<8x32xf32>
    %cst_236 = arith.constant 1.000000e+00 : f32
    %588 = vector.broadcast %cst_236 : f32 to vector<1x32xf32>
    %589 = arith.addf %588, %36 : vector<1x32xf32>
    %590 = vector.broadcast %589 : vector<1x32xf32> to vector<8x32xf32>
    %591 = arith.mulf %590, %587 : vector<8x32xf32>
    %592 = vector.broadcast %35 : vector<1x32xf32> to vector<8x32xf32>
    %593 = arith.addf %591, %592 : vector<8x32xf32>
    %c0_237 = arith.constant 0 : index
    %c0_238 = arith.constant 0 : index
    %594 = vector.load %arg26[%c0_237, %c0_238] : memref<32x128xf32, #tpu.memory_space<vmem>>, vector<32x128xf32>
    %595 = arith.truncf %593 : vector<8x32xf32> to vector<8x32xbf16>
    %596 = arith.truncf %594 : vector<32x128xf32> to vector<32x128xbf16>
    %cst_239 = arith.constant dense<0.000000e+00> : vector<8x128xf32>
    %597 = tpu.matmul %595, %596, %cst_239 {dimension_numbers = #tpu.dot_dimension_numbers<[1], [0], [0], [1], [0, 0, 1, 1], [], []>} : vector<8x32xbf16>, vector<32x128xbf16>, vector<8x128xf32> -> vector<8x128xf32>
    %c0_240 = arith.constant 0 : index
    %c0_241 = arith.constant 0 : index
    %598 = vector.load %arg27[%c0_240, %c0_241] : memref<1x128xf32, #tpu.memory_space<vmem>>, vector<1x128xf32>
    %599 = vector.broadcast %598 : vector<1x128xf32> to vector<8x128xf32>
    %600 = arith.addf %597, %599 : vector<8x128xf32>
    %601 = arith.mulf %600, %600 : vector<8x128xf32>
    %602 = arith.mulf %600, %601 : vector<8x128xf32>
    %cst_242 = arith.constant 4.471500e-02 : f32
    %603 = vector.broadcast %cst_242 : f32 to vector<8x128xf32>
    %604 = arith.mulf %603, %602 : vector<8x128xf32>
    %605 = arith.addf %600, %604 : vector<8x128xf32>
    %cst_243 = arith.constant 0.797884583 : f32
    %606 = vector.broadcast %cst_243 : f32 to vector<8x128xf32>
    %607 = arith.mulf %606, %605 : vector<8x128xf32>
    %608 = math.tanh %607 : vector<8x128xf32>
    %cst_244 = arith.constant 1.000000e+00 : f32
    %609 = vector.broadcast %cst_244 : f32 to vector<8x128xf32>
    %610 = arith.addf %609, %608 : vector<8x128xf32>
    %cst_245 = arith.constant 5.000000e-01 : f32
    %611 = vector.broadcast %cst_245 : f32 to vector<8x128xf32>
    %612 = arith.mulf %611, %610 : vector<8x128xf32>
    %613 = arith.mulf %600, %612 : vector<8x128xf32>
    %c0_246 = arith.constant 0 : index
    %c0_247 = arith.constant 0 : index
    %614 = vector.load %arg28[%c0_246, %c0_247] : memref<128x32xf32, #tpu.memory_space<vmem>>, vector<128x32xf32>
    %615 = arith.truncf %613 : vector<8x128xf32> to vector<8x128xbf16>
    %616 = arith.truncf %614 : vector<128x32xf32> to vector<128x32xbf16>
    %cst_248 = arith.constant dense<0.000000e+00> : vector<8x32xf32>
    %617 = tpu.matmul %615, %616, %cst_248 {dimension_numbers = #tpu.dot_dimension_numbers<[1], [0], [0], [1], [0, 0, 1, 1], [], []>} : vector<8x128xbf16>, vector<128x32xbf16>, vector<8x32xf32> -> vector<8x32xf32>
    %c0_249 = arith.constant 0 : index
    %c0_250 = arith.constant 0 : index
    %618 = vector.load %arg29[%c0_249, %c0_250] : memref<1x32xf32, #tpu.memory_space<vmem>>, vector<1x32xf32>
    %619 = vector.broadcast %618 : vector<1x32xf32> to vector<8x32xf32>
    %620 = arith.addf %617, %619 : vector<8x32xf32>
    %621 = vector.broadcast %37 : vector<1x32xf32> to vector<8x32xf32>
    %622 = arith.mulf %621, %620 : vector<8x32xf32>
    %623 = arith.addf %569, %622 : vector<8x32xf32>
    %c0_251 = arith.constant 0 : index
    %c0_252 = arith.constant 0 : index
    %c0_253 = arith.constant 0 : index
    %624 = vector.load %arg31[%c0_251, %c0_252, %c0_253] : memref<2x8x32xf32, #tpu.memory_space<vmem>>, vector<1x8x32xf32>
    %625 = vector.shape_cast %624 : vector<1x8x32xf32> to vector<8x32xf32>
    %626 = vector.shape_cast %623 : vector<8x32xf32> to vector<1x8x32xf32>
    tpu.vector_store %arg31[%c0_251, %c0_252, %c0_253], %626 {strides = array<i32>} : memref<2x8x32xf32, #tpu.memory_space<vmem>>, vector<1x8x32xf32>,
    %627 = vector.extract_strided_slice %14 {offsets = [1, 0], sizes = [1, 32], strides = [1, 1]} : vector<2x192xf32> to vector<1x32xf32>
    %628 = vector.extract_strided_slice %14 {offsets = [1, 32], sizes = [1, 32], strides = [1, 1]} : vector<2x192xf32> to vector<1x32xf32>
    %629 = vector.extract_strided_slice %14 {offsets = [1, 64], sizes = [1, 32], strides = [1, 1]} : vector<2x192xf32> to vector<1x32xf32>
    %630 = vector.extract_strided_slice %14 {offsets = [1, 96], sizes = [1, 32], strides = [1, 1]} : vector<2x192xf32> to vector<1x32xf32>
    %631 = vector.extract_strided_slice %14 {offsets = [1, 128], sizes = [1, 32], strides = [1, 1]} : vector<2x192xf32> to vector<1x32xf32>
    %632 = vector.extract_strided_slice %14 {offsets = [1, 160], sizes = [1, 32], strides = [1, 1]} : vector<2x192xf32> to vector<1x32xf32>
    %633 = vector.extract_strided_slice %21 {offsets = [1, 0], sizes = [1, 32], strides = [1, 1]} : vector<2x192xf32> to vector<1x32xf32>
    %634 = vector.extract_strided_slice %21 {offsets = [1, 32], sizes = [1, 32], strides = [1, 1]} : vector<2x192xf32> to vector<1x32xf32>
    %635 = vector.extract_strided_slice %21 {offsets = [1, 64], sizes = [1, 32], strides = [1, 1]} : vector<2x192xf32> to vector<1x32xf32>
    %636 = vector.extract_strided_slice %21 {offsets = [1, 96], sizes = [1, 32], strides = [1, 1]} : vector<2x192xf32> to vector<1x32xf32>
    %637 = vector.extract_strided_slice %21 {offsets = [1, 128], sizes = [1, 32], strides = [1, 1]} : vector<2x192xf32> to vector<1x32xf32>
    %638 = vector.extract_strided_slice %21 {offsets = [1, 160], sizes = [1, 32], strides = [1, 1]} : vector<2x192xf32> to vector<1x32xf32>
    %c1 = arith.constant 1 : index
    %c0_254 = arith.constant 0 : index
    %c0_255 = arith.constant 0 : index
    %639 = vector.load %arg0[%c1, %c0_254, %c0_255] : memref<2x16x32xf32, #tpu.memory_space<vmem>>, vector<1x16x32xf32>
    %640 = vector.shape_cast %639 : vector<1x16x32xf32> to vector<16x32xf32>
    %c1_256 = arith.constant 1 : index
    %c0_257 = arith.constant 0 : index
    %c0_258 = arith.constant 0 : index
    %641 = vector.load %arg1[%c1_256, %c0_257, %c0_258] : memref<2x8x32xf32, #tpu.memory_space<vmem>>, vector<1x8x32xf32>
    %642 = vector.shape_cast %641 : vector<1x8x32xf32> to vector<8x32xf32>
    %c1_259 = arith.constant 1 : index
    %c0_260 = arith.constant 0 : index
    %c0_261 = arith.constant 0 : index
    %643 = vector.load %arg3[%c1_259, %c0_260, %c0_261] : memref<2x24x16xf32, #tpu.memory_space<vmem>>, vector<1x24x16xf32>
    %644 = vector.shape_cast %643 : vector<1x24x16xf32> to vector<24x16xf32>
    %c1_262 = arith.constant 1 : index
    %c0_263 = arith.constant 0 : index
    %c0_264 = arith.constant 0 : index
    %645 = vector.load %arg4[%c1_262, %c0_263, %c0_264] : memref<2x24x16xf32, #tpu.memory_space<vmem>>, vector<1x24x16xf32>
    %646 = vector.shape_cast %645 : vector<1x24x16xf32> to vector<24x16xf32>
    %647 = vector.extract_strided_slice %644 {offsets = [0, 0], sizes = [8, 16], strides = [1, 1]} : vector<24x16xf32> to vector<8x16xf32>
    %648 = vector.extract_strided_slice %646 {offsets = [0, 0], sizes = [8, 16], strides = [1, 1]} : vector<24x16xf32> to vector<8x16xf32>
    %649 = vector.extract_strided_slice %644 {offsets = [8, 0], sizes = [16, 16], strides = [1, 1]} : vector<24x16xf32> to vector<16x16xf32>
    %650 = vector.extract_strided_slice %646 {offsets = [8, 0], sizes = [16, 16], strides = [1, 1]} : vector<24x16xf32> to vector<16x16xf32>
    %cst_265 = arith.constant dense<0.000000e+00> : vector<8xf32>
    %651 = vector.multi_reduction <add>, %642, %cst_265 [1] : vector<8x32xf32> to vector<8xf32>
    %652 = vector.shape_cast %651 : vector<8xf32> to vector<8x1xf32>
    %cst_266 = arith.constant 3.200000e+01 : f32
    %653 = vector.broadcast %cst_266 : f32 to vector<8x1xf32>
    %654 = arith.divf %652, %653 : vector<8x1xf32>
    %655 = vector.broadcast %654 : vector<8x1xf32> to vector<8x32xf32>
    %656 = arith.subf %642, %655 : vector<8x32xf32>
    %657 = arith.mulf %656, %656 : vector<8x32xf32>
    %cst_267 = arith.constant dense<0.000000e+00> : vector<8xf32>
    %658 = vector.multi_reduction <add>, %657, %cst_267 [1] : vector<8x32xf32> to vector<8xf32>
    %659 = vector.shape_cast %658 : vector<8xf32> to vector<8x1xf32>
    %cst_268 = arith.constant 3.200000e+01 : f32
    %660 = vector.broadcast %cst_268 : f32 to vector<8x1xf32>
    %661 = arith.divf %659, %660 : vector<8x1xf32>
    %662 = vector.broadcast %654 : vector<8x1xf32> to vector<8x32xf32>
    %663 = arith.subf %642, %662 : vector<8x32xf32>
    %cst_269 = arith.constant 9.99999997E-7 : f32
    %664 = vector.broadcast %cst_269 : f32 to vector<8x1xf32>
    %665 = arith.addf %661, %664 : vector<8x1xf32>
    %666 = math.rsqrt %665 : vector<8x1xf32>
    %667 = vector.broadcast %666 : vector<8x1xf32> to vector<8x32xf32>
    %668 = arith.mulf %663, %667 : vector<8x32xf32>
    %cst_270 = arith.constant 1.000000e+00 : f32
    %669 = vector.broadcast %cst_270 : f32 to vector<1x32xf32>
    %670 = arith.addf %669, %634 : vector<1x32xf32>
    %671 = vector.broadcast %670 : vector<1x32xf32> to vector<8x32xf32>
    %672 = arith.mulf %671, %668 : vector<8x32xf32>
    %673 = vector.broadcast %633 : vector<1x32xf32> to vector<8x32xf32>
    %674 = arith.addf %672, %673 : vector<8x32xf32>
    %c0_271 = arith.constant 0 : index
    %c0_272 = arith.constant 0 : index
    %675 = vector.load %arg16[%c0_271, %c0_272] : memref<32x96xf32, #tpu.memory_space<vmem>>, vector<32x96xf32>
    %676 = arith.truncf %674 : vector<8x32xf32> to vector<8x32xbf16>
    %677 = arith.truncf %675 : vector<32x96xf32> to vector<32x96xbf16>
    %cst_273 = arith.constant dense<0.000000e+00> : vector<8x96xf32>
    %678 = tpu.matmul %676, %677, %cst_273 {dimension_numbers = #tpu.dot_dimension_numbers<[1], [0], [0], [1], [0, 0, 1, 1], [], []>} : vector<8x32xbf16>, vector<32x96xbf16>, vector<8x96xf32> -> vector<8x96xf32>
    %c0_274 = arith.constant 0 : index
    %c0_275 = arith.constant 0 : index
    %679 = vector.load %arg17[%c0_274, %c0_275] : memref<1x96xf32, #tpu.memory_space<vmem>>, vector<1x96xf32>
    %680 = vector.broadcast %679 : vector<1x96xf32> to vector<8x96xf32>
    %681 = arith.addf %678, %680 : vector<8x96xf32>
    %682 = vector.extract_strided_slice %681 {offsets = [0, 0], sizes = [8, 16], strides = [1, 1]} : vector<8x96xf32> to vector<8x16xf32>
    %683 = vector.extract_strided_slice %681 {offsets = [0, 32], sizes = [8, 16], strides = [1, 1]} : vector<8x96xf32> to vector<8x16xf32>
    %684 = vector.extract_strided_slice %681 {offsets = [0, 64], sizes = [8, 16], strides = [1, 1]} : vector<8x96xf32> to vector<8x16xf32>
    %685 = arith.mulf %682, %682 : vector<8x16xf32>
    %cst_276 = arith.constant dense<0.000000e+00> : vector<8xf32>
    %686 = vector.multi_reduction <add>, %685, %cst_276 [1] : vector<8x16xf32> to vector<8xf32>
    %687 = vector.shape_cast %686 : vector<8xf32> to vector<8x1xf32>
    %cst_277 = arith.constant 1.600000e+01 : f32
    %688 = vector.broadcast %cst_277 : f32 to vector<8x1xf32>
    %689 = arith.divf %687, %688 : vector<8x1xf32>
    %cst_278 = arith.constant 9.99999997E-7 : f32
    %690 = vector.broadcast %cst_278 : f32 to vector<8x1xf32>
    %691 = arith.addf %689, %690 : vector<8x1xf32>
    %692 = math.rsqrt %691 : vector<8x1xf32>
    %693 = vector.broadcast %692 : vector<8x1xf32> to vector<8x16xf32>
    %694 = arith.mulf %682, %693 : vector<8x16xf32>
    %695 = vector.broadcast %24 : vector<1x16xf32> to vector<8x16xf32>
    %696 = arith.mulf %694, %695 : vector<8x16xf32>
    %697 = arith.mulf %647, %696 : vector<8x16xf32>
    %cst_279 = arith.constant dense<0.000000e+00> : vector<8x16xf32>
    %698 = tpu.matmul %696, %0, %cst_279 {dimension_numbers = #tpu.dot_dimension_numbers<[1], [0], [0], [1], [0, 0, 1, 1], [], []>} : vector<8x16xf32>, vector<16x16xf32>, vector<8x16xf32> -> vector<8x16xf32>
    %699 = arith.mulf %648, %698 : vector<8x16xf32>
    %700 = arith.addf %697, %699 : vector<8x16xf32>
    %701 = arith.mulf %683, %683 : vector<8x16xf32>
    %cst_280 = arith.constant dense<0.000000e+00> : vector<8xf32>
    %702 = vector.multi_reduction <add>, %701, %cst_280 [1] : vector<8x16xf32> to vector<8xf32>
    %703 = vector.shape_cast %702 : vector<8xf32> to vector<8x1xf32>
    %cst_281 = arith.constant 1.600000e+01 : f32
    %704 = vector.broadcast %cst_281 : f32 to vector<8x1xf32>
    %705 = arith.divf %703, %704 : vector<8x1xf32>
    %cst_282 = arith.constant 9.99999997E-7 : f32
    %706 = vector.broadcast %cst_282 : f32 to vector<8x1xf32>
    %707 = arith.addf %705, %706 : vector<8x1xf32>
    %708 = math.rsqrt %707 : vector<8x1xf32>
    %709 = vector.broadcast %708 : vector<8x1xf32> to vector<8x16xf32>
    %710 = arith.mulf %683, %709 : vector<8x16xf32>
    %711 = vector.broadcast %25 : vector<1x16xf32> to vector<8x16xf32>
    %712 = arith.mulf %710, %711 : vector<8x16xf32>
    %713 = arith.mulf %647, %712 : vector<8x16xf32>
    %cst_283 = arith.constant dense<0.000000e+00> : vector<8x16xf32>
    %714 = tpu.matmul %712, %0, %cst_283 {dimension_numbers = #tpu.dot_dimension_numbers<[1], [0], [0], [1], [0, 0, 1, 1], [], []>} : vector<8x16xf32>, vector<16x16xf32>, vector<8x16xf32> -> vector<8x16xf32>
    %715 = arith.mulf %648, %714 : vector<8x16xf32>
    %716 = arith.addf %713, %715 : vector<8x16xf32>
    %c0_284 = arith.constant 0 : index
    %c0_285 = arith.constant 0 : index
    %717 = vector.load %arg32[%c0_284, %c0_285] : memref<48x16xf32, #tpu.memory_space<vmem>>, vector<8x16xf32>
    tpu.vector_store %arg32[%c0_284, %c0_285], %716 {strides = array<i32>} : memref<48x16xf32, #tpu.memory_space<vmem>>, vector<8x16xf32>,
    %c0_286 = arith.constant 0 : index
    %c0_287 = arith.constant 0 : index
    %718 = vector.load %arg33[%c0_286, %c0_287] : memref<48x16xf32, #tpu.memory_space<vmem>>, vector<8x16xf32>
    tpu.vector_store %arg33[%c0_286, %c0_287], %684 {strides = array<i32>} : memref<48x16xf32, #tpu.memory_space<vmem>>, vector<8x16xf32>,
    %719 = vector.extract_strided_slice %681 {offsets = [0, 16], sizes = [8, 16], strides = [1, 1]} : vector<8x96xf32> to vector<8x16xf32>
    %720 = vector.extract_strided_slice %681 {offsets = [0, 48], sizes = [8, 16], strides = [1, 1]} : vector<8x96xf32> to vector<8x16xf32>
    %721 = vector.extract_strided_slice %681 {offsets = [0, 80], sizes = [8, 16], strides = [1, 1]} : vector<8x96xf32> to vector<8x16xf32>
    %722 = arith.mulf %719, %719 : vector<8x16xf32>
    %cst_288 = arith.constant dense<0.000000e+00> : vector<8xf32>
    %723 = vector.multi_reduction <add>, %722, %cst_288 [1] : vector<8x16xf32> to vector<8xf32>
    %724 = vector.shape_cast %723 : vector<8xf32> to vector<8x1xf32>
    %cst_289 = arith.constant 1.600000e+01 : f32
    %725 = vector.broadcast %cst_289 : f32 to vector<8x1xf32>
    %726 = arith.divf %724, %725 : vector<8x1xf32>
    %cst_290 = arith.constant 9.99999997E-7 : f32
    %727 = vector.broadcast %cst_290 : f32 to vector<8x1xf32>
    %728 = arith.addf %726, %727 : vector<8x1xf32>
    %729 = math.rsqrt %728 : vector<8x1xf32>
    %730 = vector.broadcast %729 : vector<8x1xf32> to vector<8x16xf32>
    %731 = arith.mulf %719, %730 : vector<8x16xf32>
    %732 = vector.broadcast %24 : vector<1x16xf32> to vector<8x16xf32>
    %733 = arith.mulf %731, %732 : vector<8x16xf32>
    %734 = arith.mulf %647, %733 : vector<8x16xf32>
    %cst_291 = arith.constant dense<0.000000e+00> : vector<8x16xf32>
    %735 = tpu.matmul %733, %0, %cst_291 {dimension_numbers = #tpu.dot_dimension_numbers<[1], [0], [0], [1], [0, 0, 1, 1], [], []>} : vector<8x16xf32>, vector<16x16xf32>, vector<8x16xf32> -> vector<8x16xf32>
    %736 = arith.mulf %648, %735 : vector<8x16xf32>
    %737 = arith.addf %734, %736 : vector<8x16xf32>
    %738 = arith.mulf %720, %720 : vector<8x16xf32>
    %cst_292 = arith.constant dense<0.000000e+00> : vector<8xf32>
    %739 = vector.multi_reduction <add>, %738, %cst_292 [1] : vector<8x16xf32> to vector<8xf32>
    %740 = vector.shape_cast %739 : vector<8xf32> to vector<8x1xf32>
    %cst_293 = arith.constant 1.600000e+01 : f32
    %741 = vector.broadcast %cst_293 : f32 to vector<8x1xf32>
    %742 = arith.divf %740, %741 : vector<8x1xf32>
    %cst_294 = arith.constant 9.99999997E-7 : f32
    %743 = vector.broadcast %cst_294 : f32 to vector<8x1xf32>
    %744 = arith.addf %742, %743 : vector<8x1xf32>
    %745 = math.rsqrt %744 : vector<8x1xf32>
    %746 = vector.broadcast %745 : vector<8x1xf32> to vector<8x16xf32>
    %747 = arith.mulf %720, %746 : vector<8x16xf32>
    %748 = vector.broadcast %25 : vector<1x16xf32> to vector<8x16xf32>
    %749 = arith.mulf %747, %748 : vector<8x16xf32>
    %750 = arith.mulf %647, %749 : vector<8x16xf32>
    %cst_295 = arith.constant dense<0.000000e+00> : vector<8x16xf32>
    %751 = tpu.matmul %749, %0, %cst_295 {dimension_numbers = #tpu.dot_dimension_numbers<[1], [0], [0], [1], [0, 0, 1, 1], [], []>} : vector<8x16xf32>, vector<16x16xf32>, vector<8x16xf32> -> vector<8x16xf32>
    %752 = arith.mulf %648, %751 : vector<8x16xf32>
    %753 = arith.addf %750, %752 : vector<8x16xf32>
    %c24_296 = arith.constant 24 : index
    %c0_297 = arith.constant 0 : index
    %754 = vector.load %arg32[%c24_296, %c0_297] : memref<48x16xf32, #tpu.memory_space<vmem>>, vector<8x16xf32>
    tpu.vector_store %arg32[%c24_296, %c0_297], %753 {strides = array<i32>} : memref<48x16xf32, #tpu.memory_space<vmem>>, vector<8x16xf32>,
    %c24_298 = arith.constant 24 : index
    %c0_299 = arith.constant 0 : index
    %755 = vector.load %arg33[%c24_298, %c0_299] : memref<48x16xf32, #tpu.memory_space<vmem>>, vector<8x16xf32>
    tpu.vector_store %arg33[%c24_298, %c0_299], %721 {strides = array<i32>} : memref<48x16xf32, #tpu.memory_space<vmem>>, vector<8x16xf32>,
    %cst_300 = arith.constant dense<0.000000e+00> : vector<16xf32>
    %756 = vector.multi_reduction <add>, %640, %cst_300 [1] : vector<16x32xf32> to vector<16xf32>
    %757 = vector.shape_cast %756 : vector<16xf32> to vector<16x1xf32>
    %cst_301 = arith.constant 3.200000e+01 : f32
    %758 = vector.broadcast %cst_301 : f32 to vector<16x1xf32>
    %759 = arith.divf %757, %758 : vector<16x1xf32>
    %760 = vector.broadcast %759 : vector<16x1xf32> to vector<16x32xf32>
    %761 = arith.subf %640, %760 : vector<16x32xf32>
    %762 = arith.mulf %761, %761 : vector<16x32xf32>
    %cst_302 = arith.constant dense<0.000000e+00> : vector<16xf32>
    %763 = vector.multi_reduction <add>, %762, %cst_302 [1] : vector<16x32xf32> to vector<16xf32>
    %764 = vector.shape_cast %763 : vector<16xf32> to vector<16x1xf32>
    %cst_303 = arith.constant 3.200000e+01 : f32
    %765 = vector.broadcast %cst_303 : f32 to vector<16x1xf32>
    %766 = arith.divf %764, %765 : vector<16x1xf32>
    %767 = vector.broadcast %759 : vector<16x1xf32> to vector<16x32xf32>
    %768 = arith.subf %640, %767 : vector<16x32xf32>
    %cst_304 = arith.constant 9.99999997E-7 : f32
    %769 = vector.broadcast %cst_304 : f32 to vector<16x1xf32>
    %770 = arith.addf %766, %769 : vector<16x1xf32>
    %771 = math.rsqrt %770 : vector<16x1xf32>
    %772 = vector.broadcast %771 : vector<16x1xf32> to vector<16x32xf32>
    %773 = arith.mulf %768, %772 : vector<16x32xf32>
    %cst_305 = arith.constant 1.000000e+00 : f32
    %774 = vector.broadcast %cst_305 : f32 to vector<1x32xf32>
    %775 = arith.addf %774, %628 : vector<1x32xf32>
    %776 = vector.broadcast %775 : vector<1x32xf32> to vector<16x32xf32>
    %777 = arith.mulf %776, %773 : vector<16x32xf32>
    %778 = vector.broadcast %627 : vector<1x32xf32> to vector<16x32xf32>
    %779 = arith.addf %777, %778 : vector<16x32xf32>
    %c0_306 = arith.constant 0 : index
    %c0_307 = arith.constant 0 : index
    %780 = vector.load %arg14[%c0_306, %c0_307] : memref<32x96xf32, #tpu.memory_space<vmem>>, vector<32x96xf32>
    %781 = arith.truncf %779 : vector<16x32xf32> to vector<16x32xbf16>
    %782 = arith.truncf %780 : vector<32x96xf32> to vector<32x96xbf16>
    %cst_308 = arith.constant dense<0.000000e+00> : vector<16x96xf32>
    %783 = tpu.matmul %781, %782, %cst_308 {dimension_numbers = #tpu.dot_dimension_numbers<[1], [0], [0], [1], [0, 0, 1, 1], [], []>} : vector<16x32xbf16>, vector<32x96xbf16>, vector<16x96xf32> -> vector<16x96xf32>
    %c0_309 = arith.constant 0 : index
    %c0_310 = arith.constant 0 : index
    %784 = vector.load %arg15[%c0_309, %c0_310] : memref<1x96xf32, #tpu.memory_space<vmem>>, vector<1x96xf32>
    %785 = vector.broadcast %784 : vector<1x96xf32> to vector<16x96xf32>
    %786 = arith.addf %783, %785 : vector<16x96xf32>
    %787 = vector.extract_strided_slice %786 {offsets = [0, 0], sizes = [16, 16], strides = [1, 1]} : vector<16x96xf32> to vector<16x16xf32>
    %788 = vector.extract_strided_slice %786 {offsets = [0, 32], sizes = [16, 16], strides = [1, 1]} : vector<16x96xf32> to vector<16x16xf32>
    %789 = vector.extract_strided_slice %786 {offsets = [0, 64], sizes = [16, 16], strides = [1, 1]} : vector<16x96xf32> to vector<16x16xf32>
    %790 = arith.mulf %787, %787 : vector<16x16xf32>
    %cst_311 = arith.constant dense<0.000000e+00> : vector<16xf32>
    %791 = vector.multi_reduction <add>, %790, %cst_311 [1] : vector<16x16xf32> to vector<16xf32>
    %792 = vector.shape_cast %791 : vector<16xf32> to vector<16x1xf32>
    %cst_312 = arith.constant 1.600000e+01 : f32
    %793 = vector.broadcast %cst_312 : f32 to vector<16x1xf32>
    %794 = arith.divf %792, %793 : vector<16x1xf32>
    %cst_313 = arith.constant 9.99999997E-7 : f32
    %795 = vector.broadcast %cst_313 : f32 to vector<16x1xf32>
    %796 = arith.addf %794, %795 : vector<16x1xf32>
    %797 = math.rsqrt %796 : vector<16x1xf32>
    %798 = vector.broadcast %797 : vector<16x1xf32> to vector<16x16xf32>
    %799 = arith.mulf %787, %798 : vector<16x16xf32>
    %800 = vector.broadcast %22 : vector<1x16xf32> to vector<16x16xf32>
    %801 = arith.mulf %799, %800 : vector<16x16xf32>
    %802 = arith.mulf %649, %801 : vector<16x16xf32>
    %cst_314 = arith.constant dense<0.000000e+00> : vector<16x16xf32>
    %803 = tpu.matmul %801, %0, %cst_314 {dimension_numbers = #tpu.dot_dimension_numbers<[1], [0], [0], [1], [0, 0, 1, 1], [], []>} : vector<16x16xf32>, vector<16x16xf32>, vector<16x16xf32> -> vector<16x16xf32>
    %804 = arith.mulf %650, %803 : vector<16x16xf32>
    %805 = arith.addf %802, %804 : vector<16x16xf32>
    %806 = arith.mulf %788, %788 : vector<16x16xf32>
    %cst_315 = arith.constant dense<0.000000e+00> : vector<16xf32>
    %807 = vector.multi_reduction <add>, %806, %cst_315 [1] : vector<16x16xf32> to vector<16xf32>
    %808 = vector.shape_cast %807 : vector<16xf32> to vector<16x1xf32>
    %cst_316 = arith.constant 1.600000e+01 : f32
    %809 = vector.broadcast %cst_316 : f32 to vector<16x1xf32>
    %810 = arith.divf %808, %809 : vector<16x1xf32>
    %cst_317 = arith.constant 9.99999997E-7 : f32
    %811 = vector.broadcast %cst_317 : f32 to vector<16x1xf32>
    %812 = arith.addf %810, %811 : vector<16x1xf32>
    %813 = math.rsqrt %812 : vector<16x1xf32>
    %814 = vector.broadcast %813 : vector<16x1xf32> to vector<16x16xf32>
    %815 = arith.mulf %788, %814 : vector<16x16xf32>
    %816 = vector.broadcast %23 : vector<1x16xf32> to vector<16x16xf32>
    %817 = arith.mulf %815, %816 : vector<16x16xf32>
    %818 = arith.mulf %649, %817 : vector<16x16xf32>
    %cst_318 = arith.constant dense<0.000000e+00> : vector<16x16xf32>
    %819 = tpu.matmul %817, %0, %cst_318 {dimension_numbers = #tpu.dot_dimension_numbers<[1], [0], [0], [1], [0, 0, 1, 1], [], []>} : vector<16x16xf32>, vector<16x16xf32>, vector<16x16xf32> -> vector<16x16xf32>
    %820 = arith.mulf %650, %819 : vector<16x16xf32>
    %821 = arith.addf %818, %820 : vector<16x16xf32>
    %c8_319 = arith.constant 8 : index
    %c0_320 = arith.constant 0 : index
    %822 = vector.load %arg32[%c8_319, %c0_320] : memref<48x16xf32, #tpu.memory_space<vmem>>, vector<16x16xf32>
    tpu.vector_store %arg32[%c8_319, %c0_320], %821 {strides = array<i32>} : memref<48x16xf32, #tpu.memory_space<vmem>>, vector<16x16xf32>,
    %c8_321 = arith.constant 8 : index
    %c0_322 = arith.constant 0 : index
    %823 = vector.load %arg33[%c8_321, %c0_322] : memref<48x16xf32, #tpu.memory_space<vmem>>, vector<16x16xf32>
    tpu.vector_store %arg33[%c8_321, %c0_322], %789 {strides = array<i32>} : memref<48x16xf32, #tpu.memory_space<vmem>>, vector<16x16xf32>,
    %c0_323 = arith.constant 0 : index
    %c0_324 = arith.constant 0 : index
    %824 = vector.load %arg32[%c0_323, %c0_324] : memref<48x16xf32, #tpu.memory_space<vmem>>, vector<24x16xf32>
    %c0_325 = arith.constant 0 : index
    %c0_326 = arith.constant 0 : index
    %825 = vector.load %arg33[%c0_325, %c0_326] : memref<48x16xf32, #tpu.memory_space<vmem>>, vector<24x16xf32>
    %826 = arith.truncf %805 : vector<16x16xf32> to vector<16x16xbf16>
    %827 = arith.truncf %824 : vector<24x16xf32> to vector<24x16xbf16>
    %cst_327 = arith.constant dense<0.000000e+00> : vector<16x24xf32>
    %828 = tpu.matmul %826, %827, %cst_327 {dimension_numbers = #tpu.dot_dimension_numbers<[1], [1], [0], [0], [0, 0, 1, 0], [], []>} : vector<16x16xbf16>, vector<24x16xbf16>, vector<16x24xf32> -> vector<16x24xf32>
    %cst_328 = arith.constant 2.500000e-01 : f32
    %829 = vector.broadcast %cst_328 : f32 to vector<16x24xf32>
    %830 = arith.mulf %828, %829 : vector<16x24xf32>
    %cst_329 = arith.constant dense<0xFF800000> : vector<16xf32>
    %831 = vector.multi_reduction <maximumf>, %830, %cst_329 [1] : vector<16x24xf32> to vector<16xf32>
    %832 = vector.shape_cast %831 : vector<16xf32> to vector<16x1xf32>
    %833 = vector.broadcast %832 : vector<16x1xf32> to vector<16x24xf32>
    %834 = arith.subf %830, %833 : vector<16x24xf32>
    %835 = math.exp %834 : vector<16x24xf32>
    %cst_330 = arith.constant dense<0.000000e+00> : vector<16xf32>
    %836 = vector.multi_reduction <add>, %835, %cst_330 [1] : vector<16x24xf32> to vector<16xf32>
    %837 = vector.shape_cast %836 : vector<16xf32> to vector<16x1xf32>
    %838 = tpu.reciprocal %837 {approx = true} : vector<16x1xf32> -> vector<16x1xf32>
    %839 = vector.broadcast %838 : vector<16x1xf32> to vector<16x24xf32>
    %840 = arith.mulf %835, %839 : vector<16x24xf32>
    %841 = arith.truncf %840 : vector<16x24xf32> to vector<16x24xbf16>
    %842 = arith.truncf %825 : vector<24x16xf32> to vector<24x16xbf16>
    %cst_331 = arith.constant dense<0.000000e+00> : vector<16x16xf32>
    %843 = tpu.matmul %841, %842, %cst_331 {dimension_numbers = #tpu.dot_dimension_numbers<[1], [0], [0], [1], [0, 0, 1, 1], [], []>} : vector<16x24xbf16>, vector<24x16xbf16>, vector<16x16xf32> -> vector<16x16xf32>
    %c0_332 = arith.constant 0 : index
    %c0_333 = arith.constant 0 : index
    %844 = vector.load %arg34[%c0_332, %c0_333] : memref<16x32xf32, #tpu.memory_space<vmem>>, vector<16x16xf32>
    tpu.vector_store %arg34[%c0_332, %c0_333], %843 {strides = array<i32>} : memref<16x32xf32, #tpu.memory_space<vmem>>, vector<16x16xf32>,
    %845 = vector.extract_strided_slice %786 {offsets = [0, 16], sizes = [16, 16], strides = [1, 1]} : vector<16x96xf32> to vector<16x16xf32>
    %846 = vector.extract_strided_slice %786 {offsets = [0, 48], sizes = [16, 16], strides = [1, 1]} : vector<16x96xf32> to vector<16x16xf32>
    %847 = vector.extract_strided_slice %786 {offsets = [0, 80], sizes = [16, 16], strides = [1, 1]} : vector<16x96xf32> to vector<16x16xf32>
    %848 = arith.mulf %845, %845 : vector<16x16xf32>
    %cst_334 = arith.constant dense<0.000000e+00> : vector<16xf32>
    %849 = vector.multi_reduction <add>, %848, %cst_334 [1] : vector<16x16xf32> to vector<16xf32>
    %850 = vector.shape_cast %849 : vector<16xf32> to vector<16x1xf32>
    %cst_335 = arith.constant 1.600000e+01 : f32
    %851 = vector.broadcast %cst_335 : f32 to vector<16x1xf32>
    %852 = arith.divf %850, %851 : vector<16x1xf32>
    %cst_336 = arith.constant 9.99999997E-7 : f32
    %853 = vector.broadcast %cst_336 : f32 to vector<16x1xf32>
    %854 = arith.addf %852, %853 : vector<16x1xf32>
    %855 = math.rsqrt %854 : vector<16x1xf32>
    %856 = vector.broadcast %855 : vector<16x1xf32> to vector<16x16xf32>
    %857 = arith.mulf %845, %856 : vector<16x16xf32>
    %858 = vector.broadcast %22 : vector<1x16xf32> to vector<16x16xf32>
    %859 = arith.mulf %857, %858 : vector<16x16xf32>
    %860 = arith.mulf %649, %859 : vector<16x16xf32>
    %cst_337 = arith.constant dense<0.000000e+00> : vector<16x16xf32>
    %861 = tpu.matmul %859, %0, %cst_337 {dimension_numbers = #tpu.dot_dimension_numbers<[1], [0], [0], [1], [0, 0, 1, 1], [], []>} : vector<16x16xf32>, vector<16x16xf32>, vector<16x16xf32> -> vector<16x16xf32>
    %862 = arith.mulf %650, %861 : vector<16x16xf32>
    %863 = arith.addf %860, %862 : vector<16x16xf32>
    %864 = arith.mulf %846, %846 : vector<16x16xf32>
    %cst_338 = arith.constant dense<0.000000e+00> : vector<16xf32>
    %865 = vector.multi_reduction <add>, %864, %cst_338 [1] : vector<16x16xf32> to vector<16xf32>
    %866 = vector.shape_cast %865 : vector<16xf32> to vector<16x1xf32>
    %cst_339 = arith.constant 1.600000e+01 : f32
    %867 = vector.broadcast %cst_339 : f32 to vector<16x1xf32>
    %868 = arith.divf %866, %867 : vector<16x1xf32>
    %cst_340 = arith.constant 9.99999997E-7 : f32
    %869 = vector.broadcast %cst_340 : f32 to vector<16x1xf32>
    %870 = arith.addf %868, %869 : vector<16x1xf32>
    %871 = math.rsqrt %870 : vector<16x1xf32>
    %872 = vector.broadcast %871 : vector<16x1xf32> to vector<16x16xf32>
    %873 = arith.mulf %846, %872 : vector<16x16xf32>
    %874 = vector.broadcast %23 : vector<1x16xf32> to vector<16x16xf32>
    %875 = arith.mulf %873, %874 : vector<16x16xf32>
    %876 = arith.mulf %649, %875 : vector<16x16xf32>
    %cst_341 = arith.constant dense<0.000000e+00> : vector<16x16xf32>
    %877 = tpu.matmul %875, %0, %cst_341 {dimension_numbers = #tpu.dot_dimension_numbers<[1], [0], [0], [1], [0, 0, 1, 1], [], []>} : vector<16x16xf32>, vector<16x16xf32>, vector<16x16xf32> -> vector<16x16xf32>
    %878 = arith.mulf %650, %877 : vector<16x16xf32>
    %879 = arith.addf %876, %878 : vector<16x16xf32>
    %c32_342 = arith.constant 32 : index
    %c0_343 = arith.constant 0 : index
    %880 = vector.load %arg32[%c32_342, %c0_343] : memref<48x16xf32, #tpu.memory_space<vmem>>, vector<16x16xf32>
    tpu.vector_store %arg32[%c32_342, %c0_343], %879 {strides = array<i32>} : memref<48x16xf32, #tpu.memory_space<vmem>>, vector<16x16xf32>,
    %c32_344 = arith.constant 32 : index
    %c0_345 = arith.constant 0 : index
    %881 = vector.load %arg33[%c32_344, %c0_345] : memref<48x16xf32, #tpu.memory_space<vmem>>, vector<16x16xf32>
    tpu.vector_store %arg33[%c32_344, %c0_345], %847 {strides = array<i32>} : memref<48x16xf32, #tpu.memory_space<vmem>>, vector<16x16xf32>,
    %c24_346 = arith.constant 24 : index
    %c0_347 = arith.constant 0 : index
    %882 = vector.load %arg32[%c24_346, %c0_347] : memref<48x16xf32, #tpu.memory_space<vmem>>, vector<24x16xf32>
    %c24_348 = arith.constant 24 : index
    %c0_349 = arith.constant 0 : index
    %883 = vector.load %arg33[%c24_348, %c0_349] : memref<48x16xf32, #tpu.memory_space<vmem>>, vector<24x16xf32>
    %884 = arith.truncf %863 : vector<16x16xf32> to vector<16x16xbf16>
    %885 = arith.truncf %882 : vector<24x16xf32> to vector<24x16xbf16>
    %cst_350 = arith.constant dense<0.000000e+00> : vector<16x24xf32>
    %886 = tpu.matmul %884, %885, %cst_350 {dimension_numbers = #tpu.dot_dimension_numbers<[1], [1], [0], [0], [0, 0, 1, 0], [], []>} : vector<16x16xbf16>, vector<24x16xbf16>, vector<16x24xf32> -> vector<16x24xf32>
    %cst_351 = arith.constant 2.500000e-01 : f32
    %887 = vector.broadcast %cst_351 : f32 to vector<16x24xf32>
    %888 = arith.mulf %886, %887 : vector<16x24xf32>
    %cst_352 = arith.constant dense<0xFF800000> : vector<16xf32>
    %889 = vector.multi_reduction <maximumf>, %888, %cst_352 [1] : vector<16x24xf32> to vector<16xf32>
    %890 = vector.shape_cast %889 : vector<16xf32> to vector<16x1xf32>
    %891 = vector.broadcast %890 : vector<16x1xf32> to vector<16x24xf32>
    %892 = arith.subf %888, %891 : vector<16x24xf32>
    %893 = math.exp %892 : vector<16x24xf32>
    %cst_353 = arith.constant dense<0.000000e+00> : vector<16xf32>
    %894 = vector.multi_reduction <add>, %893, %cst_353 [1] : vector<16x24xf32> to vector<16xf32>
    %895 = vector.shape_cast %894 : vector<16xf32> to vector<16x1xf32>
    %896 = tpu.reciprocal %895 {approx = true} : vector<16x1xf32> -> vector<16x1xf32>
    %897 = vector.broadcast %896 : vector<16x1xf32> to vector<16x24xf32>
    %898 = arith.mulf %893, %897 : vector<16x24xf32>
    %899 = arith.truncf %898 : vector<16x24xf32> to vector<16x24xbf16>
    %900 = arith.truncf %883 : vector<24x16xf32> to vector<24x16xbf16>
    %cst_354 = arith.constant dense<0.000000e+00> : vector<16x16xf32>
    %901 = tpu.matmul %899, %900, %cst_354 {dimension_numbers = #tpu.dot_dimension_numbers<[1], [0], [0], [1], [0, 0, 1, 1], [], []>} : vector<16x24xbf16>, vector<24x16xbf16>, vector<16x16xf32> -> vector<16x16xf32>
    %c0_355 = arith.constant 0 : index
    %c16_356 = arith.constant 16 : index
    %902 = vector.load %arg34[%c0_355, %c16_356] : memref<16x32xf32, #tpu.memory_space<vmem>>, vector<16x16xf32>
    tpu.vector_store %arg34[%c0_355, %c16_356], %901 {strides = array<i32>} : memref<16x32xf32, #tpu.memory_space<vmem>>, vector<16x16xf32>,
    %c0_357 = arith.constant 0 : index
    %c0_358 = arith.constant 0 : index
    %903 = vector.load %arg34[%c0_357, %c0_358] : memref<16x32xf32, #tpu.memory_space<vmem>>, vector<16x32xf32>
    %904 = vector.broadcast %629 : vector<1x32xf32> to vector<16x32xf32>
    %905 = arith.mulf %904, %903 : vector<16x32xf32>
    %906 = arith.addf %640, %905 : vector<16x32xf32>
    %cst_359 = arith.constant dense<0.000000e+00> : vector<16xf32>
    %907 = vector.multi_reduction <add>, %906, %cst_359 [1] : vector<16x32xf32> to vector<16xf32>
    %908 = vector.shape_cast %907 : vector<16xf32> to vector<16x1xf32>
    %cst_360 = arith.constant 3.200000e+01 : f32
    %909 = vector.broadcast %cst_360 : f32 to vector<16x1xf32>
    %910 = arith.divf %908, %909 : vector<16x1xf32>
    %911 = vector.broadcast %910 : vector<16x1xf32> to vector<16x32xf32>
    %912 = arith.subf %906, %911 : vector<16x32xf32>
    %913 = arith.mulf %912, %912 : vector<16x32xf32>
    %cst_361 = arith.constant dense<0.000000e+00> : vector<16xf32>
    %914 = vector.multi_reduction <add>, %913, %cst_361 [1] : vector<16x32xf32> to vector<16xf32>
    %915 = vector.shape_cast %914 : vector<16xf32> to vector<16x1xf32>
    %cst_362 = arith.constant 3.200000e+01 : f32
    %916 = vector.broadcast %cst_362 : f32 to vector<16x1xf32>
    %917 = arith.divf %915, %916 : vector<16x1xf32>
    %918 = vector.broadcast %910 : vector<16x1xf32> to vector<16x32xf32>
    %919 = arith.subf %906, %918 : vector<16x32xf32>
    %cst_363 = arith.constant 9.99999997E-7 : f32
    %920 = vector.broadcast %cst_363 : f32 to vector<16x1xf32>
    %921 = arith.addf %917, %920 : vector<16x1xf32>
    %922 = math.rsqrt %921 : vector<16x1xf32>
    %923 = vector.broadcast %922 : vector<16x1xf32> to vector<16x32xf32>
    %924 = arith.mulf %919, %923 : vector<16x32xf32>
    %cst_364 = arith.constant 1.000000e+00 : f32
    %925 = vector.broadcast %cst_364 : f32 to vector<1x32xf32>
    %926 = arith.addf %925, %628 : vector<1x32xf32>
    %927 = vector.broadcast %926 : vector<1x32xf32> to vector<16x32xf32>
    %928 = arith.mulf %927, %924 : vector<16x32xf32>
    %929 = vector.broadcast %627 : vector<1x32xf32> to vector<16x32xf32>
    %930 = arith.addf %928, %929 : vector<16x32xf32>
    %c0_365 = arith.constant 0 : index
    %c0_366 = arith.constant 0 : index
    %931 = vector.load %arg14[%c0_365, %c0_366] : memref<32x96xf32, #tpu.memory_space<vmem>>, vector<32x96xf32>
    %932 = arith.truncf %930 : vector<16x32xf32> to vector<16x32xbf16>
    %933 = arith.truncf %931 : vector<32x96xf32> to vector<32x96xbf16>
    %cst_367 = arith.constant dense<0.000000e+00> : vector<16x96xf32>
    %934 = tpu.matmul %932, %933, %cst_367 {dimension_numbers = #tpu.dot_dimension_numbers<[1], [0], [0], [1], [0, 0, 1, 1], [], []>} : vector<16x32xbf16>, vector<32x96xbf16>, vector<16x96xf32> -> vector<16x96xf32>
    %c0_368 = arith.constant 0 : index
    %c0_369 = arith.constant 0 : index
    %935 = vector.load %arg15[%c0_368, %c0_369] : memref<1x96xf32, #tpu.memory_space<vmem>>, vector<1x96xf32>
    %936 = vector.broadcast %935 : vector<1x96xf32> to vector<16x96xf32>
    %937 = arith.addf %934, %936 : vector<16x96xf32>
    %938 = vector.extract_strided_slice %937 {offsets = [0, 0], sizes = [16, 16], strides = [1, 1]} : vector<16x96xf32> to vector<16x16xf32>
    %939 = vector.extract_strided_slice %937 {offsets = [0, 32], sizes = [16, 16], strides = [1, 1]} : vector<16x96xf32> to vector<16x16xf32>
    %940 = vector.extract_strided_slice %937 {offsets = [0, 64], sizes = [16, 16], strides = [1, 1]} : vector<16x96xf32> to vector<16x16xf32>
    %941 = arith.mulf %938, %938 : vector<16x16xf32>
    %cst_370 = arith.constant dense<0.000000e+00> : vector<16xf32>
    %942 = vector.multi_reduction <add>, %941, %cst_370 [1] : vector<16x16xf32> to vector<16xf32>
    %943 = vector.shape_cast %942 : vector<16xf32> to vector<16x1xf32>
    %cst_371 = arith.constant 1.600000e+01 : f32
    %944 = vector.broadcast %cst_371 : f32 to vector<16x1xf32>
    %945 = arith.divf %943, %944 : vector<16x1xf32>
    %cst_372 = arith.constant 9.99999997E-7 : f32
    %946 = vector.broadcast %cst_372 : f32 to vector<16x1xf32>
    %947 = arith.addf %945, %946 : vector<16x1xf32>
    %948 = math.rsqrt %947 : vector<16x1xf32>
    %949 = vector.broadcast %948 : vector<16x1xf32> to vector<16x16xf32>
    %950 = arith.mulf %938, %949 : vector<16x16xf32>
    %951 = vector.broadcast %22 : vector<1x16xf32> to vector<16x16xf32>
    %952 = arith.mulf %950, %951 : vector<16x16xf32>
    %953 = arith.mulf %649, %952 : vector<16x16xf32>
    %cst_373 = arith.constant dense<0.000000e+00> : vector<16x16xf32>
    %954 = tpu.matmul %952, %0, %cst_373 {dimension_numbers = #tpu.dot_dimension_numbers<[1], [0], [0], [1], [0, 0, 1, 1], [], []>} : vector<16x16xf32>, vector<16x16xf32>, vector<16x16xf32> -> vector<16x16xf32>
    %955 = arith.mulf %650, %954 : vector<16x16xf32>
    %956 = arith.addf %953, %955 : vector<16x16xf32>
    %957 = arith.mulf %939, %939 : vector<16x16xf32>
    %cst_374 = arith.constant dense<0.000000e+00> : vector<16xf32>
    %958 = vector.multi_reduction <add>, %957, %cst_374 [1] : vector<16x16xf32> to vector<16xf32>
    %959 = vector.shape_cast %958 : vector<16xf32> to vector<16x1xf32>
    %cst_375 = arith.constant 1.600000e+01 : f32
    %960 = vector.broadcast %cst_375 : f32 to vector<16x1xf32>
    %961 = arith.divf %959, %960 : vector<16x1xf32>
    %cst_376 = arith.constant 9.99999997E-7 : f32
    %962 = vector.broadcast %cst_376 : f32 to vector<16x1xf32>
    %963 = arith.addf %961, %962 : vector<16x1xf32>
    %964 = math.rsqrt %963 : vector<16x1xf32>
    %965 = vector.broadcast %964 : vector<16x1xf32> to vector<16x16xf32>
    %966 = arith.mulf %939, %965 : vector<16x16xf32>
    %967 = vector.broadcast %23 : vector<1x16xf32> to vector<16x16xf32>
    %968 = arith.mulf %966, %967 : vector<16x16xf32>
    %969 = arith.mulf %649, %968 : vector<16x16xf32>
    %cst_377 = arith.constant dense<0.000000e+00> : vector<16x16xf32>
    %970 = tpu.matmul %968, %0, %cst_377 {dimension_numbers = #tpu.dot_dimension_numbers<[1], [0], [0], [1], [0, 0, 1, 1], [], []>} : vector<16x16xf32>, vector<16x16xf32>, vector<16x16xf32> -> vector<16x16xf32>
    %971 = arith.mulf %650, %970 : vector<16x16xf32>
    %972 = arith.addf %969, %971 : vector<16x16xf32>
    %c8_378 = arith.constant 8 : index
    %c0_379 = arith.constant 0 : index
    %973 = vector.load %arg32[%c8_378, %c0_379] : memref<48x16xf32, #tpu.memory_space<vmem>>, vector<16x16xf32>
    tpu.vector_store %arg32[%c8_378, %c0_379], %972 {strides = array<i32>} : memref<48x16xf32, #tpu.memory_space<vmem>>, vector<16x16xf32>,
    %c8_380 = arith.constant 8 : index
    %c0_381 = arith.constant 0 : index
    %974 = vector.load %arg33[%c8_380, %c0_381] : memref<48x16xf32, #tpu.memory_space<vmem>>, vector<16x16xf32>
    tpu.vector_store %arg33[%c8_380, %c0_381], %940 {strides = array<i32>} : memref<48x16xf32, #tpu.memory_space<vmem>>, vector<16x16xf32>,
    %c0_382 = arith.constant 0 : index
    %c0_383 = arith.constant 0 : index
    %975 = vector.load %arg32[%c0_382, %c0_383] : memref<48x16xf32, #tpu.memory_space<vmem>>, vector<24x16xf32>
    %c0_384 = arith.constant 0 : index
    %c0_385 = arith.constant 0 : index
    %976 = vector.load %arg33[%c0_384, %c0_385] : memref<48x16xf32, #tpu.memory_space<vmem>>, vector<24x16xf32>
    %977 = arith.truncf %956 : vector<16x16xf32> to vector<16x16xbf16>
    %978 = arith.truncf %975 : vector<24x16xf32> to vector<24x16xbf16>
    %cst_386 = arith.constant dense<0.000000e+00> : vector<16x24xf32>
    %979 = tpu.matmul %977, %978, %cst_386 {dimension_numbers = #tpu.dot_dimension_numbers<[1], [1], [0], [0], [0, 0, 1, 0], [], []>} : vector<16x16xbf16>, vector<24x16xbf16>, vector<16x24xf32> -> vector<16x24xf32>
    %cst_387 = arith.constant 2.500000e-01 : f32
    %980 = vector.broadcast %cst_387 : f32 to vector<16x24xf32>
    %981 = arith.mulf %979, %980 : vector<16x24xf32>
    %cst_388 = arith.constant dense<0xFF800000> : vector<16xf32>
    %982 = vector.multi_reduction <maximumf>, %981, %cst_388 [1] : vector<16x24xf32> to vector<16xf32>
    %983 = vector.shape_cast %982 : vector<16xf32> to vector<16x1xf32>
    %984 = vector.broadcast %983 : vector<16x1xf32> to vector<16x24xf32>
    %985 = arith.subf %981, %984 : vector<16x24xf32>
    %986 = math.exp %985 : vector<16x24xf32>
    %cst_389 = arith.constant dense<0.000000e+00> : vector<16xf32>
    %987 = vector.multi_reduction <add>, %986, %cst_389 [1] : vector<16x24xf32> to vector<16xf32>
    %988 = vector.shape_cast %987 : vector<16xf32> to vector<16x1xf32>
    %989 = tpu.reciprocal %988 {approx = true} : vector<16x1xf32> -> vector<16x1xf32>
    %990 = vector.broadcast %989 : vector<16x1xf32> to vector<16x24xf32>
    %991 = arith.mulf %986, %990 : vector<16x24xf32>
    %992 = arith.truncf %991 : vector<16x24xf32> to vector<16x24xbf16>
    %993 = arith.truncf %976 : vector<24x16xf32> to vector<24x16xbf16>
    %cst_390 = arith.constant dense<0.000000e+00> : vector<16x16xf32>
    %994 = tpu.matmul %992, %993, %cst_390 {dimension_numbers = #tpu.dot_dimension_numbers<[1], [0], [0], [1], [0, 0, 1, 1], [], []>} : vector<16x24xbf16>, vector<24x16xbf16>, vector<16x16xf32> -> vector<16x16xf32>
    %c0_391 = arith.constant 0 : index
    %c0_392 = arith.constant 0 : index
    %995 = vector.load %arg34[%c0_391, %c0_392] : memref<16x32xf32, #tpu.memory_space<vmem>>, vector<16x16xf32>
    tpu.vector_store %arg34[%c0_391, %c0_392], %994 {strides = array<i32>} : memref<16x32xf32, #tpu.memory_space<vmem>>, vector<16x16xf32>,
    %996 = arith.truncf %700 : vector<8x16xf32> to vector<8x16xbf16>
    %997 = arith.truncf %975 : vector<24x16xf32> to vector<24x16xbf16>
    %cst_393 = arith.constant dense<0.000000e+00> : vector<8x24xf32>
    %998 = tpu.matmul %996, %997, %cst_393 {dimension_numbers = #tpu.dot_dimension_numbers<[1], [1], [0], [0], [0, 0, 1, 0], [], []>} : vector<8x16xbf16>, vector<24x16xbf16>, vector<8x24xf32> -> vector<8x24xf32>
    %cst_394 = arith.constant 2.500000e-01 : f32
    %999 = vector.broadcast %cst_394 : f32 to vector<8x24xf32>
    %1000 = arith.mulf %998, %999 : vector<8x24xf32>
    %cst_395 = arith.constant dense<0xFF800000> : vector<8xf32>
    %1001 = vector.multi_reduction <maximumf>, %1000, %cst_395 [1] : vector<8x24xf32> to vector<8xf32>
    %1002 = vector.shape_cast %1001 : vector<8xf32> to vector<8x1xf32>
    %1003 = vector.broadcast %1002 : vector<8x1xf32> to vector<8x24xf32>
    %1004 = arith.subf %1000, %1003 : vector<8x24xf32>
    %1005 = math.exp %1004 : vector<8x24xf32>
    %cst_396 = arith.constant dense<0.000000e+00> : vector<8xf32>
    %1006 = vector.multi_reduction <add>, %1005, %cst_396 [1] : vector<8x24xf32> to vector<8xf32>
    %1007 = vector.shape_cast %1006 : vector<8xf32> to vector<8x1xf32>
    %1008 = tpu.reciprocal %1007 {approx = true} : vector<8x1xf32> -> vector<8x1xf32>
    %1009 = vector.broadcast %1008 : vector<8x1xf32> to vector<8x24xf32>
    %1010 = arith.mulf %1005, %1009 : vector<8x24xf32>
    %1011 = arith.truncf %1010 : vector<8x24xf32> to vector<8x24xbf16>
    %1012 = arith.truncf %976 : vector<24x16xf32> to vector<24x16xbf16>
    %cst_397 = arith.constant dense<0.000000e+00> : vector<8x16xf32>
    %1013 = tpu.matmul %1011, %1012, %cst_397 {dimension_numbers = #tpu.dot_dimension_numbers<[1], [0], [0], [1], [0, 0, 1, 1], [], []>} : vector<8x24xbf16>, vector<24x16xbf16>, vector<8x16xf32> -> vector<8x16xf32>
    %c0_398 = arith.constant 0 : index
    %c0_399 = arith.constant 0 : index
    %1014 = vector.load %arg35[%c0_398, %c0_399] : memref<8x32xf32, #tpu.memory_space<vmem>>, vector<8x16xf32>
    tpu.vector_store %arg35[%c0_398, %c0_399], %1013 {strides = array<i32>} : memref<8x32xf32, #tpu.memory_space<vmem>>, vector<8x16xf32>,
    %1015 = vector.extract_strided_slice %937 {offsets = [0, 16], sizes = [16, 16], strides = [1, 1]} : vector<16x96xf32> to vector<16x16xf32>
    %1016 = vector.extract_strided_slice %937 {offsets = [0, 48], sizes = [16, 16], strides = [1, 1]} : vector<16x96xf32> to vector<16x16xf32>
    %1017 = vector.extract_strided_slice %937 {offsets = [0, 80], sizes = [16, 16], strides = [1, 1]} : vector<16x96xf32> to vector<16x16xf32>
    %1018 = arith.mulf %1015, %1015 : vector<16x16xf32>
    %cst_400 = arith.constant dense<0.000000e+00> : vector<16xf32>
    %1019 = vector.multi_reduction <add>, %1018, %cst_400 [1] : vector<16x16xf32> to vector<16xf32>
    %1020 = vector.shape_cast %1019 : vector<16xf32> to vector<16x1xf32>
    %cst_401 = arith.constant 1.600000e+01 : f32
    %1021 = vector.broadcast %cst_401 : f32 to vector<16x1xf32>
    %1022 = arith.divf %1020, %1021 : vector<16x1xf32>
    %cst_402 = arith.constant 9.99999997E-7 : f32
    %1023 = vector.broadcast %cst_402 : f32 to vector<16x1xf32>
    %1024 = arith.addf %1022, %1023 : vector<16x1xf32>
    %1025 = math.rsqrt %1024 : vector<16x1xf32>
    %1026 = vector.broadcast %1025 : vector<16x1xf32> to vector<16x16xf32>
    %1027 = arith.mulf %1015, %1026 : vector<16x16xf32>
    %1028 = vector.broadcast %22 : vector<1x16xf32> to vector<16x16xf32>
    %1029 = arith.mulf %1027, %1028 : vector<16x16xf32>
    %1030 = arith.mulf %649, %1029 : vector<16x16xf32>
    %cst_403 = arith.constant dense<0.000000e+00> : vector<16x16xf32>
    %1031 = tpu.matmul %1029, %0, %cst_403 {dimension_numbers = #tpu.dot_dimension_numbers<[1], [0], [0], [1], [0, 0, 1, 1], [], []>} : vector<16x16xf32>, vector<16x16xf32>, vector<16x16xf32> -> vector<16x16xf32>
    %1032 = arith.mulf %650, %1031 : vector<16x16xf32>
    %1033 = arith.addf %1030, %1032 : vector<16x16xf32>
    %1034 = arith.mulf %1016, %1016 : vector<16x16xf32>
    %cst_404 = arith.constant dense<0.000000e+00> : vector<16xf32>
    %1035 = vector.multi_reduction <add>, %1034, %cst_404 [1] : vector<16x16xf32> to vector<16xf32>
    %1036 = vector.shape_cast %1035 : vector<16xf32> to vector<16x1xf32>
    %cst_405 = arith.constant 1.600000e+01 : f32
    %1037 = vector.broadcast %cst_405 : f32 to vector<16x1xf32>
    %1038 = arith.divf %1036, %1037 : vector<16x1xf32>
    %cst_406 = arith.constant 9.99999997E-7 : f32
    %1039 = vector.broadcast %cst_406 : f32 to vector<16x1xf32>
    %1040 = arith.addf %1038, %1039 : vector<16x1xf32>
    %1041 = math.rsqrt %1040 : vector<16x1xf32>
    %1042 = vector.broadcast %1041 : vector<16x1xf32> to vector<16x16xf32>
    %1043 = arith.mulf %1016, %1042 : vector<16x16xf32>
    %1044 = vector.broadcast %23 : vector<1x16xf32> to vector<16x16xf32>
    %1045 = arith.mulf %1043, %1044 : vector<16x16xf32>
    %1046 = arith.mulf %649, %1045 : vector<16x16xf32>
    %cst_407 = arith.constant dense<0.000000e+00> : vector<16x16xf32>
    %1047 = tpu.matmul %1045, %0, %cst_407 {dimension_numbers = #tpu.dot_dimension_numbers<[1], [0], [0], [1], [0, 0, 1, 1], [], []>} : vector<16x16xf32>, vector<16x16xf32>, vector<16x16xf32> -> vector<16x16xf32>
    %1048 = arith.mulf %650, %1047 : vector<16x16xf32>
    %1049 = arith.addf %1046, %1048 : vector<16x16xf32>
    %c32_408 = arith.constant 32 : index
    %c0_409 = arith.constant 0 : index
    %1050 = vector.load %arg32[%c32_408, %c0_409] : memref<48x16xf32, #tpu.memory_space<vmem>>, vector<16x16xf32>
    tpu.vector_store %arg32[%c32_408, %c0_409], %1049 {strides = array<i32>} : memref<48x16xf32, #tpu.memory_space<vmem>>, vector<16x16xf32>,
    %c32_410 = arith.constant 32 : index
    %c0_411 = arith.constant 0 : index
    %1051 = vector.load %arg33[%c32_410, %c0_411] : memref<48x16xf32, #tpu.memory_space<vmem>>, vector<16x16xf32>
    tpu.vector_store %arg33[%c32_410, %c0_411], %1017 {strides = array<i32>} : memref<48x16xf32, #tpu.memory_space<vmem>>, vector<16x16xf32>,
    %c24_412 = arith.constant 24 : index
    %c0_413 = arith.constant 0 : index
    %1052 = vector.load %arg32[%c24_412, %c0_413] : memref<48x16xf32, #tpu.memory_space<vmem>>, vector<24x16xf32>
    %c24_414 = arith.constant 24 : index
    %c0_415 = arith.constant 0 : index
    %1053 = vector.load %arg33[%c24_414, %c0_415] : memref<48x16xf32, #tpu.memory_space<vmem>>, vector<24x16xf32>
    %1054 = arith.truncf %1033 : vector<16x16xf32> to vector<16x16xbf16>
    %1055 = arith.truncf %1052 : vector<24x16xf32> to vector<24x16xbf16>
    %cst_416 = arith.constant dense<0.000000e+00> : vector<16x24xf32>
    %1056 = tpu.matmul %1054, %1055, %cst_416 {dimension_numbers = #tpu.dot_dimension_numbers<[1], [1], [0], [0], [0, 0, 1, 0], [], []>} : vector<16x16xbf16>, vector<24x16xbf16>, vector<16x24xf32> -> vector<16x24xf32>
    %cst_417 = arith.constant 2.500000e-01 : f32
    %1057 = vector.broadcast %cst_417 : f32 to vector<16x24xf32>
    %1058 = arith.mulf %1056, %1057 : vector<16x24xf32>
    %cst_418 = arith.constant dense<0xFF800000> : vector<16xf32>
    %1059 = vector.multi_reduction <maximumf>, %1058, %cst_418 [1] : vector<16x24xf32> to vector<16xf32>
    %1060 = vector.shape_cast %1059 : vector<16xf32> to vector<16x1xf32>
    %1061 = vector.broadcast %1060 : vector<16x1xf32> to vector<16x24xf32>
    %1062 = arith.subf %1058, %1061 : vector<16x24xf32>
    %1063 = math.exp %1062 : vector<16x24xf32>
    %cst_419 = arith.constant dense<0.000000e+00> : vector<16xf32>
    %1064 = vector.multi_reduction <add>, %1063, %cst_419 [1] : vector<16x24xf32> to vector<16xf32>
    %1065 = vector.shape_cast %1064 : vector<16xf32> to vector<16x1xf32>
    %1066 = tpu.reciprocal %1065 {approx = true} : vector<16x1xf32> -> vector<16x1xf32>
    %1067 = vector.broadcast %1066 : vector<16x1xf32> to vector<16x24xf32>
    %1068 = arith.mulf %1063, %1067 : vector<16x24xf32>
    %1069 = arith.truncf %1068 : vector<16x24xf32> to vector<16x24xbf16>
    %1070 = arith.truncf %1053 : vector<24x16xf32> to vector<24x16xbf16>
    %cst_420 = arith.constant dense<0.000000e+00> : vector<16x16xf32>
    %1071 = tpu.matmul %1069, %1070, %cst_420 {dimension_numbers = #tpu.dot_dimension_numbers<[1], [0], [0], [1], [0, 0, 1, 1], [], []>} : vector<16x24xbf16>, vector<24x16xbf16>, vector<16x16xf32> -> vector<16x16xf32>
    %c0_421 = arith.constant 0 : index
    %c16_422 = arith.constant 16 : index
    %1072 = vector.load %arg34[%c0_421, %c16_422] : memref<16x32xf32, #tpu.memory_space<vmem>>, vector<16x16xf32>
    tpu.vector_store %arg34[%c0_421, %c16_422], %1071 {strides = array<i32>} : memref<16x32xf32, #tpu.memory_space<vmem>>, vector<16x16xf32>,
    %1073 = arith.truncf %737 : vector<8x16xf32> to vector<8x16xbf16>
    %1074 = arith.truncf %1052 : vector<24x16xf32> to vector<24x16xbf16>
    %cst_423 = arith.constant dense<0.000000e+00> : vector<8x24xf32>
    %1075 = tpu.matmul %1073, %1074, %cst_423 {dimension_numbers = #tpu.dot_dimension_numbers<[1], [1], [0], [0], [0, 0, 1, 0], [], []>} : vector<8x16xbf16>, vector<24x16xbf16>, vector<8x24xf32> -> vector<8x24xf32>
    %cst_424 = arith.constant 2.500000e-01 : f32
    %1076 = vector.broadcast %cst_424 : f32 to vector<8x24xf32>
    %1077 = arith.mulf %1075, %1076 : vector<8x24xf32>
    %cst_425 = arith.constant dense<0xFF800000> : vector<8xf32>
    %1078 = vector.multi_reduction <maximumf>, %1077, %cst_425 [1] : vector<8x24xf32> to vector<8xf32>
    %1079 = vector.shape_cast %1078 : vector<8xf32> to vector<8x1xf32>
    %1080 = vector.broadcast %1079 : vector<8x1xf32> to vector<8x24xf32>
    %1081 = arith.subf %1077, %1080 : vector<8x24xf32>
    %1082 = math.exp %1081 : vector<8x24xf32>
    %cst_426 = arith.constant dense<0.000000e+00> : vector<8xf32>
    %1083 = vector.multi_reduction <add>, %1082, %cst_426 [1] : vector<8x24xf32> to vector<8xf32>
    %1084 = vector.shape_cast %1083 : vector<8xf32> to vector<8x1xf32>
    %1085 = tpu.reciprocal %1084 {approx = true} : vector<8x1xf32> -> vector<8x1xf32>
    %1086 = vector.broadcast %1085 : vector<8x1xf32> to vector<8x24xf32>
    %1087 = arith.mulf %1082, %1086 : vector<8x24xf32>
    %1088 = arith.truncf %1087 : vector<8x24xf32> to vector<8x24xbf16>
    %1089 = arith.truncf %1053 : vector<24x16xf32> to vector<24x16xbf16>
    %cst_427 = arith.constant dense<0.000000e+00> : vector<8x16xf32>
    %1090 = tpu.matmul %1088, %1089, %cst_427 {dimension_numbers = #tpu.dot_dimension_numbers<[1], [0], [0], [1], [0, 0, 1, 1], [], []>} : vector<8x24xbf16>, vector<24x16xbf16>, vector<8x16xf32> -> vector<8x16xf32>
    %c0_428 = arith.constant 0 : index
    %c16_429 = arith.constant 16 : index
    %1091 = vector.load %arg35[%c0_428, %c16_429] : memref<8x32xf32, #tpu.memory_space<vmem>>, vector<8x16xf32>
    tpu.vector_store %arg35[%c0_428, %c16_429], %1090 {strides = array<i32>} : memref<8x32xf32, #tpu.memory_space<vmem>>, vector<8x16xf32>,
    %c0_430 = arith.constant 0 : index
    %c0_431 = arith.constant 0 : index
    %1092 = vector.load %arg34[%c0_430, %c0_431] : memref<16x32xf32, #tpu.memory_space<vmem>>, vector<16x32xf32>
    %c0_432 = arith.constant 0 : index
    %c0_433 = arith.constant 0 : index
    %1093 = vector.load %arg35[%c0_432, %c0_433] : memref<8x32xf32, #tpu.memory_space<vmem>>, vector<8x32xf32>
    %c0_434 = arith.constant 0 : index
    %c0_435 = arith.constant 0 : index
    %1094 = vector.load %arg18[%c0_434, %c0_435] : memref<32x32xf32, #tpu.memory_space<vmem>>, vector<32x32xf32>
    %1095 = arith.truncf %1092 : vector<16x32xf32> to vector<16x32xbf16>
    %1096 = arith.truncf %1094 : vector<32x32xf32> to vector<32x32xbf16>
    %cst_436 = arith.constant dense<0.000000e+00> : vector<16x32xf32>
    %1097 = tpu.matmul %1095, %1096, %cst_436 {dimension_numbers = #tpu.dot_dimension_numbers<[1], [0], [0], [1], [0, 0, 1, 1], [], []>} : vector<16x32xbf16>, vector<32x32xbf16>, vector<16x32xf32> -> vector<16x32xf32>
    %c0_437 = arith.constant 0 : index
    %c0_438 = arith.constant 0 : index
    %1098 = vector.load %arg19[%c0_437, %c0_438] : memref<1x32xf32, #tpu.memory_space<vmem>>, vector<1x32xf32>
    %1099 = vector.broadcast %1098 : vector<1x32xf32> to vector<16x32xf32>
    %1100 = arith.addf %1097, %1099 : vector<16x32xf32>
    %1101 = vector.broadcast %629 : vector<1x32xf32> to vector<16x32xf32>
    %1102 = arith.mulf %1101, %1100 : vector<16x32xf32>
    %1103 = arith.addf %906, %1102 : vector<16x32xf32>
    %cst_439 = arith.constant dense<0.000000e+00> : vector<16xf32>
    %1104 = vector.multi_reduction <add>, %1103, %cst_439 [1] : vector<16x32xf32> to vector<16xf32>
    %1105 = vector.shape_cast %1104 : vector<16xf32> to vector<16x1xf32>
    %cst_440 = arith.constant 3.200000e+01 : f32
    %1106 = vector.broadcast %cst_440 : f32 to vector<16x1xf32>
    %1107 = arith.divf %1105, %1106 : vector<16x1xf32>
    %1108 = vector.broadcast %1107 : vector<16x1xf32> to vector<16x32xf32>
    %1109 = arith.subf %1103, %1108 : vector<16x32xf32>
    %1110 = arith.mulf %1109, %1109 : vector<16x32xf32>
    %cst_441 = arith.constant dense<0.000000e+00> : vector<16xf32>
    %1111 = vector.multi_reduction <add>, %1110, %cst_441 [1] : vector<16x32xf32> to vector<16xf32>
    %1112 = vector.shape_cast %1111 : vector<16xf32> to vector<16x1xf32>
    %cst_442 = arith.constant 3.200000e+01 : f32
    %1113 = vector.broadcast %cst_442 : f32 to vector<16x1xf32>
    %1114 = arith.divf %1112, %1113 : vector<16x1xf32>
    %1115 = vector.broadcast %1107 : vector<16x1xf32> to vector<16x32xf32>
    %1116 = arith.subf %1103, %1115 : vector<16x32xf32>
    %cst_443 = arith.constant 9.99999997E-7 : f32
    %1117 = vector.broadcast %cst_443 : f32 to vector<16x1xf32>
    %1118 = arith.addf %1114, %1117 : vector<16x1xf32>
    %1119 = math.rsqrt %1118 : vector<16x1xf32>
    %1120 = vector.broadcast %1119 : vector<16x1xf32> to vector<16x32xf32>
    %1121 = arith.mulf %1116, %1120 : vector<16x32xf32>
    %cst_444 = arith.constant 1.000000e+00 : f32
    %1122 = vector.broadcast %cst_444 : f32 to vector<1x32xf32>
    %1123 = arith.addf %1122, %631 : vector<1x32xf32>
    %1124 = vector.broadcast %1123 : vector<1x32xf32> to vector<16x32xf32>
    %1125 = arith.mulf %1124, %1121 : vector<16x32xf32>
    %1126 = vector.broadcast %630 : vector<1x32xf32> to vector<16x32xf32>
    %1127 = arith.addf %1125, %1126 : vector<16x32xf32>
    %c0_445 = arith.constant 0 : index
    %c0_446 = arith.constant 0 : index
    %1128 = vector.load %arg22[%c0_445, %c0_446] : memref<32x128xf32, #tpu.memory_space<vmem>>, vector<32x128xf32>
    %1129 = arith.truncf %1127 : vector<16x32xf32> to vector<16x32xbf16>
    %1130 = arith.truncf %1128 : vector<32x128xf32> to vector<32x128xbf16>
    %cst_447 = arith.constant dense<0.000000e+00> : vector<16x128xf32>
    %1131 = tpu.matmul %1129, %1130, %cst_447 {dimension_numbers = #tpu.dot_dimension_numbers<[1], [0], [0], [1], [0, 0, 1, 1], [], []>} : vector<16x32xbf16>, vector<32x128xbf16>, vector<16x128xf32> -> vector<16x128xf32>
    %c0_448 = arith.constant 0 : index
    %c0_449 = arith.constant 0 : index
    %1132 = vector.load %arg23[%c0_448, %c0_449] : memref<1x128xf32, #tpu.memory_space<vmem>>, vector<1x128xf32>
    %1133 = vector.broadcast %1132 : vector<1x128xf32> to vector<16x128xf32>
    %1134 = arith.addf %1131, %1133 : vector<16x128xf32>
    %1135 = arith.mulf %1134, %1134 : vector<16x128xf32>
    %1136 = arith.mulf %1134, %1135 : vector<16x128xf32>
    %cst_450 = arith.constant 4.471500e-02 : f32
    %1137 = vector.broadcast %cst_450 : f32 to vector<16x128xf32>
    %1138 = arith.mulf %1137, %1136 : vector<16x128xf32>
    %1139 = arith.addf %1134, %1138 : vector<16x128xf32>
    %cst_451 = arith.constant 0.797884583 : f32
    %1140 = vector.broadcast %cst_451 : f32 to vector<16x128xf32>
    %1141 = arith.mulf %1140, %1139 : vector<16x128xf32>
    %1142 = math.tanh %1141 : vector<16x128xf32>
    %cst_452 = arith.constant 1.000000e+00 : f32
    %1143 = vector.broadcast %cst_452 : f32 to vector<16x128xf32>
    %1144 = arith.addf %1143, %1142 : vector<16x128xf32>
    %cst_453 = arith.constant 5.000000e-01 : f32
    %1145 = vector.broadcast %cst_453 : f32 to vector<16x128xf32>
    %1146 = arith.mulf %1145, %1144 : vector<16x128xf32>
    %1147 = arith.mulf %1134, %1146 : vector<16x128xf32>
    %c0_454 = arith.constant 0 : index
    %c0_455 = arith.constant 0 : index
    %1148 = vector.load %arg24[%c0_454, %c0_455] : memref<128x32xf32, #tpu.memory_space<vmem>>, vector<128x32xf32>
    %1149 = arith.truncf %1147 : vector<16x128xf32> to vector<16x128xbf16>
    %1150 = arith.truncf %1148 : vector<128x32xf32> to vector<128x32xbf16>
    %cst_456 = arith.constant dense<0.000000e+00> : vector<16x32xf32>
    %1151 = tpu.matmul %1149, %1150, %cst_456 {dimension_numbers = #tpu.dot_dimension_numbers<[1], [0], [0], [1], [0, 0, 1, 1], [], []>} : vector<16x128xbf16>, vector<128x32xbf16>, vector<16x32xf32> -> vector<16x32xf32>
    %c0_457 = arith.constant 0 : index
    %c0_458 = arith.constant 0 : index
    %1152 = vector.load %arg25[%c0_457, %c0_458] : memref<1x32xf32, #tpu.memory_space<vmem>>, vector<1x32xf32>
    %1153 = vector.broadcast %1152 : vector<1x32xf32> to vector<16x32xf32>
    %1154 = arith.addf %1151, %1153 : vector<16x32xf32>
    %1155 = vector.broadcast %632 : vector<1x32xf32> to vector<16x32xf32>
    %1156 = arith.mulf %1155, %1154 : vector<16x32xf32>
    %1157 = arith.addf %1103, %1156 : vector<16x32xf32>
    %c1_459 = arith.constant 1 : index
    %c0_460 = arith.constant 0 : index
    %c0_461 = arith.constant 0 : index
    %1158 = vector.load %arg30[%c1_459, %c0_460, %c0_461] : memref<2x16x32xf32, #tpu.memory_space<vmem>>, vector<1x16x32xf32>
    %1159 = vector.shape_cast %1158 : vector<1x16x32xf32> to vector<16x32xf32>
    %1160 = vector.shape_cast %1157 : vector<16x32xf32> to vector<1x16x32xf32>
    tpu.vector_store %arg30[%c1_459, %c0_460, %c0_461], %1160 {strides = array<i32>} : memref<2x16x32xf32, #tpu.memory_space<vmem>>, vector<1x16x32xf32>,
    %c0_462 = arith.constant 0 : index
    %c0_463 = arith.constant 0 : index
    %1161 = vector.load %arg20[%c0_462, %c0_463] : memref<32x32xf32, #tpu.memory_space<vmem>>, vector<32x32xf32>
    %1162 = arith.truncf %1093 : vector<8x32xf32> to vector<8x32xbf16>
    %1163 = arith.truncf %1161 : vector<32x32xf32> to vector<32x32xbf16>
    %cst_464 = arith.constant dense<0.000000e+00> : vector<8x32xf32>
    %1164 = tpu.matmul %1162, %1163, %cst_464 {dimension_numbers = #tpu.dot_dimension_numbers<[1], [0], [0], [1], [0, 0, 1, 1], [], []>} : vector<8x32xbf16>, vector<32x32xbf16>, vector<8x32xf32> -> vector<8x32xf32>
    %c0_465 = arith.constant 0 : index
    %c0_466 = arith.constant 0 : index
    %1165 = vector.load %arg21[%c0_465, %c0_466] : memref<1x32xf32, #tpu.memory_space<vmem>>, vector<1x32xf32>
    %1166 = vector.broadcast %1165 : vector<1x32xf32> to vector<8x32xf32>
    %1167 = arith.addf %1164, %1166 : vector<8x32xf32>
    %1168 = vector.broadcast %635 : vector<1x32xf32> to vector<8x32xf32>
    %1169 = arith.mulf %1168, %1167 : vector<8x32xf32>
    %1170 = arith.addf %642, %1169 : vector<8x32xf32>
    %cst_467 = arith.constant dense<0.000000e+00> : vector<8xf32>
    %1171 = vector.multi_reduction <add>, %1170, %cst_467 [1] : vector<8x32xf32> to vector<8xf32>
    %1172 = vector.shape_cast %1171 : vector<8xf32> to vector<8x1xf32>
    %cst_468 = arith.constant 3.200000e+01 : f32
    %1173 = vector.broadcast %cst_468 : f32 to vector<8x1xf32>
    %1174 = arith.divf %1172, %1173 : vector<8x1xf32>
    %1175 = vector.broadcast %1174 : vector<8x1xf32> to vector<8x32xf32>
    %1176 = arith.subf %1170, %1175 : vector<8x32xf32>
    %1177 = arith.mulf %1176, %1176 : vector<8x32xf32>
    %cst_469 = arith.constant dense<0.000000e+00> : vector<8xf32>
    %1178 = vector.multi_reduction <add>, %1177, %cst_469 [1] : vector<8x32xf32> to vector<8xf32>
    %1179 = vector.shape_cast %1178 : vector<8xf32> to vector<8x1xf32>
    %cst_470 = arith.constant 3.200000e+01 : f32
    %1180 = vector.broadcast %cst_470 : f32 to vector<8x1xf32>
    %1181 = arith.divf %1179, %1180 : vector<8x1xf32>
    %1182 = vector.broadcast %1174 : vector<8x1xf32> to vector<8x32xf32>
    %1183 = arith.subf %1170, %1182 : vector<8x32xf32>
    %cst_471 = arith.constant 9.99999997E-7 : f32
    %1184 = vector.broadcast %cst_471 : f32 to vector<8x1xf32>
    %1185 = arith.addf %1181, %1184 : vector<8x1xf32>
    %1186 = math.rsqrt %1185 : vector<8x1xf32>
    %1187 = vector.broadcast %1186 : vector<8x1xf32> to vector<8x32xf32>
    %1188 = arith.mulf %1183, %1187 : vector<8x32xf32>
    %cst_472 = arith.constant 1.000000e+00 : f32
    %1189 = vector.broadcast %cst_472 : f32 to vector<1x32xf32>
    %1190 = arith.addf %1189, %637 : vector<1x32xf32>
    %1191 = vector.broadcast %1190 : vector<1x32xf32> to vector<8x32xf32>
    %1192 = arith.mulf %1191, %1188 : vector<8x32xf32>
    %1193 = vector.broadcast %636 : vector<1x32xf32> to vector<8x32xf32>
    %1194 = arith.addf %1192, %1193 : vector<8x32xf32>
    %c0_473 = arith.constant 0 : index
    %c0_474 = arith.constant 0 : index
    %1195 = vector.load %arg26[%c0_473, %c0_474] : memref<32x128xf32, #tpu.memory_space<vmem>>, vector<32x128xf32>
    %1196 = arith.truncf %1194 : vector<8x32xf32> to vector<8x32xbf16>
    %1197 = arith.truncf %1195 : vector<32x128xf32> to vector<32x128xbf16>
    %cst_475 = arith.constant dense<0.000000e+00> : vector<8x128xf32>
    %1198 = tpu.matmul %1196, %1197, %cst_475 {dimension_numbers = #tpu.dot_dimension_numbers<[1], [0], [0], [1], [0, 0, 1, 1], [], []>} : vector<8x32xbf16>, vector<32x128xbf16>, vector<8x128xf32> -> vector<8x128xf32>
    %c0_476 = arith.constant 0 : index
    %c0_477 = arith.constant 0 : index
    %1199 = vector.load %arg27[%c0_476, %c0_477] : memref<1x128xf32, #tpu.memory_space<vmem>>, vector<1x128xf32>
    %1200 = vector.broadcast %1199 : vector<1x128xf32> to vector<8x128xf32>
    %1201 = arith.addf %1198, %1200 : vector<8x128xf32>
    %1202 = arith.mulf %1201, %1201 : vector<8x128xf32>
    %1203 = arith.mulf %1201, %1202 : vector<8x128xf32>
    %cst_478 = arith.constant 4.471500e-02 : f32
    %1204 = vector.broadcast %cst_478 : f32 to vector<8x128xf32>
    %1205 = arith.mulf %1204, %1203 : vector<8x128xf32>
    %1206 = arith.addf %1201, %1205 : vector<8x128xf32>
    %cst_479 = arith.constant 0.797884583 : f32
    %1207 = vector.broadcast %cst_479 : f32 to vector<8x128xf32>
    %1208 = arith.mulf %1207, %1206 : vector<8x128xf32>
    %1209 = math.tanh %1208 : vector<8x128xf32>
    %cst_480 = arith.constant 1.000000e+00 : f32
    %1210 = vector.broadcast %cst_480 : f32 to vector<8x128xf32>
    %1211 = arith.addf %1210, %1209 : vector<8x128xf32>
    %cst_481 = arith.constant 5.000000e-01 : f32
    %1212 = vector.broadcast %cst_481 : f32 to vector<8x128xf32>
    %1213 = arith.mulf %1212, %1211 : vector<8x128xf32>
    %1214 = arith.mulf %1201, %1213 : vector<8x128xf32>
    %c0_482 = arith.constant 0 : index
    %c0_483 = arith.constant 0 : index
    %1215 = vector.load %arg28[%c0_482, %c0_483] : memref<128x32xf32, #tpu.memory_space<vmem>>, vector<128x32xf32>
    %1216 = arith.truncf %1214 : vector<8x128xf32> to vector<8x128xbf16>
    %1217 = arith.truncf %1215 : vector<128x32xf32> to vector<128x32xbf16>
    %cst_484 = arith.constant dense<0.000000e+00> : vector<8x32xf32>
    %1218 = tpu.matmul %1216, %1217, %cst_484 {dimension_numbers = #tpu.dot_dimension_numbers<[1], [0], [0], [1], [0, 0, 1, 1], [], []>} : vector<8x128xbf16>, vector<128x32xbf16>, vector<8x32xf32> -> vector<8x32xf32>
    %c0_485 = arith.constant 0 : index
    %c0_486 = arith.constant 0 : index
    %1219 = vector.load %arg29[%c0_485, %c0_486] : memref<1x32xf32, #tpu.memory_space<vmem>>, vector<1x32xf32>
    %1220 = vector.broadcast %1219 : vector<1x32xf32> to vector<8x32xf32>
    %1221 = arith.addf %1218, %1220 : vector<8x32xf32>
    %1222 = vector.broadcast %638 : vector<1x32xf32> to vector<8x32xf32>
    %1223 = arith.mulf %1222, %1221 : vector<8x32xf32>
    %1224 = arith.addf %1170, %1223 : vector<8x32xf32>
    %c1_487 = arith.constant 1 : index
    %c0_488 = arith.constant 0 : index
    %c0_489 = arith.constant 0 : index
    %1225 = vector.load %arg31[%c1_487, %c0_488, %c0_489] : memref<2x8x32xf32, #tpu.memory_space<vmem>>, vector<1x8x32xf32>
    %1226 = vector.shape_cast %1225 : vector<1x8x32xf32> to vector<8x32xf32>
    %1227 = vector.shape_cast %1224 : vector<8x32xf32> to vector<1x8x32xf32>
    tpu.vector_store %arg31[%c1_487, %c0_488, %c0_489], %1227 {strides = array<i32>} : memref<2x8x32xf32, #tpu.memory_space<vmem>>, vector<1x8x32xf32>,
    return
  }
}

</mosaic_0001>

<llo_original>
// kernel: double_stream_mixer_forward.1
$region0: #{double_stream_mixer_forward.1}
  #allocation0 [shape = 'u32[]', space=smem, size = 0x4, offset = 0x4, fixed_abs, tag = 'smem constant byte address 0x4 - core index']
  #allocation1 [shape = 'u32[144,128]{1,0:T(1,128)}', space=vmem, size = 0x12000, scoped, tag = 'internal scratch']
  #allocation2 [shape = 'f32[48,16]{1,0:T(8,128)}', space=vmem, size = 0x6000, scoped, tag = 'scratch operand']
  #allocation3 [shape = 'f32[48,16]{1,0:T(8,128)}', space=vmem, size = 0x6000, scoped, tag = 'scratch operand']
  #allocation4 [shape = 'f32[16,32]{1,0:T(8,128)}', space=vmem, size = 0x2000, scoped, tag = 'scratch operand']
  #allocation5 [shape = 'f32[8,32]{1,0:T(8,128)}', space=vmem, size = 0x1000, scoped, tag = 'scratch operand']
  %s0 = inlined_call_operand.smem [shape: u32[32], index: -1, kind: input, shape index: {}]
  %s1 = sld [smem:[%s0]]
  %s2 = scalar_lea.smem %s0, 1
  %s3 = sld [smem:[%s2]]
  %s4 = scalar_lea.smem %s0, 2
  %s5 = sld [smem:[%s4]]
  %s6 = scalar_lea.smem %s0, 3
  %s7 = sld [smem:[%s6]]
  %s8 = scalar_lea.smem %s0, 4
  %s9 = sld [smem:[%s8]]
  %s10 = scalar_lea.smem %s0, 5
  %s11 = sld [smem:[%s10]]
  %s12 = scalar_lea.smem %s0, 6
  %s13 = sld [smem:[%s12]]
  %s14 = scalar_lea.smem %s0, 7
  %s15 = sld [smem:[%s14]]
  %s16 = scalar_lea.smem %s0, 8
  %s17 = sld [smem:[%s16]]
  %s18 = scalar_lea.smem %s0, 9
  %s19 = sld [smem:[%s18]]
  %s20 = scalar_lea.smem %s0, 10
  %s21 = sld [smem:[%s20]]
  %s22 = scalar_lea.smem %s0, 11
  %s23 = sld [smem:[%s22]]
  %s24 = scalar_lea.smem %s0, 12
  %s25 = sld [smem:[%s24]]
  %s26 = scalar_lea.smem %s0, 13
  %s27 = sld [smem:[%s26]]
  %s28 = scalar_lea.smem %s0, 14
  %s29 = sld [smem:[%s28]]
  %s30 = scalar_lea.smem %s0, 15
  %s31 = sld [smem:[%s30]]
  %s32 = scalar_lea.smem %s0, 16
  %s33 = sld [smem:[%s32]]
  %s34 = scalar_lea.smem %s0, 17
  %s35 = sld [smem:[%s34]]
  %s36 = scalar_lea.smem %s0, 18
  %s37 = sld [smem:[%s36]]
  %s38 = scalar_lea.smem %s0, 19
  %s39 = sld [smem:[%s38]]
  %s40 = scalar_lea.smem %s0, 20
  %s41 = sld [smem:[%s40]]
  %s42 = scalar_lea.smem %s0, 21
  %s43 = sld [smem:[%s42]]
  %s44 = scalar_lea.smem %s0, 22
  %s45 = sld [smem:[%s44]]
  %s46 = scalar_lea.smem %s0, 23
  %s47 = sld [smem:[%s46]]
  %s48 = scalar_lea.smem %s0, 24
  %s49 = sld [smem:[%s48]]
  %s50 = scalar_lea.smem %s0, 25
  %s51 = sld [smem:[%s50]]
  %s52 = scalar_lea.smem %s0, 26
  %s53 = sld [smem:[%s52]]
  %s54 = scalar_lea.smem %s0, 27
  %s55 = sld [smem:[%s54]]
  %s56 = scalar_lea.smem %s0, 28
  %s57 = sld [smem:[%s56]]
  %s58 = scalar_lea.smem %s0, 29
  %s59 = sld [smem:[%s58]]
  %s60 = scalar_lea.smem %s0, 30
  %s61 = sld [smem:[%s60]]
  %s62 = scalar_lea.smem %s0, 31
  %s63 = sld [smem:[%s62]]
  %64 = xla_tuple %s61, %s63
  %s65 = sld [smem:[#allocation0]]
  $region138: #{double_stream_mixer_forward.1} parent=0
    _
  %s67 = ssub.s32 1, %s65
  %s68 = scalar_select 0, %s67, %s65
  $region1: #{double_stream_mixer_forward.1} parent=0
    #allocation6 [shape = 'u8[16384]{0}', space=vmem, size = 0x4000, scoped, tag = 'output window, operand 0, single buffered']
    #allocation7 [shape = 's32[1]{0}', space=sflag, size = 0x4, scoped, tag = 'scoped memory for double_stream_mixer_forward.1']
    #allocation8 [shape = 'u8[8192]{0}', space=vmem, size = 0x2000, scoped, tag = 'output window, operand 1, single buffered']
    #allocation9 [shape = 's32[1]{0}', space=sflag, size = 0x4, scoped, tag = 'scoped memory for double_stream_mixer_forward.1']
    %69 = vsyncpa [#allocation7], 0
    %70 = vsyncpa [#allocation9], 0
    // Predicated region
    $region2: #{double_stream_mixer_forward.1} parent=1 // pred_check
      _
    $region3: #{double_stream_mixer_forward.1} parent=1 // pred_check_branch
      %72 = sbr.rel (0) target = $region5
    $region4: #{double_stream_mixer_forward.1} parent=1 // pred_region
      _
    $region5: #{double_stream_mixer_forward.1} parent=1 // pred_fallthru
      _
    // Predicated region
    $region6: #{double_stream_mixer_forward.1} parent=1 // pred_check
      _
    $region7: #{double_stream_mixer_forward.1} parent=1 // pred_check_branch
      %74 = sbr.rel (0) target = $region9
    $region8: #{double_stream_mixer_forward.1} parent=1 // pred_region
      _
    $region9: #{double_stream_mixer_forward.1} parent=1 // pred_fallthru
      _
    // Predicated region
    $region10: #{double_stream_mixer_forward.1} parent=1 // pred_check
      _
    $region11: #{double_stream_mixer_forward.1} parent=1 // pred_check_branch
      %76 = sbr.rel (0) target = $region13
    $region12: #{double_stream_mixer_forward.1} parent=1 // pred_region
      _
    $region13: #{double_stream_mixer_forward.1} parent=1 // pred_fallthru
      _
    // Predicated region
    $region14: #{double_stream_mixer_forward.1} parent=1 // pred_check
      _
    $region15: #{double_stream_mixer_forward.1} parent=1 // pred_check_branch
      %78 = sbr.rel (0) target = $region17
    $region16: #{double_stream_mixer_forward.1} parent=1 // pred_region
      _
    $region17: #{double_stream_mixer_forward.1} parent=1 // pred_fallthru
      _
    // Predicated region
    $region18: #{double_stream_mixer_forward.1} parent=1 // pred_check
      _
    $region19: #{double_stream_mixer_forward.1} parent=1 // pred_check_branch
      %80 = sbr.rel (0) target = $region21
    $region20: #{double_stream_mixer_forward.1} parent=1 // pred_region
      _
    $region21: #{double_stream_mixer_forward.1} parent=1 // pred_fallthru
      _
    // Predicated region
    $region22: #{double_stream_mixer_forward.1} parent=1 // pred_check
      _
    $region23: #{double_stream_mixer_forward.1} parent=1 // pred_check_branch
      %82 = sbr.rel (0) target = $region25
    $region24: #{double_stream_mixer_forward.1} parent=1 // pred_region
      _
    $region25: #{double_stream_mixer_forward.1} parent=1 // pred_fallthru
      _
    // Predicated region
    $region26: #{double_stream_mixer_forward.1} parent=1 // pred_check
      _
    $region27: #{double_stream_mixer_forward.1} parent=1 // pred_check_branch
      %84 = sbr.rel (0) target = $region29
    $region28: #{double_stream_mixer_forward.1} parent=1 // pred_region
      _
    $region29: #{double_stream_mixer_forward.1} parent=1 // pred_fallthru
      _
    // Predicated region
    $region30: #{double_stream_mixer_forward.1} parent=1 // pred_check
      _
    $region31: #{double_stream_mixer_forward.1} parent=1 // pred_check_branch
      %86 = sbr.rel (0) target = $region33
    $region32: #{double_stream_mixer_forward.1} parent=1 // pred_region
      _
    $region33: #{double_stream_mixer_forward.1} parent=1 // pred_fallthru
      _
    // Predicated region
    $region34: #{double_stream_mixer_forward.1} parent=1 // pred_check
      _
    $region35: #{double_stream_mixer_forward.1} parent=1 // pred_check_branch
      %88 = sbr.rel (0) target = $region37
    $region36: #{double_stream_mixer_forward.1} parent=1 // pred_region
      _
    $region37: #{double_stream_mixer_forward.1} parent=1 // pred_fallthru
      _
    // Predicated region
    $region38: #{double_stream_mixer_forward.1} parent=1 // pred_check
      _
    $region39: #{double_stream_mixer_forward.1} parent=1 // pred_check_branch
      %90 = sbr.rel (0) target = $region41
    $region40: #{double_stream_mixer_forward.1} parent=1 // pred_region
      _
    $region41: #{double_stream_mixer_forward.1} parent=1 // pred_fallthru
      _
    // Predicated region
    $region42: #{double_stream_mixer_forward.1} parent=1 // pred_check
      _
    $region43: #{double_stream_mixer_forward.1} parent=1 // pred_check_branch
      %92 = sbr.rel (0) target = $region45
    $region44: #{double_stream_mixer_forward.1} parent=1 // pred_region
      _
    $region45: #{double_stream_mixer_forward.1} parent=1 // pred_fallthru
      _
    // Predicated region
    $region46: #{double_stream_mixer_forward.1} parent=1 // pred_check
      _
    $region47: #{double_stream_mixer_forward.1} parent=1 // pred_check_branch
      %94 = sbr.rel (0) target = $region49
    $region48: #{double_stream_mixer_forward.1} parent=1 // pred_region
      _
    $region49: #{double_stream_mixer_forward.1} parent=1 // pred_fallthru
      _
    // Predicated region
    $region50: #{double_stream_mixer_forward.1} parent=1 // pred_check
      _
    $region51: #{double_stream_mixer_forward.1} parent=1 // pred_check_branch
      %96 = sbr.rel (0) target = $region53
    $region52: #{double_stream_mixer_forward.1} parent=1 // pred_region
      _
    $region53: #{double_stream_mixer_forward.1} parent=1 // pred_fallthru
      _
    // Predicated region
    $region54: #{double_stream_mixer_forward.1} parent=1 // pred_check
      _
    $region55: #{double_stream_mixer_forward.1} parent=1 // pred_check_branch
      %98 = sbr.rel (0) target = $region57
    $region56: #{double_stream_mixer_forward.1} parent=1 // pred_region
      _
    $region57: #{double_stream_mixer_forward.1} parent=1 // pred_fallthru
      _
    // Predicated region
    $region58: #{double_stream_mixer_forward.1} parent=1 // pred_check
      _
    $region59: #{double_stream_mixer_forward.1} parent=1 // pred_check_branch
      %100 = sbr.rel (0) target = $region61
    $region60: #{double_stream_mixer_forward.1} parent=1 // pred_region
      _
    $region61: #{double_stream_mixer_forward.1} parent=1 // pred_fallthru
      _
    // Predicated region
    $region62: #{double_stream_mixer_forward.1} parent=1 // pred_check
      _
    $region63: #{double_stream_mixer_forward.1} parent=1 // pred_check_branch
      %102 = sbr.rel (0) target = $region65
    $region64: #{double_stream_mixer_forward.1} parent=1 // pred_region
      _
    $region65: #{double_stream_mixer_forward.1} parent=1 // pred_fallthru
      _
    // Predicated region
    $region66: #{double_stream_mixer_forward.1} parent=1 // pred_check
      _
    $region67: #{double_stream_mixer_forward.1} parent=1 // pred_check_branch
      %104 = sbr.rel (0) target = $region69
    $region68: #{double_stream_mixer_forward.1} parent=1 // pred_region
      _
    $region69: #{double_stream_mixer_forward.1} parent=1 // pred_fallthru
      _
    // Predicated region
    $region70: #{double_stream_mixer_forward.1} parent=1 // pred_check
      _
    $region71: #{double_stream_mixer_forward.1} parent=1 // pred_check_branch
      %106 = sbr.rel (0) target = $region73
    $region72: #{double_stream_mixer_forward.1} parent=1 // pred_region
      _
    $region73: #{double_stream_mixer_forward.1} parent=1 // pred_fallthru
      _
    // Predicated region
    $region74: #{double_stream_mixer_forward.1} parent=1 // pred_check
      _
    $region75: #{double_stream_mixer_forward.1} parent=1 // pred_check_branch
      %108 = sbr.rel (0) target = $region77
    $region76: #{double_stream_mixer_forward.1} parent=1 // pred_region
      _
    $region77: #{double_stream_mixer_forward.1} parent=1 // pred_fallthru
      _
    // Predicated region
    $region78: #{double_stream_mixer_forward.1} parent=1 // pred_check
      _
    $region79: #{double_stream_mixer_forward.1} parent=1 // pred_check_branch
      %110 = sbr.rel (0) target = $region81
    $region80: #{double_stream_mixer_forward.1} parent=1 // pred_region
      _
    $region81: #{double_stream_mixer_forward.1} parent=1 // pred_fallthru
      _
    // Predicated region
    $region82: #{double_stream_mixer_forward.1} parent=1 // pred_check
      _
    $region83: #{double_stream_mixer_forward.1} parent=1 // pred_check_branch
      %112 = sbr.rel (0) target = $region85
    $region84: #{double_stream_mixer_forward.1} parent=1 // pred_region
      _
    $region85: #{double_stream_mixer_forward.1} parent=1 // pred_fallthru
      _
    // Predicated region
    $region86: #{double_stream_mixer_forward.1} parent=1 // pred_check
      _
    $region87: #{double_stream_mixer_forward.1} parent=1 // pred_check_branch
      %114 = sbr.rel (0) target = $region89
    $region88: #{double_stream_mixer_forward.1} parent=1 // pred_region
      _
    $region89: #{double_stream_mixer_forward.1} parent=1 // pred_fallthru
      _
    // Predicated region
    $region90: #{double_stream_mixer_forward.1} parent=1 // pred_check
      _
    $region91: #{double_stream_mixer_forward.1} parent=1 // pred_check_branch
      %116 = sbr.rel (0) target = $region93
    $region92: #{double_stream_mixer_forward.1} parent=1 // pred_region
      _
    $region93: #{double_stream_mixer_forward.1} parent=1 // pred_fallthru
      _
    // Predicated region
    $region94: #{double_stream_mixer_forward.1} parent=1 // pred_check
      _
    $region95: #{double_stream_mixer_forward.1} parent=1 // pred_check_branch
      %118 = sbr.rel (0) target = $region97
    $region96: #{double_stream_mixer_forward.1} parent=1 // pred_region
      _
    $region97: #{double_stream_mixer_forward.1} parent=1 // pred_fallthru
      _
    // Predicated region
    $region98: #{double_stream_mixer_forward.1} parent=1 // pred_check
      _
    $region99: #{double_stream_mixer_forward.1} parent=1 // pred_check_branch
      %120 = sbr.rel (0) target = $region101
    $region100: #{double_stream_mixer_forward.1} parent=1 // pred_region
      _
    $region101: #{double_stream_mixer_forward.1} parent=1 // pred_fallthru
      _
    // Predicated region
    $region102: #{double_stream_mixer_forward.1} parent=1 // pred_check
      _
    $region103: #{double_stream_mixer_forward.1} parent=1 // pred_check_branch
      %122 = sbr.rel (0) target = $region105
    $region104: #{double_stream_mixer_forward.1} parent=1 // pred_region
      _
    $region105: #{double_stream_mixer_forward.1} parent=1 // pred_fallthru
      _
    // Predicated region
    $region106: #{double_stream_mixer_forward.1} parent=1 // pred_check
      _
    $region107: #{double_stream_mixer_forward.1} parent=1 // pred_check_branch
      %124 = sbr.rel (0) target = $region109
    $region108: #{double_stream_mixer_forward.1} parent=1 // pred_region
      _
    $region109: #{double_stream_mixer_forward.1} parent=1 // pred_fallthru
      _
    // Predicated region
    $region110: #{double_stream_mixer_forward.1} parent=1 // pred_check
      _
    $region111: #{double_stream_mixer_forward.1} parent=1 // pred_check_branch
      %126 = sbr.rel (0) target = $region113
    $region112: #{double_stream_mixer_forward.1} parent=1 // pred_region
      _
    $region113: #{double_stream_mixer_forward.1} parent=1 // pred_fallthru
      _
    // Predicated region
    $region114: #{double_stream_mixer_forward.1} parent=1 // pred_check
      _
    $region115: #{double_stream_mixer_forward.1} parent=1 // pred_check_branch
      %128 = sbr.rel (0) target = $region117
    $region116: #{double_stream_mixer_forward.1} parent=1 // pred_region
      _
    $region117: #{double_stream_mixer_forward.1} parent=1 // pred_fallthru
      _
    // Predicated region
    $region118: #{double_stream_mixer_forward.1} parent=1 // pred_check
      _
    $region119: #{double_stream_mixer_forward.1} parent=1 // pred_check_branch
      %130 = sbr.rel (0) target = $region121
    $region120: #{double_stream_mixer_forward.1} parent=1 // pred_region
      _
    $region121: #{double_stream_mixer_forward.1} parent=1 // pred_fallthru
      _
    %v132 = vld [vmem:[%s19] sm:$0xff]
    %v133 = vld [vmem:[%s19 + $0x8] sm:$0xff]
    %v134 = vld [vmem:[%s5] sm:$0x3]
    %v135 = vxor.u32 %v134, 2147483648
    %v136 = vmul.f32 %v135, 1.442695
    %v137 = vpow.pop %v136
    %v138 = vadd.f32 %v137, 1.0
    %v139 = vrcp.pop %v138
    %v140 = vmul.f32 1.0, %v139
    %v141 = vmul.f32 %v134, %v140
    %v142 = vld [vmem:[%s21] sm:$0xff]
    %v143 = vld [vmem:[%s21 + $0x8] sm:$0xff]
    %v144 = vld [vmem:[%s21 + $0x10] sm:$0xff]
    %v145 = vld [vmem:[%s21 + $0x18] sm:$0xff]
    %v146 = vld [vmem:[%s21 + $0x20] sm:$0xff]
    %v147 = vld [vmem:[%s21 + $0x28] sm:$0xff]
    %v148 = vld [vmem:[%s21 + $0x30] sm:$0xff]
    %v149 = vld [vmem:[%s21 + $0x38] sm:$0xff]
    %v150 = vpack.c.bf16 %v141, %v141
    %v151 = vpack.c.bf16 %v144, %v142
    %v152 = vpack.c.bf16 %v145, %v143
    %v153 = vpack.c.bf16 %v148, %v146
    %v154 = vpack.c.bf16 %v149, %v147
    %v155 = vld [vmem:[%s23] sm:$0x3]
    %v157 = vlaneseq
    %v158 = vshrl.u32 %v157, 7
    %v159 = vsub.s32 0, %v158
    %v160 = vrot.slane %v155, %v159
    %v161 = vlaneseq
    %v162 = vshrl.u32 %v161, 7
    %v163 = vsub.s32 1, %v162
    %v164 = vrot.slane %v155, %v163
    %vm167 = vcmask 261120
    %v169 = vsel %vm167, %v150, 0
    %171 = vmatprep.subr.bf16.mxu0 %v152
    %172 = vmatpush1.bf16.msra.mxu0 %v151
    %173 = vmatprep.subr.bf16.mxu0 %v154
    %174 = vmatpush1.bf16.msra.mxu0 %v153
    %175 = vmatprep.subr.bf16.mxu0 0
    %176 = vmatpush1.bf16.msra.mxu0 0
    %177 = vmatprep.subr.bf16.mxu0 0
    %178 = vmatpush1.bf16.msra.mxu0 0
    %179 = vmatprep.subr.bf16.mxu0 0
    %180 = vmatpush1.bf16.msra.mxu0 0
    %181 = vmatprep.subr.bf16.mxu0 0
    %182 = vmatpush1.bf16.msra.mxu0 0
    %183 = vmatprep.subr.bf16.mxu0 0
    %184 = vmatpush1.bf16.msra.mxu0 0
    %185 = vmatprep.subr.bf16.mxu0 0
    %186 = vmatpush1.bf16.msra.mxu0 0
    %187 = vmatprep.subr.bf16.mxu0 0
    %188 = vmatpush1.bf16.msra.mxu0 0
    %189 = vmatprep.subr.bf16.mxu0 0
    %190 = vmatpush1.bf16.msra.mxu0 0
    %191 = vmatprep.subr.bf16.mxu0 0
    %192 = vmatpush1.bf16.msra.mxu0 0
    %193 = vmatprep.subr.bf16.mxu0 0
    %194 = vmatpush1.bf16.msra.mxu0 0
    %195 = vmatprep.subr.bf16.mxu0 0
    %196 = vmatpush1.bf16.msra.mxu0 0
    %197 = vmatprep.subr.bf16.mxu0 0
    %198 = vmatpush1.bf16.msra.mxu0 0
    %199 = vmatprep.subr.bf16.mxu0 0
    %200 = vmatpush1.bf16.msra.mxu0 0
    %201 = vmatprep.subr.bf16.mxu0 0
    %202 = vmatpush1.bf16.msra.mxu0 0
    %203 = vmatprep.mubr.bf16.mxu0 0
    %204 = vmatmul.mubr.bf16.gmra.mrb[0].mxu0 %v169
    %v205 = vpop.f32.mrb[0].mxu0
    %v206 = vadd.f32 %v160, %v205
    %v207 = vpop.f32.mrb[0].mxu0
    %v208 = vadd.f32 %v164, %v207
    %v209 = vpop.f32.mrb[0].mxu0
    %v210 = vpop.f32.mrb[0].mxu0
    %211 = vdwg.mxu0
    %v212 = vld [vmem:[%s25] sm:$0xff]
    %v213 = vld [vmem:[%s25 + $0x8] sm:$0xff]
    %v214 = vld [vmem:[%s25 + $0x10] sm:$0xff]
    %v215 = vld [vmem:[%s25 + $0x18] sm:$0xff]
    %v216 = vld [vmem:[%s25 + $0x20] sm:$0xff]
    %v217 = vld [vmem:[%s25 + $0x28] sm:$0xff]
    %v218 = vld [vmem:[%s25 + $0x30] sm:$0xff]
    %v219 = vld [vmem:[%s25 + $0x38] sm:$0xff]
    %v220 = vpack.c.bf16 %v214, %v212
    %v221 = vpack.c.bf16 %v215, %v213
    %v222 = vpack.c.bf16 %v218, %v216
    %v223 = vpack.c.bf16 %v219, %v217
    %v224 = vld [vmem:[%s27] sm:$0x3]
    %v226 = vlaneseq
    %v227 = vshrl.u32 %v226, 7
    %v228 = vsub.s32 0, %v227
    %v229 = vrot.slane %v224, %v228
    %v230 = vlaneseq
    %v231 = vshrl.u32 %v230, 7
    %v232 = vsub.s32 1, %v231
    %v233 = vrot.slane %v224, %v232
    %236 = vmatprep.subr.bf16.mxu0 %v221
    %237 = vmatpush1.bf16.msra.mxu0 %v220
    %238 = vmatprep.subr.bf16.mxu0 %v223
    %239 = vmatpush1.bf16.msra.mxu0 %v222
    %240 = vmatprep.subr.bf16.mxu0 0
    %241 = vmatpush1.bf16.msra.mxu0 0
    %242 = vmatprep.subr.bf16.mxu0 0
    %243 = vmatpush1.bf16.msra.mxu0 0
    %244 = vmatprep.subr.bf16.mxu0 0
    %245 = vmatpush1.bf16.msra.mxu0 0
    %246 = vmatprep.subr.bf16.mxu0 0
    %247 = vmatpush1.bf16.msra.mxu0 0
    %248 = vmatprep.subr.bf16.mxu0 0
    %249 = vmatpush1.bf16.msra.mxu0 0
    %250 = vmatprep.subr.bf16.mxu0 0
    %251 = vmatpush1.bf16.msra.mxu0 0
    %252 = vmatprep.subr.bf16.mxu0 0
    %253 = vmatpush1.bf16.msra.mxu0 0
    %254 = vmatprep.subr.bf16.mxu0 0
    %255 = vmatpush1.bf16.msra.mxu0 0
    %256 = vmatprep.subr.bf16.mxu0 0
    %257 = vmatpush1.bf16.msra.mxu0 0
    %258 = vmatprep.subr.bf16.mxu0 0
    %259 = vmatpush1.bf16.msra.mxu0 0
    %260 = vmatprep.subr.bf16.mxu0 0
    %261 = vmatpush1.bf16.msra.mxu0 0
    %262 = vmatprep.subr.bf16.mxu0 0
    %263 = vmatpush1.bf16.msra.mxu0 0
    %264 = vmatprep.subr.bf16.mxu0 0
    %265 = vmatpush1.bf16.msra.mxu0 0
    %266 = vmatprep.subr.bf16.mxu0 0
    %267 = vmatpush1.bf16.msra.mxu0 0
    %268 = vmatprep.mubr.bf16.mxu0 0
    %269 = vmatmul.mubr.bf16.gmra.mrb[0].mxu0 %v169
    %v270 = vpop.f32.mrb[0].mxu0
    %v271 = vadd.f32 %v229, %v270
    %v272 = vpop.f32.mrb[0].mxu0
    %v273 = vadd.f32 %v233, %v272
    %v274 = vpop.f32.mrb[0].mxu0
    %v275 = vpop.f32.mrb[0].mxu0
    %276 = vdwg.mxu0
    %v277 = vld [vmem:[%s11] sm:$0x1]
    %v278 = vld [vmem:[%s13] sm:$0x1]
    %v279 = vld [vmem:[%s15] sm:$0x1]
    %v280 = vld [vmem:[%s17] sm:$0x1]
    %v281 = vld [vmem:[%s1] sm:$0xff]
    %v282 = vld [vmem:[%s1 + $0x8] sm:$0xff]
    %v283 = vld [vmem:[%s3] sm:$0xff]
    %v284 = vld [vmem:[%s7] sm:$0xff]
    %v285 = vld [vmem:[%s7 + $0x8] sm:$0xff]
    %v286 = vld [vmem:[%s7 + $0x10] sm:$0xff]
    %v287 = vld [vmem:[%s9] sm:$0xff]
    %v288 = vld [vmem:[%s9 + $0x8] sm:$0xff]
    %v289 = vld [vmem:[%s9 + $0x10] sm:$0xff]
    %v290 = vsel %vm167, %v283, 0.0
    %291 = vadd.xlane.f32.xlu0 %v290
    %v292 = vpop.xlane.xlu0 %291
    %v293 = vrcp.pop 32.0
    %v294 = vmul.f32 %v292, %v293
    %v295 = vsub.f32 %v283, %v294
    %v296 = vmul.f32 %v295, %v295
    %v297 = vsel %vm167, %v296, 0.0
    %298 = vadd.xlane.f32.xlu0 %v297
    %v299 = vpop.xlane.xlu0 %298
    %v300 = vmul.f32 %v299, %v293
    %v301 = vadd.f32 %v300, 1e-06
    %v302 = vrsqrt.pop %v301
    %v303 = vmul.f32 %v295, %v302
    %v304 = vadd.f32 %v271, 1.0
    %v305 = vlaneseq
    %v306 = vshrl.u32 %v305, 7
    %v307 = vsub.s32 0, %v306
    %v308 = vrot.slane %v304, %v307
    %310 = vrot.lane.b32.xlu0 %v303, 32
    %v311 = vpop.permute.xlu0 %310
    %v313 = vmul.f32 %v308, %v311
    %v314 = vlaneseq
    %v315 = vshrl.u32 %v314, 7
    %v316 = vsub.s32 0, %v315
    %v317 = vrot.slane %v271, %v316
    %319 = vrot.lane.b32.xlu0 %v317, 32
    %v320 = vpop.permute.xlu0 %319
    %v322 = vadd.f32 %v313, %v320
    %v323 = vld [vmem:[%s33] sm:$0xff]
    %v324 = vld [vmem:[%s33 + $0x8] sm:$0xff]
    %v325 = vld [vmem:[%s33 + $0x10] sm:$0xff]
    %v326 = vld [vmem:[%s33 + $0x18] sm:$0xff]
    %v327 = vpack.c.bf16 %v322, %v322
    %v328 = vpack.c.bf16 %v324, %v323
    %v329 = vpack.c.bf16 %v326, %v325
    %v330 = vld [vmem:[%s35] sm:$0x1]
    %v332 = vlaneseq
    %v333 = vshrl.u32 %v332, 7
    %v334 = vsub.s32 0, %v333
    %v335 = vrot.slane %v330, %v334
    %338 = vrot.lane.b32.xlu0 %v327, 96
    %v339 = vpop.permute.xlu0 %338
    %v341 = vsel %vm167, %v339, 0
    %343 = vmatprep.subr.bf16.mxu0 0
    %344 = vmatpush1.bf16.msra.mxu0 %v328
    %345 = vmatprep.subr.bf16.mxu0 0
    %346 = vmatpush1.bf16.msra.mxu0 %v329
    %347 = vmatprep.subr.bf16.mxu0 0
    %348 = vmatpush1.bf16.msra.mxu0 0
    %349 = vmatprep.subr.bf16.mxu0 0
    %350 = vmatpush1.bf16.msra.mxu0 0
    %351 = vmatprep.subr.bf16.mxu0 0
    %352 = vmatpush1.bf16.msra.mxu0 0
    %353 = vmatprep.subr.bf16.mxu0 0
    %354 = vmatpush1.bf16.msra.mxu0 0
    %355 = vmatprep.subr.bf16.mxu0 0
    %356 = vmatpush1.bf16.msra.mxu0 0
    %357 = vmatprep.subr.bf16.mxu0 0
    %358 = vmatpush1.bf16.msra.mxu0 0
    %359 = vmatprep.subr.bf16.mxu0 0
    %360 = vmatpush1.bf16.msra.mxu0 0
    %361 = vmatprep.subr.bf16.mxu0 0
    %362 = vmatpush1.bf16.msra.mxu0 0
    %363 = vmatprep.subr.bf16.mxu0 0
    %364 = vmatpush1.bf16.msra.mxu0 0
    %365 = vmatprep.subr.bf16.mxu0 0
    %366 = vmatpush1.bf16.msra.mxu0 0
    %367 = vmatprep.subr.bf16.mxu0 0
    %368 = vmatpush1.bf16.msra.mxu0 0
    %369 = vmatprep.subr.bf16.mxu0 0
    %370 = vmatpush1.bf16.msra.mxu0 0
    %371 = vmatprep.subr.bf16.mxu0 0
    %372 = vmatpush1.bf16.msra.mxu0 0
    %373 = vmatprep.subr.bf16.mxu0 0
    %374 = vmatpush1.bf16.msra.mxu0 0
    %375 = vmatprep.mubr.bf16.mxu0 0
    %376 = vmatmul.mubr.bf16.gmra.mrb[0].mxu0 %v341
    %v377 = vpop.f32.mrb[0].mxu0
    %v378 = vadd.f32 %v335, %v377
    %v379 = vpop.f32.mrb[0].mxu0
    %v380 = vpop.f32.mrb[0].mxu0
    %v381 = vpop.f32.mrb[0].mxu0
    %382 = vdwg.mxu0
    %v383 = vmul.f32 %v378, %v378
    %vm384 = vcmask 130048
    %v385 = vsel %vm384, %v383, 0.0
    %386 = vadd.xlane.f32.xlu0 %v385
    %v387 = vpop.xlane.xlu0 %386
    %v388 = vrcp.pop 16.0
    %v389 = vmul.f32 %v387, %v388
    %v390 = vadd.f32 %v389, 1e-06
    %v391 = vrsqrt.pop %v390
    %v392 = vmul.f32 %v378, %v391
    %v394 = vlaneseq
    %v395 = vshrl.u32 %v394, 7
    %v396 = vsub.s32 0, %v395
    %v397 = vrot.slane %v279, %v396
    %v399 = vmul.f32 %v392, %v397
    %v400 = vmul.f32 %v284, %v399
    %v402 = vsel %vm384, %v399, 0
    %404 = vmatprep.subr.mxu0 0.0
    %405 = vmatpush1.msra.mxu0 %v132
    %406 = vmatprep.subr.mxu0 0.0
    %407 = vmatpush1.msra.mxu0 %v133
    %408 = vmatprep.subr.mxu0 0.0
    %409 = vmatpush1.msra.mxu0 0.0
    %410 = vmatprep.subr.mxu0 0.0
    %411 = vmatpush1.msra.mxu0 0.0
    %412 = vmatprep.subr.mxu0 0.0
    %413 = vmatpush1.msra.mxu0 0.0
    %414 = vmatprep.subr.mxu0 0.0
    %415 = vmatpush1.msra.mxu0 0.0
    %416 = vmatprep.subr.mxu0 0.0
    %417 = vmatpush1.msra.mxu0 0.0
    %418 = vmatprep.subr.mxu0 0.0
    %419 = vmatpush1.msra.mxu0 0.0
    %420 = vmatprep.subr.mxu0 0.0
    %421 = vmatpush1.msra.mxu0 0.0
    %422 = vmatprep.subr.mxu0 0.0
    %423 = vmatpush1.msra.mxu0 0.0
    %424 = vmatprep.subr.mxu0 0.0
    %425 = vmatpush1.msra.mxu0 0.0
    %426 = vmatprep.subr.mxu0 0.0
    %427 = vmatpush1.msra.mxu0 0.0
    %428 = vmatprep.subr.mxu0 0.0
    %429 = vmatpush1.msra.mxu0 0.0
    %430 = vmatprep.subr.mxu0 0.0
    %431 = vmatpush1.msra.mxu0 0.0
    %432 = vmatprep.subr.mxu0 0.0
    %433 = vmatpush1.msra.mxu0 0.0
    %434 = vmatprep.subr.mxu0 0.0
    %435 = vmatpush1.msra.mxu0 0.0
    %436 = vmatprep.subr.mxu0 0.0
    %437 = vmatpush1.msra.mxu0 0.0
    %438 = vmatprep.subr.mxu0 0.0
    %439 = vmatpush1.msra.mxu0 0.0
    %440 = vmatprep.subr.mxu0 0.0
    %441 = vmatpush1.msra.mxu0 0.0
    %442 = vmatprep.subr.mxu0 0.0
    %443 = vmatpush1.msra.mxu0 0.0
    %444 = vmatprep.subr.mxu0 0.0
    %445 = vmatpush1.msra.mxu0 0.0
    %446 = vmatprep.subr.mxu0 0.0
    %447 = vmatpush1.msra.mxu0 0.0
    %448 = vmatprep.subr.mxu0 0.0
    %449 = vmatpush1.msra.mxu0 0.0
    %450 = vmatprep.subr.mxu0 0.0
    %451 = vmatpush1.msra.mxu0 0.0
    %452 = vmatprep.subr.mxu0 0.0
    %453 = vmatpush1.msra.mxu0 0.0
    %454 = vmatprep.subr.mxu0 0.0
    %455 = vmatpush1.msra.mxu0 0.0
    %456 = vmatprep.subr.mxu0 0.0
    %457 = vmatpush1.msra.mxu0 0.0
    %458 = vmatprep.subr.mxu0 0.0
    %459 = vmatpush1.msra.mxu0 0.0
    %460 = vmatprep.subr.mxu0 0.0
    %461 = vmatpush1.msra.mxu0 0.0
    %462 = vmatprep.subr.mxu0 0.0
    %463 = vmatpush1.msra.mxu0 0.0
    %464 = vmatprep.subr.mxu0 0.0
    %465 = vmatpush1.msra.mxu0 0.0
    %466 = vmatprep.subr.mxu0 0.0
    %467 = vmatpush1.msra.mxu0 0.0
    %468 = vmatprep.mubr.f32.mxu0 0.0
    %469 = vmatmul.mubr.f32.gmra.mrb[0].mxu0 %v402
    %v470 = vpop.f32.mrb[0].mxu0
    %v471 = vadd.f32 0.0, %v470
    %v472 = vpop.f32.mrb[0].mxu0
    %473 = vdwg.mxu0
    %v474 = vmul.f32 %v287, %v471
    %v475 = vadd.f32 %v400, %v474
    %477 = vrot.lane.b32.xlu0 %v383, 96
    %v478 = vpop.permute.xlu0 %477
    %v480 = vsel %vm384, %v478, 0.0
    %481 = vadd.xlane.f32.xlu0 %v480
    %v482 = vpop.xlane.xlu0 %481
    %v483 = vmul.f32 %v482, %v388
    %v484 = vadd.f32 %v483, 1e-06
    %v485 = vrsqrt.pop %v484
    %v486 = vmul.f32 %v378, %v485
    %v488 = vlaneseq
    %v489 = vshrl.u32 %v488, 7
    %v490 = vsub.s32 0, %v489
    %v491 = vrot.slane %v280, %v490
    %492 = vrot.lane.b32.xlu0 %v491, 32
    %v493 = vpop.permute.xlu0 %492
    %v495 = vmul.f32 %v486, %v493
    %497 = vrot.lane.b32.xlu0 %v495, 96
    %v498 = vpop.permute.xlu0 %497
    %v500 = vmul.f32 %v284, %v498
    %v501 = vsel %vm384, %v498, 0
    %503 = vmatprep.subr.mxu0 0.0
    %504 = vmatpush1.msra.mxu0 %v132
    %505 = vmatprep.subr.mxu0 0.0
    %506 = vmatpush1.msra.mxu0 %v133
    %507 = vmatprep.subr.mxu0 0.0
    %508 = vmatpush1.msra.mxu0 0.0
    %509 = vmatprep.subr.mxu0 0.0
    %510 = vmatpush1.msra.mxu0 0.0
    %511 = vmatprep.subr.mxu0 0.0
    %512 = vmatpush1.msra.mxu0 0.0
    %513 = vmatprep.subr.mxu0 0.0
    %514 = vmatpush1.msra.mxu0 0.0
    %515 = vmatprep.subr.mxu0 0.0
    %516 = vmatpush1.msra.mxu0 0.0
    %517 = vmatprep.subr.mxu0 0.0
    %518 = vmatpush1.msra.mxu0 0.0
    %519 = vmatprep.subr.mxu0 0.0
    %520 = vmatpush1.msra.mxu0 0.0
    %521 = vmatprep.subr.mxu0 0.0
    %522 = vmatpush1.msra.mxu0 0.0
    %523 = vmatprep.subr.mxu0 0.0
    %524 = vmatpush1.msra.mxu0 0.0
    %525 = vmatprep.subr.mxu0 0.0
    %526 = vmatpush1.msra.mxu0 0.0
    %527 = vmatprep.subr.mxu0 0.0
    %528 = vmatpush1.msra.mxu0 0.0
    %529 = vmatprep.subr.mxu0 0.0
    %530 = vmatpush1.msra.mxu0 0.0
    %531 = vmatprep.subr.mxu0 0.0
    %532 = vmatpush1.msra.mxu0 0.0
    %533 = vmatprep.subr.mxu0 0.0
    %534 = vmatpush1.msra.mxu0 0.0
    %535 = vmatprep.subr.mxu0 0.0
    %536 = vmatpush1.msra.mxu0 0.0
    %537 = vmatprep.subr.mxu0 0.0
    %538 = vmatpush1.msra.mxu0 0.0
    %539 = vmatprep.subr.mxu0 0.0
    %540 = vmatpush1.msra.mxu0 0.0
    %541 = vmatprep.subr.mxu0 0.0
    %542 = vmatpush1.msra.mxu0 0.0
    %543 = vmatprep.subr.mxu0 0.0
    %544 = vmatpush1.msra.mxu0 0.0
    %545 = vmatprep.subr.mxu0 0.0
    %546 = vmatpush1.msra.mxu0 0.0
    %547 = vmatprep.subr.mxu0 0.0
    %548 = vmatpush1.msra.mxu0 0.0
    %549 = vmatprep.subr.mxu0 0.0
    %550 = vmatpush1.msra.mxu0 0.0
    %551 = vmatprep.subr.mxu0 0.0
    %552 = vmatpush1.msra.mxu0 0.0
    %553 = vmatprep.subr.mxu0 0.0
    %554 = vmatpush1.msra.mxu0 0.0
    %555 = vmatprep.subr.mxu0 0.0
    %556 = vmatpush1.msra.mxu0 0.0
    %557 = vmatprep.subr.mxu0 0.0
    %558 = vmatpush1.msra.mxu0 0.0
    %559 = vmatprep.subr.mxu0 0.0
    %560 = vmatpush1.msra.mxu0 0.0
    %561 = vmatprep.subr.mxu0 0.0
    %562 = vmatpush1.msra.mxu0 0.0
    %563 = vmatprep.subr.mxu0 0.0
    %564 = vmatpush1.msra.mxu0 0.0
    %565 = vmatprep.subr.mxu0 0.0
    %566 = vmatpush1.msra.mxu0 0.0
    %567 = vmatprep.mubr.f32.mxu0 0.0
    %568 = vmatmul.mubr.f32.gmra.mrb[0].mxu0 %v501
    %v569 = vpop.f32.mrb[0].mxu0
    %v570 = vadd.f32 0.0, %v569
    %v571 = vpop.f32.mrb[0].mxu0
    %572 = vdwg.mxu0
    %v573 = vmul.f32 %v287, %v570
    %v574 = vadd.f32 %v500, %v573
    %575 = vst.msk [vmem:[#allocation2] sm:$0xff] %vm384, %v574
    %577 = vrot.lane.b32.xlu0 %v378, 64
    %v578 = vpop.permute.xlu0 %577
    %580 = vst.msk [vmem:[#allocation3] sm:$0xff] %vm384, %v578
    %581 = vrot.lane.b32.xlu0 %v383, 112
    %v582 = vpop.permute.xlu0 %581
    %v584 = vsel %vm384, %v582, 0.0
    %585 = vadd.xlane.f32.xlu0 %v584
    %v586 = vpop.xlane.xlu0 %585
    %v587 = vmul.f32 %v586, %v388
    %v588 = vadd.f32 %v587, 1e-06
    %v589 = vrsqrt.pop %v588
    %v590 = vmul.f32 %v378, %v589
    %591 = vrot.lane.b32.xlu0 %v397, 16
    %v592 = vpop.permute.xlu0 %591
    %v594 = vmul.f32 %v590, %v592
    %596 = vrot.lane.b32.xlu0 %v594, 112
    %v597 = vpop.permute.xlu0 %596
    %v599 = vmul.f32 %v284, %v597
    %v600 = vsel %vm384, %v597, 0
    %602 = vmatprep.subr.mxu0 0.0
    %603 = vmatpush1.msra.mxu0 %v132
    %604 = vmatprep.subr.mxu0 0.0
    %605 = vmatpush1.msra.mxu0 %v133
    %606 = vmatprep.subr.mxu0 0.0
    %607 = vmatpush1.msra.mxu0 0.0
    %608 = vmatprep.subr.mxu0 0.0
    %609 = vmatpush1.msra.mxu0 0.0
    %610 = vmatprep.subr.mxu0 0.0
    %611 = vmatpush1.msra.mxu0 0.0
    %612 = vmatprep.subr.mxu0 0.0
    %613 = vmatpush1.msra.mxu0 0.0
    %614 = vmatprep.subr.mxu0 0.0
    %615 = vmatpush1.msra.mxu0 0.0
    %616 = vmatprep.subr.mxu0 0.0
    %617 = vmatpush1.msra.mxu0 0.0
    %618 = vmatprep.subr.mxu0 0.0
    %619 = vmatpush1.msra.mxu0 0.0
    %620 = vmatprep.subr.mxu0 0.0
    %621 = vmatpush1.msra.mxu0 0.0
    %622 = vmatprep.subr.mxu0 0.0
    %623 = vmatpush1.msra.mxu0 0.0
    %624 = vmatprep.subr.mxu0 0.0
    %625 = vmatpush1.msra.mxu0 0.0
    %626 = vmatprep.subr.mxu0 0.0
    %627 = vmatpush1.msra.mxu0 0.0
    %628 = vmatprep.subr.mxu0 0.0
    %629 = vmatpush1.msra.mxu0 0.0
    %630 = vmatprep.subr.mxu0 0.0
    %631 = vmatpush1.msra.mxu0 0.0
    %632 = vmatprep.subr.mxu0 0.0
    %633 = vmatpush1.msra.mxu0 0.0
    %634 = vmatprep.subr.mxu0 0.0
    %635 = vmatpush1.msra.mxu0 0.0
    %636 = vmatprep.subr.mxu0 0.0
    %637 = vmatpush1.msra.mxu0 0.0
    %638 = vmatprep.subr.mxu0 0.0
    %639 = vmatpush1.msra.mxu0 0.0
    %640 = vmatprep.subr.mxu0 0.0
    %641 = vmatpush1.msra.mxu0 0.0
    %642 = vmatprep.subr.mxu0 0.0
    %643 = vmatpush1.msra.mxu0 0.0
    %644 = vmatprep.subr.mxu0 0.0
    %645 = vmatpush1.msra.mxu0 0.0
    %646 = vmatprep.subr.mxu0 0.0
    %647 = vmatpush1.msra.mxu0 0.0
    %648 = vmatprep.subr.mxu0 0.0
    %649 = vmatpush1.msra.mxu0 0.0
    %650 = vmatprep.subr.mxu0 0.0
    %651 = vmatpush1.msra.mxu0 0.0
    %652 = vmatprep.subr.mxu0 0.0
    %653 = vmatpush1.msra.mxu0 0.0
    %654 = vmatprep.subr.mxu0 0.0
    %655 = vmatpush1.msra.mxu0 0.0
    %656 = vmatprep.subr.mxu0 0.0
    %657 = vmatpush1.msra.mxu0 0.0
    %658 = vmatprep.subr.mxu0 0.0
    %659 = vmatpush1.msra.mxu0 0.0
    %660 = vmatprep.subr.mxu0 0.0
    %661 = vmatpush1.msra.mxu0 0.0
    %662 = vmatprep.subr.mxu0 0.0
    %663 = vmatpush1.msra.mxu0 0.0
    %664 = vmatprep.subr.mxu0 0.0
    %665 = vmatpush1.msra.mxu0 0.0
    %666 = vmatprep.mubr.f32.mxu0 0.0
    %667 = vmatmul.mubr.f32.gmra.mrb[0].mxu0 %v600
    %v668 = vpop.f32.mrb[0].mxu0
    %v669 = vadd.f32 0.0, %v668
    %v670 = vpop.f32.mrb[0].mxu0
    %671 = vdwg.mxu0
    %v672 = vmul.f32 %v287, %v669
    %v673 = vadd.f32 %v599, %v672
    %674 = vrot.lane.b32.xlu0 %v383, 80
    %v675 = vpop.permute.xlu0 %674
    %v677 = vsel %vm384, %v675, 0.0
    %678 = vadd.xlane.f32.xlu0 %v677
    %v679 = vpop.xlane.xlu0 %678
    %v680 = vmul.f32 %v679, %v388
    %v681 = vadd.f32 %v680, 1e-06
    %v682 = vrsqrt.pop %v681
    %v683 = vmul.f32 %v378, %v682
    %684 = vrot.lane.b32.xlu0 %v491, 48
    %v685 = vpop.permute.xlu0 %684
    %v687 = vmul.f32 %v683, %v685
    %689 = vrot.lane.b32.xlu0 %v687, 80
    %v690 = vpop.permute.xlu0 %689
    %v692 = vmul.f32 %v284, %v690
    %v693 = vsel %vm384, %v690, 0
    %695 = vmatprep.subr.mxu0 0.0
    %696 = vmatpush1.msra.mxu0 %v132
    %697 = vmatprep.subr.mxu0 0.0
    %698 = vmatpush1.msra.mxu0 %v133
    %699 = vmatprep.subr.mxu0 0.0
    %700 = vmatpush1.msra.mxu0 0.0
    %701 = vmatprep.subr.mxu0 0.0
    %702 = vmatpush1.msra.mxu0 0.0
    %703 = vmatprep.subr.mxu0 0.0
    %704 = vmatpush1.msra.mxu0 0.0
    %705 = vmatprep.subr.mxu0 0.0
    %706 = vmatpush1.msra.mxu0 0.0
    %707 = vmatprep.subr.mxu0 0.0
    %708 = vmatpush1.msra.mxu0 0.0
    %709 = vmatprep.subr.mxu0 0.0
    %710 = vmatpush1.msra.mxu0 0.0
    %711 = vmatprep.subr.mxu0 0.0
    %712 = vmatpush1.msra.mxu0 0.0
    %713 = vmatprep.subr.mxu0 0.0
    %714 = vmatpush1.msra.mxu0 0.0
    %715 = vmatprep.subr.mxu0 0.0
    %716 = vmatpush1.msra.mxu0 0.0
    %717 = vmatprep.subr.mxu0 0.0
    %718 = vmatpush1.msra.mxu0 0.0
    %719 = vmatprep.subr.mxu0 0.0
    %720 = vmatpush1.msra.mxu0 0.0
    %721 = vmatprep.subr.mxu0 0.0
    %722 = vmatpush1.msra.mxu0 0.0
    %723 = vmatprep.subr.mxu0 0.0
    %724 = vmatpush1.msra.mxu0 0.0
    %725 = vmatprep.subr.mxu0 0.0
    %726 = vmatpush1.msra.mxu0 0.0
    %727 = vmatprep.subr.mxu0 0.0
    %728 = vmatpush1.msra.mxu0 0.0
    %729 = vmatprep.subr.mxu0 0.0
    %730 = vmatpush1.msra.mxu0 0.0
    %731 = vmatprep.subr.mxu0 0.0
    %732 = vmatpush1.msra.mxu0 0.0
    %733 = vmatprep.subr.mxu0 0.0
    %734 = vmatpush1.msra.mxu0 0.0
    %735 = vmatprep.subr.mxu0 0.0
    %736 = vmatpush1.msra.mxu0 0.0
    %737 = vmatprep.subr.mxu0 0.0
    %738 = vmatpush1.msra.mxu0 0.0
    %739 = vmatprep.subr.mxu0 0.0
    %740 = vmatpush1.msra.mxu0 0.0
    %741 = vmatprep.subr.mxu0 0.0
    %742 = vmatpush1.msra.mxu0 0.0
    %743 = vmatprep.subr.mxu0 0.0
    %744 = vmatpush1.msra.mxu0 0.0
    %745 = vmatprep.subr.mxu0 0.0
    %746 = vmatpush1.msra.mxu0 0.0
    %747 = vmatprep.subr.mxu0 0.0
    %748 = vmatpush1.msra.mxu0 0.0
    %749 = vmatprep.subr.mxu0 0.0
    %750 = vmatpush1.msra.mxu0 0.0
    %751 = vmatprep.subr.mxu0 0.0
    %752 = vmatpush1.msra.mxu0 0.0
    %753 = vmatprep.subr.mxu0 0.0
    %754 = vmatpush1.msra.mxu0 0.0
    %755 = vmatprep.subr.mxu0 0.0
    %756 = vmatpush1.msra.mxu0 0.0
    %757 = vmatprep.subr.mxu0 0.0
    %758 = vmatpush1.msra.mxu0 0.0
    %759 = vmatprep.mubr.f32.mxu0 0.0
    %760 = vmatmul.mubr.f32.gmra.mrb[0].mxu0 %v693
    %v761 = vpop.f32.mrb[0].mxu0
    %v762 = vadd.f32 0.0, %v761
    %v763 = vpop.f32.mrb[0].mxu0
    %764 = vdwg.mxu0
    %v765 = vmul.f32 %v287, %v762
    %v766 = vadd.f32 %v692, %v765
    %767 = vst.msk [vmem:[#allocation2 + $0x18] sm:$0xff] %vm384, %v766
    %768 = vrot.lane.b32.xlu0 %v378, 48
    %v769 = vpop.permute.xlu0 %768
    %771 = vst.msk [vmem:[#allocation3 + $0x18] sm:$0xff] %vm384, %v769
    %v772 = vsel %vm167, %v281, 0.0
    %773 = vadd.xlane.f32.xlu0 %v772
    %v774 = vpop.xlane.xlu0 %773
    %v775 = vsel %vm167, %v282, 0.0
    %776 = vadd.xlane.f32.xlu0 %v775
    %v777 = vpop.xlane.xlu0 %776
    %v778 = vmul.f32 %v774, %v293
    %v779 = vmul.f32 %v777, %v293
    %v780 = vsub.f32 %v281, %v778
    %v781 = vsub.f32 %v282, %v779
    %v782 = vmul.f32 %v780, %v780
    %v783 = vmul.f32 %v781, %v781
    %v784 = vsel %vm167, %v782, 0.0
    %785 = vadd.xlane.f32.xlu0 %v784
    %v786 = vpop.xlane.xlu0 %785
    %v787 = vsel %vm167, %v783, 0.0
    %788 = vadd.xlane.f32.xlu0 %v787
    %v789 = vpop.xlane.xlu0 %788
    %v790 = vmul.f32 %v786, %v293
    %v791 = vmul.f32 %v789, %v293
    %v792 = vadd.f32 %v790, 1e-06
    %v793 = vadd.f32 %v791, 1e-06
    %v794 = vrsqrt.pop %v792
    %v795 = vrsqrt.pop %v793
    %v796 = vmul.f32 %v780, %v794
    %v797 = vmul.f32 %v781, %v795
    %v798 = vadd.f32 %v206, 1.0
    %v799 = vlaneseq
    %v800 = vshrl.u32 %v799, 7
    %v801 = vsub.s32 0, %v800
    %v802 = vrot.slane %v798, %v801
    %805 = vrot.lane.b32.xlu0 %v796, 32
    %v806 = vpop.permute.xlu0 %805
    %807 = vrot.lane.b32.xlu0 %v797, 32
    %v808 = vpop.permute.xlu0 %807
    %v811 = vmul.f32 %v802, %v806
    %v812 = vmul.f32 %v802, %v808
    %v813 = vlaneseq
    %v814 = vshrl.u32 %v813, 7
    %v815 = vsub.s32 0, %v814
    %v816 = vrot.slane %v206, %v815
    %818 = vrot.lane.b32.xlu0 %v816, 32
    %v819 = vpop.permute.xlu0 %818
    %v821 = vadd.f32 %v811, %v819
    %v822 = vadd.f32 %v812, %v819
    %v823 = vld [vmem:[%s29] sm:$0xff]
    %v824 = vld [vmem:[%s29 + $0x8] sm:$0xff]
    %v825 = vld [vmem:[%s29 + $0x10] sm:$0xff]
    %v826 = vld [vmem:[%s29 + $0x18] sm:$0xff]
    %v827 = vpack.c.bf16 %v822, %v821
    %v828 = vpack.c.bf16 %v824, %v823
    %v829 = vpack.c.bf16 %v826, %v825
    %v830 = vld [vmem:[%s31] sm:$0x1]
    %v832 = vlaneseq
    %v833 = vshrl.u32 %v832, 7
    %v834 = vsub.s32 0, %v833
    %v835 = vrot.slane %v830, %v834
    %838 = vrot.lane.b32.xlu0 %v827, 96
    %v839 = vpop.permute.xlu0 %838
    %v841 = vsel %vm167, %v839, 0
    %843 = vmatprep.subr.bf16.mxu0 0
    %844 = vmatpush1.bf16.msra.mxu0 %v828
    %845 = vmatprep.subr.bf16.mxu0 0
    %846 = vmatpush1.bf16.msra.mxu0 %v829
    %847 = vmatprep.subr.bf16.mxu0 0
    %848 = vmatpush1.bf16.msra.mxu0 0
    %849 = vmatprep.subr.bf16.mxu0 0
    %850 = vmatpush1.bf16.msra.mxu0 0
    %851 = vmatprep.subr.bf16.mxu0 0
    %852 = vmatpush1.bf16.msra.mxu0 0
    %853 = vmatprep.subr.bf16.mxu0 0
    %854 = vmatpush1.bf16.msra.mxu0 0
    %855 = vmatprep.subr.bf16.mxu0 0
    %856 = vmatpush1.bf16.msra.mxu0 0
    %857 = vmatprep.subr.bf16.mxu0 0
    %858 = vmatpush1.bf16.msra.mxu0 0
    %859 = vmatprep.subr.bf16.mxu0 0
    %860 = vmatpush1.bf16.msra.mxu0 0
    %861 = vmatprep.subr.bf16.mxu0 0
    %862 = vmatpush1.bf16.msra.mxu0 0
    %863 = vmatprep.subr.bf16.mxu0 0
    %864 = vmatpush1.bf16.msra.mxu0 0
    %865 = vmatprep.subr.bf16.mxu0 0
    %866 = vmatpush1.bf16.msra.mxu0 0
    %867 = vmatprep.subr.bf16.mxu0 0
    %868 = vmatpush1.bf16.msra.mxu0 0
    %869 = vmatprep.subr.bf16.mxu0 0
    %870 = vmatpush1.bf16.msra.mxu0 0
    %871 = vmatprep.subr.bf16.mxu0 0
    %872 = vmatpush1.bf16.msra.mxu0 0
    %873 = vmatprep.subr.bf16.mxu0 0
    %874 = vmatpush1.bf16.msra.mxu0 0
    %875 = vmatprep.mubr.bf16.mxu0 0
    %876 = vmatmul.mubr.bf16.gmra.mrb[0].mxu0 %v841
    %v877 = vpop.f32.mrb[0].mxu0
    %v878 = vadd.f32 %v835, %v877
    %v879 = vpop.f32.mrb[0].mxu0
    %v880 = vpop.f32.mrb[0].mxu0
    %v881 = vadd.f32 %v835, %v880
    %v882 = vpop.f32.mrb[0].mxu0
    %883 = vdwg.mxu0
    %v884 = vmul.f32 %v878, %v878
    %v885 = vmul.f32 %v881, %v881
    %v886 = vsel %vm384, %v884, 0.0
    %887 = vadd.xlane.f32.xlu0 %v886
    %v888 = vpop.xlane.xlu0 %887
    %v889 = vsel %vm384, %v885, 0.0
    %890 = vadd.xlane.f32.xlu0 %v889
    %v891 = vpop.xlane.xlu0 %890
    %v892 = vmul.f32 %v888, %v388
    %v893 = vmul.f32 %v891, %v388
    %v894 = vadd.f32 %v892, 1e-06
    %v895 = vadd.f32 %v893, 1e-06
    %v896 = vrsqrt.pop %v894
    %v897 = vrsqrt.pop %v895
    %v898 = vmul.f32 %v878, %v896
    %v899 = vmul.f32 %v881, %v897
    %v901 = vlaneseq
    %v902 = vshrl.u32 %v901, 7
    %v903 = vsub.s32 0, %v902
    %v904 = vrot.slane %v277, %v903
    %v906 = vmul.f32 %v898, %v904
    %v907 = vmul.f32 %v899, %v904
    %v908 = vmul.f32 %v285, %v906
    %v909 = vmul.f32 %v286, %v907
    %v911 = vsel %vm384, %v906, 0
    %v914 = vsel %vm384, %v907, 0
    %916 = vmatprep.subr.mxu0 0.0
    %917 = vmatpush1.msra.mxu0 %v132
    %918 = vmatprep.subr.mxu0 0.0
    %919 = vmatpush1.msra.mxu0 %v133
    %920 = vmatprep.subr.mxu0 0.0
    %921 = vmatpush1.msra.mxu0 0.0
    %922 = vmatprep.subr.mxu0 0.0
    %923 = vmatpush1.msra.mxu0 0.0
    %924 = vmatprep.subr.mxu0 0.0
    %925 = vmatpush1.msra.mxu0 0.0
    %926 = vmatprep.subr.mxu0 0.0
    %927 = vmatpush1.msra.mxu0 0.0
    %928 = vmatprep.subr.mxu0 0.0
    %929 = vmatpush1.msra.mxu0 0.0
    %930 = vmatprep.subr.mxu0 0.0
    %931 = vmatpush1.msra.mxu0 0.0
    %932 = vmatprep.subr.mxu0 0.0
    %933 = vmatpush1.msra.mxu0 0.0
    %934 = vmatprep.subr.mxu0 0.0
    %935 = vmatpush1.msra.mxu0 0.0
    %936 = vmatprep.subr.mxu0 0.0
    %937 = vmatpush1.msra.mxu0 0.0
    %938 = vmatprep.subr.mxu0 0.0
    %939 = vmatpush1.msra.mxu0 0.0
    %940 = vmatprep.subr.mxu0 0.0
    %941 = vmatpush1.msra.mxu0 0.0
    %942 = vmatprep.subr.mxu0 0.0
    %943 = vmatpush1.msra.mxu0 0.0
    %944 = vmatprep.subr.mxu0 0.0
    %945 = vmatpush1.msra.mxu0 0.0
    %946 = vmatprep.subr.mxu0 0.0
    %947 = vmatpush1.msra.mxu0 0.0
    %948 = vmatprep.subr.mxu0 0.0
    %949 = vmatpush1.msra.mxu0 0.0
    %950 = vmatprep.subr.mxu0 0.0
    %951 = vmatpush1.msra.mxu0 0.0
    %952 = vmatprep.subr.mxu0 0.0
    %953 = vmatpush1.msra.mxu0 0.0
    %954 = vmatprep.subr.mxu0 0.0
    %955 = vmatpush1.msra.mxu0 0.0
    %956 = vmatprep.subr.mxu0 0.0
    %957 = vmatpush1.msra.mxu0 0.0
    %958 = vmatprep.subr.mxu0 0.0
    %959 = vmatpush1.msra.mxu0 0.0
    %960 = vmatprep.subr.mxu0 0.0
    %961 = vmatpush1.msra.mxu0 0.0
    %962 = vmatprep.subr.mxu0 0.0
    %963 = vmatpush1.msra.mxu0 0.0
    %964 = vmatprep.subr.mxu0 0.0
    %965 = vmatpush1.msra.mxu0 0.0
    %966 = vmatprep.subr.mxu0 0.0
    %967 = vmatpush1.msra.mxu0 0.0
    %968 = vmatprep.subr.mxu0 0.0
    %969 = vmatpush1.msra.mxu0 0.0
    %970 = vmatprep.subr.mxu0 0.0
    %971 = vmatpush1.msra.mxu0 0.0
    %972 = vmatprep.subr.mxu0 0.0
    %973 = vmatpush1.msra.mxu0 0.0
    %974 = vmatprep.subr.mxu0 0.0
    %975 = vmatpush1.msra.mxu0 0.0
    %976 = vmatprep.subr.mxu0 0.0
    %977 = vmatpush1.msra.mxu0 0.0
    %978 = vmatprep.subr.mxu0 0.0
    %979 = vmatpush1.msra.mxu0 0.0
    %980 = vmatprep.mubr.f32.mxu0 0.0
    %981 = vmatmul.mubr.f32.gmra.mrb[0].mxu0 %v911
    %v982 = vpop.f32.mrb[0].mxu0
    %v983 = vadd.f32 0.0, %v982
    %v984 = vpop.f32.mrb[0].mxu0
    %985 = vmatprep.mubr.f32.mxu0 0.0
    %986 = vmatmul.mubr.f32.gmra.mrb[0].mxu0 %v914
    %v987 = vpop.f32.mrb[0].mxu0
    %v988 = vadd.f32 0.0, %v987
    %v989 = vpop.f32.mrb[0].mxu0
    %990 = vdwg.mxu0
    %v991 = vmul.f32 %v288, %v983
    %v992 = vmul.f32 %v289, %v988
    %v993 = vadd.f32 %v908, %v991
    %v994 = vadd.f32 %v909, %v992
    %997 = vrot.lane.b32.xlu0 %v884, 96
    %v998 = vpop.permute.xlu0 %997
    %999 = vrot.lane.b32.xlu0 %v885, 96
    %v1000 = vpop.permute.xlu0 %999
    %v1003 = vsel %vm384, %v998, 0.0
    %1004 = vadd.xlane.f32.xlu0 %v1003
    %v1005 = vpop.xlane.xlu0 %1004
    %v1006 = vsel %vm384, %v1000, 0.0
    %1007 = vadd.xlane.f32.xlu0 %v1006
    %v1008 = vpop.xlane.xlu0 %1007
    %v1009 = vmul.f32 %v1005, %v388
    %v1010 = vmul.f32 %v1008, %v388
    %v1011 = vadd.f32 %v1009, 1e-06
    %v1012 = vadd.f32 %v1010, 1e-06
    %v1013 = vrsqrt.pop %v1011
    %v1014 = vrsqrt.pop %v1012
    %v1015 = vmul.f32 %v878, %v1013
    %v1016 = vmul.f32 %v881, %v1014
    %v1018 = vlaneseq
    %v1019 = vshrl.u32 %v1018, 7
    %v1020 = vsub.s32 0, %v1019
    %v1021 = vrot.slane %v278, %v1020
    %1022 = vrot.lane.b32.xlu0 %v1021, 32
    %v1023 = vpop.permute.xlu0 %1022
    %v1025 = vmul.f32 %v1015, %v1023
    %v1026 = vmul.f32 %v1016, %v1023
    %1029 = vrot.lane.b32.xlu0 %v1025, 96
    %v1030 = vpop.permute.xlu0 %1029
    %1031 = vrot.lane.b32.xlu0 %v1026, 96
    %v1032 = vpop.permute.xlu0 %1031
    %v1035 = vmul.f32 %v285, %v1030
    %v1036 = vmul.f32 %v286, %v1032
    %v1037 = vsel %vm384, %v1030, 0
    %v1039 = vsel %vm384, %v1032, 0
    %1041 = vmatprep.subr.mxu0 0.0
    %1042 = vmatpush1.msra.mxu0 %v132
    %1043 = vmatprep.subr.mxu0 0.0
    %1044 = vmatpush1.msra.mxu0 %v133
    %1045 = vmatprep.subr.mxu0 0.0
    %1046 = vmatpush1.msra.mxu0 0.0
    %1047 = vmatprep.subr.mxu0 0.0
    %1048 = vmatpush1.msra.mxu0 0.0
    %1049 = vmatprep.subr.mxu0 0.0
    %1050 = vmatpush1.msra.mxu0 0.0
    %1051 = vmatprep.subr.mxu0 0.0
    %1052 = vmatpush1.msra.mxu0 0.0
    %1053 = vmatprep.subr.mxu0 0.0
    %1054 = vmatpush1.msra.mxu0 0.0
    %1055 = vmatprep.subr.mxu0 0.0
    %1056 = vmatpush1.msra.mxu0 0.0
    %1057 = vmatprep.subr.mxu0 0.0
    %1058 = vmatpush1.msra.mxu0 0.0
    %1059 = vmatprep.subr.mxu0 0.0
    %1060 = vmatpush1.msra.mxu0 0.0
    %1061 = vmatprep.subr.mxu0 0.0
    %1062 = vmatpush1.msra.mxu0 0.0
    %1063 = vmatprep.subr.mxu0 0.0
    %1064 = vmatpush1.msra.mxu0 0.0
    %1065 = vmatprep.subr.mxu0 0.0
    %1066 = vmatpush1.msra.mxu0 0.0
    %1067 = vmatprep.subr.mxu0 0.0
    %1068 = vmatpush1.msra.mxu0 0.0
    %1069 = vmatprep.subr.mxu0 0.0
    %1070 = vmatpush1.msra.mxu0 0.0
    %1071 = vmatprep.subr.mxu0 0.0
    %1072 = vmatpush1.msra.mxu0 0.0
    %1073 = vmatprep.subr.mxu0 0.0
    %1074 = vmatpush1.msra.mxu0 0.0
    %1075 = vmatprep.subr.mxu0 0.0
    %1076 = vmatpush1.msra.mxu0 0.0
    %1077 = vmatprep.subr.mxu0 0.0
    %1078 = vmatpush1.msra.mxu0 0.0
    %1079 = vmatprep.subr.mxu0 0.0
    %1080 = vmatpush1.msra.mxu0 0.0
    %1081 = vmatprep.subr.mxu0 0.0
    %1082 = vmatpush1.msra.mxu0 0.0
    %1083 = vmatprep.subr.mxu0 0.0
    %1084 = vmatpush1.msra.mxu0 0.0
    %1085 = vmatprep.subr.mxu0 0.0
    %1086 = vmatpush1.msra.mxu0 0.0
    %1087 = vmatprep.subr.mxu0 0.0
    %1088 = vmatpush1.msra.mxu0 0.0
    %1089 = vmatprep.subr.mxu0 0.0
    %1090 = vmatpush1.msra.mxu0 0.0
    %1091 = vmatprep.subr.mxu0 0.0
    %1092 = vmatpush1.msra.mxu0 0.0
    %1093 = vmatprep.subr.mxu0 0.0
    %1094 = vmatpush1.msra.mxu0 0.0
    %1095 = vmatprep.subr.mxu0 0.0
    %1096 = vmatpush1.msra.mxu0 0.0
    %1097 = vmatprep.subr.mxu0 0.0
    %1098 = vmatpush1.msra.mxu0 0.0
    %1099 = vmatprep.subr.mxu0 0.0
    %1100 = vmatpush1.msra.mxu0 0.0
    %1101 = vmatprep.subr.mxu0 0.0
    %1102 = vmatpush1.msra.mxu0 0.0
    %1103 = vmatprep.subr.mxu0 0.0
    %1104 = vmatpush1.msra.mxu0 0.0
    %1105 = vmatprep.mubr.f32.mxu0 0.0
    %1106 = vmatmul.mubr.f32.gmra.mrb[0].mxu0 %v1037
    %v1107 = vpop.f32.mrb[0].mxu0
    %v1108 = vadd.f32 0.0, %v1107
    %v1109 = vpop.f32.mrb[0].mxu0
    %1110 = vmatprep.mubr.f32.mxu0 0.0
    %1111 = vmatmul.mubr.f32.gmra.mrb[0].mxu0 %v1039
    %v1112 = vpop.f32.mrb[0].mxu0
    %v1113 = vadd.f32 0.0, %v1112
    %v1114 = vpop.f32.mrb[0].mxu0
    %1115 = vdwg.mxu0
    %v1116 = vmul.f32 %v288, %v1108
    %v1117 = vmul.f32 %v289, %v1113
    %v1118 = vadd.f32 %v1035, %v1116
    %v1119 = vadd.f32 %v1036, %v1117
    %1120 = vst.msk [vmem:[#allocation2 + $0x8] sm:$0xff] %vm384, %v1118
    %1121 = vst.msk [vmem:[#allocation2 + $0x10] sm:$0xff] %vm384, %v1119
    %1124 = vrot.lane.b32.xlu0 %v878, 64
    %v1125 = vpop.permute.xlu0 %1124
    %1126 = vrot.lane.b32.xlu0 %v881, 64
    %v1127 = vpop.permute.xlu0 %1126
    %1130 = vst.msk [vmem:[#allocation3 + $0x8] sm:$0xff] %vm384, %v1125
    %1131 = vst.msk [vmem:[#allocation3 + $0x10] sm:$0xff] %vm384, %v1127
    %v1132 = vld [vmem:[#allocation2] sm:$0xff]
    %v1133 = vld [vmem:[#allocation2 + $0x8] sm:$0xff]
    %v1134 = vld [vmem:[#allocation2 + $0x10] sm:$0xff]
    %v1135 = vld [vmem:[#allocation3] sm:$0xff]
    %v1136 = vld [vmem:[#allocation3 + $0x8] sm:$0xff]
    %v1137 = vld [vmem:[#allocation3 + $0x10] sm:$0xff]
    %v1138 = vpack.c.bf16 %v994, %v993
    %v1139 = vpack.c.bf16 %v1133, %v1132
    %v1140 = vpack.c.bf16 %v1134, %v1134
    %v1142 = vsel %vm384, %v1138, 0
    %v1145 = vsel %vm384, %v1139, 0
    %v1148 = vsel %vm384, %v1140, 0
    %1150 = vmatprep.subr.bf16.mxu0 0
    %1151 = vmatpush1.bf16.xpose.msra.mxu0 %v1145
    %1152 = vmatprep.subr.bf16.mxu0 0
    %1153 = vmatpush1.bf16.xpose.msra.mxu0 %v1148
    %1154 = vmatprep.subr.bf16.mxu0 0
    %1155 = vmatpush1.bf16.xpose.msra.mxu0 0
    %1156 = vmatprep.subr.bf16.mxu0 0
    %1157 = vmatpush1.bf16.xpose.msra.mxu0 0
    %1158 = vmatprep.subr.bf16.mxu0 0
    %1159 = vmatpush1.bf16.xpose.msra.mxu0 0
    %1160 = vmatprep.subr.bf16.mxu0 0
    %1161 = vmatpush1.bf16.xpose.msra.mxu0 0
    %1162 = vmatprep.subr.bf16.mxu0 0
    %1163 = vmatpush1.bf16.xpose.msra.mxu0 0
    %1164 = vmatprep.subr.bf16.mxu0 0
    %1165 = vmatpush1.bf16.xpose.msra.mxu0 0
    %1166 = vmatprep.subr.bf16.mxu0 0
    %1167 = vmatpush1.bf16.xpose.msra.mxu0 0
    %1168 = vmatprep.subr.bf16.mxu0 0
    %1169 = vmatpush1.bf16.xpose.msra.mxu0 0
    %1170 = vmatprep.subr.bf16.mxu0 0
    %1171 = vmatpush1.bf16.xpose.msra.mxu0 0
    %1172 = vmatprep.subr.bf16.mxu0 0
    %1173 = vmatpush1.bf16.xpose.msra.mxu0 0
    %1174 = vmatprep.subr.bf16.mxu0 0
    %1175 = vmatpush1.bf16.xpose.msra.mxu0 0
    %1176 = vmatprep.subr.bf16.mxu0 0
    %1177 = vmatpush1.bf16.xpose.msra.mxu0 0
    %1178 = vmatprep.subr.bf16.mxu0 0
    %1179 = vmatpush1.bf16.xpose.msra.mxu0 0
    %1180 = vmatprep.subr.bf16.mxu0 0
    %1181 = vmatpush1.bf16.xpose.msra.mxu0 0
    %1182 = vmatprep.mubr.bf16.mxu0 0
    %1183 = vmatmul.mubr.bf16.gmra.mrb[0].mxu0 %v1142
    %v1184 = vpop.f32.mrb[0].mxu0
    %v1185 = vadd.f32 0.0, %v1184
    %v1186 = vpop.f32.mrb[0].mxu0
    %v1187 = vpop.f32.mrb[0].mxu0
    %v1188 = vadd.f32 0.0, %v1187
    %v1189 = vpop.f32.mrb[0].mxu0
    %1190 = vdwg.mxu0
    %v1191 = vmul.f32 %v1185, 0.25
    %v1192 = vmul.f32 %v1188, 0.25
    %vm1193 = vcmask 195584
    %v1194 = vsel %vm1193, %v1191, -inf
    %1195 = vmax.xlane.f32.xlu0 %v1194
    %v1196 = vpop.xlane.xlu0 %1195
    %v1197 = vsel %vm1193, %v1192, -inf
    %1198 = vmax.xlane.f32.xlu0 %v1197
    %v1199 = vpop.xlane.xlu0 %1198
    %v1200 = vsub.f32 %v1191, %v1196
    %v1201 = vsub.f32 %v1192, %v1199
    %v1202 = vmul.f32 %v1200, 1.442695
    %v1203 = vpow.pop %v1202
    %v1204 = vmul.f32 %v1201, 1.442695
    %v1205 = vpow.pop %v1204
    %v1206 = vsel %vm1193, %v1203, 0.0
    %1207 = vadd.xlane.f32.xlu0 %v1206
    %v1208 = vpop.xlane.xlu0 %1207
    %v1209 = vsel %vm1193, %v1205, 0.0
    %1210 = vadd.xlane.f32.xlu0 %v1209
    %v1211 = vpop.xlane.xlu0 %1210
    %v1212 = vrcp.pop %v1208
    %v1213 = vrcp.pop %v1211
    %v1214 = vmul.f32 %v1203, %v1212
    %v1215 = vmul.f32 %v1205, %v1213
    %v1216 = vpack.c.bf16 %v1215, %v1214
    %v1217 = vpack.c.bf16 %v1136, %v1135
    %v1218 = vpack.c.bf16 %v1137, %v1137
    %v1220 = vsel %vm1193, %v1216, 0
    %vm1222 = vcmask 1043456
    %v1224 = vsel %vm1222, %v1218, 0
    %1226 = vmatprep.subr.bf16.mxu0 0
    %1227 = vmatpush1.bf16.msra.mxu0 %v1217
    %1228 = vmatprep.subr.bf16.mxu0 0
    %1229 = vmatpush1.bf16.msra.mxu0 %v1224
    %1230 = vmatprep.subr.bf16.mxu0 0
    %1231 = vmatpush1.bf16.msra.mxu0 0
    %1232 = vmatprep.subr.bf16.mxu0 0
    %1233 = vmatpush1.bf16.msra.mxu0 0
    %1234 = vmatprep.subr.bf16.mxu0 0
    %1235 = vmatpush1.bf16.msra.mxu0 0
    %1236 = vmatprep.subr.bf16.mxu0 0
    %1237 = vmatpush1.bf16.msra.mxu0 0
    %1238 = vmatprep.subr.bf16.mxu0 0
    %1239 = vmatpush1.bf16.msra.mxu0 0
    %1240 = vmatprep.subr.bf16.mxu0 0
    %1241 = vmatpush1.bf16.msra.mxu0 0
    %1242 = vmatprep.subr.bf16.mxu0 0
    %1243 = vmatpush1.bf16.msra.mxu0 0
    %1244 = vmatprep.subr.bf16.mxu0 0
    %1245 = vmatpush1.bf16.msra.mxu0 0
    %1246 = vmatprep.subr.bf16.mxu0 0
    %1247 = vmatpush1.bf16.msra.mxu0 0
    %1248 = vmatprep.subr.bf16.mxu0 0
    %1249 = vmatpush1.bf16.msra.mxu0 0
    %1250 = vmatprep.subr.bf16.mxu0 0
    %1251 = vmatpush1.bf16.msra.mxu0 0
    %1252 = vmatprep.subr.bf16.mxu0 0
    %1253 = vmatpush1.bf16.msra.mxu0 0
    %1254 = vmatprep.subr.bf16.mxu0 0
    %1255 = vmatpush1.bf16.msra.mxu0 0
    %1256 = vmatprep.subr.bf16.mxu0 0
    %1257 = vmatpush1.bf16.msra.mxu0 0
    %1258 = vmatprep.mubr.bf16.mxu0 0
    %1259 = vmatmul.mubr.bf16.gmra.mrb[0].mxu0 %v1220
    %v1260 = vpop.f32.mrb[0].mxu0
    %v1261 = vadd.f32 0.0, %v1260
    %v1262 = vpop.f32.mrb[0].mxu0
    %v1263 = vpop.f32.mrb[0].mxu0
    %v1264 = vadd.f32 0.0, %v1263
    %v1265 = vpop.f32.mrb[0].mxu0
    %1266 = vdwg.mxu0
    %1267 = vst.msk [vmem:[#allocation4] sm:$0xff] %vm384, %v1261
    %1268 = vst.msk [vmem:[#allocation4 + $0x8] sm:$0xff] %vm384, %v1264
    %1269 = vrot.lane.b32.xlu0 %v884, 112
    %v1270 = vpop.permute.xlu0 %1269
    %1271 = vrot.lane.b32.xlu0 %v885, 112
    %v1272 = vpop.permute.xlu0 %1271
    %v1275 = vsel %vm384, %v1270, 0.0
    %1276 = vadd.xlane.f32.xlu0 %v1275
    %v1277 = vpop.xlane.xlu0 %1276
    %v1278 = vsel %vm384, %v1272, 0.0
    %1279 = vadd.xlane.f32.xlu0 %v1278
    %v1280 = vpop.xlane.xlu0 %1279
    %v1281 = vmul.f32 %v1277, %v388
    %v1282 = vmul.f32 %v1280, %v388
    %v1283 = vadd.f32 %v1281, 1e-06
    %v1284 = vadd.f32 %v1282, 1e-06
    %v1285 = vrsqrt.pop %v1283
    %v1286 = vrsqrt.pop %v1284
    %v1287 = vmul.f32 %v878, %v1285
    %v1288 = vmul.f32 %v881, %v1286
    %1289 = vrot.lane.b32.xlu0 %v904, 16
    %v1290 = vpop.permute.xlu0 %1289
    %v1292 = vmul.f32 %v1287, %v1290
    %v1293 = vmul.f32 %v1288, %v1290
    %1296 = vrot.lane.b32.xlu0 %v1292, 112
    %v1297 = vpop.permute.xlu0 %1296
    %1298 = vrot.lane.b32.xlu0 %v1293, 112
    %v1299 = vpop.permute.xlu0 %1298
    %v1302 = vmul.f32 %v285, %v1297
    %v1303 = vmul.f32 %v286, %v1299
    %v1304 = vsel %vm384, %v1297, 0
    %v1306 = vsel %vm384, %v1299, 0
    %1308 = vmatprep.subr.mxu0 0.0
    %1309 = vmatpush1.msra.mxu0 %v132
    %1310 = vmatprep.subr.mxu0 0.0
    %1311 = vmatpush1.msra.mxu0 %v133
    %1312 = vmatprep.subr.mxu0 0.0
    %1313 = vmatpush1.msra.mxu0 0.0
    %1314 = vmatprep.subr.mxu0 0.0
    %1315 = vmatpush1.msra.mxu0 0.0
    %1316 = vmatprep.subr.mxu0 0.0
    %1317 = vmatpush1.msra.mxu0 0.0
    %1318 = vmatprep.subr.mxu0 0.0
    %1319 = vmatpush1.msra.mxu0 0.0
    %1320 = vmatprep.subr.mxu0 0.0
    %1321 = vmatpush1.msra.mxu0 0.0
    %1322 = vmatprep.subr.mxu0 0.0
    %1323 = vmatpush1.msra.mxu0 0.0
    %1324 = vmatprep.subr.mxu0 0.0
    %1325 = vmatpush1.msra.mxu0 0.0
    %1326 = vmatprep.subr.mxu0 0.0
    %1327 = vmatpush1.msra.mxu0 0.0
    %1328 = vmatprep.subr.mxu0 0.0
    %1329 = vmatpush1.msra.mxu0 0.0
    %1330 = vmatprep.subr.mxu0 0.0
    %1331 = vmatpush1.msra.mxu0 0.0
    %1332 = vmatprep.subr.mxu0 0.0
    %1333 = vmatpush1.msra.mxu0 0.0
    %1334 = vmatprep.subr.mxu0 0.0
    %1335 = vmatpush1.msra.mxu0 0.0
    %1336 = vmatprep.subr.mxu0 0.0
    %1337 = vmatpush1.msra.mxu0 0.0
    %1338 = vmatprep.subr.mxu0 0.0
    %1339 = vmatpush1.msra.mxu0 0.0
    %1340 = vmatprep.subr.mxu0 0.0
    %1341 = vmatpush1.msra.mxu0 0.0
    %1342 = vmatprep.subr.mxu0 0.0
    %1343 = vmatpush1.msra.mxu0 0.0
    %1344 = vmatprep.subr.mxu0 0.0
    %1345 = vmatpush1.msra.mxu0 0.0
    %1346 = vmatprep.subr.mxu0 0.0
    %1347 = vmatpush1.msra.mxu0 0.0
    %1348 = vmatprep.subr.mxu0 0.0
    %1349 = vmatpush1.msra.mxu0 0.0
    %1350 = vmatprep.subr.mxu0 0.0
    %1351 = vmatpush1.msra.mxu0 0.0
    %1352 = vmatprep.subr.mxu0 0.0
    %1353 = vmatpush1.msra.mxu0 0.0
    %1354 = vmatprep.subr.mxu0 0.0
    %1355 = vmatpush1.msra.mxu0 0.0
    %1356 = vmatprep.subr.mxu0 0.0
    %1357 = vmatpush1.msra.mxu0 0.0
    %1358 = vmatprep.subr.mxu0 0.0
    %1359 = vmatpush1.msra.mxu0 0.0
    %1360 = vmatprep.subr.mxu0 0.0
    %1361 = vmatpush1.msra.mxu0 0.0
    %1362 = vmatprep.subr.mxu0 0.0
    %1363 = vmatpush1.msra.mxu0 0.0
    %1364 = vmatprep.subr.mxu0 0.0
    %1365 = vmatpush1.msra.mxu0 0.0
    %1366 = vmatprep.subr.mxu0 0.0
    %1367 = vmatpush1.msra.mxu0 0.0
    %1368 = vmatprep.subr.mxu0 0.0
    %1369 = vmatpush1.msra.mxu0 0.0
    %1370 = vmatprep.subr.mxu0 0.0
    %1371 = vmatpush1.msra.mxu0 0.0
    %1372 = vmatprep.mubr.f32.mxu0 0.0
    %1373 = vmatmul.mubr.f32.gmra.mrb[0].mxu0 %v1304
    %v1374 = vpop.f32.mrb[0].mxu0
    %v1375 = vadd.f32 0.0, %v1374
    %v1376 = vpop.f32.mrb[0].mxu0
    %1377 = vmatprep.mubr.f32.mxu0 0.0
    %1378 = vmatmul.mubr.f32.gmra.mrb[0].mxu0 %v1306
    %v1379 = vpop.f32.mrb[0].mxu0
    %v1380 = vadd.f32 0.0, %v1379
    %v1381 = vpop.f32.mrb[0].mxu0
    %1382 = vdwg.mxu0
    %v1383 = vmul.f32 %v288, %v1375
    %v1384 = vmul.f32 %v289, %v1380
    %v1385 = vadd.f32 %v1302, %v1383
    %v1386 = vadd.f32 %v1303, %v1384
    %1387 = vrot.lane.b32.xlu0 %v884, 80
    %v1388 = vpop.permute.xlu0 %1387
    %1389 = vrot.lane.b32.xlu0 %v885, 80
    %v1390 = vpop.permute.xlu0 %1389
    %v1393 = vsel %vm384, %v1388, 0.0
    %1394 = vadd.xlane.f32.xlu0 %v1393
    %v1395 = vpop.xlane.xlu0 %1394
    %v1396 = vsel %vm384, %v1390, 0.0
    %1397 = vadd.xlane.f32.xlu0 %v1396
    %v1398 = vpop.xlane.xlu0 %1397
    %v1399 = vmul.f32 %v1395, %v388
    %v1400 = vmul.f32 %v1398, %v388
    %v1401 = vadd.f32 %v1399, 1e-06
    %v1402 = vadd.f32 %v1400, 1e-06
    %v1403 = vrsqrt.pop %v1401
    %v1404 = vrsqrt.pop %v1402
    %v1405 = vmul.f32 %v878, %v1403
    %v1406 = vmul.f32 %v881, %v1404
    %1407 = vrot.lane.b32.xlu0 %v1021, 48
    %v1408 = vpop.permute.xlu0 %1407
    %v1410 = vmul.f32 %v1405, %v1408
    %v1411 = vmul.f32 %v1406, %v1408
    %1414 = vrot.lane.b32.xlu0 %v1410, 80
    %v1415 = vpop.permute.xlu0 %1414
    %1416 = vrot.lane.b32.xlu0 %v1411, 80
    %v1417 = vpop.permute.xlu0 %1416
    %v1420 = vmul.f32 %v285, %v1415
    %v1421 = vmul.f32 %v286, %v1417
    %v1422 = vsel %vm384, %v1415, 0
    %v1424 = vsel %vm384, %v1417, 0
    %1426 = vmatprep.subr.mxu0 0.0
    %1427 = vmatpush1.msra.mxu0 %v132
    %1428 = vmatprep.subr.mxu0 0.0
    %1429 = vmatpush1.msra.mxu0 %v133
    %1430 = vmatprep.subr.mxu0 0.0
    %1431 = vmatpush1.msra.mxu0 0.0
    %1432 = vmatprep.subr.mxu0 0.0
    %1433 = vmatpush1.msra.mxu0 0.0
    %1434 = vmatprep.subr.mxu0 0.0
    %1435 = vmatpush1.msra.mxu0 0.0
    %1436 = vmatprep.subr.mxu0 0.0
    %1437 = vmatpush1.msra.mxu0 0.0
    %1438 = vmatprep.subr.mxu0 0.0
    %1439 = vmatpush1.msra.mxu0 0.0
    %1440 = vmatprep.subr.mxu0 0.0
    %1441 = vmatpush1.msra.mxu0 0.0
    %1442 = vmatprep.subr.mxu0 0.0
    %1443 = vmatpush1.msra.mxu0 0.0
    %1444 = vmatprep.subr.mxu0 0.0
    %1445 = vmatpush1.msra.mxu0 0.0
    %1446 = vmatprep.subr.mxu0 0.0
    %1447 = vmatpush1.msra.mxu0 0.0
    %1448 = vmatprep.subr.mxu0 0.0
    %1449 = vmatpush1.msra.mxu0 0.0
    %1450 = vmatprep.subr.mxu0 0.0
    %1451 = vmatpush1.msra.mxu0 0.0
    %1452 = vmatprep.subr.mxu0 0.0
    %1453 = vmatpush1.msra.mxu0 0.0
    %1454 = vmatprep.subr.mxu0 0.0
    %1455 = vmatpush1.msra.mxu0 0.0
    %1456 = vmatprep.subr.mxu0 0.0
    %1457 = vmatpush1.msra.mxu0 0.0
    %1458 = vmatprep.subr.mxu0 0.0
    %1459 = vmatpush1.msra.mxu0 0.0
    %1460 = vmatprep.subr.mxu0 0.0
    %1461 = vmatpush1.msra.mxu0 0.0
    %1462 = vmatprep.subr.mxu0 0.0
    %1463 = vmatpush1.msra.mxu0 0.0
    %1464 = vmatprep.subr.mxu0 0.0
    %1465 = vmatpush1.msra.mxu0 0.0
    %1466 = vmatprep.subr.mxu0 0.0
    %1467 = vmatpush1.msra.mxu0 0.0
    %1468 = vmatprep.subr.mxu0 0.0
    %1469 = vmatpush1.msra.mxu0 0.0
    %1470 = vmatprep.subr.mxu0 0.0
    %1471 = vmatpush1.msra.mxu0 0.0
    %1472 = vmatprep.subr.mxu0 0.0
    %1473 = vmatpush1.msra.mxu0 0.0
    %1474 = vmatprep.subr.mxu0 0.0
    %1475 = vmatpush1.msra.mxu0 0.0
    %1476 = vmatprep.subr.mxu0 0.0
    %1477 = vmatpush1.msra.mxu0 0.0
    %1478 = vmatprep.subr.mxu0 0.0
    %1479 = vmatpush1.msra.mxu0 0.0
    %1480 = vmatprep.subr.mxu0 0.0
    %1481 = vmatpush1.msra.mxu0 0.0
    %1482 = vmatprep.subr.mxu0 0.0
    %1483 = vmatpush1.msra.mxu0 0.0
    %1484 = vmatprep.subr.mxu0 0.0
    %1485 = vmatpush1.msra.mxu0 0.0
    %1486 = vmatprep.subr.mxu0 0.0
    %1487 = vmatpush1.msra.mxu0 0.0
    %1488 = vmatprep.subr.mxu0 0.0
    %1489 = vmatpush1.msra.mxu0 0.0
    %1490 = vmatprep.mubr.f32.mxu0 0.0
    %1491 = vmatmul.mubr.f32.gmra.mrb[0].mxu0 %v1422
    %v1492 = vpop.f32.mrb[0].mxu0
    %v1493 = vadd.f32 0.0, %v1492
    %v1494 = vpop.f32.mrb[0].mxu0
    %1495 = vmatprep.mubr.f32.mxu0 0.0
    %1496 = vmatmul.mubr.f32.gmra.mrb[0].mxu0 %v1424
    %v1497 = vpop.f32.mrb[0].mxu0
    %v1498 = vadd.f32 0.0, %v1497
    %v1499 = vpop.f32.mrb[0].mxu0
    %1500 = vdwg.mxu0
    %v1501 = vmul.f32 %v288, %v1493
    %v1502 = vmul.f32 %v289, %v1498
    %v1503 = vadd.f32 %v1420, %v1501
    %v1504 = vadd.f32 %v1421, %v1502
    %1505 = vst.msk [vmem:[#allocation2 + $0x20] sm:$0xff] %vm384, %v1503
    %1506 = vst.msk [vmem:[#allocation2 + $0x28] sm:$0xff] %vm384, %v1504
    %1507 = vrot.lane.b32.xlu0 %v878, 48
    %v1508 = vpop.permute.xlu0 %1507
    %1509 = vrot.lane.b32.xlu0 %v881, 48
    %v1510 = vpop.permute.xlu0 %1509
    %1513 = vst.msk [vmem:[#allocation3 + $0x20] sm:$0xff] %vm384, %v1508
    %1514 = vst.msk [vmem:[#allocation3 + $0x28] sm:$0xff] %vm384, %v1510
    %v1515 = vld [vmem:[#allocation2 + $0x18] sm:$0xff]
    %v1516 = vld [vmem:[#allocation2 + $0x20] sm:$0xff]
    %v1517 = vld [vmem:[#allocation2 + $0x28] sm:$0xff]
    %v1518 = vld [vmem:[#allocation3 + $0x18] sm:$0xff]
    %v1519 = vld [vmem:[#allocation3 + $0x20] sm:$0xff]
    %v1520 = vld [vmem:[#allocation3 + $0x28] sm:$0xff]
    %v1521 = vpack.c.bf16 %v1386, %v1385
    %v1522 = vpack.c.bf16 %v1516, %v1515
    %v1523 = vpack.c.bf16 %v1517, %v1517
    %v1525 = vsel %vm384, %v1521, 0
    %v1528 = vsel %vm384, %v1522, 0
    %v1531 = vsel %vm384, %v1523, 0
    %1533 = vmatprep.subr.bf16.mxu0 0
    %1534 = vmatpush1.bf16.xpose.msra.mxu0 %v1528
    %1535 = vmatprep.subr.bf16.mxu0 0
    %1536 = vmatpush1.bf16.xpose.msra.mxu0 %v1531
    %1537 = vmatprep.subr.bf16.mxu0 0
    %1538 = vmatpush1.bf16.xpose.msra.mxu0 0
    %1539 = vmatprep.subr.bf16.mxu0 0
    %1540 = vmatpush1.bf16.xpose.msra.mxu0 0
    %1541 = vmatprep.subr.bf16.mxu0 0
    %1542 = vmatpush1.bf16.xpose.msra.mxu0 0
    %1543 = vmatprep.subr.bf16.mxu0 0
    %1544 = vmatpush1.bf16.xpose.msra.mxu0 0
    %1545 = vmatprep.subr.bf16.mxu0 0
    %1546 = vmatpush1.bf16.xpose.msra.mxu0 0
    %1547 = vmatprep.subr.bf16.mxu0 0
    %1548 = vmatpush1.bf16.xpose.msra.mxu0 0
    %1549 = vmatprep.subr.bf16.mxu0 0
    %1550 = vmatpush1.bf16.xpose.msra.mxu0 0
    %1551 = vmatprep.subr.bf16.mxu0 0
    %1552 = vmatpush1.bf16.xpose.msra.mxu0 0
    %1553 = vmatprep.subr.bf16.mxu0 0
    %1554 = vmatpush1.bf16.xpose.msra.mxu0 0
    %1555 = vmatprep.subr.bf16.mxu0 0
    %1556 = vmatpush1.bf16.xpose.msra.mxu0 0
    %1557 = vmatprep.subr.bf16.mxu0 0
    %1558 = vmatpush1.bf16.xpose.msra.mxu0 0
    %1559 = vmatprep.subr.bf16.mxu0 0
    %1560 = vmatpush1.bf16.xpose.msra.mxu0 0
    %1561 = vmatprep.subr.bf16.mxu0 0
    %1562 = vmatpush1.bf16.xpose.msra.mxu0 0
    %1563 = vmatprep.subr.bf16.mxu0 0
    %1564 = vmatpush1.bf16.xpose.msra.mxu0 0
    %1565 = vmatprep.mubr.bf16.mxu0 0
    %1566 = vmatmul.mubr.bf16.gmra.mrb[0].mxu0 %v1525
    %v1567 = vpop.f32.mrb[0].mxu0
    %v1568 = vadd.f32 0.0, %v1567
    %v1569 = vpop.f32.mrb[0].mxu0
    %v1570 = vpop.f32.mrb[0].mxu0
    %v1571 = vadd.f32 0.0, %v1570
    %v1572 = vpop.f32.mrb[0].mxu0
    %1573 = vdwg.mxu0
    %v1574 = vmul.f32 %v1568, 0.25
    %v1575 = vmul.f32 %v1571, 0.25
    %v1576 = vsel %vm1193, %v1574, -inf
    %1577 = vmax.xlane.f32.xlu0 %v1576
    %v1578 = vpop.xlane.xlu0 %1577
    %v1579 = vsel %vm1193, %v1575, -inf
    %1580 = vmax.xlane.f32.xlu0 %v1579
    %v1581 = vpop.xlane.xlu0 %1580
    %v1582 = vsub.f32 %v1574, %v1578
    %v1583 = vsub.f32 %v1575, %v1581
    %v1584 = vmul.f32 %v1582, 1.442695
    %v1585 = vpow.pop %v1584
    %v1586 = vmul.f32 %v1583, 1.442695
    %v1587 = vpow.pop %v1586
    %v1588 = vsel %vm1193, %v1585, 0.0
    %1589 = vadd.xlane.f32.xlu0 %v1588
    %v1590 = vpop.xlane.xlu0 %1589
    %v1591 = vsel %vm1193, %v1587, 0.0
    %1592 = vadd.xlane.f32.xlu0 %v1591
    %v1593 = vpop.xlane.xlu0 %1592
    %v1594 = vrcp.pop %v1590
    %v1595 = vrcp.pop %v1593
    %v1596 = vmul.f32 %v1585, %v1594
    %v1597 = vmul.f32 %v1587, %v1595
    %v1598 = vpack.c.bf16 %v1597, %v1596
    %v1599 = vpack.c.bf16 %v1519, %v1518
    %v1600 = vpack.c.bf16 %v1520, %v1520
    %v1602 = vsel %vm1193, %v1598, 0
    %v1605 = vsel %vm1222, %v1600, 0
    %1607 = vmatprep.subr.bf16.mxu0 0
    %1608 = vmatpush1.bf16.msra.mxu0 %v1599
    %1609 = vmatprep.subr.bf16.mxu0 0
    %1610 = vmatpush1.bf16.msra.mxu0 %v1605
    %1611 = vmatprep.subr.bf16.mxu0 0
    %1612 = vmatpush1.bf16.msra.mxu0 0
    %1613 = vmatprep.subr.bf16.mxu0 0
    %1614 = vmatpush1.bf16.msra.mxu0 0
    %1615 = vmatprep.subr.bf16.mxu0 0
    %1616 = vmatpush1.bf16.msra.mxu0 0
    %1617 = vmatprep.subr.bf16.mxu0 0
    %1618 = vmatpush1.bf16.msra.mxu0 0
    %1619 = vmatprep.subr.bf16.mxu0 0
    %1620 = vmatpush1.bf16.msra.mxu0 0
    %1621 = vmatprep.subr.bf16.mxu0 0
    %1622 = vmatpush1.bf16.msra.mxu0 0
    %1623 = vmatprep.subr.bf16.mxu0 0
    %1624 = vmatpush1.bf16.msra.mxu0 0
    %1625 = vmatprep.subr.bf16.mxu0 0
    %1626 = vmatpush1.bf16.msra.mxu0 0
    %1627 = vmatprep.subr.bf16.mxu0 0
    %1628 = vmatpush1.bf16.msra.mxu0 0
    %1629 = vmatprep.subr.bf16.mxu0 0
    %1630 = vmatpush1.bf16.msra.mxu0 0
    %1631 = vmatprep.subr.bf16.mxu0 0
    %1632 = vmatpush1.bf16.msra.mxu0 0
    %1633 = vmatprep.subr.bf16.mxu0 0
    %1634 = vmatpush1.bf16.msra.mxu0 0
    %1635 = vmatprep.subr.bf16.mxu0 0
    %1636 = vmatpush1.bf16.msra.mxu0 0
    %1637 = vmatprep.subr.bf16.mxu0 0
    %1638 = vmatpush1.bf16.msra.mxu0 0
    %1639 = vmatprep.mubr.bf16.mxu0 0
    %1640 = vmatmul.mubr.bf16.gmra.mrb[0].mxu0 %v1602
    %v1641 = vpop.f32.mrb[0].mxu0
    %v1642 = vadd.f32 0.0, %v1641
    %v1643 = vpop.f32.mrb[0].mxu0
    %v1644 = vpop.f32.mrb[0].mxu0
    %v1645 = vadd.f32 0.0, %v1644
    %v1646 = vpop.f32.mrb[0].mxu0
    %1647 = vdwg.mxu0
    %1650 = vrot.lane.b32.xlu0 %v1642, 16
    %v1651 = vpop.permute.xlu0 %1650
    %1652 = vrot.lane.b32.xlu0 %v1645, 16
    %v1653 = vpop.permute.xlu0 %1652
    %vm1656 = vcmask 261248
    %1657 = vst.msk [vmem:[#allocation4] sm:$0xff] %vm1656, %v1651
    %1658 = vst.msk [vmem:[#allocation4 + $0x8] sm:$0xff] %vm1656, %v1653
    %v1659 = vld [vmem:[#allocation4] sm:$0xff]
    %v1660 = vld [vmem:[#allocation4 + $0x8] sm:$0xff]
    %1663 = vrot.lane.b32.xlu0 %v1659, 64
    %v1664 = vpop.permute.xlu0 %1663
    %1665 = vrot.lane.b32.xlu0 %v1660, 64
    %v1666 = vpop.permute.xlu0 %1665
    %v1669 = vmul.f32 %v816, %v1664
    %v1670 = vmul.f32 %v816, %v1666
    %1673 = vrot.lane.b32.xlu0 %v1669, 64
    %v1674 = vpop.permute.xlu0 %1673
    %1675 = vrot.lane.b32.xlu0 %v1670, 64
    %v1676 = vpop.permute.xlu0 %1675
    %v1679 = vadd.f32 %v281, %v1674
    %v1680 = vadd.f32 %v282, %v1676
    %v1681 = vsel %vm167, %v1679, 0.0
    %1682 = vadd.xlane.f32.xlu0 %v1681
    %v1683 = vpop.xlane.xlu0 %1682
    %v1684 = vsel %vm167, %v1680, 0.0
    %1685 = vadd.xlane.f32.xlu0 %v1684
    %v1686 = vpop.xlane.xlu0 %1685
    %v1687 = vmul.f32 %v1683, %v293
    %v1688 = vmul.f32 %v1686, %v293
    %v1689 = vsub.f32 %v1679, %v1687
    %v1690 = vsub.f32 %v1680, %v1688
    %v1691 = vmul.f32 %v1689, %v1689
    %v1692 = vmul.f32 %v1690, %v1690
    %v1693 = vsel %vm167, %v1691, 0.0
    %1694 = vadd.xlane.f32.xlu0 %v1693
    %v1695 = vpop.xlane.xlu0 %1694
    %v1696 = vsel %vm167, %v1692, 0.0
    %1697 = vadd.xlane.f32.xlu0 %v1696
    %v1698 = vpop.xlane.xlu0 %1697
    %v1699 = vmul.f32 %v1695, %v293
    %v1700 = vmul.f32 %v1698, %v293
    %v1701 = vadd.f32 %v1699, 1e-06
    %v1702 = vadd.f32 %v1700, 1e-06
    %v1703 = vrsqrt.pop %v1701
    %v1704 = vrsqrt.pop %v1702
    %v1705 = vmul.f32 %v1689, %v1703
    %v1706 = vmul.f32 %v1690, %v1704
    %1709 = vrot.lane.b32.xlu0 %v1705, 32
    %v1710 = vpop.permute.xlu0 %1709
    %1711 = vrot.lane.b32.xlu0 %v1706, 32
    %v1712 = vpop.permute.xlu0 %1711
    %v1715 = vmul.f32 %v802, %v1710
    %v1716 = vmul.f32 %v802, %v1712
    %v1717 = vadd.f32 %v1715, %v819
    %v1718 = vadd.f32 %v1716, %v819
    %v1719 = vld [vmem:[%s29] sm:$0xff]
    %v1720 = vld [vmem:[%s29 + $0x8] sm:$0xff]
    %v1721 = vld [vmem:[%s29 + $0x10] sm:$0xff]
    %v1722 = vld [vmem:[%s29 + $0x18] sm:$0xff]
    %v1723 = vpack.c.bf16 %v1718, %v1717
    %v1724 = vpack.c.bf16 %v1720, %v1719
    %v1725 = vpack.c.bf16 %v1722, %v1721
    %v1726 = vld [vmem:[%s31] sm:$0x1]
    %v1728 = vlaneseq
    %v1729 = vshrl.u32 %v1728, 7
    %v1730 = vsub.s32 0, %v1729
    %v1731 = vrot.slane %v1726, %v1730
    %1734 = vrot.lane.b32.xlu0 %v1723, 96
    %v1735 = vpop.permute.xlu0 %1734
    %v1737 = vsel %vm167, %v1735, 0
    %1739 = vmatprep.subr.bf16.mxu0 0
    %1740 = vmatpush1.bf16.msra.mxu0 %v1724
    %1741 = vmatprep.subr.bf16.mxu0 0
    %1742 = vmatpush1.bf16.msra.mxu0 %v1725
    %1743 = vmatprep.subr.bf16.mxu0 0
    %1744 = vmatpush1.bf16.msra.mxu0 0
    %1745 = vmatprep.subr.bf16.mxu0 0
    %1746 = vmatpush1.bf16.msra.mxu0 0
    %1747 = vmatprep.subr.bf16.mxu0 0
    %1748 = vmatpush1.bf16.msra.mxu0 0
    %1749 = vmatprep.subr.bf16.mxu0 0
    %1750 = vmatpush1.bf16.msra.mxu0 0
    %1751 = vmatprep.subr.bf16.mxu0 0
    %1752 = vmatpush1.bf16.msra.mxu0 0
    %1753 = vmatprep.subr.bf16.mxu0 0
    %1754 = vmatpush1.bf16.msra.mxu0 0
    %1755 = vmatprep.subr.bf16.mxu0 0
    %1756 = vmatpush1.bf16.msra.mxu0 0
    %1757 = vmatprep.subr.bf16.mxu0 0
    %1758 = vmatpush1.bf16.msra.mxu0 0
    %1759 = vmatprep.subr.bf16.mxu0 0
    %1760 = vmatpush1.bf16.msra.mxu0 0
    %1761 = vmatprep.subr.bf16.mxu0 0
    %1762 = vmatpush1.bf16.msra.mxu0 0
    %1763 = vmatprep.subr.bf16.mxu0 0
    %1764 = vmatpush1.bf16.msra.mxu0 0
    %1765 = vmatprep.subr.bf16.mxu0 0
    %1766 = vmatpush1.bf16.msra.mxu0 0
    %1767 = vmatprep.subr.bf16.mxu0 0
    %1768 = vmatpush1.bf16.msra.mxu0 0
    %1769 = vmatprep.subr.bf16.mxu0 0
    %1770 = vmatpush1.bf16.msra.mxu0 0
    %1771 = vmatprep.mubr.bf16.mxu0 0
    %1772 = vmatmul.mubr.bf16.gmra.mrb[0].mxu0 %v1737
    %v1773 = vpop.f32.mrb[0].mxu0
    %v1774 = vadd.f32 %v1731, %v1773
    %v1775 = vpop.f32.mrb[0].mxu0
    %v1776 = vpop.f32.mrb[0].mxu0
    %v1777 = vadd.f32 %v1731, %v1776
    %v1778 = vpop.f32.mrb[0].mxu0
    %1779 = vdwg.mxu0
    %v1780 = vmul.f32 %v1774, %v1774
    %v1781 = vmul.f32 %v1777, %v1777
    %v1782 = vsel %vm384, %v1780, 0.0
    %1783 = vadd.xlane.f32.xlu0 %v1782
    %v1784 = vpop.xlane.xlu0 %1783
    %v1785 = vsel %vm384, %v1781, 0.0
    %1786 = vadd.xlane.f32.xlu0 %v1785
    %v1787 = vpop.xlane.xlu0 %1786
    %v1788 = vmul.f32 %v1784, %v388
    %v1789 = vmul.f32 %v1787, %v388
    %v1790 = vadd.f32 %v1788, 1e-06
    %v1791 = vadd.f32 %v1789, 1e-06
    %v1792 = vrsqrt.pop %v1790
    %v1793 = vrsqrt.pop %v1791
    %v1794 = vmul.f32 %v1774, %v1792
    %v1795 = vmul.f32 %v1777, %v1793
    %v1796 = vmul.f32 %v1794, %v904
    %v1797 = vmul.f32 %v1795, %v904
    %v1798 = vmul.f32 %v285, %v1796
    %v1799 = vmul.f32 %v286, %v1797
    %v1801 = vsel %vm384, %v1796, 0
    %v1804 = vsel %vm384, %v1797, 0
    %1806 = vmatprep.subr.mxu0 0.0
    %1807 = vmatpush1.msra.mxu0 %v132
    %1808 = vmatprep.subr.mxu0 0.0
    %1809 = vmatpush1.msra.mxu0 %v133
    %1810 = vmatprep.subr.mxu0 0.0
    %1811 = vmatpush1.msra.mxu0 0.0
    %1812 = vmatprep.subr.mxu0 0.0
    %1813 = vmatpush1.msra.mxu0 0.0
    %1814 = vmatprep.subr.mxu0 0.0
    %1815 = vmatpush1.msra.mxu0 0.0
    %1816 = vmatprep.subr.mxu0 0.0
    %1817 = vmatpush1.msra.mxu0 0.0
    %1818 = vmatprep.subr.mxu0 0.0
    %1819 = vmatpush1.msra.mxu0 0.0
    %1820 = vmatprep.subr.mxu0 0.0
    %1821 = vmatpush1.msra.mxu0 0.0
    %1822 = vmatprep.subr.mxu0 0.0
    %1823 = vmatpush1.msra.mxu0 0.0
    %1824 = vmatprep.subr.mxu0 0.0
    %1825 = vmatpush1.msra.mxu0 0.0
    %1826 = vmatprep.subr.mxu0 0.0
    %1827 = vmatpush1.msra.mxu0 0.0
    %1828 = vmatprep.subr.mxu0 0.0
    %1829 = vmatpush1.msra.mxu0 0.0
    %1830 = vmatprep.subr.mxu0 0.0
    %1831 = vmatpush1.msra.mxu0 0.0
    %1832 = vmatprep.subr.mxu0 0.0
    %1833 = vmatpush1.msra.mxu0 0.0
    %1834 = vmatprep.subr.mxu0 0.0
    %1835 = vmatpush1.msra.mxu0 0.0
    %1836 = vmatprep.subr.mxu0 0.0
    %1837 = vmatpush1.msra.mxu0 0.0
    %1838 = vmatprep.subr.mxu0 0.0
    %1839 = vmatpush1.msra.mxu0 0.0
    %1840 = vmatprep.subr.mxu0 0.0
    %1841 = vmatpush1.msra.mxu0 0.0
    %1842 = vmatprep.subr.mxu0 0.0
    %1843 = vmatpush1.msra.mxu0 0.0
    %1844 = vmatprep.subr.mxu0 0.0
    %1845 = vmatpush1.msra.mxu0 0.0
    %1846 = vmatprep.subr.mxu0 0.0
    %1847 = vmatpush1.msra.mxu0 0.0
    %1848 = vmatprep.subr.mxu0 0.0
    %1849 = vmatpush1.msra.mxu0 0.0
    %1850 = vmatprep.subr.mxu0 0.0
    %1851 = vmatpush1.msra.mxu0 0.0
    %1852 = vmatprep.subr.mxu0 0.0
    %1853 = vmatpush1.msra.mxu0 0.0
    %1854 = vmatprep.subr.mxu0 0.0
    %1855 = vmatpush1.msra.mxu0 0.0
    %1856 = vmatprep.subr.mxu0 0.0
    %1857 = vmatpush1.msra.mxu0 0.0
    %1858 = vmatprep.subr.mxu0 0.0
    %1859 = vmatpush1.msra.mxu0 0.0
    %1860 = vmatprep.subr.mxu0 0.0
    %1861 = vmatpush1.msra.mxu0 0.0
    %1862 = vmatprep.subr.mxu0 0.0
    %1863 = vmatpush1.msra.mxu0 0.0
    %1864 = vmatprep.subr.mxu0 0.0
    %1865 = vmatpush1.msra.mxu0 0.0
    %1866 = vmatprep.subr.mxu0 0.0
    %1867 = vmatpush1.msra.mxu0 0.0
    %1868 = vmatprep.subr.mxu0 0.0
    %1869 = vmatpush1.msra.mxu0 0.0
    %1870 = vmatprep.mubr.f32.mxu0 0.0
    %1871 = vmatmul.mubr.f32.gmra.mrb[0].mxu0 %v1801
    %v1872 = vpop.f32.mrb[0].mxu0
    %v1873 = vadd.f32 0.0, %v1872
    %v1874 = vpop.f32.mrb[0].mxu0
    %1875 = vmatprep.mubr.f32.mxu0 0.0
    %1876 = vmatmul.mubr.f32.gmra.mrb[0].mxu0 %v1804
    %v1877 = vpop.f32.mrb[0].mxu0
    %v1878 = vadd.f32 0.0, %v1877
    %v1879 = vpop.f32.mrb[0].mxu0
    %1880 = vdwg.mxu0
    %v1881 = vmul.f32 %v288, %v1873
    %v1882 = vmul.f32 %v289, %v1878
    %v1883 = vadd.f32 %v1798, %v1881
    %v1884 = vadd.f32 %v1799, %v1882
    %1887 = vrot.lane.b32.xlu0 %v1780, 96
    %v1888 = vpop.permute.xlu0 %1887
    %1889 = vrot.lane.b32.xlu0 %v1781, 96
    %v1890 = vpop.permute.xlu0 %1889
    %v1893 = vsel %vm384, %v1888, 0.0
    %1894 = vadd.xlane.f32.xlu0 %v1893
    %v1895 = vpop.xlane.xlu0 %1894
    %v1896 = vsel %vm384, %v1890, 0.0
    %1897 = vadd.xlane.f32.xlu0 %v1896
    %v1898 = vpop.xlane.xlu0 %1897
    %v1899 = vmul.f32 %v1895, %v388
    %v1900 = vmul.f32 %v1898, %v388
    %v1901 = vadd.f32 %v1899, 1e-06
    %v1902 = vadd.f32 %v1900, 1e-06
    %v1903 = vrsqrt.pop %v1901
    %v1904 = vrsqrt.pop %v1902
    %v1905 = vmul.f32 %v1774, %v1903
    %v1906 = vmul.f32 %v1777, %v1904
    %v1907 = vmul.f32 %v1905, %v1023
    %v1908 = vmul.f32 %v1906, %v1023
    %1911 = vrot.lane.b32.xlu0 %v1907, 96
    %v1912 = vpop.permute.xlu0 %1911
    %1913 = vrot.lane.b32.xlu0 %v1908, 96
    %v1914 = vpop.permute.xlu0 %1913
    %v1917 = vmul.f32 %v285, %v1912
    %v1918 = vmul.f32 %v286, %v1914
    %v1919 = vsel %vm384, %v1912, 0
    %v1921 = vsel %vm384, %v1914, 0
    %1923 = vmatprep.subr.mxu0 0.0
    %1924 = vmatpush1.msra.mxu0 %v132
    %1925 = vmatprep.subr.mxu0 0.0
    %1926 = vmatpush1.msra.mxu0 %v133
    %1927 = vmatprep.subr.mxu0 0.0
    %1928 = vmatpush1.msra.mxu0 0.0
    %1929 = vmatprep.subr.mxu0 0.0
    %1930 = vmatpush1.msra.mxu0 0.0
    %1931 = vmatprep.subr.mxu0 0.0
    %1932 = vmatpush1.msra.mxu0 0.0
    %1933 = vmatprep.subr.mxu0 0.0
    %1934 = vmatpush1.msra.mxu0 0.0
    %1935 = vmatprep.subr.mxu0 0.0
    %1936 = vmatpush1.msra.mxu0 0.0
    %1937 = vmatprep.subr.mxu0 0.0
    %1938 = vmatpush1.msra.mxu0 0.0
    %1939 = vmatprep.subr.mxu0 0.0
    %1940 = vmatpush1.msra.mxu0 0.0
    %1941 = vmatprep.subr.mxu0 0.0
    %1942 = vmatpush1.msra.mxu0 0.0
    %1943 = vmatprep.subr.mxu0 0.0
    %1944 = vmatpush1.msra.mxu0 0.0
    %1945 = vmatprep.subr.mxu0 0.0
    %1946 = vmatpush1.msra.mxu0 0.0
    %1947 = vmatprep.subr.mxu0 0.0
    %1948 = vmatpush1.msra.mxu0 0.0
    %1949 = vmatprep.subr.mxu0 0.0
    %1950 = vmatpush1.msra.mxu0 0.0
    %1951 = vmatprep.subr.mxu0 0.0
    %1952 = vmatpush1.msra.mxu0 0.0
    %1953 = vmatprep.subr.mxu0 0.0
    %1954 = vmatpush1.msra.mxu0 0.0
    %1955 = vmatprep.subr.mxu0 0.0
    %1956 = vmatpush1.msra.mxu0 0.0
    %1957 = vmatprep.subr.mxu0 0.0
    %1958 = vmatpush1.msra.mxu0 0.0
    %1959 = vmatprep.subr.mxu0 0.0
    %1960 = vmatpush1.msra.mxu0 0.0
    %1961 = vmatprep.subr.mxu0 0.0
    %1962 = vmatpush1.msra.mxu0 0.0
    %1963 = vmatprep.subr.mxu0 0.0
    %1964 = vmatpush1.msra.mxu0 0.0
    %1965 = vmatprep.subr.mxu0 0.0
    %1966 = vmatpush1.msra.mxu0 0.0
    %1967 = vmatprep.subr.mxu0 0.0
    %1968 = vmatpush1.msra.mxu0 0.0
    %1969 = vmatprep.subr.mxu0 0.0
    %1970 = vmatpush1.msra.mxu0 0.0
    %1971 = vmatprep.subr.mxu0 0.0
    %1972 = vmatpush1.msra.mxu0 0.0
    %1973 = vmatprep.subr.mxu0 0.0
    %1974 = vmatpush1.msra.mxu0 0.0
    %1975 = vmatprep.subr.mxu0 0.0
    %1976 = vmatpush1.msra.mxu0 0.0
    %1977 = vmatprep.subr.mxu0 0.0
    %1978 = vmatpush1.msra.mxu0 0.0
    %1979 = vmatprep.subr.mxu0 0.0
    %1980 = vmatpush1.msra.mxu0 0.0
    %1981 = vmatprep.subr.mxu0 0.0
    %1982 = vmatpush1.msra.mxu0 0.0
    %1983 = vmatprep.subr.mxu0 0.0
    %1984 = vmatpush1.msra.mxu0 0.0
    %1985 = vmatprep.subr.mxu0 0.0
    %1986 = vmatpush1.msra.mxu0 0.0
    %1987 = vmatprep.mubr.f32.mxu0 0.0
    %1988 = vmatmul.mubr.f32.gmra.mrb[0].mxu0 %v1919
    %v1989 = vpop.f32.mrb[0].mxu0
    %v1990 = vadd.f32 0.0, %v1989
    %v1991 = vpop.f32.mrb[0].mxu0
    %1992 = vmatprep.mubr.f32.mxu0 0.0
    %1993 = vmatmul.mubr.f32.gmra.mrb[0].mxu0 %v1921
    %v1994 = vpop.f32.mrb[0].mxu0
    %v1995 = vadd.f32 0.0, %v1994
    %v1996 = vpop.f32.mrb[0].mxu0
    %1997 = vdwg.mxu0
    %v1998 = vmul.f32 %v288, %v1990
    %v1999 = vmul.f32 %v289, %v1995
    %v2000 = vadd.f32 %v1917, %v1998
    %v2001 = vadd.f32 %v1918, %v1999
    %2002 = vst.msk [vmem:[#allocation2 + $0x8] sm:$0xff] %vm384, %v2000
    %2003 = vst.msk [vmem:[#allocation2 + $0x10] sm:$0xff] %vm384, %v2001
    %2006 = vrot.lane.b32.xlu0 %v1774, 64
    %v2007 = vpop.permute.xlu0 %2006
    %2008 = vrot.lane.b32.xlu0 %v1777, 64
    %v2009 = vpop.permute.xlu0 %2008
    %2012 = vst.msk [vmem:[#allocation3 + $0x8] sm:$0xff] %vm384, %v2007
    %2013 = vst.msk [vmem:[#allocation3 + $0x10] sm:$0xff] %vm384, %v2009
    %v2014 = vld [vmem:[#allocation2] sm:$0xff]
    %v2015 = vld [vmem:[#allocation2 + $0x8] sm:$0xff]
    %v2016 = vld [vmem:[#allocation2 + $0x10] sm:$0xff]
    %v2017 = vld [vmem:[#allocation3] sm:$0xff]
    %v2018 = vld [vmem:[#allocation3 + $0x8] sm:$0xff]
    %v2019 = vld [vmem:[#allocation3 + $0x10] sm:$0xff]
    %v2020 = vpack.c.bf16 %v1884, %v1883
    %v2021 = vpack.c.bf16 %v2015, %v2014
    %v2022 = vpack.c.bf16 %v2016, %v2016
    %v2024 = vsel %vm384, %v2020, 0
    %v2027 = vsel %vm384, %v2021, 0
    %v2030 = vsel %vm384, %v2022, 0
    %2032 = vmatprep.subr.bf16.mxu0 0
    %2033 = vmatpush1.bf16.xpose.msra.mxu0 %v2027
    %2034 = vmatprep.subr.bf16.mxu0 0
    %2035 = vmatpush1.bf16.xpose.msra.mxu0 %v2030
    %2036 = vmatprep.subr.bf16.mxu0 0
    %2037 = vmatpush1.bf16.xpose.msra.mxu0 0
    %2038 = vmatprep.subr.bf16.mxu0 0
    %2039 = vmatpush1.bf16.xpose.msra.mxu0 0
    %2040 = vmatprep.subr.bf16.mxu0 0
    %2041 = vmatpush1.bf16.xpose.msra.mxu0 0
    %2042 = vmatprep.subr.bf16.mxu0 0
    %2043 = vmatpush1.bf16.xpose.msra.mxu0 0
    %2044 = vmatprep.subr.bf16.mxu0 0
    %2045 = vmatpush1.bf16.xpose.msra.mxu0 0
    %2046 = vmatprep.subr.bf16.mxu0 0
    %2047 = vmatpush1.bf16.xpose.msra.mxu0 0
    %2048 = vmatprep.subr.bf16.mxu0 0
    %2049 = vmatpush1.bf16.xpose.msra.mxu0 0
    %2050 = vmatprep.subr.bf16.mxu0 0
    %2051 = vmatpush1.bf16.xpose.msra.mxu0 0
    %2052 = vmatprep.subr.bf16.mxu0 0
    %2053 = vmatpush1.bf16.xpose.msra.mxu0 0
    %2054 = vmatprep.subr.bf16.mxu0 0
    %2055 = vmatpush1.bf16.xpose.msra.mxu0 0
    %2056 = vmatprep.subr.bf16.mxu0 0
    %2057 = vmatpush1.bf16.xpose.msra.mxu0 0
    %2058 = vmatprep.subr.bf16.mxu0 0
    %2059 = vmatpush1.bf16.xpose.msra.mxu0 0
    %2060 = vmatprep.subr.bf16.mxu0 0
    %2061 = vmatpush1.bf16.xpose.msra.mxu0 0
    %2062 = vmatprep.subr.bf16.mxu0 0
    %2063 = vmatpush1.bf16.xpose.msra.mxu0 0
    %2064 = vmatprep.mubr.bf16.mxu0 0
    %2065 = vmatmul.mubr.bf16.gmra.mrb[0].mxu0 %v2024
    %v2066 = vpop.f32.mrb[0].mxu0
    %v2067 = vadd.f32 0.0, %v2066
    %v2068 = vpop.f32.mrb[0].mxu0
    %v2069 = vpop.f32.mrb[0].mxu0
    %v2070 = vadd.f32 0.0, %v2069
    %v2071 = vpop.f32.mrb[0].mxu0
    %2072 = vdwg.mxu0
    %v2073 = vmul.f32 %v2067, 0.25
    %v2074 = vmul.f32 %v2070, 0.25
    %v2075 = vsel %vm1193, %v2073, -inf
    %2076 = vmax.xlane.f32.xlu0 %v2075
    %v2077 = vpop.xlane.xlu0 %2076
    %v2078 = vsel %vm1193, %v2074, -inf
    %2079 = vmax.xlane.f32.xlu0 %v2078
    %v2080 = vpop.xlane.xlu0 %2079
    %v2081 = vsub.f32 %v2073, %v2077
    %v2082 = vsub.f32 %v2074, %v2080
    %v2083 = vmul.f32 %v2081, 1.442695
    %v2084 = vpow.pop %v2083
    %v2085 = vmul.f32 %v2082, 1.442695
    %v2086 = vpow.pop %v2085
    %v2087 = vsel %vm1193, %v2084, 0.0
    %2088 = vadd.xlane.f32.xlu0 %v2087
    %v2089 = vpop.xlane.xlu0 %2088
    %v2090 = vsel %vm1193, %v2086, 0.0
    %2091 = vadd.xlane.f32.xlu0 %v2090
    %v2092 = vpop.xlane.xlu0 %2091
    %v2093 = vrcp.pop %v2089
    %v2094 = vrcp.pop %v2092
    %v2095 = vmul.f32 %v2084, %v2093
    %v2096 = vmul.f32 %v2086, %v2094
    %v2097 = vpack.c.bf16 %v2096, %v2095
    %v2098 = vpack.c.bf16 %v2018, %v2017
    %v2099 = vpack.c.bf16 %v2019, %v2019
    %v2101 = vsel %vm1193, %v2097, 0
    %v2104 = vsel %vm1222, %v2099, 0
    %2106 = vmatprep.subr.bf16.mxu0 0
    %2107 = vmatpush1.bf16.msra.mxu0 %v2098
    %2108 = vmatprep.subr.bf16.mxu0 0
    %2109 = vmatpush1.bf16.msra.mxu0 %v2104
    %2110 = vmatprep.subr.bf16.mxu0 0
    %2111 = vmatpush1.bf16.msra.mxu0 0
    %2112 = vmatprep.subr.bf16.mxu0 0
    %2113 = vmatpush1.bf16.msra.mxu0 0
    %2114 = vmatprep.subr.bf16.mxu0 0
    %2115 = vmatpush1.bf16.msra.mxu0 0
    %2116 = vmatprep.subr.bf16.mxu0 0
    %2117 = vmatpush1.bf16.msra.mxu0 0
    %2118 = vmatprep.subr.bf16.mxu0 0
    %2119 = vmatpush1.bf16.msra.mxu0 0
    %2120 = vmatprep.subr.bf16.mxu0 0
    %2121 = vmatpush1.bf16.msra.mxu0 0
    %2122 = vmatprep.subr.bf16.mxu0 0
    %2123 = vmatpush1.bf16.msra.mxu0 0
    %2124 = vmatprep.subr.bf16.mxu0 0
    %2125 = vmatpush1.bf16.msra.mxu0 0
    %2126 = vmatprep.subr.bf16.mxu0 0
    %2127 = vmatpush1.bf16.msra.mxu0 0
    %2128 = vmatprep.subr.bf16.mxu0 0
    %2129 = vmatpush1.bf16.msra.mxu0 0
    %2130 = vmatprep.subr.bf16.mxu0 0
    %2131 = vmatpush1.bf16.msra.mxu0 0
    %2132 = vmatprep.subr.bf16.mxu0 0
    %2133 = vmatpush1.bf16.msra.mxu0 0
    %2134 = vmatprep.subr.bf16.mxu0 0
    %2135 = vmatpush1.bf16.msra.mxu0 0
    %2136 = vmatprep.subr.bf16.mxu0 0
    %2137 = vmatpush1.bf16.msra.mxu0 0
    %2138 = vmatprep.mubr.bf16.mxu0 0
    %2139 = vmatmul.mubr.bf16.gmra.mrb[0].mxu0 %v2101
    %v2140 = vpop.f32.mrb[0].mxu0
    %v2141 = vadd.f32 0.0, %v2140
    %v2142 = vpop.f32.mrb[0].mxu0
    %v2143 = vpop.f32.mrb[0].mxu0
    %v2144 = vadd.f32 0.0, %v2143
    %v2145 = vpop.f32.mrb[0].mxu0
    %2146 = vdwg.mxu0
    %2147 = vst.msk [vmem:[#allocation4] sm:$0xff] %vm384, %v2141
    %2148 = vst.msk [vmem:[#allocation4 + $0x8] sm:$0xff] %vm384, %v2144
    %v2149 = vpack.c.bf16 %v475, %v475
    %v2151 = vsel %vm384, %v2149, 0
    %2153 = vmatprep.subr.bf16.mxu0 0
    %2154 = vmatpush1.bf16.xpose.msra.mxu0 %v2027
    %2155 = vmatprep.subr.bf16.mxu0 0
    %2156 = vmatpush1.bf16.xpose.msra.mxu0 %v2030
    %2157 = vmatprep.subr.bf16.mxu0 0
    %2158 = vmatpush1.bf16.xpose.msra.mxu0 0
    %2159 = vmatprep.subr.bf16.mxu0 0
    %2160 = vmatpush1.bf16.xpose.msra.mxu0 0
    %2161 = vmatprep.subr.bf16.mxu0 0
    %2162 = vmatpush1.bf16.xpose.msra.mxu0 0
    %2163 = vmatprep.subr.bf16.mxu0 0
    %2164 = vmatpush1.bf16.xpose.msra.mxu0 0
    %2165 = vmatprep.subr.bf16.mxu0 0
    %2166 = vmatpush1.bf16.xpose.msra.mxu0 0
    %2167 = vmatprep.subr.bf16.mxu0 0
    %2168 = vmatpush1.bf16.xpose.msra.mxu0 0
    %2169 = vmatprep.subr.bf16.mxu0 0
    %2170 = vmatpush1.bf16.xpose.msra.mxu0 0
    %2171 = vmatprep.subr.bf16.mxu0 0
    %2172 = vmatpush1.bf16.xpose.msra.mxu0 0
    %2173 = vmatprep.subr.bf16.mxu0 0
    %2174 = vmatpush1.bf16.xpose.msra.mxu0 0
    %2175 = vmatprep.subr.bf16.mxu0 0
    %2176 = vmatpush1.bf16.xpose.msra.mxu0 0
    %2177 = vmatprep.subr.bf16.mxu0 0
    %2178 = vmatpush1.bf16.xpose.msra.mxu0 0
    %2179 = vmatprep.subr.bf16.mxu0 0
    %2180 = vmatpush1.bf16.xpose.msra.mxu0 0
    %2181 = vmatprep.subr.bf16.mxu0 0
    %2182 = vmatpush1.bf16.xpose.msra.mxu0 0
    %2183 = vmatprep.subr.bf16.mxu0 0
    %2184 = vmatpush1.bf16.xpose.msra.mxu0 0
    %2185 = vmatprep.mubr.bf16.mxu0 0
    %2186 = vmatmul.mubr.bf16.gmra.mrb[0].mxu0 %v2151
    %v2187 = vpop.f32.mrb[0].mxu0
    %v2188 = vadd.f32 0.0, %v2187
    %v2189 = vpop.f32.mrb[0].mxu0
    %v2190 = vpop.f32.mrb[0].mxu0
    %v2191 = vpop.f32.mrb[0].mxu0
    %2192 = vdwg.mxu0
    %v2193 = vmul.f32 %v2188, 0.25
    %v2194 = vsel %vm1193, %v2193, -inf
    %2195 = vmax.xlane.f32.xlu0 %v2194
    %v2196 = vpop.xlane.xlu0 %2195
    %v2197 = vsub.f32 %v2193, %v2196
    %v2198 = vmul.f32 %v2197, 1.442695
    %v2199 = vpow.pop %v2198
    %v2200 = vsel %vm1193, %v2199, 0.0
    %2201 = vadd.xlane.f32.xlu0 %v2200
    %v2202 = vpop.xlane.xlu0 %2201
    %v2203 = vrcp.pop %v2202
    %v2204 = vmul.f32 %v2199, %v2203
    %v2205 = vpack.c.bf16 %v2204, %v2204
    %v2207 = vsel %vm1193, %v2205, 0
    %2209 = vmatprep.subr.bf16.mxu0 0
    %2210 = vmatpush1.bf16.msra.mxu0 %v2098
    %2211 = vmatprep.subr.bf16.mxu0 0
    %2212 = vmatpush1.bf16.msra.mxu0 %v2104
    %2213 = vmatprep.subr.bf16.mxu0 0
    %2214 = vmatpush1.bf16.msra.mxu0 0
    %2215 = vmatprep.subr.bf16.mxu0 0
    %2216 = vmatpush1.bf16.msra.mxu0 0
    %2217 = vmatprep.subr.bf16.mxu0 0
    %2218 = vmatpush1.bf16.msra.mxu0 0
    %2219 = vmatprep.subr.bf16.mxu0 0
    %2220 = vmatpush1.bf16.msra.mxu0 0
    %2221 = vmatprep.subr.bf16.mxu0 0
    %2222 = vmatpush1.bf16.msra.mxu0 0
    %2223 = vmatprep.subr.bf16.mxu0 0
    %2224 = vmatpush1.bf16.msra.mxu0 0
    %2225 = vmatprep.subr.bf16.mxu0 0
    %2226 = vmatpush1.bf16.msra.mxu0 0
    %2227 = vmatprep.subr.bf16.mxu0 0
    %2228 = vmatpush1.bf16.msra.mxu0 0
    %2229 = vmatprep.subr.bf16.mxu0 0
    %2230 = vmatpush1.bf16.msra.mxu0 0
    %2231 = vmatprep.subr.bf16.mxu0 0
    %2232 = vmatpush1.bf16.msra.mxu0 0
    %2233 = vmatprep.subr.bf16.mxu0 0
    %2234 = vmatpush1.bf16.msra.mxu0 0
    %2235 = vmatprep.subr.bf16.mxu0 0
    %2236 = vmatpush1.bf16.msra.mxu0 0
    %2237 = vmatprep.subr.bf16.mxu0 0
    %2238 = vmatpush1.bf16.msra.mxu0 0
    %2239 = vmatprep.subr.bf16.mxu0 0
    %2240 = vmatpush1.bf16.msra.mxu0 0
    %2241 = vmatprep.mubr.bf16.mxu0 0
    %2242 = vmatmul.mubr.bf16.gmra.mrb[0].mxu0 %v2207
    %v2243 = vpop.f32.mrb[0].mxu0
    %v2244 = vadd.f32 0.0, %v2243
    %v2245 = vpop.f32.mrb[0].mxu0
    %v2246 = vpop.f32.mrb[0].mxu0
    %v2247 = vpop.f32.mrb[0].mxu0
    %2248 = vdwg.mxu0
    %2249 = vst.msk [vmem:[#allocation5] sm:$0xff] %vm384, %v2244
    %2250 = vrot.lane.b32.xlu0 %v1780, 112
    %v2251 = vpop.permute.xlu0 %2250
    %2252 = vrot.lane.b32.xlu0 %v1781, 112
    %v2253 = vpop.permute.xlu0 %2252
    %v2256 = vsel %vm384, %v2251, 0.0
    %2257 = vadd.xlane.f32.xlu0 %v2256
    %v2258 = vpop.xlane.xlu0 %2257
    %v2259 = vsel %vm384, %v2253, 0.0
    %2260 = vadd.xlane.f32.xlu0 %v2259
    %v2261 = vpop.xlane.xlu0 %2260
    %v2262 = vmul.f32 %v2258, %v388
    %v2263 = vmul.f32 %v2261, %v388
    %v2264 = vadd.f32 %v2262, 1e-06
    %v2265 = vadd.f32 %v2263, 1e-06
    %v2266 = vrsqrt.pop %v2264
    %v2267 = vrsqrt.pop %v2265
    %v2268 = vmul.f32 %v1774, %v2266
    %v2269 = vmul.f32 %v1777, %v2267
    %v2270 = vmul.f32 %v2268, %v1290
    %v2271 = vmul.f32 %v2269, %v1290
    %2274 = vrot.lane.b32.xlu0 %v2270, 112
    %v2275 = vpop.permute.xlu0 %2274
    %2276 = vrot.lane.b32.xlu0 %v2271, 112
    %v2277 = vpop.permute.xlu0 %2276
    %v2280 = vmul.f32 %v285, %v2275
    %v2281 = vmul.f32 %v286, %v2277
    %v2282 = vsel %vm384, %v2275, 0
    %v2284 = vsel %vm384, %v2277, 0
    %2286 = vmatprep.subr.mxu0 0.0
    %2287 = vmatpush1.msra.mxu0 %v132
    %2288 = vmatprep.subr.mxu0 0.0
    %2289 = vmatpush1.msra.mxu0 %v133
    %2290 = vmatprep.subr.mxu0 0.0
    %2291 = vmatpush1.msra.mxu0 0.0
    %2292 = vmatprep.subr.mxu0 0.0
    %2293 = vmatpush1.msra.mxu0 0.0
    %2294 = vmatprep.subr.mxu0 0.0
    %2295 = vmatpush1.msra.mxu0 0.0
    %2296 = vmatprep.subr.mxu0 0.0
    %2297 = vmatpush1.msra.mxu0 0.0
    %2298 = vmatprep.subr.mxu0 0.0
    %2299 = vmatpush1.msra.mxu0 0.0
    %2300 = vmatprep.subr.mxu0 0.0
    %2301 = vmatpush1.msra.mxu0 0.0
    %2302 = vmatprep.subr.mxu0 0.0
    %2303 = vmatpush1.msra.mxu0 0.0
    %2304 = vmatprep.subr.mxu0 0.0
    %2305 = vmatpush1.msra.mxu0 0.0
    %2306 = vmatprep.subr.mxu0 0.0
    %2307 = vmatpush1.msra.mxu0 0.0
    %2308 = vmatprep.subr.mxu0 0.0
    %2309 = vmatpush1.msra.mxu0 0.0
    %2310 = vmatprep.subr.mxu0 0.0
    %2311 = vmatpush1.msra.mxu0 0.0
    %2312 = vmatprep.subr.mxu0 0.0
    %2313 = vmatpush1.msra.mxu0 0.0
    %2314 = vmatprep.subr.mxu0 0.0
    %2315 = vmatpush1.msra.mxu0 0.0
    %2316 = vmatprep.subr.mxu0 0.0
    %2317 = vmatpush1.msra.mxu0 0.0
    %2318 = vmatprep.subr.mxu0 0.0
    %2319 = vmatpush1.msra.mxu0 0.0
    %2320 = vmatprep.subr.mxu0 0.0
    %2321 = vmatpush1.msra.mxu0 0.0
    %2322 = vmatprep.subr.mxu0 0.0
    %2323 = vmatpush1.msra.mxu0 0.0
    %2324 = vmatprep.subr.mxu0 0.0
    %2325 = vmatpush1.msra.mxu0 0.0
    %2326 = vmatprep.subr.mxu0 0.0
    %2327 = vmatpush1.msra.mxu0 0.0
    %2328 = vmatprep.subr.mxu0 0.0
    %2329 = vmatpush1.msra.mxu0 0.0
    %2330 = vmatprep.subr.mxu0 0.0
    %2331 = vmatpush1.msra.mxu0 0.0
    %2332 = vmatprep.subr.mxu0 0.0
    %2333 = vmatpush1.msra.mxu0 0.0
    %2334 = vmatprep.subr.mxu0 0.0
    %2335 = vmatpush1.msra.mxu0 0.0
    %2336 = vmatprep.subr.mxu0 0.0
    %2337 = vmatpush1.msra.mxu0 0.0
    %2338 = vmatprep.subr.mxu0 0.0
    %2339 = vmatpush1.msra.mxu0 0.0
    %2340 = vmatprep.subr.mxu0 0.0
    %2341 = vmatpush1.msra.mxu0 0.0
    %2342 = vmatprep.subr.mxu0 0.0
    %2343 = vmatpush1.msra.mxu0 0.0
    %2344 = vmatprep.subr.mxu0 0.0
    %2345 = vmatpush1.msra.mxu0 0.0
    %2346 = vmatprep.subr.mxu0 0.0
    %2347 = vmatpush1.msra.mxu0 0.0
    %2348 = vmatprep.subr.mxu0 0.0
    %2349 = vmatpush1.msra.mxu0 0.0
    %2350 = vmatprep.mubr.f32.mxu0 0.0
    %2351 = vmatmul.mubr.f32.gmra.mrb[0].mxu0 %v2282
    %v2352 = vpop.f32.mrb[0].mxu0
    %v2353 = vadd.f32 0.0, %v2352
    %v2354 = vpop.f32.mrb[0].mxu0
    %2355 = vmatprep.mubr.f32.mxu0 0.0
    %2356 = vmatmul.mubr.f32.gmra.mrb[0].mxu0 %v2284
    %v2357 = vpop.f32.mrb[0].mxu0
    %v2358 = vadd.f32 0.0, %v2357
    %v2359 = vpop.f32.mrb[0].mxu0
    %2360 = vdwg.mxu0
    %v2361 = vmul.f32 %v288, %v2353
    %v2362 = vmul.f32 %v289, %v2358
    %v2363 = vadd.f32 %v2280, %v2361
    %v2364 = vadd.f32 %v2281, %v2362
    %2365 = vrot.lane.b32.xlu0 %v1780, 80
    %v2366 = vpop.permute.xlu0 %2365
    %2367 = vrot.lane.b32.xlu0 %v1781, 80
    %v2368 = vpop.permute.xlu0 %2367
    %v2371 = vsel %vm384, %v2366, 0.0
    %2372 = vadd.xlane.f32.xlu0 %v2371
    %v2373 = vpop.xlane.xlu0 %2372
    %v2374 = vsel %vm384, %v2368, 0.0
    %2375 = vadd.xlane.f32.xlu0 %v2374
    %v2376 = vpop.xlane.xlu0 %2375
    %v2377 = vmul.f32 %v2373, %v388
    %v2378 = vmul.f32 %v2376, %v388
    %v2379 = vadd.f32 %v2377, 1e-06
    %v2380 = vadd.f32 %v2378, 1e-06
    %v2381 = vrsqrt.pop %v2379
    %v2382 = vrsqrt.pop %v2380
    %v2383 = vmul.f32 %v1774, %v2381
    %v2384 = vmul.f32 %v1777, %v2382
    %v2385 = vmul.f32 %v2383, %v1408
    %v2386 = vmul.f32 %v2384, %v1408
    %2389 = vrot.lane.b32.xlu0 %v2385, 80
    %v2390 = vpop.permute.xlu0 %2389
    %2391 = vrot.lane.b32.xlu0 %v2386, 80
    %v2392 = vpop.permute.xlu0 %2391
    %v2395 = vmul.f32 %v285, %v2390
    %v2396 = vmul.f32 %v286, %v2392
    %v2397 = vsel %vm384, %v2390, 0
    %v2399 = vsel %vm384, %v2392, 0
    %2401 = vmatprep.subr.mxu0 0.0
    %2402 = vmatpush1.msra.mxu0 %v132
    %2403 = vmatprep.subr.mxu0 0.0
    %2404 = vmatpush1.msra.mxu0 %v133
    %2405 = vmatprep.subr.mxu0 0.0
    %2406 = vmatpush1.msra.mxu0 0.0
    %2407 = vmatprep.subr.mxu0 0.0
    %2408 = vmatpush1.msra.mxu0 0.0
    %2409 = vmatprep.subr.mxu0 0.0
    %2410 = vmatpush1.msra.mxu0 0.0
    %2411 = vmatprep.subr.mxu0 0.0
    %2412 = vmatpush1.msra.mxu0 0.0
    %2413 = vmatprep.subr.mxu0 0.0
    %2414 = vmatpush1.msra.mxu0 0.0
    %2415 = vmatprep.subr.mxu0 0.0
    %2416 = vmatpush1.msra.mxu0 0.0
    %2417 = vmatprep.subr.mxu0 0.0
    %2418 = vmatpush1.msra.mxu0 0.0
    %2419 = vmatprep.subr.mxu0 0.0
    %2420 = vmatpush1.msra.mxu0 0.0
    %2421 = vmatprep.subr.mxu0 0.0
    %2422 = vmatpush1.msra.mxu0 0.0
    %2423 = vmatprep.subr.mxu0 0.0
    %2424 = vmatpush1.msra.mxu0 0.0
    %2425 = vmatprep.subr.mxu0 0.0
    %2426 = vmatpush1.msra.mxu0 0.0
    %2427 = vmatprep.subr.mxu0 0.0
    %2428 = vmatpush1.msra.mxu0 0.0
    %2429 = vmatprep.subr.mxu0 0.0
    %2430 = vmatpush1.msra.mxu0 0.0
    %2431 = vmatprep.subr.mxu0 0.0
    %2432 = vmatpush1.msra.mxu0 0.0
    %2433 = vmatprep.subr.mxu0 0.0
    %2434 = vmatpush1.msra.mxu0 0.0
    %2435 = vmatprep.subr.mxu0 0.0
    %2436 = vmatpush1.msra.mxu0 0.0
    %2437 = vmatprep.subr.mxu0 0.0
    %2438 = vmatpush1.msra.mxu0 0.0
    %2439 = vmatprep.subr.mxu0 0.0
    %2440 = vmatpush1.msra.mxu0 0.0
    %2441 = vmatprep.subr.mxu0 0.0
    %2442 = vmatpush1.msra.mxu0 0.0
    %2443 = vmatprep.subr.mxu0 0.0
    %2444 = vmatpush1.msra.mxu0 0.0
    %2445 = vmatprep.subr.mxu0 0.0
    %2446 = vmatpush1.msra.mxu0 0.0
    %2447 = vmatprep.subr.mxu0 0.0
    %2448 = vmatpush1.msra.mxu0 0.0
    %2449 = vmatprep.subr.mxu0 0.0
    %2450 = vmatpush1.msra.mxu0 0.0
    %2451 = vmatprep.subr.mxu0 0.0
    %2452 = vmatpush1.msra.mxu0 0.0
    %2453 = vmatprep.subr.mxu0 0.0
    %2454 = vmatpush1.msra.mxu0 0.0
    %2455 = vmatprep.subr.mxu0 0.0
    %2456 = vmatpush1.msra.mxu0 0.0
    %2457 = vmatprep.subr.mxu0 0.0
    %2458 = vmatpush1.msra.mxu0 0.0
    %2459 = vmatprep.subr.mxu0 0.0
    %2460 = vmatpush1.msra.mxu0 0.0
    %2461 = vmatprep.subr.mxu0 0.0
    %2462 = vmatpush1.msra.mxu0 0.0
    %2463 = vmatprep.subr.mxu0 0.0
    %2464 = vmatpush1.msra.mxu0 0.0
    %2465 = vmatprep.mubr.f32.mxu0 0.0
    %2466 = vmatmul.mubr.f32.gmra.mrb[0].mxu0 %v2397
    %v2467 = vpop.f32.mrb[0].mxu0
    %v2468 = vadd.f32 0.0, %v2467
    %v2469 = vpop.f32.mrb[0].mxu0
    %2470 = vmatprep.mubr.f32.mxu0 0.0
    %2471 = vmatmul.mubr.f32.gmra.mrb[0].mxu0 %v2399
    %v2472 = vpop.f32.mrb[0].mxu0
    %v2473 = vadd.f32 0.0, %v2472
    %v2474 = vpop.f32.mrb[0].mxu0
    %2475 = vdwg.mxu0
    %v2476 = vmul.f32 %v288, %v2468
    %v2477 = vmul.f32 %v289, %v2473
    %v2478 = vadd.f32 %v2395, %v2476
    %v2479 = vadd.f32 %v2396, %v2477
    %2480 = vst.msk [vmem:[#allocation2 + $0x20] sm:$0xff] %vm384, %v2478
    %2481 = vst.msk [vmem:[#allocation2 + $0x28] sm:$0xff] %vm384, %v2479
    %2482 = vrot.lane.b32.xlu0 %v1774, 48
    %v2483 = vpop.permute.xlu0 %2482
    %2484 = vrot.lane.b32.xlu0 %v1777, 48
    %v2485 = vpop.permute.xlu0 %2484
    %2488 = vst.msk [vmem:[#allocation3 + $0x20] sm:$0xff] %vm384, %v2483
    %2489 = vst.msk [vmem:[#allocation3 + $0x28] sm:$0xff] %vm384, %v2485
    %v2490 = vld [vmem:[#allocation2 + $0x18] sm:$0xff]
    %v2491 = vld [vmem:[#allocation2 + $0x20] sm:$0xff]
    %v2492 = vld [vmem:[#allocation2 + $0x28] sm:$0xff]
    %v2493 = vld [vmem:[#allocation3 + $0x18] sm:$0xff]
    %v2494 = vld [vmem:[#allocation3 + $0x20] sm:$0xff]
    %v2495 = vld [vmem:[#allocation3 + $0x28] sm:$0xff]
    %v2496 = vpack.c.bf16 %v2364, %v2363
    %v2497 = vpack.c.bf16 %v2491, %v2490
    %v2498 = vpack.c.bf16 %v2492, %v2492
    %v2500 = vsel %vm384, %v2496, 0
    %v2503 = vsel %vm384, %v2497, 0
    %v2506 = vsel %vm384, %v2498, 0
    %2508 = vmatprep.subr.bf16.mxu0 0
    %2509 = vmatpush1.bf16.xpose.msra.mxu0 %v2503
    %2510 = vmatprep.subr.bf16.mxu0 0
    %2511 = vmatpush1.bf16.xpose.msra.mxu0 %v2506
    %2512 = vmatprep.subr.bf16.mxu0 0
    %2513 = vmatpush1.bf16.xpose.msra.mxu0 0
    %2514 = vmatprep.subr.bf16.mxu0 0
    %2515 = vmatpush1.bf16.xpose.msra.mxu0 0
    %2516 = vmatprep.subr.bf16.mxu0 0
    %2517 = vmatpush1.bf16.xpose.msra.mxu0 0
    %2518 = vmatprep.subr.bf16.mxu0 0
    %2519 = vmatpush1.bf16.xpose.msra.mxu0 0
    %2520 = vmatprep.subr.bf16.mxu0 0
    %2521 = vmatpush1.bf16.xpose.msra.mxu0 0
    %2522 = vmatprep.subr.bf16.mxu0 0
    %2523 = vmatpush1.bf16.xpose.msra.mxu0 0
    %2524 = vmatprep.subr.bf16.mxu0 0
    %2525 = vmatpush1.bf16.xpose.msra.mxu0 0
    %2526 = vmatprep.subr.bf16.mxu0 0
    %2527 = vmatpush1.bf16.xpose.msra.mxu0 0
    %2528 = vmatprep.subr.bf16.mxu0 0
    %2529 = vmatpush1.bf16.xpose.msra.mxu0 0
    %2530 = vmatprep.subr.bf16.mxu0 0
    %2531 = vmatpush1.bf16.xpose.msra.mxu0 0
    %2532 = vmatprep.subr.bf16.mxu0 0
    %2533 = vmatpush1.bf16.xpose.msra.mxu0 0
    %2534 = vmatprep.subr.bf16.mxu0 0
    %2535 = vmatpush1.bf16.xpose.msra.mxu0 0
    %2536 = vmatprep.subr.bf16.mxu0 0
    %2537 = vmatpush1.bf16.xpose.msra.mxu0 0
    %2538 = vmatprep.subr.bf16.mxu0 0
    %2539 = vmatpush1.bf16.xpose.msra.mxu0 0
    %2540 = vmatprep.mubr.bf16.mxu0 0
    %2541 = vmatmul.mubr.bf16.gmra.mrb[0].mxu0 %v2500
    %v2542 = vpop.f32.mrb[0].mxu0
    %v2543 = vadd.f32 0.0, %v2542
    %v2544 = vpop.f32.mrb[0].mxu0
    %v2545 = vpop.f32.mrb[0].mxu0
    %v2546 = vadd.f32 0.0, %v2545
    %v2547 = vpop.f32.mrb[0].mxu0
    %2548 = vdwg.mxu0
    %v2549 = vmul.f32 %v2543, 0.25
    %v2550 = vmul.f32 %v2546, 0.25
    %v2551 = vsel %vm1193, %v2549, -inf
    %2552 = vmax.xlane.f32.xlu0 %v2551
    %v2553 = vpop.xlane.xlu0 %2552
    %v2554 = vsel %vm1193, %v2550, -inf
    %2555 = vmax.xlane.f32.xlu0 %v2554
    %v2556 = vpop.xlane.xlu0 %2555
    %v2557 = vsub.f32 %v2549, %v2553
    %v2558 = vsub.f32 %v2550, %v2556
    %v2559 = vmul.f32 %v2557, 1.442695
    %v2560 = vpow.pop %v2559
    %v2561 = vmul.f32 %v2558, 1.442695
    %v2562 = vpow.pop %v2561
    %v2563 = vsel %vm1193, %v2560, 0.0
    %2564 = vadd.xlane.f32.xlu0 %v2563
    %v2565 = vpop.xlane.xlu0 %2564
    %v2566 = vsel %vm1193, %v2562, 0.0
    %2567 = vadd.xlane.f32.xlu0 %v2566
    %v2568 = vpop.xlane.xlu0 %2567
    %v2569 = vrcp.pop %v2565
    %v2570 = vrcp.pop %v2568
    %v2571 = vmul.f32 %v2560, %v2569
    %v2572 = vmul.f32 %v2562, %v2570
    %v2573 = vpack.c.bf16 %v2572, %v2571
    %v2574 = vpack.c.bf16 %v2494, %v2493
    %v2575 = vpack.c.bf16 %v2495, %v2495
    %v2577 = vsel %vm1193, %v2573, 0
    %v2580 = vsel %vm1222, %v2575, 0
    %2582 = vmatprep.subr.bf16.mxu0 0
    %2583 = vmatpush1.bf16.msra.mxu0 %v2574
    %2584 = vmatprep.subr.bf16.mxu0 0
    %2585 = vmatpush1.bf16.msra.mxu0 %v2580
    %2586 = vmatprep.subr.bf16.mxu0 0
    %2587 = vmatpush1.bf16.msra.mxu0 0
    %2588 = vmatprep.subr.bf16.mxu0 0
    %2589 = vmatpush1.bf16.msra.mxu0 0
    %2590 = vmatprep.subr.bf16.mxu0 0
    %2591 = vmatpush1.bf16.msra.mxu0 0
    %2592 = vmatprep.subr.bf16.mxu0 0
    %2593 = vmatpush1.bf16.msra.mxu0 0
    %2594 = vmatprep.subr.bf16.mxu0 0
    %2595 = vmatpush1.bf16.msra.mxu0 0
    %2596 = vmatprep.subr.bf16.mxu0 0
    %2597 = vmatpush1.bf16.msra.mxu0 0
    %2598 = vmatprep.subr.bf16.mxu0 0
    %2599 = vmatpush1.bf16.msra.mxu0 0
    %2600 = vmatprep.subr.bf16.mxu0 0
    %2601 = vmatpush1.bf16.msra.mxu0 0
    %2602 = vmatprep.subr.bf16.mxu0 0
    %2603 = vmatpush1.bf16.msra.mxu0 0
    %2604 = vmatprep.subr.bf16.mxu0 0
    %2605 = vmatpush1.bf16.msra.mxu0 0
    %2606 = vmatprep.subr.bf16.mxu0 0
    %2607 = vmatpush1.bf16.msra.mxu0 0
    %2608 = vmatprep.subr.bf16.mxu0 0
    %2609 = vmatpush1.bf16.msra.mxu0 0
    %2610 = vmatprep.subr.bf16.mxu0 0
    %2611 = vmatpush1.bf16.msra.mxu0 0
    %2612 = vmatprep.subr.bf16.mxu0 0
    %2613 = vmatpush1.bf16.msra.mxu0 0
    %2614 = vmatprep.mubr.bf16.mxu0 0
    %2615 = vmatmul.mubr.bf16.gmra.mrb[0].mxu0 %v2577
    %v2616 = vpop.f32.mrb[0].mxu0
    %v2617 = vadd.f32 0.0, %v2616
    %v2618 = vpop.f32.mrb[0].mxu0
    %v2619 = vpop.f32.mrb[0].mxu0
    %v2620 = vadd.f32 0.0, %v2619
    %v2621 = vpop.f32.mrb[0].mxu0
    %2622 = vdwg.mxu0
    %2625 = vrot.lane.b32.xlu0 %v2617, 16
    %v2626 = vpop.permute.xlu0 %2625
    %2627 = vrot.lane.b32.xlu0 %v2620, 16
    %v2628 = vpop.permute.xlu0 %2627
    %2631 = vst.msk [vmem:[#allocation4] sm:$0xff] %vm1656, %v2626
    %2632 = vst.msk [vmem:[#allocation4 + $0x8] sm:$0xff] %vm1656, %v2628
    %v2633 = vpack.c.bf16 %v673, %v673
    %v2635 = vsel %vm384, %v2633, 0
    %2637 = vmatprep.subr.bf16.mxu0 0
    %2638 = vmatpush1.bf16.xpose.msra.mxu0 %v2503
    %2639 = vmatprep.subr.bf16.mxu0 0
    %2640 = vmatpush1.bf16.xpose.msra.mxu0 %v2506
    %2641 = vmatprep.subr.bf16.mxu0 0
    %2642 = vmatpush1.bf16.xpose.msra.mxu0 0
    %2643 = vmatprep.subr.bf16.mxu0 0
    %2644 = vmatpush1.bf16.xpose.msra.mxu0 0
    %2645 = vmatprep.subr.bf16.mxu0 0
    %2646 = vmatpush1.bf16.xpose.msra.mxu0 0
    %2647 = vmatprep.subr.bf16.mxu0 0
    %2648 = vmatpush1.bf16.xpose.msra.mxu0 0
    %2649 = vmatprep.subr.bf16.mxu0 0
    %2650 = vmatpush1.bf16.xpose.msra.mxu0 0
    %2651 = vmatprep.subr.bf16.mxu0 0
    %2652 = vmatpush1.bf16.xpose.msra.mxu0 0
    %2653 = vmatprep.subr.bf16.mxu0 0
    %2654 = vmatpush1.bf16.xpose.msra.mxu0 0
    %2655 = vmatprep.subr.bf16.mxu0 0
    %2656 = vmatpush1.bf16.xpose.msra.mxu0 0
    %2657 = vmatprep.subr.bf16.mxu0 0
    %2658 = vmatpush1.bf16.xpose.msra.mxu0 0
    %2659 = vmatprep.subr.bf16.mxu0 0
    %2660 = vmatpush1.bf16.xpose.msra.mxu0 0
    %2661 = vmatprep.subr.bf16.mxu0 0
    %2662 = vmatpush1.bf16.xpose.msra.mxu0 0
    %2663 = vmatprep.subr.bf16.mxu0 0
    %2664 = vmatpush1.bf16.xpose.msra.mxu0 0
    %2665 = vmatprep.subr.bf16.mxu0 0
    %2666 = vmatpush1.bf16.xpose.msra.mxu0 0
    %2667 = vmatprep.subr.bf16.mxu0 0
    %2668 = vmatpush1.bf16.xpose.msra.mxu0 0
    %2669 = vmatprep.mubr.bf16.mxu0 0
    %2670 = vmatmul.mubr.bf16.gmra.mrb[0].mxu0 %v2635
    %v2671 = vpop.f32.mrb[0].mxu0
    %v2672 = vadd.f32 0.0, %v2671
    %v2673 = vpop.f32.mrb[0].mxu0
    %v2674 = vpop.f32.mrb[0].mxu0
    %v2675 = vpop.f32.mrb[0].mxu0
    %2676 = vdwg.mxu0
    %v2677 = vmul.f32 %v2672, 0.25
    %v2678 = vsel %vm1193, %v2677, -inf
    %2679 = vmax.xlane.f32.xlu0 %v2678
    %v2680 = vpop.xlane.xlu0 %2679
    %v2681 = vsub.f32 %v2677, %v2680
    %v2682 = vmul.f32 %v2681, 1.442695
    %v2683 = vpow.pop %v2682
    %v2684 = vsel %vm1193, %v2683, 0.0
    %2685 = vadd.xlane.f32.xlu0 %v2684
    %v2686 = vpop.xlane.xlu0 %2685
    %v2687 = vrcp.pop %v2686
    %v2688 = vmul.f32 %v2683, %v2687
    %v2689 = vpack.c.bf16 %v2688, %v2688
    %v2691 = vsel %vm1193, %v2689, 0
    %2693 = vmatprep.subr.bf16.mxu0 0
    %2694 = vmatpush1.bf16.msra.mxu0 %v2574
    %2695 = vmatprep.subr.bf16.mxu0 0
    %2696 = vmatpush1.bf16.msra.mxu0 %v2580
    %2697 = vmatprep.subr.bf16.mxu0 0
    %2698 = vmatpush1.bf16.msra.mxu0 0
    %2699 = vmatprep.subr.bf16.mxu0 0
    %2700 = vmatpush1.bf16.msra.mxu0 0
    %2701 = vmatprep.subr.bf16.mxu0 0
    %2702 = vmatpush1.bf16.msra.mxu0 0
    %2703 = vmatprep.subr.bf16.mxu0 0
    %2704 = vmatpush1.bf16.msra.mxu0 0
    %2705 = vmatprep.subr.bf16.mxu0 0
    %2706 = vmatpush1.bf16.msra.mxu0 0
    %2707 = vmatprep.subr.bf16.mxu0 0
    %2708 = vmatpush1.bf16.msra.mxu0 0
    %2709 = vmatprep.subr.bf16.mxu0 0
    %2710 = vmatpush1.bf16.msra.mxu0 0
    %2711 = vmatprep.subr.bf16.mxu0 0
    %2712 = vmatpush1.bf16.msra.mxu0 0
    %2713 = vmatprep.subr.bf16.mxu0 0
    %2714 = vmatpush1.bf16.msra.mxu0 0
    %2715 = vmatprep.subr.bf16.mxu0 0
    %2716 = vmatpush1.bf16.msra.mxu0 0
    %2717 = vmatprep.subr.bf16.mxu0 0
    %2718 = vmatpush1.bf16.msra.mxu0 0
    %2719 = vmatprep.subr.bf16.mxu0 0
    %2720 = vmatpush1.bf16.msra.mxu0 0
    %2721 = vmatprep.subr.bf16.mxu0 0
    %2722 = vmatpush1.bf16.msra.mxu0 0
    %2723 = vmatprep.subr.bf16.mxu0 0
    %2724 = vmatpush1.bf16.msra.mxu0 0
    %2725 = vmatprep.mubr.bf16.mxu0 0
    %2726 = vmatmul.mubr.bf16.gmra.mrb[0].mxu0 %v2691
    %v2727 = vpop.f32.mrb[0].mxu0
    %v2728 = vadd.f32 0.0, %v2727
    %v2729 = vpop.f32.mrb[0].mxu0
    %v2730 = vpop.f32.mrb[0].mxu0
    %v2731 = vpop.f32.mrb[0].mxu0
    %2732 = vdwg.mxu0
    %2734 = vrot.lane.b32.xlu0 %v2728, 16
    %v2735 = vpop.permute.xlu0 %2734
    %2737 = vst.msk [vmem:[#allocation5] sm:$0xff] %vm1656, %v2735
    %v2738 = vld [vmem:[#allocation4] sm:$0xff]
    %v2739 = vld [vmem:[#allocation4 + $0x8] sm:$0xff]
    %v2740 = vld [vmem:[#allocation5] sm:$0xff]
    %v2741 = vld [vmem:[%s37] sm:$0xff]
    %v2742 = vld [vmem:[%s37 + $0x8] sm:$0xff]
    %v2743 = vld [vmem:[%s37 + $0x10] sm:$0xff]
    %v2744 = vld [vmem:[%s37 + $0x18] sm:$0xff]
    %v2745 = vpack.c.bf16 %v2739, %v2738
    %v2746 = vpack.c.bf16 %v2742, %v2741
    %v2747 = vpack.c.bf16 %v2744, %v2743
    %v2748 = vld [vmem:[%s39] sm:$0x1]
    %v2750 = vlaneseq
    %v2751 = vshrl.u32 %v2750, 7
    %v2752 = vsub.s32 0, %v2751
    %v2753 = vrot.slane %v2748, %v2752
    %v2756 = vsel %vm167, %v2745, 0
    %2758 = vmatprep.subr.bf16.mxu0 0
    %2759 = vmatpush1.bf16.msra.mxu0 %v2746
    %2760 = vmatprep.subr.bf16.mxu0 0
    %2761 = vmatpush1.bf16.msra.mxu0 %v2747
    %2762 = vmatprep.subr.bf16.mxu0 0
    %2763 = vmatpush1.bf16.msra.mxu0 0
    %2764 = vmatprep.subr.bf16.mxu0 0
    %2765 = vmatpush1.bf16.msra.mxu0 0
    %2766 = vmatprep.subr.bf16.mxu0 0
    %2767 = vmatpush1.bf16.msra.mxu0 0
    %2768 = vmatprep.subr.bf16.mxu0 0
    %2769 = vmatpush1.bf16.msra.mxu0 0
    %2770 = vmatprep.subr.bf16.mxu0 0
    %2771 = vmatpush1.bf16.msra.mxu0 0
    %2772 = vmatprep.subr.bf16.mxu0 0
    %2773 = vmatpush1.bf16.msra.mxu0 0
    %2774 = vmatprep.subr.bf16.mxu0 0
    %2775 = vmatpush1.bf16.msra.mxu0 0
    %2776 = vmatprep.subr.bf16.mxu0 0
    %2777 = vmatpush1.bf16.msra.mxu0 0
    %2778 = vmatprep.subr.bf16.mxu0 0
    %2779 = vmatpush1.bf16.msra.mxu0 0
    %2780 = vmatprep.subr.bf16.mxu0 0
    %2781 = vmatpush1.bf16.msra.mxu0 0
    %2782 = vmatprep.subr.bf16.mxu0 0
    %2783 = vmatpush1.bf16.msra.mxu0 0
    %2784 = vmatprep.subr.bf16.mxu0 0
    %2785 = vmatpush1.bf16.msra.mxu0 0
    %2786 = vmatprep.subr.bf16.mxu0 0
    %2787 = vmatpush1.bf16.msra.mxu0 0
    %2788 = vmatprep.subr.bf16.mxu0 0
    %2789 = vmatpush1.bf16.msra.mxu0 0
    %2790 = vmatprep.mubr.bf16.mxu0 0
    %2791 = vmatmul.mubr.bf16.gmra.mrb[0].mxu0 %v2756
    %v2792 = vpop.f32.mrb[0].mxu0
    %v2793 = vadd.f32 %v2753, %v2792
    %v2794 = vpop.f32.mrb[0].mxu0
    %v2795 = vpop.f32.mrb[0].mxu0
    %v2796 = vadd.f32 %v2753, %v2795
    %v2797 = vpop.f32.mrb[0].mxu0
    %2798 = vdwg.mxu0
    %2801 = vrot.lane.b32.xlu0 %v2793, 64
    %v2802 = vpop.permute.xlu0 %2801
    %2803 = vrot.lane.b32.xlu0 %v2796, 64
    %v2804 = vpop.permute.xlu0 %2803
    %v2807 = vmul.f32 %v816, %v2802
    %v2808 = vmul.f32 %v816, %v2804
    %2811 = vrot.lane.b32.xlu0 %v2807, 64
    %v2812 = vpop.permute.xlu0 %2811
    %2813 = vrot.lane.b32.xlu0 %v2808, 64
    %v2814 = vpop.permute.xlu0 %2813
    %v2817 = vadd.f32 %v1679, %v2812
    %v2818 = vadd.f32 %v1680, %v2814
    %v2819 = vsel %vm167, %v2817, 0.0
    %2820 = vadd.xlane.f32.xlu0 %v2819
    %v2821 = vpop.xlane.xlu0 %2820
    %v2822 = vsel %vm167, %v2818, 0.0
    %2823 = vadd.xlane.f32.xlu0 %v2822
    %v2824 = vpop.xlane.xlu0 %2823
    %v2825 = vmul.f32 %v2821, %v293
    %v2826 = vmul.f32 %v2824, %v293
    %v2827 = vsub.f32 %v2817, %v2825
    %v2828 = vsub.f32 %v2818, %v2826
    %v2829 = vmul.f32 %v2827, %v2827
    %v2830 = vmul.f32 %v2828, %v2828
    %v2831 = vsel %vm167, %v2829, 0.0
    %2832 = vadd.xlane.f32.xlu0 %v2831
    %v2833 = vpop.xlane.xlu0 %2832
    %v2834 = vsel %vm167, %v2830, 0.0
    %2835 = vadd.xlane.f32.xlu0 %v2834
    %v2836 = vpop.xlane.xlu0 %2835
    %v2837 = vmul.f32 %v2833, %v293
    %v2838 = vmul.f32 %v2836, %v293
    %v2839 = vadd.f32 %v2837, 1e-06
    %v2840 = vadd.f32 %v2838, 1e-06
    %v2841 = vrsqrt.pop %v2839
    %v2842 = vrsqrt.pop %v2840
    %v2843 = vmul.f32 %v2827, %v2841
    %v2844 = vmul.f32 %v2828, %v2842
    %v2845 = vadd.f32 %v208, 1.0
    %v2846 = vlaneseq
    %v2847 = vshrl.u32 %v2846, 7
    %v2848 = vsub.s32 0, %v2847
    %v2849 = vrot.slane %v2845, %v2848
    %v2850 = vmul.f32 %v2849, %v2843
    %v2851 = vmul.f32 %v2849, %v2844
    %v2852 = vadd.f32 %v2850, %v819
    %v2853 = vadd.f32 %v2851, %v819
    %v2854 = vld [vmem:[%s45] sm:$0xff]
    %v2855 = vld [vmem:[%s45 + $0x8] sm:$0xff]
    %v2856 = vld [vmem:[%s45 + $0x10] sm:$0xff]
    %v2857 = vld [vmem:[%s45 + $0x18] sm:$0xff]
    %v2858 = vpack.c.bf16 %v2853, %v2852
    %v2859 = vpack.c.bf16 %v2855, %v2854
    %v2860 = vpack.c.bf16 %v2857, %v2856
    %v2861 = vld [vmem:[%s47] sm:$0x1]
    %v2863 = vlaneseq
    %v2864 = vshrl.u32 %v2863, 7
    %v2865 = vsub.s32 0, %v2864
    %v2866 = vrot.slane %v2861, %v2865
    %v2869 = vsel %vm167, %v2858, 0
    %2871 = vmatprep.subr.bf16.mxu0 0
    %2872 = vmatpush1.bf16.msra.mxu0 %v2859
    %2873 = vmatprep.subr.bf16.mxu0 0
    %2874 = vmatpush1.bf16.msra.mxu0 %v2860
    %2875 = vmatprep.subr.bf16.mxu0 0
    %2876 = vmatpush1.bf16.msra.mxu0 0
    %2877 = vmatprep.subr.bf16.mxu0 0
    %2878 = vmatpush1.bf16.msra.mxu0 0
    %2879 = vmatprep.subr.bf16.mxu0 0
    %2880 = vmatpush1.bf16.msra.mxu0 0
    %2881 = vmatprep.subr.bf16.mxu0 0
    %2882 = vmatpush1.bf16.msra.mxu0 0
    %2883 = vmatprep.subr.bf16.mxu0 0
    %2884 = vmatpush1.bf16.msra.mxu0 0
    %2885 = vmatprep.subr.bf16.mxu0 0
    %2886 = vmatpush1.bf16.msra.mxu0 0
    %2887 = vmatprep.subr.bf16.mxu0 0
    %2888 = vmatpush1.bf16.msra.mxu0 0
    %2889 = vmatprep.subr.bf16.mxu0 0
    %2890 = vmatpush1.bf16.msra.mxu0 0
    %2891 = vmatprep.subr.bf16.mxu0 0
    %2892 = vmatpush1.bf16.msra.mxu0 0
    %2893 = vmatprep.subr.bf16.mxu0 0
    %2894 = vmatpush1.bf16.msra.mxu0 0
    %2895 = vmatprep.subr.bf16.mxu0 0
    %2896 = vmatpush1.bf16.msra.mxu0 0
    %2897 = vmatprep.subr.bf16.mxu0 0
    %2898 = vmatpush1.bf16.msra.mxu0 0
    %2899 = vmatprep.subr.bf16.mxu0 0
    %2900 = vmatpush1.bf16.msra.mxu0 0
    %2901 = vmatprep.subr.bf16.mxu0 0
    %2902 = vmatpush1.bf16.msra.mxu0 0
    %2903 = vmatprep.mubr.bf16.mxu0 0
    %2904 = vmatmul.mubr.bf16.gmra.mrb[0].mxu0 %v2869
    %v2905 = vpop.f32.mrb[0].mxu0
    %v2906 = vadd.f32 %v2866, %v2905
    %v2907 = vpop.f32.mrb[0].mxu0
    %v2908 = vpop.f32.mrb[0].mxu0
    %v2909 = vadd.f32 %v2866, %v2908
    %v2910 = vpop.f32.mrb[0].mxu0
    %2911 = vdwg.mxu0
    %v2912 = vmul.f32 %v2906, %v2906
    %v2913 = vmul.f32 %v2909, %v2909
    %v2914 = vmul.f32 %v2906, %v2912
    %v2915 = vmul.f32 %v2909, %v2913
    %v2916 = vmul.f32 %v2914, 0.044715
    %v2917 = vmul.f32 %v2915, 0.044715
    %v2918 = vadd.f32 %v2906, %v2916
    %v2919 = vadd.f32 %v2909, %v2917
    %v2920 = vmul.f32 %v2918, 0.7978846
    %v2921 = vmul.f32 %v2919, 0.7978846
    %v2922 = vtanh.pop %v2920
    %v2923 = vtanh.pop %v2921
    %v2924 = vadd.f32 %v2922, 1.0
    %v2925 = vadd.f32 %v2923, 1.0
    %v2926 = vmul.f32 %v2924, 0.5
    %v2927 = vmul.f32 %v2925, 0.5
    %v2928 = vmul.f32 %v2906, %v2926
    %v2929 = vmul.f32 %v2909, %v2927
    %v2930 = vld [vmem:[%s49] sm:$0xff]
    %v2931 = vld [vmem:[%s49 + $0x8] sm:$0xff]
    %v2932 = vld [vmem:[%s49 + $0x10] sm:$0xff]
    %v2933 = vld [vmem:[%s49 + $0x18] sm:$0xff]
    %v2934 = vld [vmem:[%s49 + $0x20] sm:$0xff]
    %v2935 = vld [vmem:[%s49 + $0x28] sm:$0xff]
    %v2936 = vld [vmem:[%s49 + $0x30] sm:$0xff]
    %v2937 = vld [vmem:[%s49 + $0x38] sm:$0xff]
    %v2938 = vld [vmem:[%s49 + $0x40] sm:$0xff]
    %v2939 = vld [vmem:[%s49 + $0x48] sm:$0xff]
    %v2940 = vld [vmem:[%s49 + $0x50] sm:$0xff]
    %v2941 = vld [vmem:[%s49 + $0x58] sm:$0xff]
    %v2942 = vld [vmem:[%s49 + $0x60] sm:$0xff]
    %v2943 = vld [vmem:[%s49 + $0x68] sm:$0xff]
    %v2944 = vld [vmem:[%s49 + $0x70] sm:$0xff]
    %v2945 = vld [vmem:[%s49 + $0x78] sm:$0xff]
    %v2946 = vpack.c.bf16 %v2929, %v2928
    %v2947 = vpack.c.bf16 %v2931, %v2930
    %v2948 = vpack.c.bf16 %v2933, %v2932
    %v2949 = vpack.c.bf16 %v2935, %v2934
    %v2950 = vpack.c.bf16 %v2937, %v2936
    %v2951 = vpack.c.bf16 %v2939, %v2938
    %v2952 = vpack.c.bf16 %v2941, %v2940
    %v2953 = vpack.c.bf16 %v2943, %v2942
    %v2954 = vpack.c.bf16 %v2945, %v2944
    %v2955 = vld [vmem:[%s51] sm:$0x1]
    %v2957 = vlaneseq
    %v2958 = vshrl.u32 %v2957, 7
    %v2959 = vsub.s32 0, %v2958
    %v2960 = vrot.slane %v2955, %v2959
    %2962 = vmatprep.subr.bf16.mxu0 0
    %2963 = vmatpush1.bf16.msra.mxu0 %v2947
    %2964 = vmatprep.subr.bf16.mxu0 0
    %2965 = vmatpush1.bf16.msra.mxu0 %v2948
    %2966 = vmatprep.subr.bf16.mxu0 0
    %2967 = vmatpush1.bf16.msra.mxu0 %v2949
    %2968 = vmatprep.subr.bf16.mxu0 0
    %2969 = vmatpush1.bf16.msra.mxu0 %v2950
    %2970 = vmatprep.subr.bf16.mxu0 0
    %2971 = vmatpush1.bf16.msra.mxu0 %v2951
    %2972 = vmatprep.subr.bf16.mxu0 0
    %2973 = vmatpush1.bf16.msra.mxu0 %v2952
    %2974 = vmatprep.subr.bf16.mxu0 0
    %2975 = vmatpush1.bf16.msra.mxu0 %v2953
    %2976 = vmatprep.subr.bf16.mxu0 0
    %2977 = vmatpush1.bf16.msra.mxu0 %v2954
    %2978 = vmatprep.subr.bf16.mxu0 0
    %2979 = vmatpush1.bf16.msra.mxu0 0
    %2980 = vmatprep.subr.bf16.mxu0 0
    %2981 = vmatpush1.bf16.msra.mxu0 0
    %2982 = vmatprep.subr.bf16.mxu0 0
    %2983 = vmatpush1.bf16.msra.mxu0 0
    %2984 = vmatprep.subr.bf16.mxu0 0
    %2985 = vmatpush1.bf16.msra.mxu0 0
    %2986 = vmatprep.subr.bf16.mxu0 0
    %2987 = vmatpush1.bf16.msra.mxu0 0
    %2988 = vmatprep.subr.bf16.mxu0 0
    %2989 = vmatpush1.bf16.msra.mxu0 0
    %2990 = vmatprep.subr.bf16.mxu0 0
    %2991 = vmatpush1.bf16.msra.mxu0 0
    %2992 = vmatprep.subr.bf16.mxu0 0
    %2993 = vmatpush1.bf16.msra.mxu0 0
    %2994 = vmatprep.mubr.bf16.mxu0 0
    %2995 = vmatmul.mubr.bf16.gmra.mrb[0].mxu0 %v2946
    %v2996 = vpop.f32.mrb[0].mxu0
    %v2997 = vadd.f32 %v2960, %v2996
    %v2998 = vpop.f32.mrb[0].mxu0
    %v2999 = vpop.f32.mrb[0].mxu0
    %v3000 = vadd.f32 %v2960, %v2999
    %v3001 = vpop.f32.mrb[0].mxu0
    %3002 = vdwg.mxu0
    %v3003 = vlaneseq
    %v3004 = vshrl.u32 %v3003, 7
    %v3005 = vsub.s32 0, %v3004
    %v3006 = vrot.slane %v208, %v3005
    %3009 = vrot.lane.b32.xlu0 %v2997, 32
    %v3010 = vpop.permute.xlu0 %3009
    %3011 = vrot.lane.b32.xlu0 %v3000, 32
    %v3012 = vpop.permute.xlu0 %3011
    %v3015 = vmul.f32 %v3006, %v3010
    %v3016 = vmul.f32 %v3006, %v3012
    %3019 = vrot.lane.b32.xlu0 %v3015, 96
    %v3020 = vpop.permute.xlu0 %3019
    %3021 = vrot.lane.b32.xlu0 %v3016, 96
    %v3022 = vpop.permute.xlu0 %3021
    %v3025 = vadd.f32 %v2817, %v3020
    %v3026 = vadd.f32 %v2818, %v3022
    %3027 = vst.msk [vmem:[#allocation6] sm:$0xff] %vm167, %v3025
    %3028 = vst.msk [vmem:[#allocation6 + $0x8] sm:$0xff] %vm167, %v3026
    %v3029 = vld [vmem:[%s41] sm:$0xff]
    %v3030 = vld [vmem:[%s41 + $0x8] sm:$0xff]
    %v3031 = vld [vmem:[%s41 + $0x10] sm:$0xff]
    %v3032 = vld [vmem:[%s41 + $0x18] sm:$0xff]
    %v3033 = vpack.c.bf16 %v2740, %v2740
    %v3034 = vpack.c.bf16 %v3030, %v3029
    %v3035 = vpack.c.bf16 %v3032, %v3031
    %v3036 = vld [vmem:[%s43] sm:$0x1]
    %v3038 = vlaneseq
    %v3039 = vshrl.u32 %v3038, 7
    %v3040 = vsub.s32 0, %v3039
    %v3041 = vrot.slane %v3036, %v3040
    %v3044 = vsel %vm167, %v3033, 0
    %3046 = vmatprep.subr.bf16.mxu0 0
    %3047 = vmatpush1.bf16.msra.mxu0 %v3034
    %3048 = vmatprep.subr.bf16.mxu0 0
    %3049 = vmatpush1.bf16.msra.mxu0 %v3035
    %3050 = vmatprep.subr.bf16.mxu0 0
    %3051 = vmatpush1.bf16.msra.mxu0 0
    %3052 = vmatprep.subr.bf16.mxu0 0
    %3053 = vmatpush1.bf16.msra.mxu0 0
    %3054 = vmatprep.subr.bf16.mxu0 0
    %3055 = vmatpush1.bf16.msra.mxu0 0
    %3056 = vmatprep.subr.bf16.mxu0 0
    %3057 = vmatpush1.bf16.msra.mxu0 0
    %3058 = vmatprep.subr.bf16.mxu0 0
    %3059 = vmatpush1.bf16.msra.mxu0 0
    %3060 = vmatprep.subr.bf16.mxu0 0
    %3061 = vmatpush1.bf16.msra.mxu0 0
    %3062 = vmatprep.subr.bf16.mxu0 0
    %3063 = vmatpush1.bf16.msra.mxu0 0
    %3064 = vmatprep.subr.bf16.mxu0 0
    %3065 = vmatpush1.bf16.msra.mxu0 0
    %3066 = vmatprep.subr.bf16.mxu0 0
    %3067 = vmatpush1.bf16.msra.mxu0 0
    %3068 = vmatprep.subr.bf16.mxu0 0
    %3069 = vmatpush1.bf16.msra.mxu0 0
    %3070 = vmatprep.subr.bf16.mxu0 0
    %3071 = vmatpush1.bf16.msra.mxu0 0
    %3072 = vmatprep.subr.bf16.mxu0 0
    %3073 = vmatpush1.bf16.msra.mxu0 0
    %3074 = vmatprep.subr.bf16.mxu0 0
    %3075 = vmatpush1.bf16.msra.mxu0 0
    %3076 = vmatprep.subr.bf16.mxu0 0
    %3077 = vmatpush1.bf16.msra.mxu0 0
    %3078 = vmatprep.mubr.bf16.mxu0 0
    %3079 = vmatmul.mubr.bf16.gmra.mrb[0].mxu0 %v3044
    %v3080 = vpop.f32.mrb[0].mxu0
    %v3081 = vadd.f32 %v3041, %v3080
    %v3082 = vpop.f32.mrb[0].mxu0
    %v3083 = vpop.f32.mrb[0].mxu0
    %v3084 = vpop.f32.mrb[0].mxu0
    %3085 = vdwg.mxu0
    %3087 = vrot.lane.b32.xlu0 %v3081, 64
    %v3088 = vpop.permute.xlu0 %3087
    %v3090 = vmul.f32 %v317, %v3088
    %3092 = vrot.lane.b32.xlu0 %v3090, 64
    %v3093 = vpop.permute.xlu0 %3092
    %v3095 = vadd.f32 %v283, %v3093
    %v3096 = vsel %vm167, %v3095, 0.0
    %3097 = vadd.xlane.f32.xlu0 %v3096
    %v3098 = vpop.xlane.xlu0 %3097
    %v3099 = vmul.f32 %v3098, %v293
    %v3100 = vsub.f32 %v3095, %v3099
    %v3101 = vmul.f32 %v3100, %v3100
    %v3102 = vsel %vm167, %v3101, 0.0
    %3103 = vadd.xlane.f32.xlu0 %v3102
    %v3104 = vpop.xlane.xlu0 %3103
    %v3105 = vmul.f32 %v3104, %v293
    %v3106 = vadd.f32 %v3105, 1e-06
    %v3107 = vrsqrt.pop %v3106
    %v3108 = vmul.f32 %v3100, %v3107
    %v3109 = vadd.f32 %v273, 1.0
    %v3110 = vlaneseq
    %v3111 = vshrl.u32 %v3110, 7
    %v3112 = vsub.s32 0, %v3111
    %v3113 = vrot.slane %v3109, %v3112
    %v3114 = vmul.f32 %v3113, %v3108
    %v3115 = vadd.f32 %v3114, %v320
    %v3116 = vld [vmem:[%s53] sm:$0xff]
    %v3117 = vld [vmem:[%s53 + $0x8] sm:$0xff]
    %v3118 = vld [vmem:[%s53 + $0x10] sm:$0xff]
    %v3119 = vld [vmem:[%s53 + $0x18] sm:$0xff]
    %v3120 = vpack.c.bf16 %v3115, %v3115
    %v3121 = vpack.c.bf16 %v3117, %v3116
    %v3122 = vpack.c.bf16 %v3119, %v3118
    %v3123 = vld [vmem:[%s55] sm:$0x1]
    %v3125 = vlaneseq
    %v3126 = vshrl.u32 %v3125, 7
    %v3127 = vsub.s32 0, %v3126
    %v3128 = vrot.slane %v3123, %v3127
    %v3131 = vsel %vm167, %v3120, 0
    %3133 = vmatprep.subr.bf16.mxu0 0
    %3134 = vmatpush1.bf16.msra.mxu0 %v3121
    %3135 = vmatprep.subr.bf16.mxu0 0
    %3136 = vmatpush1.bf16.msra.mxu0 %v3122
    %3137 = vmatprep.subr.bf16.mxu0 0
    %3138 = vmatpush1.bf16.msra.mxu0 0
    %3139 = vmatprep.subr.bf16.mxu0 0
    %3140 = vmatpush1.bf16.msra.mxu0 0
    %3141 = vmatprep.subr.bf16.mxu0 0
    %3142 = vmatpush1.bf16.msra.mxu0 0
    %3143 = vmatprep.subr.bf16.mxu0 0
    %3144 = vmatpush1.bf16.msra.mxu0 0
    %3145 = vmatprep.subr.bf16.mxu0 0
    %3146 = vmatpush1.bf16.msra.mxu0 0
    %3147 = vmatprep.subr.bf16.mxu0 0
    %3148 = vmatpush1.bf16.msra.mxu0 0
    %3149 = vmatprep.subr.bf16.mxu0 0
    %3150 = vmatpush1.bf16.msra.mxu0 0
    %3151 = vmatprep.subr.bf16.mxu0 0
    %3152 = vmatpush1.bf16.msra.mxu0 0
    %3153 = vmatprep.subr.bf16.mxu0 0
    %3154 = vmatpush1.bf16.msra.mxu0 0
    %3155 = vmatprep.subr.bf16.mxu0 0
    %3156 = vmatpush1.bf16.msra.mxu0 0
    %3157 = vmatprep.subr.bf16.mxu0 0
    %3158 = vmatpush1.bf16.msra.mxu0 0
    %3159 = vmatprep.subr.bf16.mxu0 0
    %3160 = vmatpush1.bf16.msra.mxu0 0
    %3161 = vmatprep.subr.bf16.mxu0 0
    %3162 = vmatpush1.bf16.msra.mxu0 0
    %3163 = vmatprep.subr.bf16.mxu0 0
    %3164 = vmatpush1.bf16.msra.mxu0 0
    %3165 = vmatprep.mubr.bf16.mxu0 0
    %3166 = vmatmul.mubr.bf16.gmra.mrb[0].mxu0 %v3131
    %v3167 = vpop.f32.mrb[0].mxu0
    %v3168 = vadd.f32 %v3128, %v3167
    %v3169 = vpop.f32.mrb[0].mxu0
    %v3170 = vpop.f32.mrb[0].mxu0
    %v3171 = vpop.f32.mrb[0].mxu0
    %3172 = vdwg.mxu0
    %v3173 = vmul.f32 %v3168, %v3168
    %v3174 = vmul.f32 %v3168, %v3173
    %v3175 = vmul.f32 %v3174, 0.044715
    %v3176 = vadd.f32 %v3168, %v3175
    %v3177 = vmul.f32 %v3176, 0.7978846
    %v3178 = vtanh.pop %v3177
    %v3179 = vadd.f32 %v3178, 1.0
    %v3180 = vmul.f32 %v3179, 0.5
    %v3181 = vmul.f32 %v3168, %v3180
    %v3182 = vld [vmem:[%s57] sm:$0xff]
    %v3183 = vld [vmem:[%s57 + $0x8] sm:$0xff]
    %v3184 = vld [vmem:[%s57 + $0x10] sm:$0xff]
    %v3185 = vld [vmem:[%s57 + $0x18] sm:$0xff]
    %v3186 = vld [vmem:[%s57 + $0x20] sm:$0xff]
    %v3187 = vld [vmem:[%s57 + $0x28] sm:$0xff]
    %v3188 = vld [vmem:[%s57 + $0x30] sm:$0xff]
    %v3189 = vld [vmem:[%s57 + $0x38] sm:$0xff]
    %v3190 = vld [vmem:[%s57 + $0x40] sm:$0xff]
    %v3191 = vld [vmem:[%s57 + $0x48] sm:$0xff]
    %v3192 = vld [vmem:[%s57 + $0x50] sm:$0xff]
    %v3193 = vld [vmem:[%s57 + $0x58] sm:$0xff]
    %v3194 = vld [vmem:[%s57 + $0x60] sm:$0xff]
    %v3195 = vld [vmem:[%s57 + $0x68] sm:$0xff]
    %v3196 = vld [vmem:[%s57 + $0x70] sm:$0xff]
    %v3197 = vld [vmem:[%s57 + $0x78] sm:$0xff]
    %v3198 = vpack.c.bf16 %v3181, %v3181
    %v3199 = vpack.c.bf16 %v3183, %v3182
    %v3200 = vpack.c.bf16 %v3185, %v3184
    %v3201 = vpack.c.bf16 %v3187, %v3186
    %v3202 = vpack.c.bf16 %v3189, %v3188
    %v3203 = vpack.c.bf16 %v3191, %v3190
    %v3204 = vpack.c.bf16 %v3193, %v3192
    %v3205 = vpack.c.bf16 %v3195, %v3194
    %v3206 = vpack.c.bf16 %v3197, %v3196
    %v3207 = vld [vmem:[%s59] sm:$0x1]
    %v3209 = vlaneseq
    %v3210 = vshrl.u32 %v3209, 7
    %v3211 = vsub.s32 0, %v3210
    %v3212 = vrot.slane %v3207, %v3211
    %3214 = vmatprep.subr.bf16.mxu0 0
    %3215 = vmatpush1.bf16.msra.mxu0 %v3199
    %3216 = vmatprep.subr.bf16.mxu0 0
    %3217 = vmatpush1.bf16.msra.mxu0 %v3200
    %3218 = vmatprep.subr.bf16.mxu0 0
    %3219 = vmatpush1.bf16.msra.mxu0 %v3201
    %3220 = vmatprep.subr.bf16.mxu0 0
    %3221 = vmatpush1.bf16.msra.mxu0 %v3202
    %3222 = vmatprep.subr.bf16.mxu0 0
    %3223 = vmatpush1.bf16.msra.mxu0 %v3203
    %3224 = vmatprep.subr.bf16.mxu0 0
    %3225 = vmatpush1.bf16.msra.mxu0 %v3204
    %3226 = vmatprep.subr.bf16.mxu0 0
    %3227 = vmatpush1.bf16.msra.mxu0 %v3205
    %3228 = vmatprep.subr.bf16.mxu0 0
    %3229 = vmatpush1.bf16.msra.mxu0 %v3206
    %3230 = vmatprep.subr.bf16.mxu0 0
    %3231 = vmatpush1.bf16.msra.mxu0 0
    %3232 = vmatprep.subr.bf16.mxu0 0
    %3233 = vmatpush1.bf16.msra.mxu0 0
    %3234 = vmatprep.subr.bf16.mxu0 0
    %3235 = vmatpush1.bf16.msra.mxu0 0
    %3236 = vmatprep.subr.bf16.mxu0 0
    %3237 = vmatpush1.bf16.msra.mxu0 0
    %3238 = vmatprep.subr.bf16.mxu0 0
    %3239 = vmatpush1.bf16.msra.mxu0 0
    %3240 = vmatprep.subr.bf16.mxu0 0
    %3241 = vmatpush1.bf16.msra.mxu0 0
    %3242 = vmatprep.subr.bf16.mxu0 0
    %3243 = vmatpush1.bf16.msra.mxu0 0
    %3244 = vmatprep.subr.bf16.mxu0 0
    %3245 = vmatpush1.bf16.msra.mxu0 0
    %3246 = vmatprep.mubr.bf16.mxu0 0
    %3247 = vmatmul.mubr.bf16.gmra.mrb[0].mxu0 %v3198
    %v3248 = vpop.f32.mrb[0].mxu0
    %v3249 = vadd.f32 %v3212, %v3248
    %v3250 = vpop.f32.mrb[0].mxu0
    %v3251 = vpop.f32.mrb[0].mxu0
    %v3252 = vpop.f32.mrb[0].mxu0
    %3253 = vdwg.mxu0
    %v3254 = vlaneseq
    %v3255 = vshrl.u32 %v3254, 7
    %v3256 = vsub.s32 0, %v3255
    %v3257 = vrot.slane %v273, %v3256
    %3259 = vrot.lane.b32.xlu0 %v3249, 32
    %v3260 = vpop.permute.xlu0 %3259
    %v3262 = vmul.f32 %v3257, %v3260
    %3264 = vrot.lane.b32.xlu0 %v3262, 96
    %v3265 = vpop.permute.xlu0 %3264
    %v3267 = vadd.f32 %v3095, %v3265
    %3268 = vst.msk [vmem:[#allocation8] sm:$0xff] %vm167, %v3267
    %s3269 = scalar_lea.vmem %s1, 16
    %v3270 = vld [vmem:[%s3269] sm:$0xff]
    %v3271 = vld [vmem:[%s3269 + $0x8] sm:$0xff]
    %s3272 = scalar_lea.vmem %s3, 8
    %v3273 = vld [vmem:[%s3272] sm:$0xff]
    %s3274 = scalar_lea.vmem %s7, 24
    %v3275 = vld [vmem:[%s3274] sm:$0xff]
    %v3276 = vld [vmem:[%s3274 + $0x8] sm:$0xff]
    %v3277 = vld [vmem:[%s3274 + $0x10] sm:$0xff]
    %s3278 = scalar_lea.vmem %s9, 24
    %v3279 = vld [vmem:[%s3278] sm:$0xff]
    %v3280 = vld [vmem:[%s3278 + $0x8] sm:$0xff]
    %v3281 = vld [vmem:[%s3278 + $0x10] sm:$0xff]
    %v3282 = vsel %vm167, %v3273, 0.0
    %3283 = vadd.xlane.f32.xlu0 %v3282
    %v3284 = vpop.xlane.xlu0 %3283
    %v3285 = vmul.f32 %v3284, %v293
    %v3286 = vsub.f32 %v3273, %v3285
    %v3287 = vmul.f32 %v3286, %v3286
    %v3288 = vsel %vm167, %v3287, 0.0
    %3289 = vadd.xlane.f32.xlu0 %v3288
    %v3290 = vpop.xlane.xlu0 %3289
    %v3291 = vmul.f32 %v3290, %v293
    %v3292 = vadd.f32 %v3291, 1e-06
    %v3293 = vrsqrt.pop %v3292
    %v3294 = vmul.f32 %v3286, %v3293
    %v3295 = vlaneseq
    %v3296 = vshrl.u32 %v3295, 7
    %v3297 = vsub.s32 1, %v3296
    %v3298 = vrot.slane %v304, %v3297
    %3300 = vrot.lane.b32.xlu0 %v3294, 32
    %v3301 = vpop.permute.xlu0 %3300
    %v3303 = vmul.f32 %v3298, %v3301
    %v3304 = vlaneseq
    %v3305 = vshrl.u32 %v3304, 7
    %v3306 = vsub.s32 1, %v3305
    %v3307 = vrot.slane %v271, %v3306
    %3309 = vrot.lane.b32.xlu0 %v3307, 32
    %v3310 = vpop.permute.xlu0 %3309
    %v3312 = vadd.f32 %v3303, %v3310
    %v3313 = vld [vmem:[%s33] sm:$0xff]
    %v3314 = vld [vmem:[%s33 + $0x8] sm:$0xff]
    %v3315 = vld [vmem:[%s33 + $0x10] sm:$0xff]
    %v3316 = vld [vmem:[%s33 + $0x18] sm:$0xff]
    %v3317 = vpack.c.bf16 %v3312, %v3312
    %v3318 = vpack.c.bf16 %v3314, %v3313
    %v3319 = vpack.c.bf16 %v3316, %v3315
    %v3320 = vld [vmem:[%s35] sm:$0x1]
    %v3322 = vlaneseq
    %v3323 = vshrl.u32 %v3322, 7
    %v3324 = vsub.s32 0, %v3323
    %v3325 = vrot.slane %v3320, %v3324
    %3328 = vrot.lane.b32.xlu0 %v3317, 96
    %v3329 = vpop.permute.xlu0 %3328
    %v3331 = vsel %vm167, %v3329, 0
    %3333 = vmatprep.subr.bf16.mxu0 0
    %3334 = vmatpush1.bf16.msra.mxu0 %v3318
    %3335 = vmatprep.subr.bf16.mxu0 0
    %3336 = vmatpush1.bf16.msra.mxu0 %v3319
    %3337 = vmatprep.subr.bf16.mxu0 0
    %3338 = vmatpush1.bf16.msra.mxu0 0
    %3339 = vmatprep.subr.bf16.mxu0 0
    %3340 = vmatpush1.bf16.msra.mxu0 0
    %3341 = vmatprep.subr.bf16.mxu0 0
    %3342 = vmatpush1.bf16.msra.mxu0 0
    %3343 = vmatprep.subr.bf16.mxu0 0
    %3344 = vmatpush1.bf16.msra.mxu0 0
    %3345 = vmatprep.subr.bf16.mxu0 0
    %3346 = vmatpush1.bf16.msra.mxu0 0
    %3347 = vmatprep.subr.bf16.mxu0 0
    %3348 = vmatpush1.bf16.msra.mxu0 0
    %3349 = vmatprep.subr.bf16.mxu0 0
    %3350 = vmatpush1.bf16.msra.mxu0 0
    %3351 = vmatprep.subr.bf16.mxu0 0
    %3352 = vmatpush1.bf16.msra.mxu0 0
    %3353 = vmatprep.subr.bf16.mxu0 0
    %3354 = vmatpush1.bf16.msra.mxu0 0
    %3355 = vmatprep.subr.bf16.mxu0 0
    %3356 = vmatpush1.bf16.msra.mxu0 0
    %3357 = vmatprep.subr.bf16.mxu0 0
    %3358 = vmatpush1.bf16.msra.mxu0 0
    %3359 = vmatprep.subr.bf16.mxu0 0
    %3360 = vmatpush1.bf16.msra.mxu0 0
    %3361 = vmatprep.subr.bf16.mxu0 0
    %3362 = vmatpush1.bf16.msra.mxu0 0
    %3363 = vmatprep.subr.bf16.mxu0 0
    %3364 = vmatpush1.bf16.msra.mxu0 0
    %3365 = vmatprep.mubr.bf16.mxu0 0
    %3366 = vmatmul.mubr.bf16.gmra.mrb[0].mxu0 %v3331
    %v3367 = vpop.f32.mrb[0].mxu0
    %v3368 = vadd.f32 %v3325, %v3367
    %v3369 = vpop.f32.mrb[0].mxu0
    %v3370 = vpop.f32.mrb[0].mxu0
    %v3371 = vpop.f32.mrb[0].mxu0
    %3372 = vdwg.mxu0
    %v3373 = vmul.f32 %v3368, %v3368
    %v3374 = vsel %vm384, %v3373, 0.0
    %3375 = vadd.xlane.f32.xlu0 %v3374
    %v3376 = vpop.xlane.xlu0 %3375
    %v3377 = vmul.f32 %v3376, %v388
    %v3378 = vadd.f32 %v3377, 1e-06
    %v3379 = vrsqrt.pop %v3378
    %v3380 = vmul.f32 %v3368, %v3379
    %v3381 = vmul.f32 %v3380, %v397
    %v3382 = vmul.f32 %v3275, %v3381
    %v3384 = vsel %vm384, %v3381, 0
    %3386 = vmatprep.subr.mxu0 0.0
    %3387 = vmatpush1.msra.mxu0 %v132
    %3388 = vmatprep.subr.mxu0 0.0
    %3389 = vmatpush1.msra.mxu0 %v133
    %3390 = vmatprep.subr.mxu0 0.0
    %3391 = vmatpush1.msra.mxu0 0.0
    %3392 = vmatprep.subr.mxu0 0.0
    %3393 = vmatpush1.msra.mxu0 0.0
    %3394 = vmatprep.subr.mxu0 0.0
    %3395 = vmatpush1.msra.mxu0 0.0
    %3396 = vmatprep.subr.mxu0 0.0
    %3397 = vmatpush1.msra.mxu0 0.0
    %3398 = vmatprep.subr.mxu0 0.0
    %3399 = vmatpush1.msra.mxu0 0.0
    %3400 = vmatprep.subr.mxu0 0.0
    %3401 = vmatpush1.msra.mxu0 0.0
    %3402 = vmatprep.subr.mxu0 0.0
    %3403 = vmatpush1.msra.mxu0 0.0
    %3404 = vmatprep.subr.mxu0 0.0
    %3405 = vmatpush1.msra.mxu0 0.0
    %3406 = vmatprep.subr.mxu0 0.0
    %3407 = vmatpush1.msra.mxu0 0.0
    %3408 = vmatprep.subr.mxu0 0.0
    %3409 = vmatpush1.msra.mxu0 0.0
    %3410 = vmatprep.subr.mxu0 0.0
    %3411 = vmatpush1.msra.mxu0 0.0
    %3412 = vmatprep.subr.mxu0 0.0
    %3413 = vmatpush1.msra.mxu0 0.0
    %3414 = vmatprep.subr.mxu0 0.0
    %3415 = vmatpush1.msra.mxu0 0.0
    %3416 = vmatprep.subr.mxu0 0.0
    %3417 = vmatpush1.msra.mxu0 0.0
    %3418 = vmatprep.subr.mxu0 0.0
    %3419 = vmatpush1.msra.mxu0 0.0
    %3420 = vmatprep.subr.mxu0 0.0
    %3421 = vmatpush1.msra.mxu0 0.0
    %3422 = vmatprep.subr.mxu0 0.0
    %3423 = vmatpush1.msra.mxu0 0.0
    %3424 = vmatprep.subr.mxu0 0.0
    %3425 = vmatpush1.msra.mxu0 0.0
    %3426 = vmatprep.subr.mxu0 0.0
    %3427 = vmatpush1.msra.mxu0 0.0
    %3428 = vmatprep.subr.mxu0 0.0
    %3429 = vmatpush1.msra.mxu0 0.0
    %3430 = vmatprep.subr.mxu0 0.0
    %3431 = vmatpush1.msra.mxu0 0.0
    %3432 = vmatprep.subr.mxu0 0.0
    %3433 = vmatpush1.msra.mxu0 0.0
    %3434 = vmatprep.subr.mxu0 0.0
    %3435 = vmatpush1.msra.mxu0 0.0
    %3436 = vmatprep.subr.mxu0 0.0
    %3437 = vmatpush1.msra.mxu0 0.0
    %3438 = vmatprep.subr.mxu0 0.0
    %3439 = vmatpush1.msra.mxu0 0.0
    %3440 = vmatprep.subr.mxu0 0.0
    %3441 = vmatpush1.msra.mxu0 0.0
    %3442 = vmatprep.subr.mxu0 0.0
    %3443 = vmatpush1.msra.mxu0 0.0
    %3444 = vmatprep.subr.mxu0 0.0
    %3445 = vmatpush1.msra.mxu0 0.0
    %3446 = vmatprep.subr.mxu0 0.0
    %3447 = vmatpush1.msra.mxu0 0.0
    %3448 = vmatprep.subr.mxu0 0.0
    %3449 = vmatpush1.msra.mxu0 0.0
    %3450 = vmatprep.mubr.f32.mxu0 0.0
    %3451 = vmatmul.mubr.f32.gmra.mrb[0].mxu0 %v3384
    %v3452 = vpop.f32.mrb[0].mxu0
    %v3453 = vadd.f32 0.0, %v3452
    %v3454 = vpop.f32.mrb[0].mxu0
    %3455 = vdwg.mxu0
    %v3456 = vmul.f32 %v3279, %v3453
    %v3457 = vadd.f32 %v3382, %v3456
    %3459 = vrot.lane.b32.xlu0 %v3373, 96
    %v3460 = vpop.permute.xlu0 %3459
    %v3462 = vsel %vm384, %v3460, 0.0
    %3463 = vadd.xlane.f32.xlu0 %v3462
    %v3464 = vpop.xlane.xlu0 %3463
    %v3465 = vmul.f32 %v3464, %v388
    %v3466 = vadd.f32 %v3465, 1e-06
    %v3467 = vrsqrt.pop %v3466
    %v3468 = vmul.f32 %v3368, %v3467
    %v3469 = vmul.f32 %v3468, %v493
    %3471 = vrot.lane.b32.xlu0 %v3469, 96
    %v3472 = vpop.permute.xlu0 %3471
    %v3474 = vmul.f32 %v3275, %v3472
    %v3475 = vsel %vm384, %v3472, 0
    %3477 = vmatprep.subr.mxu0 0.0
    %3478 = vmatpush1.msra.mxu0 %v132
    %3479 = vmatprep.subr.mxu0 0.0
    %3480 = vmatpush1.msra.mxu0 %v133
    %3481 = vmatprep.subr.mxu0 0.0
    %3482 = vmatpush1.msra.mxu0 0.0
    %3483 = vmatprep.subr.mxu0 0.0
    %3484 = vmatpush1.msra.mxu0 0.0
    %3485 = vmatprep.subr.mxu0 0.0
    %3486 = vmatpush1.msra.mxu0 0.0
    %3487 = vmatprep.subr.mxu0 0.0
    %3488 = vmatpush1.msra.mxu0 0.0
    %3489 = vmatprep.subr.mxu0 0.0
    %3490 = vmatpush1.msra.mxu0 0.0
    %3491 = vmatprep.subr.mxu0 0.0
    %3492 = vmatpush1.msra.mxu0 0.0
    %3493 = vmatprep.subr.mxu0 0.0
    %3494 = vmatpush1.msra.mxu0 0.0
    %3495 = vmatprep.subr.mxu0 0.0
    %3496 = vmatpush1.msra.mxu0 0.0
    %3497 = vmatprep.subr.mxu0 0.0
    %3498 = vmatpush1.msra.mxu0 0.0
    %3499 = vmatprep.subr.mxu0 0.0
    %3500 = vmatpush1.msra.mxu0 0.0
    %3501 = vmatprep.subr.mxu0 0.0
    %3502 = vmatpush1.msra.mxu0 0.0
    %3503 = vmatprep.subr.mxu0 0.0
    %3504 = vmatpush1.msra.mxu0 0.0
    %3505 = vmatprep.subr.mxu0 0.0
    %3506 = vmatpush1.msra.mxu0 0.0
    %3507 = vmatprep.subr.mxu0 0.0
    %3508 = vmatpush1.msra.mxu0 0.0
    %3509 = vmatprep.subr.mxu0 0.0
    %3510 = vmatpush1.msra.mxu0 0.0
    %3511 = vmatprep.subr.mxu0 0.0
    %3512 = vmatpush1.msra.mxu0 0.0
    %3513 = vmatprep.subr.mxu0 0.0
    %3514 = vmatpush1.msra.mxu0 0.0
    %3515 = vmatprep.subr.mxu0 0.0
    %3516 = vmatpush1.msra.mxu0 0.0
    %3517 = vmatprep.subr.mxu0 0.0
    %3518 = vmatpush1.msra.mxu0 0.0
    %3519 = vmatprep.subr.mxu0 0.0
    %3520 = vmatpush1.msra.mxu0 0.0
    %3521 = vmatprep.subr.mxu0 0.0
    %3522 = vmatpush1.msra.mxu0 0.0
    %3523 = vmatprep.subr.mxu0 0.0
    %3524 = vmatpush1.msra.mxu0 0.0
    %3525 = vmatprep.subr.mxu0 0.0
    %3526 = vmatpush1.msra.mxu0 0.0
    %3527 = vmatprep.subr.mxu0 0.0
    %3528 = vmatpush1.msra.mxu0 0.0
    %3529 = vmatprep.subr.mxu0 0.0
    %3530 = vmatpush1.msra.mxu0 0.0
    %3531 = vmatprep.subr.mxu0 0.0
    %3532 = vmatpush1.msra.mxu0 0.0
    %3533 = vmatprep.subr.mxu0 0.0
    %3534 = vmatpush1.msra.mxu0 0.0
    %3535 = vmatprep.subr.mxu0 0.0
    %3536 = vmatpush1.msra.mxu0 0.0
    %3537 = vmatprep.subr.mxu0 0.0
    %3538 = vmatpush1.msra.mxu0 0.0
    %3539 = vmatprep.subr.mxu0 0.0
    %3540 = vmatpush1.msra.mxu0 0.0
    %3541 = vmatprep.mubr.f32.mxu0 0.0
    %3542 = vmatmul.mubr.f32.gmra.mrb[0].mxu0 %v3475
    %v3543 = vpop.f32.mrb[0].mxu0
    %v3544 = vadd.f32 0.0, %v3543
    %v3545 = vpop.f32.mrb[0].mxu0
    %3546 = vdwg.mxu0
    %v3547 = vmul.f32 %v3279, %v3544
    %v3548 = vadd.f32 %v3474, %v3547
    %3549 = vst.msk [vmem:[#allocation2] sm:$0xff] %vm384, %v3548
    %3551 = vrot.lane.b32.xlu0 %v3368, 64
    %v3552 = vpop.permute.xlu0 %3551
    %3554 = vst.msk [vmem:[#allocation3] sm:$0xff] %vm384, %v3552
    %3555 = vrot.lane.b32.xlu0 %v3373, 112
    %v3556 = vpop.permute.xlu0 %3555
    %v3558 = vsel %vm384, %v3556, 0.0
    %3559 = vadd.xlane.f32.xlu0 %v3558
    %v3560 = vpop.xlane.xlu0 %3559
    %v3561 = vmul.f32 %v3560, %v388
    %v3562 = vadd.f32 %v3561, 1e-06
    %v3563 = vrsqrt.pop %v3562
    %v3564 = vmul.f32 %v3368, %v3563
    %v3565 = vmul.f32 %v3564, %v592
    %3567 = vrot.lane.b32.xlu0 %v3565, 112
    %v3568 = vpop.permute.xlu0 %3567
    %v3570 = vmul.f32 %v3275, %v3568
    %v3571 = vsel %vm384, %v3568, 0
    %3573 = vmatprep.subr.mxu0 0.0
    %3574 = vmatpush1.msra.mxu0 %v132
    %3575 = vmatprep.subr.mxu0 0.0
    %3576 = vmatpush1.msra.mxu0 %v133
    %3577 = vmatprep.subr.mxu0 0.0
    %3578 = vmatpush1.msra.mxu0 0.0
    %3579 = vmatprep.subr.mxu0 0.0
    %3580 = vmatpush1.msra.mxu0 0.0
    %3581 = vmatprep.subr.mxu0 0.0
    %3582 = vmatpush1.msra.mxu0 0.0
    %3583 = vmatprep.subr.mxu0 0.0
    %3584 = vmatpush1.msra.mxu0 0.0
    %3585 = vmatprep.subr.mxu0 0.0
    %3586 = vmatpush1.msra.mxu0 0.0
    %3587 = vmatprep.subr.mxu0 0.0
    %3588 = vmatpush1.msra.mxu0 0.0
    %3589 = vmatprep.subr.mxu0 0.0
    %3590 = vmatpush1.msra.mxu0 0.0
    %3591 = vmatprep.subr.mxu0 0.0
    %3592 = vmatpush1.msra.mxu0 0.0
    %3593 = vmatprep.subr.mxu0 0.0
    %3594 = vmatpush1.msra.mxu0 0.0
    %3595 = vmatprep.subr.mxu0 0.0
    %3596 = vmatpush1.msra.mxu0 0.0
    %3597 = vmatprep.subr.mxu0 0.0
    %3598 = vmatpush1.msra.mxu0 0.0
    %3599 = vmatprep.subr.mxu0 0.0
    %3600 = vmatpush1.msra.mxu0 0.0
    %3601 = vmatprep.subr.mxu0 0.0
    %3602 = vmatpush1.msra.mxu0 0.0
    %3603 = vmatprep.subr.mxu0 0.0
    %3604 = vmatpush1.msra.mxu0 0.0
    %3605 = vmatprep.subr.mxu0 0.0
    %3606 = vmatpush1.msra.mxu0 0.0
    %3607 = vmatprep.subr.mxu0 0.0
    %3608 = vmatpush1.msra.mxu0 0.0
    %3609 = vmatprep.subr.mxu0 0.0
    %3610 = vmatpush1.msra.mxu0 0.0
    %3611 = vmatprep.subr.mxu0 0.0
    %3612 = vmatpush1.msra.mxu0 0.0
    %3613 = vmatprep.subr.mxu0 0.0
    %3614 = vmatpush1.msra.mxu0 0.0
    %3615 = vmatprep.subr.mxu0 0.0
    %3616 = vmatpush1.msra.mxu0 0.0
    %3617 = vmatprep.subr.mxu0 0.0
    %3618 = vmatpush1.msra.mxu0 0.0
    %3619 = vmatprep.subr.mxu0 0.0
    %3620 = vmatpush1.msra.mxu0 0.0
    %3621 = vmatprep.subr.mxu0 0.0
    %3622 = vmatpush1.msra.mxu0 0.0
    %3623 = vmatprep.subr.mxu0 0.0
    %3624 = vmatpush1.msra.mxu0 0.0
    %3625 = vmatprep.subr.mxu0 0.0
    %3626 = vmatpush1.msra.mxu0 0.0
    %3627 = vmatprep.subr.mxu0 0.0
    %3628 = vmatpush1.msra.mxu0 0.0
    %3629 = vmatprep.subr.mxu0 0.0
    %3630 = vmatpush1.msra.mxu0 0.0
    %3631 = vmatprep.subr.mxu0 0.0
    %3632 = vmatpush1.msra.mxu0 0.0
    %3633 = vmatprep.subr.mxu0 0.0
    %3634 = vmatpush1.msra.mxu0 0.0
    %3635 = vmatprep.subr.mxu0 0.0
    %3636 = vmatpush1.msra.mxu0 0.0
    %3637 = vmatprep.mubr.f32.mxu0 0.0
    %3638 = vmatmul.mubr.f32.gmra.mrb[0].mxu0 %v3571
    %v3639 = vpop.f32.mrb[0].mxu0
    %v3640 = vadd.f32 0.0, %v3639
    %v3641 = vpop.f32.mrb[0].mxu0
    %3642 = vdwg.mxu0
    %v3643 = vmul.f32 %v3279, %v3640
    %v3644 = vadd.f32 %v3570, %v3643
    %3645 = vrot.lane.b32.xlu0 %v3373, 80
    %v3646 = vpop.permute.xlu0 %3645
    %v3648 = vsel %vm384, %v3646, 0.0
    %3649 = vadd.xlane.f32.xlu0 %v3648
    %v3650 = vpop.xlane.xlu0 %3649
    %v3651 = vmul.f32 %v3650, %v388
    %v3652 = vadd.f32 %v3651, 1e-06
    %v3653 = vrsqrt.pop %v3652
    %v3654 = vmul.f32 %v3368, %v3653
    %v3655 = vmul.f32 %v3654, %v685
    %3657 = vrot.lane.b32.xlu0 %v3655, 80
    %v3658 = vpop.permute.xlu0 %3657
    %v3660 = vmul.f32 %v3275, %v3658
    %v3661 = vsel %vm384, %v3658, 0
    %3663 = vmatprep.subr.mxu0 0.0
    %3664 = vmatpush1.msra.mxu0 %v132
    %3665 = vmatprep.subr.mxu0 0.0
    %3666 = vmatpush1.msra.mxu0 %v133
    %3667 = vmatprep.subr.mxu0 0.0
    %3668 = vmatpush1.msra.mxu0 0.0
    %3669 = vmatprep.subr.mxu0 0.0
    %3670 = vmatpush1.msra.mxu0 0.0
    %3671 = vmatprep.subr.mxu0 0.0
    %3672 = vmatpush1.msra.mxu0 0.0
    %3673 = vmatprep.subr.mxu0 0.0
    %3674 = vmatpush1.msra.mxu0 0.0
    %3675 = vmatprep.subr.mxu0 0.0
    %3676 = vmatpush1.msra.mxu0 0.0
    %3677 = vmatprep.subr.mxu0 0.0
    %3678 = vmatpush1.msra.mxu0 0.0
    %3679 = vmatprep.subr.mxu0 0.0
    %3680 = vmatpush1.msra.mxu0 0.0
    %3681 = vmatprep.subr.mxu0 0.0
    %3682 = vmatpush1.msra.mxu0 0.0
    %3683 = vmatprep.subr.mxu0 0.0
    %3684 = vmatpush1.msra.mxu0 0.0
    %3685 = vmatprep.subr.mxu0 0.0
    %3686 = vmatpush1.msra.mxu0 0.0
    %3687 = vmatprep.subr.mxu0 0.0
    %3688 = vmatpush1.msra.mxu0 0.0
    %3689 = vmatprep.subr.mxu0 0.0
    %3690 = vmatpush1.msra.mxu0 0.0
    %3691 = vmatprep.subr.mxu0 0.0
    %3692 = vmatpush1.msra.mxu0 0.0
    %3693 = vmatprep.subr.mxu0 0.0
    %3694 = vmatpush1.msra.mxu0 0.0
    %3695 = vmatprep.subr.mxu0 0.0
    %3696 = vmatpush1.msra.mxu0 0.0
    %3697 = vmatprep.subr.mxu0 0.0
    %3698 = vmatpush1.msra.mxu0 0.0
    %3699 = vmatprep.subr.mxu0 0.0
    %3700 = vmatpush1.msra.mxu0 0.0
    %3701 = vmatprep.subr.mxu0 0.0
    %3702 = vmatpush1.msra.mxu0 0.0
    %3703 = vmatprep.subr.mxu0 0.0
    %3704 = vmatpush1.msra.mxu0 0.0
    %3705 = vmatprep.subr.mxu0 0.0
    %3706 = vmatpush1.msra.mxu0 0.0
    %3707 = vmatprep.subr.mxu0 0.0
    %3708 = vmatpush1.msra.mxu0 0.0
    %3709 = vmatprep.subr.mxu0 0.0
    %3710 = vmatpush1.msra.mxu0 0.0
    %3711 = vmatprep.subr.mxu0 0.0
    %3712 = vmatpush1.msra.mxu0 0.0
    %3713 = vmatprep.subr.mxu0 0.0
    %3714 = vmatpush1.msra.mxu0 0.0
    %3715 = vmatprep.subr.mxu0 0.0
    %3716 = vmatpush1.msra.mxu0 0.0
    %3717 = vmatprep.subr.mxu0 0.0
    %3718 = vmatpush1.msra.mxu0 0.0
    %3719 = vmatprep.subr.mxu0 0.0
    %3720 = vmatpush1.msra.mxu0 0.0
    %3721 = vmatprep.subr.mxu0 0.0
    %3722 = vmatpush1.msra.mxu0 0.0
    %3723 = vmatprep.subr.mxu0 0.0
    %3724 = vmatpush1.msra.mxu0 0.0
    %3725 = vmatprep.subr.mxu0 0.0
    %3726 = vmatpush1.msra.mxu0 0.0
    %3727 = vmatprep.mubr.f32.mxu0 0.0
    %3728 = vmatmul.mubr.f32.gmra.mrb[0].mxu0 %v3661
    %v3729 = vpop.f32.mrb[0].mxu0
    %v3730 = vadd.f32 0.0, %v3729
    %v3731 = vpop.f32.mrb[0].mxu0
    %3732 = vdwg.mxu0
    %v3733 = vmul.f32 %v3279, %v3730
    %v3734 = vadd.f32 %v3660, %v3733
    %3735 = vst.msk [vmem:[#allocation2 + $0x18] sm:$0xff] %vm384, %v3734
    %3736 = vrot.lane.b32.xlu0 %v3368, 48
    %v3737 = vpop.permute.xlu0 %3736
    %3739 = vst.msk [vmem:[#allocation3 + $0x18] sm:$0xff] %vm384, %v3737
    %v3740 = vsel %vm167, %v3270, 0.0
    %3741 = vadd.xlane.f32.xlu0 %v3740
    %v3742 = vpop.xlane.xlu0 %3741
    %v3743 = vsel %vm167, %v3271, 0.0
    %3744 = vadd.xlane.f32.xlu0 %v3743
    %v3745 = vpop.xlane.xlu0 %3744
    %v3746 = vmul.f32 %v3742, %v293
    %v3747 = vmul.f32 %v3745, %v293
    %v3748 = vsub.f32 %v3270, %v3746
    %v3749 = vsub.f32 %v3271, %v3747
    %v3750 = vmul.f32 %v3748, %v3748
    %v3751 = vmul.f32 %v3749, %v3749
    %v3752 = vsel %vm167, %v3750, 0.0
    %3753 = vadd.xlane.f32.xlu0 %v3752
    %v3754 = vpop.xlane.xlu0 %3753
    %v3755 = vsel %vm167, %v3751, 0.0
    %3756 = vadd.xlane.f32.xlu0 %v3755
    %v3757 = vpop.xlane.xlu0 %3756
    %v3758 = vmul.f32 %v3754, %v293
    %v3759 = vmul.f32 %v3757, %v293
    %v3760 = vadd.f32 %v3758, 1e-06
    %v3761 = vadd.f32 %v3759, 1e-06
    %v3762 = vrsqrt.pop %v3760
    %v3763 = vrsqrt.pop %v3761
    %v3764 = vmul.f32 %v3748, %v3762
    %v3765 = vmul.f32 %v3749, %v3763
    %v3766 = vlaneseq
    %v3767 = vshrl.u32 %v3766, 7
    %v3768 = vsub.s32 1, %v3767
    %v3769 = vrot.slane %v798, %v3768
    %3772 = vrot.lane.b32.xlu0 %v3764, 32
    %v3773 = vpop.permute.xlu0 %3772
    %3774 = vrot.lane.b32.xlu0 %v3765, 32
    %v3775 = vpop.permute.xlu0 %3774
    %v3778 = vmul.f32 %v3769, %v3773
    %v3779 = vmul.f32 %v3769, %v3775
    %v3780 = vlaneseq
    %v3781 = vshrl.u32 %v3780, 7
    %v3782 = vsub.s32 1, %v3781
    %v3783 = vrot.slane %v206, %v3782
    %3785 = vrot.lane.b32.xlu0 %v3783, 32
    %v3786 = vpop.permute.xlu0 %3785
    %v3788 = vadd.f32 %v3778, %v3786
    %v3789 = vadd.f32 %v3779, %v3786
    %v3790 = vld [vmem:[%s29] sm:$0xff]
    %v3791 = vld [vmem:[%s29 + $0x8] sm:$0xff]
    %v3792 = vld [vmem:[%s29 + $0x10] sm:$0xff]
    %v3793 = vld [vmem:[%s29 + $0x18] sm:$0xff]
    %v3794 = vpack.c.bf16 %v3789, %v3788
    %v3795 = vpack.c.bf16 %v3791, %v3790
    %v3796 = vpack.c.bf16 %v3793, %v3792
    %v3797 = vld [vmem:[%s31] sm:$0x1]
    %v3799 = vlaneseq
    %v3800 = vshrl.u32 %v3799, 7
    %v3801 = vsub.s32 0, %v3800
    %v3802 = vrot.slane %v3797, %v3801
    %3805 = vrot.lane.b32.xlu0 %v3794, 96
    %v3806 = vpop.permute.xlu0 %3805
    %v3808 = vsel %vm167, %v3806, 0
    %3810 = vmatprep.subr.bf16.mxu0 0
    %3811 = vmatpush1.bf16.msra.mxu0 %v3795
    %3812 = vmatprep.subr.bf16.mxu0 0
    %3813 = vmatpush1.bf16.msra.mxu0 %v3796
    %3814 = vmatprep.subr.bf16.mxu0 0
    %3815 = vmatpush1.bf16.msra.mxu0 0
    %3816 = vmatprep.subr.bf16.mxu0 0
    %3817 = vmatpush1.bf16.msra.mxu0 0
    %3818 = vmatprep.subr.bf16.mxu0 0
    %3819 = vmatpush1.bf16.msra.mxu0 0
    %3820 = vmatprep.subr.bf16.mxu0 0
    %3821 = vmatpush1.bf16.msra.mxu0 0
    %3822 = vmatprep.subr.bf16.mxu0 0
    %3823 = vmatpush1.bf16.msra.mxu0 0
    %3824 = vmatprep.subr.bf16.mxu0 0
    %3825 = vmatpush1.bf16.msra.mxu0 0
    %3826 = vmatprep.subr.bf16.mxu0 0
    %3827 = vmatpush1.bf16.msra.mxu0 0
    %3828 = vmatprep.subr.bf16.mxu0 0
    %3829 = vmatpush1.bf16.msra.mxu0 0
    %3830 = vmatprep.subr.bf16.mxu0 0
    %3831 = vmatpush1.bf16.msra.mxu0 0
    %3832 = vmatprep.subr.bf16.mxu0 0
    %3833 = vmatpush1.bf16.msra.mxu0 0
    %3834 = vmatprep.subr.bf16.mxu0 0
    %3835 = vmatpush1.bf16.msra.mxu0 0
    %3836 = vmatprep.subr.bf16.mxu0 0
    %3837 = vmatpush1.bf16.msra.mxu0 0
    %3838 = vmatprep.subr.bf16.mxu0 0
    %3839 = vmatpush1.bf16.msra.mxu0 0
    %3840 = vmatprep.subr.bf16.mxu0 0
    %3841 = vmatpush1.bf16.msra.mxu0 0
    %3842 = vmatprep.mubr.bf16.mxu0 0
    %3843 = vmatmul.mubr.bf16.gmra.mrb[0].mxu0 %v3808
    %v3844 = vpop.f32.mrb[0].mxu0
    %v3845 = vadd.f32 %v3802, %v3844
    %v3846 = vpop.f32.mrb[0].mxu0
    %v3847 = vpop.f32.mrb[0].mxu0
    %v3848 = vadd.f32 %v3802, %v3847
    %v3849 = vpop.f32.mrb[0].mxu0
    %3850 = vdwg.mxu0
    %v3851 = vmul.f32 %v3845, %v3845
    %v3852 = vmul.f32 %v3848, %v3848
    %v3853 = vsel %vm384, %v3851, 0.0
    %3854 = vadd.xlane.f32.xlu0 %v3853
    %v3855 = vpop.xlane.xlu0 %3854
    %v3856 = vsel %vm384, %v3852, 0.0
    %3857 = vadd.xlane.f32.xlu0 %v3856
    %v3858 = vpop.xlane.xlu0 %3857
    %v3859 = vmul.f32 %v3855, %v388
    %v3860 = vmul.f32 %v3858, %v388
    %v3861 = vadd.f32 %v3859, 1e-06
    %v3862 = vadd.f32 %v3860, 1e-06
    %v3863 = vrsqrt.pop %v3861
    %v3864 = vrsqrt.pop %v3862
    %v3865 = vmul.f32 %v3845, %v3863
    %v3866 = vmul.f32 %v3848, %v3864
    %v3867 = vmul.f32 %v3865, %v904
    %v3868 = vmul.f32 %v3866, %v904
    %v3869 = vmul.f32 %v3276, %v3867
    %v3870 = vmul.f32 %v3277, %v3868
    %v3872 = vsel %vm384, %v3867, 0
    %v3875 = vsel %vm384, %v3868, 0
    %3877 = vmatprep.subr.mxu0 0.0
    %3878 = vmatpush1.msra.mxu0 %v132
    %3879 = vmatprep.subr.mxu0 0.0
    %3880 = vmatpush1.msra.mxu0 %v133
    %3881 = vmatprep.subr.mxu0 0.0
    %3882 = vmatpush1.msra.mxu0 0.0
    %3883 = vmatprep.subr.mxu0 0.0
    %3884 = vmatpush1.msra.mxu0 0.0
    %3885 = vmatprep.subr.mxu0 0.0
    %3886 = vmatpush1.msra.mxu0 0.0
    %3887 = vmatprep.subr.mxu0 0.0
    %3888 = vmatpush1.msra.mxu0 0.0
    %3889 = vmatprep.subr.mxu0 0.0
    %3890 = vmatpush1.msra.mxu0 0.0
    %3891 = vmatprep.subr.mxu0 0.0
    %3892 = vmatpush1.msra.mxu0 0.0
    %3893 = vmatprep.subr.mxu0 0.0
    %3894 = vmatpush1.msra.mxu0 0.0
    %3895 = vmatprep.subr.mxu0 0.0
    %3896 = vmatpush1.msra.mxu0 0.0
    %3897 = vmatprep.subr.mxu0 0.0
    %3898 = vmatpush1.msra.mxu0 0.0
    %3899 = vmatprep.subr.mxu0 0.0
    %3900 = vmatpush1.msra.mxu0 0.0
    %3901 = vmatprep.subr.mxu0 0.0
    %3902 = vmatpush1.msra.mxu0 0.0
    %3903 = vmatprep.subr.mxu0 0.0
    %3904 = vmatpush1.msra.mxu0 0.0
    %3905 = vmatprep.subr.mxu0 0.0
    %3906 = vmatpush1.msra.mxu0 0.0
    %3907 = vmatprep.subr.mxu0 0.0
    %3908 = vmatpush1.msra.mxu0 0.0
    %3909 = vmatprep.subr.mxu0 0.0
    %3910 = vmatpush1.msra.mxu0 0.0
    %3911 = vmatprep.subr.mxu0 0.0
    %3912 = vmatpush1.msra.mxu0 0.0
    %3913 = vmatprep.subr.mxu0 0.0
    %3914 = vmatpush1.msra.mxu0 0.0
    %3915 = vmatprep.subr.mxu0 0.0
    %3916 = vmatpush1.msra.mxu0 0.0
    %3917 = vmatprep.subr.mxu0 0.0
    %3918 = vmatpush1.msra.mxu0 0.0
    %3919 = vmatprep.subr.mxu0 0.0
    %3920 = vmatpush1.msra.mxu0 0.0
    %3921 = vmatprep.subr.mxu0 0.0
    %3922 = vmatpush1.msra.mxu0 0.0
    %3923 = vmatprep.subr.mxu0 0.0
    %3924 = vmatpush1.msra.mxu0 0.0
    %3925 = vmatprep.subr.mxu0 0.0
    %3926 = vmatpush1.msra.mxu0 0.0
    %3927 = vmatprep.subr.mxu0 0.0
    %3928 = vmatpush1.msra.mxu0 0.0
    %3929 = vmatprep.subr.mxu0 0.0
    %3930 = vmatpush1.msra.mxu0 0.0
    %3931 = vmatprep.subr.mxu0 0.0
    %3932 = vmatpush1.msra.mxu0 0.0
    %3933 = vmatprep.subr.mxu0 0.0
    %3934 = vmatpush1.msra.mxu0 0.0
    %3935 = vmatprep.subr.mxu0 0.0
    %3936 = vmatpush1.msra.mxu0 0.0
    %3937 = vmatprep.subr.mxu0 0.0
    %3938 = vmatpush1.msra.mxu0 0.0
    %3939 = vmatprep.subr.mxu0 0.0
    %3940 = vmatpush1.msra.mxu0 0.0
    %3941 = vmatprep.mubr.f32.mxu0 0.0
    %3942 = vmatmul.mubr.f32.gmra.mrb[0].mxu0 %v3872
    %v3943 = vpop.f32.mrb[0].mxu0
    %v3944 = vadd.f32 0.0, %v3943
    %v3945 = vpop.f32.mrb[0].mxu0
    %3946 = vmatprep.mubr.f32.mxu0 0.0
    %3947 = vmatmul.mubr.f32.gmra.mrb[0].mxu0 %v3875
    %v3948 = vpop.f32.mrb[0].mxu0
    %v3949 = vadd.f32 0.0, %v3948
    %v3950 = vpop.f32.mrb[0].mxu0
    %3951 = vdwg.mxu0
    %v3952 = vmul.f32 %v3280, %v3944
    %v3953 = vmul.f32 %v3281, %v3949
    %v3954 = vadd.f32 %v3869, %v3952
    %v3955 = vadd.f32 %v3870, %v3953
    %3958 = vrot.lane.b32.xlu0 %v3851, 96
    %v3959 = vpop.permute.xlu0 %3958
    %3960 = vrot.lane.b32.xlu0 %v3852, 96
    %v3961 = vpop.permute.xlu0 %3960
    %v3964 = vsel %vm384, %v3959, 0.0
    %3965 = vadd.xlane.f32.xlu0 %v3964
    %v3966 = vpop.xlane.xlu0 %3965
    %v3967 = vsel %vm384, %v3961, 0.0
    %3968 = vadd.xlane.f32.xlu0 %v3967
    %v3969 = vpop.xlane.xlu0 %3968
    %v3970 = vmul.f32 %v3966, %v388
    %v3971 = vmul.f32 %v3969, %v388
    %v3972 = vadd.f32 %v3970, 1e-06
    %v3973 = vadd.f32 %v3971, 1e-06
    %v3974 = vrsqrt.pop %v3972
    %v3975 = vrsqrt.pop %v3973
    %v3976 = vmul.f32 %v3845, %v3974
    %v3977 = vmul.f32 %v3848, %v3975
    %v3978 = vmul.f32 %v3976, %v1023
    %v3979 = vmul.f32 %v3977, %v1023
    %3982 = vrot.lane.b32.xlu0 %v3978, 96
    %v3983 = vpop.permute.xlu0 %3982
    %3984 = vrot.lane.b32.xlu0 %v3979, 96
    %v3985 = vpop.permute.xlu0 %3984
    %v3988 = vmul.f32 %v3276, %v3983
    %v3989 = vmul.f32 %v3277, %v3985
    %v3990 = vsel %vm384, %v3983, 0
    %v3992 = vsel %vm384, %v3985, 0
    %3994 = vmatprep.subr.mxu0 0.0
    %3995 = vmatpush1.msra.mxu0 %v132
    %3996 = vmatprep.subr.mxu0 0.0
    %3997 = vmatpush1.msra.mxu0 %v133
    %3998 = vmatprep.subr.mxu0 0.0
    %3999 = vmatpush1.msra.mxu0 0.0
    %4000 = vmatprep.subr.mxu0 0.0
    %4001 = vmatpush1.msra.mxu0 0.0
    %4002 = vmatprep.subr.mxu0 0.0
    %4003 = vmatpush1.msra.mxu0 0.0
    %4004 = vmatprep.subr.mxu0 0.0
    %4005 = vmatpush1.msra.mxu0 0.0
    %4006 = vmatprep.subr.mxu0 0.0
    %4007 = vmatpush1.msra.mxu0 0.0
    %4008 = vmatprep.subr.mxu0 0.0
    %4009 = vmatpush1.msra.mxu0 0.0
    %4010 = vmatprep.subr.mxu0 0.0
    %4011 = vmatpush1.msra.mxu0 0.0
    %4012 = vmatprep.subr.mxu0 0.0
    %4013 = vmatpush1.msra.mxu0 0.0
    %4014 = vmatprep.subr.mxu0 0.0
    %4015 = vmatpush1.msra.mxu0 0.0
    %4016 = vmatprep.subr.mxu0 0.0
    %4017 = vmatpush1.msra.mxu0 0.0
    %4018 = vmatprep.subr.mxu0 0.0
    %4019 = vmatpush1.msra.mxu0 0.0
    %4020 = vmatprep.subr.mxu0 0.0
    %4021 = vmatpush1.msra.mxu0 0.0
    %4022 = vmatprep.subr.mxu0 0.0
    %4023 = vmatpush1.msra.mxu0 0.0
    %4024 = vmatprep.subr.mxu0 0.0
    %4025 = vmatpush1.msra.mxu0 0.0
    %4026 = vmatprep.subr.mxu0 0.0
    %4027 = vmatpush1.msra.mxu0 0.0
    %4028 = vmatprep.subr.mxu0 0.0
    %4029 = vmatpush1.msra.mxu0 0.0
    %4030 = vmatprep.subr.mxu0 0.0
    %4031 = vmatpush1.msra.mxu0 0.0
    %4032 = vmatprep.subr.mxu0 0.0
    %4033 = vmatpush1.msra.mxu0 0.0
    %4034 = vmatprep.subr.mxu0 0.0
    %4035 = vmatpush1.msra.mxu0 0.0
    %4036 = vmatprep.subr.mxu0 0.0
    %4037 = vmatpush1.msra.mxu0 0.0
    %4038 = vmatprep.subr.mxu0 0.0
    %4039 = vmatpush1.msra.mxu0 0.0
    %4040 = vmatprep.subr.mxu0 0.0
    %4041 = vmatpush1.msra.mxu0 0.0
    %4042 = vmatprep.subr.mxu0 0.0
    %4043 = vmatpush1.msra.mxu0 0.0
    %4044 = vmatprep.subr.mxu0 0.0
    %4045 = vmatpush1.msra.mxu0 0.0
    %4046 = vmatprep.subr.mxu0 0.0
    %4047 = vmatpush1.msra.mxu0 0.0
    %4048 = vmatprep.subr.mxu0 0.0
    %4049 = vmatpush1.msra.mxu0 0.0
    %4050 = vmatprep.subr.mxu0 0.0
    %4051 = vmatpush1.msra.mxu0 0.0
    %4052 = vmatprep.subr.mxu0 0.0
    %4053 = vmatpush1.msra.mxu0 0.0
    %4054 = vmatprep.subr.mxu0 0.0
    %4055 = vmatpush1.msra.mxu0 0.0
    %4056 = vmatprep.subr.mxu0 0.0
    %4057 = vmatpush1.msra.mxu0 0.0
    %4058 = vmatprep.mubr.f32.mxu0 0.0
    %4059 = vmatmul.mubr.f32.gmra.mrb[0].mxu0 %v3990
    %v4060 = vpop.f32.mrb[0].mxu0
    %v4061 = vadd.f32 0.0, %v4060
    %v4062 = vpop.f32.mrb[0].mxu0
    %4063 = vmatprep.mubr.f32.mxu0 0.0
    %4064 = vmatmul.mubr.f32.gmra.mrb[0].mxu0 %v3992
    %v4065 = vpop.f32.mrb[0].mxu0
    %v4066 = vadd.f32 0.0, %v4065
    %v4067 = vpop.f32.mrb[0].mxu0
    %4068 = vdwg.mxu0
    %v4069 = vmul.f32 %v3280, %v4061
    %v4070 = vmul.f32 %v3281, %v4066
    %v4071 = vadd.f32 %v3988, %v4069
    %v4072 = vadd.f32 %v3989, %v4070
    %4073 = vst.msk [vmem:[#allocation2 + $0x8] sm:$0xff] %vm384, %v4071
    %4074 = vst.msk [vmem:[#allocation2 + $0x10] sm:$0xff] %vm384, %v4072
    %4077 = vrot.lane.b32.xlu0 %v3845, 64
    %v4078 = vpop.permute.xlu0 %4077
    %4079 = vrot.lane.b32.xlu0 %v3848, 64
    %v4080 = vpop.permute.xlu0 %4079
    %4083 = vst.msk [vmem:[#allocation3 + $0x8] sm:$0xff] %vm384, %v4078
    %4084 = vst.msk [vmem:[#allocation3 + $0x10] sm:$0xff] %vm384, %v4080
    %v4085 = vld [vmem:[#allocation2] sm:$0xff]
    %v4086 = vld [vmem:[#allocation2 + $0x8] sm:$0xff]
    %v4087 = vld [vmem:[#allocation2 + $0x10] sm:$0xff]
    %v4088 = vld [vmem:[#allocation3] sm:$0xff]
    %v4089 = vld [vmem:[#allocation3 + $0x8] sm:$0xff]
    %v4090 = vld [vmem:[#allocation3 + $0x10] sm:$0xff]
    %v4091 = vpack.c.bf16 %v3955, %v3954
    %v4092 = vpack.c.bf16 %v4086, %v4085
    %v4093 = vpack.c.bf16 %v4087, %v4087
    %v4095 = vsel %vm384, %v4091, 0
    %v4098 = vsel %vm384, %v4092, 0
    %v4101 = vsel %vm384, %v4093, 0
    %4103 = vmatprep.subr.bf16.mxu0 0
    %4104 = vmatpush1.bf16.xpose.msra.mxu0 %v4098
    %4105 = vmatprep.subr.bf16.mxu0 0
    %4106 = vmatpush1.bf16.xpose.msra.mxu0 %v4101
    %4107 = vmatprep.subr.bf16.mxu0 0
    %4108 = vmatpush1.bf16.xpose.msra.mxu0 0
    %4109 = vmatprep.subr.bf16.mxu0 0
    %4110 = vmatpush1.bf16.xpose.msra.mxu0 0
    %4111 = vmatprep.subr.bf16.mxu0 0
    %4112 = vmatpush1.bf16.xpose.msra.mxu0 0
    %4113 = vmatprep.subr.bf16.mxu0 0
    %4114 = vmatpush1.bf16.xpose.msra.mxu0 0
    %4115 = vmatprep.subr.bf16.mxu0 0
    %4116 = vmatpush1.bf16.xpose.msra.mxu0 0
    %4117 = vmatprep.subr.bf16.mxu0 0
    %4118 = vmatpush1.bf16.xpose.msra.mxu0 0
    %4119 = vmatprep.subr.bf16.mxu0 0
    %4120 = vmatpush1.bf16.xpose.msra.mxu0 0
    %4121 = vmatprep.subr.bf16.mxu0 0
    %4122 = vmatpush1.bf16.xpose.msra.mxu0 0
    %4123 = vmatprep.subr.bf16.mxu0 0
    %4124 = vmatpush1.bf16.xpose.msra.mxu0 0
    %4125 = vmatprep.subr.bf16.mxu0 0
    %4126 = vmatpush1.bf16.xpose.msra.mxu0 0
    %4127 = vmatprep.subr.bf16.mxu0 0
    %4128 = vmatpush1.bf16.xpose.msra.mxu0 0
    %4129 = vmatprep.subr.bf16.mxu0 0
    %4130 = vmatpush1.bf16.xpose.msra.mxu0 0
    %4131 = vmatprep.subr.bf16.mxu0 0
    %4132 = vmatpush1.bf16.xpose.msra.mxu0 0
    %4133 = vmatprep.subr.bf16.mxu0 0
    %4134 = vmatpush1.bf16.xpose.msra.mxu0 0
    %4135 = vmatprep.mubr.bf16.mxu0 0
    %4136 = vmatmul.mubr.bf16.gmra.mrb[0].mxu0 %v4095
    %v4137 = vpop.f32.mrb[0].mxu0
    %v4138 = vadd.f32 0.0, %v4137
    %v4139 = vpop.f32.mrb[0].mxu0
    %v4140 = vpop.f32.mrb[0].mxu0
    %v4141 = vadd.f32 0.0, %v4140
    %v4142 = vpop.f32.mrb[0].mxu0
    %4143 = vdwg.mxu0
    %v4144 = vmul.f32 %v4138, 0.25
    %v4145 = vmul.f32 %v4141, 0.25
    %v4146 = vsel %vm1193, %v4144, -inf
    %4147 = vmax.xlane.f32.xlu0 %v4146
    %v4148 = vpop.xlane.xlu0 %4147
    %v4149 = vsel %vm1193, %v4145, -inf
    %4150 = vmax.xlane.f32.xlu0 %v4149
    %v4151 = vpop.xlane.xlu0 %4150
    %v4152 = vsub.f32 %v4144, %v4148
    %v4153 = vsub.f32 %v4145, %v4151
    %v4154 = vmul.f32 %v4152, 1.442695
    %v4155 = vpow.pop %v4154
    %v4156 = vmul.f32 %v4153, 1.442695
    %v4157 = vpow.pop %v4156
    %v4158 = vsel %vm1193, %v4155, 0.0
    %4159 = vadd.xlane.f32.xlu0 %v4158
    %v4160 = vpop.xlane.xlu0 %4159
    %v4161 = vsel %vm1193, %v4157, 0.0
    %4162 = vadd.xlane.f32.xlu0 %v4161
    %v4163 = vpop.xlane.xlu0 %4162
    %v4164 = vrcp.pop %v4160
    %v4165 = vrcp.pop %v4163
    %v4166 = vmul.f32 %v4155, %v4164
    %v4167 = vmul.f32 %v4157, %v4165
    %v4168 = vpack.c.bf16 %v4167, %v4166
    %v4169 = vpack.c.bf16 %v4089, %v4088
    %v4170 = vpack.c.bf16 %v4090, %v4090
    %v4172 = vsel %vm1193, %v4168, 0
    %v4175 = vsel %vm1222, %v4170, 0
    %4177 = vmatprep.subr.bf16.mxu0 0
    %4178 = vmatpush1.bf16.msra.mxu0 %v4169
    %4179 = vmatprep.subr.bf16.mxu0 0
    %4180 = vmatpush1.bf16.msra.mxu0 %v4175
    %4181 = vmatprep.subr.bf16.mxu0 0
    %4182 = vmatpush1.bf16.msra.mxu0 0
    %4183 = vmatprep.subr.bf16.mxu0 0
    %4184 = vmatpush1.bf16.msra.mxu0 0
    %4185 = vmatprep.subr.bf16.mxu0 0
    %4186 = vmatpush1.bf16.msra.mxu0 0
    %4187 = vmatprep.subr.bf16.mxu0 0
    %4188 = vmatpush1.bf16.msra.mxu0 0
    %4189 = vmatprep.subr.bf16.mxu0 0
    %4190 = vmatpush1.bf16.msra.mxu0 0
    %4191 = vmatprep.subr.bf16.mxu0 0
    %4192 = vmatpush1.bf16.msra.mxu0 0
    %4193 = vmatprep.subr.bf16.mxu0 0
    %4194 = vmatpush1.bf16.msra.mxu0 0
    %4195 = vmatprep.subr.bf16.mxu0 0
    %4196 = vmatpush1.bf16.msra.mxu0 0
    %4197 = vmatprep.subr.bf16.mxu0 0
    %4198 = vmatpush1.bf16.msra.mxu0 0
    %4199 = vmatprep.subr.bf16.mxu0 0
    %4200 = vmatpush1.bf16.msra.mxu0 0
    %4201 = vmatprep.subr.bf16.mxu0 0
    %4202 = vmatpush1.bf16.msra.mxu0 0
    %4203 = vmatprep.subr.bf16.mxu0 0
    %4204 = vmatpush1.bf16.msra.mxu0 0
    %4205 = vmatprep.subr.bf16.mxu0 0
    %4206 = vmatpush1.bf16.msra.mxu0 0
    %4207 = vmatprep.subr.bf16.mxu0 0
    %4208 = vmatpush1.bf16.msra.mxu0 0
    %4209 = vmatprep.mubr.bf16.mxu0 0
    %4210 = vmatmul.mubr.bf16.gmra.mrb[0].mxu0 %v4172
    %v4211 = vpop.f32.mrb[0].mxu0
    %v4212 = vadd.f32 0.0, %v4211
    %v4213 = vpop.f32.mrb[0].mxu0
    %v4214 = vpop.f32.mrb[0].mxu0
    %v4215 = vadd.f32 0.0, %v4214
    %v4216 = vpop.f32.mrb[0].mxu0
    %4217 = vdwg.mxu0
    %4218 = vst.msk [vmem:[#allocation4] sm:$0xff] %vm384, %v4212
    %4219 = vst.msk [vmem:[#allocation4 + $0x8] sm:$0xff] %vm384, %v4215
    %4220 = vrot.lane.b32.xlu0 %v3851, 112
    %v4221 = vpop.permute.xlu0 %4220
    %4222 = vrot.lane.b32.xlu0 %v3852, 112
    %v4223 = vpop.permute.xlu0 %4222
    %v4226 = vsel %vm384, %v4221, 0.0
    %4227 = vadd.xlane.f32.xlu0 %v4226
    %v4228 = vpop.xlane.xlu0 %4227
    %v4229 = vsel %vm384, %v4223, 0.0
    %4230 = vadd.xlane.f32.xlu0 %v4229
    %v4231 = vpop.xlane.xlu0 %4230
    %v4232 = vmul.f32 %v4228, %v388
    %v4233 = vmul.f32 %v4231, %v388
    %v4234 = vadd.f32 %v4232, 1e-06
    %v4235 = vadd.f32 %v4233, 1e-06
    %v4236 = vrsqrt.pop %v4234
    %v4237 = vrsqrt.pop %v4235
    %v4238 = vmul.f32 %v3845, %v4236
    %v4239 = vmul.f32 %v3848, %v4237
    %v4240 = vmul.f32 %v4238, %v1290
    %v4241 = vmul.f32 %v4239, %v1290
    %4244 = vrot.lane.b32.xlu0 %v4240, 112
    %v4245 = vpop.permute.xlu0 %4244
    %4246 = vrot.lane.b32.xlu0 %v4241, 112
    %v4247 = vpop.permute.xlu0 %4246
    %v4250 = vmul.f32 %v3276, %v4245
    %v4251 = vmul.f32 %v3277, %v4247
    %v4252 = vsel %vm384, %v4245, 0
    %v4254 = vsel %vm384, %v4247, 0
    %4256 = vmatprep.subr.mxu0 0.0
    %4257 = vmatpush1.msra.mxu0 %v132
    %4258 = vmatprep.subr.mxu0 0.0
    %4259 = vmatpush1.msra.mxu0 %v133
    %4260 = vmatprep.subr.mxu0 0.0
    %4261 = vmatpush1.msra.mxu0 0.0
    %4262 = vmatprep.subr.mxu0 0.0
    %4263 = vmatpush1.msra.mxu0 0.0
    %4264 = vmatprep.subr.mxu0 0.0
    %4265 = vmatpush1.msra.mxu0 0.0
    %4266 = vmatprep.subr.mxu0 0.0
    %4267 = vmatpush1.msra.mxu0 0.0
    %4268 = vmatprep.subr.mxu0 0.0
    %4269 = vmatpush1.msra.mxu0 0.0
    %4270 = vmatprep.subr.mxu0 0.0
    %4271 = vmatpush1.msra.mxu0 0.0
    %4272 = vmatprep.subr.mxu0 0.0
    %4273 = vmatpush1.msra.mxu0 0.0
    %4274 = vmatprep.subr.mxu0 0.0
    %4275 = vmatpush1.msra.mxu0 0.0
    %4276 = vmatprep.subr.mxu0 0.0
    %4277 = vmatpush1.msra.mxu0 0.0
    %4278 = vmatprep.subr.mxu0 0.0
    %4279 = vmatpush1.msra.mxu0 0.0
    %4280 = vmatprep.subr.mxu0 0.0
    %4281 = vmatpush1.msra.mxu0 0.0
    %4282 = vmatprep.subr.mxu0 0.0
    %4283 = vmatpush1.msra.mxu0 0.0
    %4284 = vmatprep.subr.mxu0 0.0
    %4285 = vmatpush1.msra.mxu0 0.0
    %4286 = vmatprep.subr.mxu0 0.0
    %4287 = vmatpush1.msra.mxu0 0.0
    %4288 = vmatprep.subr.mxu0 0.0
    %4289 = vmatpush1.msra.mxu0 0.0
    %4290 = vmatprep.subr.mxu0 0.0
    %4291 = vmatpush1.msra.mxu0 0.0
    %4292 = vmatprep.subr.mxu0 0.0
    %4293 = vmatpush1.msra.mxu0 0.0
    %4294 = vmatprep.subr.mxu0 0.0
    %4295 = vmatpush1.msra.mxu0 0.0
    %4296 = vmatprep.subr.mxu0 0.0
    %4297 = vmatpush1.msra.mxu0 0.0
    %4298 = vmatprep.subr.mxu0 0.0
    %4299 = vmatpush1.msra.mxu0 0.0
    %4300 = vmatprep.subr.mxu0 0.0
    %4301 = vmatpush1.msra.mxu0 0.0
    %4302 = vmatprep.subr.mxu0 0.0
    %4303 = vmatpush1.msra.mxu0 0.0
    %4304 = vmatprep.subr.mxu0 0.0
    %4305 = vmatpush1.msra.mxu0 0.0
    %4306 = vmatprep.subr.mxu0 0.0
    %4307 = vmatpush1.msra.mxu0 0.0
    %4308 = vmatprep.subr.mxu0 0.0
    %4309 = vmatpush1.msra.mxu0 0.0
    %4310 = vmatprep.subr.mxu0 0.0
    %4311 = vmatpush1.msra.mxu0 0.0
    %4312 = vmatprep.subr.mxu0 0.0
    %4313 = vmatpush1.msra.mxu0 0.0
    %4314 = vmatprep.subr.mxu0 0.0
    %4315 = vmatpush1.msra.mxu0 0.0
    %4316 = vmatprep.subr.mxu0 0.0
    %4317 = vmatpush1.msra.mxu0 0.0
    %4318 = vmatprep.subr.mxu0 0.0
    %4319 = vmatpush1.msra.mxu0 0.0
    %4320 = vmatprep.mubr.f32.mxu0 0.0
    %4321 = vmatmul.mubr.f32.gmra.mrb[0].mxu0 %v4252
    %v4322 = vpop.f32.mrb[0].mxu0
    %v4323 = vadd.f32 0.0, %v4322
    %v4324 = vpop.f32.mrb[0].mxu0
    %4325 = vmatprep.mubr.f32.mxu0 0.0
    %4326 = vmatmul.mubr.f32.gmra.mrb[0].mxu0 %v4254
    %v4327 = vpop.f32.mrb[0].mxu0
    %v4328 = vadd.f32 0.0, %v4327
    %v4329 = vpop.f32.mrb[0].mxu0
    %4330 = vdwg.mxu0
    %v4331 = vmul.f32 %v3280, %v4323
    %v4332 = vmul.f32 %v3281, %v4328
    %v4333 = vadd.f32 %v4250, %v4331
    %v4334 = vadd.f32 %v4251, %v4332
    %4335 = vrot.lane.b32.xlu0 %v3851, 80
    %v4336 = vpop.permute.xlu0 %4335
    %4337 = vrot.lane.b32.xlu0 %v3852, 80
    %v4338 = vpop.permute.xlu0 %4337
    %v4341 = vsel %vm384, %v4336, 0.0
    %4342 = vadd.xlane.f32.xlu0 %v4341
    %v4343 = vpop.xlane.xlu0 %4342
    %v4344 = vsel %vm384, %v4338, 0.0
    %4345 = vadd.xlane.f32.xlu0 %v4344
    %v4346 = vpop.xlane.xlu0 %4345
    %v4347 = vmul.f32 %v4343, %v388
    %v4348 = vmul.f32 %v4346, %v388
    %v4349 = vadd.f32 %v4347, 1e-06
    %v4350 = vadd.f32 %v4348, 1e-06
    %v4351 = vrsqrt.pop %v4349
    %v4352 = vrsqrt.pop %v4350
    %v4353 = vmul.f32 %v3845, %v4351
    %v4354 = vmul.f32 %v3848, %v4352
    %v4355 = vmul.f32 %v4353, %v1408
    %v4356 = vmul.f32 %v4354, %v1408
    %4359 = vrot.lane.b32.xlu0 %v4355, 80
    %v4360 = vpop.permute.xlu0 %4359
    %4361 = vrot.lane.b32.xlu0 %v4356, 80
    %v4362 = vpop.permute.xlu0 %4361
    %v4365 = vmul.f32 %v3276, %v4360
    %v4366 = vmul.f32 %v3277, %v4362
    %v4367 = vsel %vm384, %v4360, 0
    %v4369 = vsel %vm384, %v4362, 0
    %4371 = vmatprep.subr.mxu0 0.0
    %4372 = vmatpush1.msra.mxu0 %v132
    %4373 = vmatprep.subr.mxu0 0.0
    %4374 = vmatpush1.msra.mxu0 %v133
    %4375 = vmatprep.subr.mxu0 0.0
    %4376 = vmatpush1.msra.mxu0 0.0
    %4377 = vmatprep.subr.mxu0 0.0
    %4378 = vmatpush1.msra.mxu0 0.0
    %4379 = vmatprep.subr.mxu0 0.0
    %4380 = vmatpush1.msra.mxu0 0.0
    %4381 = vmatprep.subr.mxu0 0.0
    %4382 = vmatpush1.msra.mxu0 0.0
    %4383 = vmatprep.subr.mxu0 0.0
    %4384 = vmatpush1.msra.mxu0 0.0
    %4385 = vmatprep.subr.mxu0 0.0
    %4386 = vmatpush1.msra.mxu0 0.0
    %4387 = vmatprep.subr.mxu0 0.0
    %4388 = vmatpush1.msra.mxu0 0.0
    %4389 = vmatprep.subr.mxu0 0.0
    %4390 = vmatpush1.msra.mxu0 0.0
    %4391 = vmatprep.subr.mxu0 0.0
    %4392 = vmatpush1.msra.mxu0 0.0
    %4393 = vmatprep.subr.mxu0 0.0
    %4394 = vmatpush1.msra.mxu0 0.0
    %4395 = vmatprep.subr.mxu0 0.0
    %4396 = vmatpush1.msra.mxu0 0.0
    %4397 = vmatprep.subr.mxu0 0.0
    %4398 = vmatpush1.msra.mxu0 0.0
    %4399 = vmatprep.subr.mxu0 0.0
    %4400 = vmatpush1.msra.mxu0 0.0
    %4401 = vmatprep.subr.mxu0 0.0
    %4402 = vmatpush1.msra.mxu0 0.0
    %4403 = vmatprep.subr.mxu0 0.0
    %4404 = vmatpush1.msra.mxu0 0.0
    %4405 = vmatprep.subr.mxu0 0.0
    %4406 = vmatpush1.msra.mxu0 0.0
    %4407 = vmatprep.subr.mxu0 0.0
    %4408 = vmatpush1.msra.mxu0 0.0
    %4409 = vmatprep.subr.mxu0 0.0
    %4410 = vmatpush1.msra.mxu0 0.0
    %4411 = vmatprep.subr.mxu0 0.0
    %4412 = vmatpush1.msra.mxu0 0.0
    %4413 = vmatprep.subr.mxu0 0.0
    %4414 = vmatpush1.msra.mxu0 0.0
    %4415 = vmatprep.subr.mxu0 0.0
    %4416 = vmatpush1.msra.mxu0 0.0
    %4417 = vmatprep.subr.mxu0 0.0
    %4418 = vmatpush1.msra.mxu0 0.0
    %4419 = vmatprep.subr.mxu0 0.0
    %4420 = vmatpush1.msra.mxu0 0.0
    %4421 = vmatprep.subr.mxu0 0.0
    %4422 = vmatpush1.msra.mxu0 0.0
    %4423 = vmatprep.subr.mxu0 0.0
    %4424 = vmatpush1.msra.mxu0 0.0
    %4425 = vmatprep.subr.mxu0 0.0
    %4426 = vmatpush1.msra.mxu0 0.0
    %4427 = vmatprep.subr.mxu0 0.0
    %4428 = vmatpush1.msra.mxu0 0.0
    %4429 = vmatprep.subr.mxu0 0.0
    %4430 = vmatpush1.msra.mxu0 0.0
    %4431 = vmatprep.subr.mxu0 0.0
    %4432 = vmatpush1.msra.mxu0 0.0
    %4433 = vmatprep.subr.mxu0 0.0
    %4434 = vmatpush1.msra.mxu0 0.0
    %4435 = vmatprep.mubr.f32.mxu0 0.0
    %4436 = vmatmul.mubr.f32.gmra.mrb[0].mxu0 %v4367
    %v4437 = vpop.f32.mrb[0].mxu0
    %v4438 = vadd.f32 0.0, %v4437
    %v4439 = vpop.f32.mrb[0].mxu0
    %4440 = vmatprep.mubr.f32.mxu0 0.0
    %4441 = vmatmul.mubr.f32.gmra.mrb[0].mxu0 %v4369
    %v4442 = vpop.f32.mrb[0].mxu0
    %v4443 = vadd.f32 0.0, %v4442
    %v4444 = vpop.f32.mrb[0].mxu0
    %4445 = vdwg.mxu0
    %v4446 = vmul.f32 %v3280, %v4438
    %v4447 = vmul.f32 %v3281, %v4443
    %v4448 = vadd.f32 %v4365, %v4446
    %v4449 = vadd.f32 %v4366, %v4447
    %4450 = vst.msk [vmem:[#allocation2 + $0x20] sm:$0xff] %vm384, %v4448
    %4451 = vst.msk [vmem:[#allocation2 + $0x28] sm:$0xff] %vm384, %v4449
    %4452 = vrot.lane.b32.xlu0 %v3845, 48
    %v4453 = vpop.permute.xlu0 %4452
    %4454 = vrot.lane.b32.xlu0 %v3848, 48
    %v4455 = vpop.permute.xlu0 %4454
    %4458 = vst.msk [vmem:[#allocation3 + $0x20] sm:$0xff] %vm384, %v4453
    %4459 = vst.msk [vmem:[#allocation3 + $0x28] sm:$0xff] %vm384, %v4455
    %v4460 = vld [vmem:[#allocation2 + $0x18] sm:$0xff]
    %v4461 = vld [vmem:[#allocation2 + $0x20] sm:$0xff]
    %v4462 = vld [vmem:[#allocation2 + $0x28] sm:$0xff]
    %v4463 = vld [vmem:[#allocation3 + $0x18] sm:$0xff]
    %v4464 = vld [vmem:[#allocation3 + $0x20] sm:$0xff]
    %v4465 = vld [vmem:[#allocation3 + $0x28] sm:$0xff]
    %v4466 = vpack.c.bf16 %v4334, %v4333
    %v4467 = vpack.c.bf16 %v4461, %v4460
    %v4468 = vpack.c.bf16 %v4462, %v4462
    %v4470 = vsel %vm384, %v4466, 0
    %v4473 = vsel %vm384, %v4467, 0
    %v4476 = vsel %vm384, %v4468, 0
    %4478 = vmatprep.subr.bf16.mxu0 0
    %4479 = vmatpush1.bf16.xpose.msra.mxu0 %v4473
    %4480 = vmatprep.subr.bf16.mxu0 0
    %4481 = vmatpush1.bf16.xpose.msra.mxu0 %v4476
    %4482 = vmatprep.subr.bf16.mxu0 0
    %4483 = vmatpush1.bf16.xpose.msra.mxu0 0
    %4484 = vmatprep.subr.bf16.mxu0 0
    %4485 = vmatpush1.bf16.xpose.msra.mxu0 0
    %4486 = vmatprep.subr.bf16.mxu0 0
    %4487 = vmatpush1.bf16.xpose.msra.mxu0 0
    %4488 = vmatprep.subr.bf16.mxu0 0
    %4489 = vmatpush1.bf16.xpose.msra.mxu0 0
    %4490 = vmatprep.subr.bf16.mxu0 0
    %4491 = vmatpush1.bf16.xpose.msra.mxu0 0
    %4492 = vmatprep.subr.bf16.mxu0 0
    %4493 = vmatpush1.bf16.xpose.msra.mxu0 0
    %4494 = vmatprep.subr.bf16.mxu0 0
    %4495 = vmatpush1.bf16.xpose.msra.mxu0 0
    %4496 = vmatprep.subr.bf16.mxu0 0
    %4497 = vmatpush1.bf16.xpose.msra.mxu0 0
    %4498 = vmatprep.subr.bf16.mxu0 0
    %4499 = vmatpush1.bf16.xpose.msra.mxu0 0
    %4500 = vmatprep.subr.bf16.mxu0 0
    %4501 = vmatpush1.bf16.xpose.msra.mxu0 0
    %4502 = vmatprep.subr.bf16.mxu0 0
    %4503 = vmatpush1.bf16.xpose.msra.mxu0 0
    %4504 = vmatprep.subr.bf16.mxu0 0
    %4505 = vmatpush1.bf16.xpose.msra.mxu0 0
    %4506 = vmatprep.subr.bf16.mxu0 0
    %4507 = vmatpush1.bf16.xpose.msra.mxu0 0
    %4508 = vmatprep.subr.bf16.mxu0 0
    %4509 = vmatpush1.bf16.xpose.msra.mxu0 0
    %4510 = vmatprep.mubr.bf16.mxu0 0
    %4511 = vmatmul.mubr.bf16.gmra.mrb[0].mxu0 %v4470
    %v4512 = vpop.f32.mrb[0].mxu0
    %v4513 = vadd.f32 0.0, %v4512
    %v4514 = vpop.f32.mrb[0].mxu0
    %v4515 = vpop.f32.mrb[0].mxu0
    %v4516 = vadd.f32 0.0, %v4515
    %v4517 = vpop.f32.mrb[0].mxu0
    %4518 = vdwg.mxu0
    %v4519 = vmul.f32 %v4513, 0.25
    %v4520 = vmul.f32 %v4516, 0.25
    %v4521 = vsel %vm1193, %v4519, -inf
    %4522 = vmax.xlane.f32.xlu0 %v4521
    %v4523 = vpop.xlane.xlu0 %4522
    %v4524 = vsel %vm1193, %v4520, -inf
    %4525 = vmax.xlane.f32.xlu0 %v4524
    %v4526 = vpop.xlane.xlu0 %4525
    %v4527 = vsub.f32 %v4519, %v4523
    %v4528 = vsub.f32 %v4520, %v4526
    %v4529 = vmul.f32 %v4527, 1.442695
    %v4530 = vpow.pop %v4529
    %v4531 = vmul.f32 %v4528, 1.442695
    %v4532 = vpow.pop %v4531
    %v4533 = vsel %vm1193, %v4530, 0.0
    %4534 = vadd.xlane.f32.xlu0 %v4533
    %v4535 = vpop.xlane.xlu0 %4534
    %v4536 = vsel %vm1193, %v4532, 0.0
    %4537 = vadd.xlane.f32.xlu0 %v4536
    %v4538 = vpop.xlane.xlu0 %4537
    %v4539 = vrcp.pop %v4535
    %v4540 = vrcp.pop %v4538
    %v4541 = vmul.f32 %v4530, %v4539
    %v4542 = vmul.f32 %v4532, %v4540
    %v4543 = vpack.c.bf16 %v4542, %v4541
    %v4544 = vpack.c.bf16 %v4464, %v4463
    %v4545 = vpack.c.bf16 %v4465, %v4465
    %v4547 = vsel %vm1193, %v4543, 0
    %v4550 = vsel %vm1222, %v4545, 0
    %4552 = vmatprep.subr.bf16.mxu0 0
    %4553 = vmatpush1.bf16.msra.mxu0 %v4544
    %4554 = vmatprep.subr.bf16.mxu0 0
    %4555 = vmatpush1.bf16.msra.mxu0 %v4550
    %4556 = vmatprep.subr.bf16.mxu0 0
    %4557 = vmatpush1.bf16.msra.mxu0 0
    %4558 = vmatprep.subr.bf16.mxu0 0
    %4559 = vmatpush1.bf16.msra.mxu0 0
    %4560 = vmatprep.subr.bf16.mxu0 0
    %4561 = vmatpush1.bf16.msra.mxu0 0
    %4562 = vmatprep.subr.bf16.mxu0 0
    %4563 = vmatpush1.bf16.msra.mxu0 0
    %4564 = vmatprep.subr.bf16.mxu0 0
    %4565 = vmatpush1.bf16.msra.mxu0 0
    %4566 = vmatprep.subr.bf16.mxu0 0
    %4567 = vmatpush1.bf16.msra.mxu0 0
    %4568 = vmatprep.subr.bf16.mxu0 0
    %4569 = vmatpush1.bf16.msra.mxu0 0
    %4570 = vmatprep.subr.bf16.mxu0 0
    %4571 = vmatpush1.bf16.msra.mxu0 0
    %4572 = vmatprep.subr.bf16.mxu0 0
    %4573 = vmatpush1.bf16.msra.mxu0 0
    %4574 = vmatprep.subr.bf16.mxu0 0
    %4575 = vmatpush1.bf16.msra.mxu0 0
    %4576 = vmatprep.subr.bf16.mxu0 0
    %4577 = vmatpush1.bf16.msra.mxu0 0
    %4578 = vmatprep.subr.bf16.mxu0 0
    %4579 = vmatpush1.bf16.msra.mxu0 0
    %4580 = vmatprep.subr.bf16.mxu0 0
    %4581 = vmatpush1.bf16.msra.mxu0 0
    %4582 = vmatprep.subr.bf16.mxu0 0
    %4583 = vmatpush1.bf16.msra.mxu0 0
    %4584 = vmatprep.mubr.bf16.mxu0 0
    %4585 = vmatmul.mubr.bf16.gmra.mrb[0].mxu0 %v4547
    %v4586 = vpop.f32.mrb[0].mxu0
    %v4587 = vadd.f32 0.0, %v4586
    %v4588 = vpop.f32.mrb[0].mxu0
    %v4589 = vpop.f32.mrb[0].mxu0
    %v4590 = vadd.f32 0.0, %v4589
    %v4591 = vpop.f32.mrb[0].mxu0
    %4592 = vdwg.mxu0
    %4595 = vrot.lane.b32.xlu0 %v4587, 16
    %v4596 = vpop.permute.xlu0 %4595
    %4597 = vrot.lane.b32.xlu0 %v4590, 16
    %v4598 = vpop.permute.xlu0 %4597
    %4601 = vst.msk [vmem:[#allocation4] sm:$0xff] %vm1656, %v4596
    %4602 = vst.msk [vmem:[#allocation4 + $0x8] sm:$0xff] %vm1656, %v4598
    %v4603 = vld [vmem:[#allocation4] sm:$0xff]
    %v4604 = vld [vmem:[#allocation4 + $0x8] sm:$0xff]
    %4607 = vrot.lane.b32.xlu0 %v4603, 64
    %v4608 = vpop.permute.xlu0 %4607
    %4609 = vrot.lane.b32.xlu0 %v4604, 64
    %v4610 = vpop.permute.xlu0 %4609
    %v4613 = vmul.f32 %v3783, %v4608
    %v4614 = vmul.f32 %v3783, %v4610
    %4617 = vrot.lane.b32.xlu0 %v4613, 64
    %v4618 = vpop.permute.xlu0 %4617
    %4619 = vrot.lane.b32.xlu0 %v4614, 64
    %v4620 = vpop.permute.xlu0 %4619
    %v4623 = vadd.f32 %v3270, %v4618
    %v4624 = vadd.f32 %v3271, %v4620
    %v4625 = vsel %vm167, %v4623, 0.0
    %4626 = vadd.xlane.f32.xlu0 %v4625
    %v4627 = vpop.xlane.xlu0 %4626
    %v4628 = vsel %vm167, %v4624, 0.0
    %4629 = vadd.xlane.f32.xlu0 %v4628
    %v4630 = vpop.xlane.xlu0 %4629
    %v4631 = vmul.f32 %v4627, %v293
    %v4632 = vmul.f32 %v4630, %v293
    %v4633 = vsub.f32 %v4623, %v4631
    %v4634 = vsub.f32 %v4624, %v4632
    %v4635 = vmul.f32 %v4633, %v4633
    %v4636 = vmul.f32 %v4634, %v4634
    %v4637 = vsel %vm167, %v4635, 0.0
    %4638 = vadd.xlane.f32.xlu0 %v4637
    %v4639 = vpop.xlane.xlu0 %4638
    %v4640 = vsel %vm167, %v4636, 0.0
    %4641 = vadd.xlane.f32.xlu0 %v4640
    %v4642 = vpop.xlane.xlu0 %4641
    %v4643 = vmul.f32 %v4639, %v293
    %v4644 = vmul.f32 %v4642, %v293
    %v4645 = vadd.f32 %v4643, 1e-06
    %v4646 = vadd.f32 %v4644, 1e-06
    %v4647 = vrsqrt.pop %v4645
    %v4648 = vrsqrt.pop %v4646
    %v4649 = vmul.f32 %v4633, %v4647
    %v4650 = vmul.f32 %v4634, %v4648
    %4653 = vrot.lane.b32.xlu0 %v4649, 32
    %v4654 = vpop.permute.xlu0 %4653
    %4655 = vrot.lane.b32.xlu0 %v4650, 32
    %v4656 = vpop.permute.xlu0 %4655
    %v4659 = vmul.f32 %v3769, %v4654
    %v4660 = vmul.f32 %v3769, %v4656
    %v4661 = vadd.f32 %v4659, %v3786
    %v4662 = vadd.f32 %v4660, %v3786
    %v4663 = vld [vmem:[%s29] sm:$0xff]
    %v4664 = vld [vmem:[%s29 + $0x8] sm:$0xff]
    %v4665 = vld [vmem:[%s29 + $0x10] sm:$0xff]
    %v4666 = vld [vmem:[%s29 + $0x18] sm:$0xff]
    %v4667 = vpack.c.bf16 %v4662, %v4661
    %v4668 = vpack.c.bf16 %v4664, %v4663
    %v4669 = vpack.c.bf16 %v4666, %v4665
    %v4670 = vld [vmem:[%s31] sm:$0x1]
    %v4672 = vlaneseq
    %v4673 = vshrl.u32 %v4672, 7
    %v4674 = vsub.s32 0, %v4673
    %v4675 = vrot.slane %v4670, %v4674
    %4678 = vrot.lane.b32.xlu0 %v4667, 96
    %v4679 = vpop.permute.xlu0 %4678
    %v4681 = vsel %vm167, %v4679, 0
    %4683 = vmatprep.subr.bf16.mxu0 0
    %4684 = vmatpush1.bf16.msra.mxu0 %v4668
    %4685 = vmatprep.subr.bf16.mxu0 0
    %4686 = vmatpush1.bf16.msra.mxu0 %v4669
    %4687 = vmatprep.subr.bf16.mxu0 0
    %4688 = vmatpush1.bf16.msra.mxu0 0
    %4689 = vmatprep.subr.bf16.mxu0 0
    %4690 = vmatpush1.bf16.msra.mxu0 0
    %4691 = vmatprep.subr.bf16.mxu0 0
    %4692 = vmatpush1.bf16.msra.mxu0 0
    %4693 = vmatprep.subr.bf16.mxu0 0
    %4694 = vmatpush1.bf16.msra.mxu0 0
    %4695 = vmatprep.subr.bf16.mxu0 0
    %4696 = vmatpush1.bf16.msra.mxu0 0
    %4697 = vmatprep.subr.bf16.mxu0 0
    %4698 = vmatpush1.bf16.msra.mxu0 0
    %4699 = vmatprep.subr.bf16.mxu0 0
    %4700 = vmatpush1.bf16.msra.mxu0 0
    %4701 = vmatprep.subr.bf16.mxu0 0
    %4702 = vmatpush1.bf16.msra.mxu0 0
    %4703 = vmatprep.subr.bf16.mxu0 0
    %4704 = vmatpush1.bf16.msra.mxu0 0
    %4705 = vmatprep.subr.bf16.mxu0 0
    %4706 = vmatpush1.bf16.msra.mxu0 0
    %4707 = vmatprep.subr.bf16.mxu0 0
    %4708 = vmatpush1.bf16.msra.mxu0 0
    %4709 = vmatprep.subr.bf16.mxu0 0
    %4710 = vmatpush1.bf16.msra.mxu0 0
    %4711 = vmatprep.subr.bf16.mxu0 0
    %4712 = vmatpush1.bf16.msra.mxu0 0
    %4713 = vmatprep.subr.bf16.mxu0 0
    %4714 = vmatpush1.bf16.msra.mxu0 0
    %4715 = vmatprep.mubr.bf16.mxu0 0
    %4716 = vmatmul.mubr.bf16.gmra.mrb[0].mxu0 %v4681
    %v4717 = vpop.f32.mrb[0].mxu0
    %v4718 = vadd.f32 %v4675, %v4717
    %v4719 = vpop.f32.mrb[0].mxu0
    %v4720 = vpop.f32.mrb[0].mxu0
    %v4721 = vadd.f32 %v4675, %v4720
    %v4722 = vpop.f32.mrb[0].mxu0
    %4723 = vdwg.mxu0
    %v4724 = vmul.f32 %v4718, %v4718
    %v4725 = vmul.f32 %v4721, %v4721
    %v4726 = vsel %vm384, %v4724, 0.0
    %4727 = vadd.xlane.f32.xlu0 %v4726
    %v4728 = vpop.xlane.xlu0 %4727
    %v4729 = vsel %vm384, %v4725, 0.0
    %4730 = vadd.xlane.f32.xlu0 %v4729
    %v4731 = vpop.xlane.xlu0 %4730
    %v4732 = vmul.f32 %v4728, %v388
    %v4733 = vmul.f32 %v4731, %v388
    %v4734 = vadd.f32 %v4732, 1e-06
    %v4735 = vadd.f32 %v4733, 1e-06
    %v4736 = vrsqrt.pop %v4734
    %v4737 = vrsqrt.pop %v4735
    %v4738 = vmul.f32 %v4718, %v4736
    %v4739 = vmul.f32 %v4721, %v4737
    %v4740 = vmul.f32 %v4738, %v904
    %v4741 = vmul.f32 %v4739, %v904
    %v4742 = vmul.f32 %v3276, %v4740
    %v4743 = vmul.f32 %v3277, %v4741
    %v4745 = vsel %vm384, %v4740, 0
    %v4748 = vsel %vm384, %v4741, 0
    %4750 = vmatprep.subr.mxu0 0.0
    %4751 = vmatpush1.msra.mxu0 %v132
    %4752 = vmatprep.subr.mxu0 0.0
    %4753 = vmatpush1.msra.mxu0 %v133
    %4754 = vmatprep.subr.mxu0 0.0
    %4755 = vmatpush1.msra.mxu0 0.0
    %4756 = vmatprep.subr.mxu0 0.0
    %4757 = vmatpush1.msra.mxu0 0.0
    %4758 = vmatprep.subr.mxu0 0.0
    %4759 = vmatpush1.msra.mxu0 0.0
    %4760 = vmatprep.subr.mxu0 0.0
    %4761 = vmatpush1.msra.mxu0 0.0
    %4762 = vmatprep.subr.mxu0 0.0
    %4763 = vmatpush1.msra.mxu0 0.0
    %4764 = vmatprep.subr.mxu0 0.0
    %4765 = vmatpush1.msra.mxu0 0.0
    %4766 = vmatprep.subr.mxu0 0.0
    %4767 = vmatpush1.msra.mxu0 0.0
    %4768 = vmatprep.subr.mxu0 0.0
    %4769 = vmatpush1.msra.mxu0 0.0
    %4770 = vmatprep.subr.mxu0 0.0
    %4771 = vmatpush1.msra.mxu0 0.0
    %4772 = vmatprep.subr.mxu0 0.0
    %4773 = vmatpush1.msra.mxu0 0.0
    %4774 = vmatprep.subr.mxu0 0.0
    %4775 = vmatpush1.msra.mxu0 0.0
    %4776 = vmatprep.subr.mxu0 0.0
    %4777 = vmatpush1.msra.mxu0 0.0
    %4778 = vmatprep.subr.mxu0 0.0
    %4779 = vmatpush1.msra.mxu0 0.0
    %4780 = vmatprep.subr.mxu0 0.0
    %4781 = vmatpush1.msra.mxu0 0.0
    %4782 = vmatprep.subr.mxu0 0.0
    %4783 = vmatpush1.msra.mxu0 0.0
    %4784 = vmatprep.subr.mxu0 0.0
    %4785 = vmatpush1.msra.mxu0 0.0
    %4786 = vmatprep.subr.mxu0 0.0
    %4787 = vmatpush1.msra.mxu0 0.0
    %4788 = vmatprep.subr.mxu0 0.0
    %4789 = vmatpush1.msra.mxu0 0.0
    %4790 = vmatprep.subr.mxu0 0.0
    %4791 = vmatpush1.msra.mxu0 0.0
    %4792 = vmatprep.subr.mxu0 0.0
    %4793 = vmatpush1.msra.mxu0 0.0
    %4794 = vmatprep.subr.mxu0 0.0
    %4795 = vmatpush1.msra.mxu0 0.0
    %4796 = vmatprep.subr.mxu0 0.0
    %4797 = vmatpush1.msra.mxu0 0.0
    %4798 = vmatprep.subr.mxu0 0.0
    %4799 = vmatpush1.msra.mxu0 0.0
    %4800 = vmatprep.subr.mxu0 0.0
    %4801 = vmatpush1.msra.mxu0 0.0
    %4802 = vmatprep.subr.mxu0 0.0
    %4803 = vmatpush1.msra.mxu0 0.0
    %4804 = vmatprep.subr.mxu0 0.0
    %4805 = vmatpush1.msra.mxu0 0.0
    %4806 = vmatprep.subr.mxu0 0.0
    %4807 = vmatpush1.msra.mxu0 0.0
    %4808 = vmatprep.subr.mxu0 0.0
    %4809 = vmatpush1.msra.mxu0 0.0
    %4810 = vmatprep.subr.mxu0 0.0
    %4811 = vmatpush1.msra.mxu0 0.0
    %4812 = vmatprep.subr.mxu0 0.0
    %4813 = vmatpush1.msra.mxu0 0.0
    %4814 = vmatprep.mubr.f32.mxu0 0.0
    %4815 = vmatmul.mubr.f32.gmra.mrb[0].mxu0 %v4745
    %v4816 = vpop.f32.mrb[0].mxu0
    %v4817 = vadd.f32 0.0, %v4816
    %v4818 = vpop.f32.mrb[0].mxu0
    %4819 = vmatprep.mubr.f32.mxu0 0.0
    %4820 = vmatmul.mubr.f32.gmra.mrb[0].mxu0 %v4748
    %v4821 = vpop.f32.mrb[0].mxu0
    %v4822 = vadd.f32 0.0, %v4821
    %v4823 = vpop.f32.mrb[0].mxu0
    %4824 = vdwg.mxu0
    %v4825 = vmul.f32 %v3280, %v4817
    %v4826 = vmul.f32 %v3281, %v4822
    %v4827 = vadd.f32 %v4742, %v4825
    %v4828 = vadd.f32 %v4743, %v4826
    %4831 = vrot.lane.b32.xlu0 %v4724, 96
    %v4832 = vpop.permute.xlu0 %4831
    %4833 = vrot.lane.b32.xlu0 %v4725, 96
    %v4834 = vpop.permute.xlu0 %4833
    %v4837 = vsel %vm384, %v4832, 0.0
    %4838 = vadd.xlane.f32.xlu0 %v4837
    %v4839 = vpop.xlane.xlu0 %4838
    %v4840 = vsel %vm384, %v4834, 0.0
    %4841 = vadd.xlane.f32.xlu0 %v4840
    %v4842 = vpop.xlane.xlu0 %4841
    %v4843 = vmul.f32 %v4839, %v388
    %v4844 = vmul.f32 %v4842, %v388
    %v4845 = vadd.f32 %v4843, 1e-06
    %v4846 = vadd.f32 %v4844, 1e-06
    %v4847 = vrsqrt.pop %v4845
    %v4848 = vrsqrt.pop %v4846
    %v4849 = vmul.f32 %v4718, %v4847
    %v4850 = vmul.f32 %v4721, %v4848
    %v4851 = vmul.f32 %v4849, %v1023
    %v4852 = vmul.f32 %v4850, %v1023
    %4855 = vrot.lane.b32.xlu0 %v4851, 96
    %v4856 = vpop.permute.xlu0 %4855
    %4857 = vrot.lane.b32.xlu0 %v4852, 96
    %v4858 = vpop.permute.xlu0 %4857
    %v4861 = vmul.f32 %v3276, %v4856
    %v4862 = vmul.f32 %v3277, %v4858
    %v4863 = vsel %vm384, %v4856, 0
    %v4865 = vsel %vm384, %v4858, 0
    %4867 = vmatprep.subr.mxu0 0.0
    %4868 = vmatpush1.msra.mxu0 %v132
    %4869 = vmatprep.subr.mxu0 0.0
    %4870 = vmatpush1.msra.mxu0 %v133
    %4871 = vmatprep.subr.mxu0 0.0
    %4872 = vmatpush1.msra.mxu0 0.0
    %4873 = vmatprep.subr.mxu0 0.0
    %4874 = vmatpush1.msra.mxu0 0.0
    %4875 = vmatprep.subr.mxu0 0.0
    %4876 = vmatpush1.msra.mxu0 0.0
    %4877 = vmatprep.subr.mxu0 0.0
    %4878 = vmatpush1.msra.mxu0 0.0
    %4879 = vmatprep.subr.mxu0 0.0
    %4880 = vmatpush1.msra.mxu0 0.0
    %4881 = vmatprep.subr.mxu0 0.0
    %4882 = vmatpush1.msra.mxu0 0.0
    %4883 = vmatprep.subr.mxu0 0.0
    %4884 = vmatpush1.msra.mxu0 0.0
    %4885 = vmatprep.subr.mxu0 0.0
    %4886 = vmatpush1.msra.mxu0 0.0
    %4887 = vmatprep.subr.mxu0 0.0
    %4888 = vmatpush1.msra.mxu0 0.0
    %4889 = vmatprep.subr.mxu0 0.0
    %4890 = vmatpush1.msra.mxu0 0.0
    %4891 = vmatprep.subr.mxu0 0.0
    %4892 = vmatpush1.msra.mxu0 0.0
    %4893 = vmatprep.subr.mxu0 0.0
    %4894 = vmatpush1.msra.mxu0 0.0
    %4895 = vmatprep.subr.mxu0 0.0
    %4896 = vmatpush1.msra.mxu0 0.0
    %4897 = vmatprep.subr.mxu0 0.0
    %4898 = vmatpush1.msra.mxu0 0.0
    %4899 = vmatprep.subr.mxu0 0.0
    %4900 = vmatpush1.msra.mxu0 0.0
    %4901 = vmatprep.subr.mxu0 0.0
    %4902 = vmatpush1.msra.mxu0 0.0
    %4903 = vmatprep.subr.mxu0 0.0
    %4904 = vmatpush1.msra.mxu0 0.0
    %4905 = vmatprep.subr.mxu0 0.0
    %4906 = vmatpush1.msra.mxu0 0.0
    %4907 = vmatprep.subr.mxu0 0.0
    %4908 = vmatpush1.msra.mxu0 0.0
    %4909 = vmatprep.subr.mxu0 0.0
    %4910 = vmatpush1.msra.mxu0 0.0
    %4911 = vmatprep.subr.mxu0 0.0
    %4912 = vmatpush1.msra.mxu0 0.0
    %4913 = vmatprep.subr.mxu0 0.0
    %4914 = vmatpush1.msra.mxu0 0.0
    %4915 = vmatprep.subr.mxu0 0.0
    %4916 = vmatpush1.msra.mxu0 0.0
    %4917 = vmatprep.subr.mxu0 0.0
    %4918 = vmatpush1.msra.mxu0 0.0
    %4919 = vmatprep.subr.mxu0 0.0
    %4920 = vmatpush1.msra.mxu0 0.0
    %4921 = vmatprep.subr.mxu0 0.0
    %4922 = vmatpush1.msra.mxu0 0.0
    %4923 = vmatprep.subr.mxu0 0.0
    %4924 = vmatpush1.msra.mxu0 0.0
    %4925 = vmatprep.subr.mxu0 0.0
    %4926 = vmatpush1.msra.mxu0 0.0
    %4927 = vmatprep.subr.mxu0 0.0
    %4928 = vmatpush1.msra.mxu0 0.0
    %4929 = vmatprep.subr.mxu0 0.0
    %4930 = vmatpush1.msra.mxu0 0.0
    %4931 = vmatprep.mubr.f32.mxu0 0.0
    %4932 = vmatmul.mubr.f32.gmra.mrb[0].mxu0 %v4863
    %v4933 = vpop.f32.mrb[0].mxu0
    %v4934 = vadd.f32 0.0, %v4933
    %v4935 = vpop.f32.mrb[0].mxu0
    %4936 = vmatprep.mubr.f32.mxu0 0.0
    %4937 = vmatmul.mubr.f32.gmra.mrb[0].mxu0 %v4865
    %v4938 = vpop.f32.mrb[0].mxu0
    %v4939 = vadd.f32 0.0, %v4938
    %v4940 = vpop.f32.mrb[0].mxu0
    %4941 = vdwg.mxu0
    %v4942 = vmul.f32 %v3280, %v4934
    %v4943 = vmul.f32 %v3281, %v4939
    %v4944 = vadd.f32 %v4861, %v4942
    %v4945 = vadd.f32 %v4862, %v4943
    %4946 = vst.msk [vmem:[#allocation2 + $0x8] sm:$0xff] %vm384, %v4944
    %4947 = vst.msk [vmem:[#allocation2 + $0x10] sm:$0xff] %vm384, %v4945
    %4950 = vrot.lane.b32.xlu0 %v4718, 64
    %v4951 = vpop.permute.xlu0 %4950
    %4952 = vrot.lane.b32.xlu0 %v4721, 64
    %v4953 = vpop.permute.xlu0 %4952
    %4956 = vst.msk [vmem:[#allocation3 + $0x8] sm:$0xff] %vm384, %v4951
    %4957 = vst.msk [vmem:[#allocation3 + $0x10] sm:$0xff] %vm384, %v4953
    %v4958 = vld [vmem:[#allocation2] sm:$0xff]
    %v4959 = vld [vmem:[#allocation2 + $0x8] sm:$0xff]
    %v4960 = vld [vmem:[#allocation2 + $0x10] sm:$0xff]
    %v4961 = vld [vmem:[#allocation3] sm:$0xff]
    %v4962 = vld [vmem:[#allocation3 + $0x8] sm:$0xff]
    %v4963 = vld [vmem:[#allocation3 + $0x10] sm:$0xff]
    %v4964 = vpack.c.bf16 %v4828, %v4827
    %v4965 = vpack.c.bf16 %v4959, %v4958
    %v4966 = vpack.c.bf16 %v4960, %v4960
    %v4968 = vsel %vm384, %v4964, 0
    %v4971 = vsel %vm384, %v4965, 0
    %v4974 = vsel %vm384, %v4966, 0
    %4976 = vmatprep.subr.bf16.mxu0 0
    %4977 = vmatpush1.bf16.xpose.msra.mxu0 %v4971
    %4978 = vmatprep.subr.bf16.mxu0 0
    %4979 = vmatpush1.bf16.xpose.msra.mxu0 %v4974
    %4980 = vmatprep.subr.bf16.mxu0 0
    %4981 = vmatpush1.bf16.xpose.msra.mxu0 0
    %4982 = vmatprep.subr.bf16.mxu0 0
    %4983 = vmatpush1.bf16.xpose.msra.mxu0 0
    %4984 = vmatprep.subr.bf16.mxu0 0
    %4985 = vmatpush1.bf16.xpose.msra.mxu0 0
    %4986 = vmatprep.subr.bf16.mxu0 0
    %4987 = vmatpush1.bf16.xpose.msra.mxu0 0
    %4988 = vmatprep.subr.bf16.mxu0 0
    %4989 = vmatpush1.bf16.xpose.msra.mxu0 0
    %4990 = vmatprep.subr.bf16.mxu0 0
    %4991 = vmatpush1.bf16.xpose.msra.mxu0 0
    %4992 = vmatprep.subr.bf16.mxu0 0
    %4993 = vmatpush1.bf16.xpose.msra.mxu0 0
    %4994 = vmatprep.subr.bf16.mxu0 0
    %4995 = vmatpush1.bf16.xpose.msra.mxu0 0
    %4996 = vmatprep.subr.bf16.mxu0 0
    %4997 = vmatpush1.bf16.xpose.msra.mxu0 0
    %4998 = vmatprep.subr.bf16.mxu0 0
    %4999 = vmatpush1.bf16.xpose.msra.mxu0 0
    %5000 = vmatprep.subr.bf16.mxu0 0
    %5001 = vmatpush1.bf16.xpose.msra.mxu0 0
    %5002 = vmatprep.subr.bf16.mxu0 0
    %5003 = vmatpush1.bf16.xpose.msra.mxu0 0
    %5004 = vmatprep.subr.bf16.mxu0 0
    %5005 = vmatpush1.bf16.xpose.msra.mxu0 0
    %5006 = vmatprep.subr.bf16.mxu0 0
    %5007 = vmatpush1.bf16.xpose.msra.mxu0 0
    %5008 = vmatprep.mubr.bf16.mxu0 0
    %5009 = vmatmul.mubr.bf16.gmra.mrb[0].mxu0 %v4968
    %v5010 = vpop.f32.mrb[0].mxu0
    %v5011 = vadd.f32 0.0, %v5010
    %v5012 = vpop.f32.mrb[0].mxu0
    %v5013 = vpop.f32.mrb[0].mxu0
    %v5014 = vadd.f32 0.0, %v5013
    %v5015 = vpop.f32.mrb[0].mxu0
    %5016 = vdwg.mxu0
    %v5017 = vmul.f32 %v5011, 0.25
    %v5018 = vmul.f32 %v5014, 0.25
    %v5019 = vsel %vm1193, %v5017, -inf
    %5020 = vmax.xlane.f32.xlu0 %v5019
    %v5021 = vpop.xlane.xlu0 %5020
    %v5022 = vsel %vm1193, %v5018, -inf
    %5023 = vmax.xlane.f32.xlu0 %v5022
    %v5024 = vpop.xlane.xlu0 %5023
    %v5025 = vsub.f32 %v5017, %v5021
    %v5026 = vsub.f32 %v5018, %v5024
    %v5027 = vmul.f32 %v5025, 1.442695
    %v5028 = vpow.pop %v5027
    %v5029 = vmul.f32 %v5026, 1.442695
    %v5030 = vpow.pop %v5029
    %v5031 = vsel %vm1193, %v5028, 0.0
    %5032 = vadd.xlane.f32.xlu0 %v5031
    %v5033 = vpop.xlane.xlu0 %5032
    %v5034 = vsel %vm1193, %v5030, 0.0
    %5035 = vadd.xlane.f32.xlu0 %v5034
    %v5036 = vpop.xlane.xlu0 %5035
    %v5037 = vrcp.pop %v5033
    %v5038 = vrcp.pop %v5036
    %v5039 = vmul.f32 %v5028, %v5037
    %v5040 = vmul.f32 %v5030, %v5038
    %v5041 = vpack.c.bf16 %v5040, %v5039
    %v5042 = vpack.c.bf16 %v4962, %v4961
    %v5043 = vpack.c.bf16 %v4963, %v4963
    %v5045 = vsel %vm1193, %v5041, 0
    %v5048 = vsel %vm1222, %v5043, 0
    %5050 = vmatprep.subr.bf16.mxu0 0
    %5051 = vmatpush1.bf16.msra.mxu0 %v5042
    %5052 = vmatprep.subr.bf16.mxu0 0
    %5053 = vmatpush1.bf16.msra.mxu0 %v5048
    %5054 = vmatprep.subr.bf16.mxu0 0
    %5055 = vmatpush1.bf16.msra.mxu0 0
    %5056 = vmatprep.subr.bf16.mxu0 0
    %5057 = vmatpush1.bf16.msra.mxu0 0
    %5058 = vmatprep.subr.bf16.mxu0 0
    %5059 = vmatpush1.bf16.msra.mxu0 0
    %5060 = vmatprep.subr.bf16.mxu0 0
    %5061 = vmatpush1.bf16.msra.mxu0 0
    %5062 = vmatprep.subr.bf16.mxu0 0
    %5063 = vmatpush1.bf16.msra.mxu0 0
    %5064 = vmatprep.subr.bf16.mxu0 0
    %5065 = vmatpush1.bf16.msra.mxu0 0
    %5066 = vmatprep.subr.bf16.mxu0 0
    %5067 = vmatpush1.bf16.msra.mxu0 0
    %5068 = vmatprep.subr.bf16.mxu0 0
    %5069 = vmatpush1.bf16.msra.mxu0 0
    %5070 = vmatprep.subr.bf16.mxu0 0
    %5071 = vmatpush1.bf16.msra.mxu0 0
    %5072 = vmatprep.subr.bf16.mxu0 0
    %5073 = vmatpush1.bf16.msra.mxu0 0
    %5074 = vmatprep.subr.bf16.mxu0 0
    %5075 = vmatpush1.bf16.msra.mxu0 0
    %5076 = vmatprep.subr.bf16.mxu0 0
    %5077 = vmatpush1.bf16.msra.mxu0 0
    %5078 = vmatprep.subr.bf16.mxu0 0
    %5079 = vmatpush1.bf16.msra.mxu0 0
    %5080 = vmatprep.subr.bf16.mxu0 0
    %5081 = vmatpush1.bf16.msra.mxu0 0
    %5082 = vmatprep.mubr.bf16.mxu0 0
    %5083 = vmatmul.mubr.bf16.gmra.mrb[0].mxu0 %v5045
    %v5084 = vpop.f32.mrb[0].mxu0
    %v5085 = vadd.f32 0.0, %v5084
    %v5086 = vpop.f32.mrb[0].mxu0
    %v5087 = vpop.f32.mrb[0].mxu0
    %v5088 = vadd.f32 0.0, %v5087
    %v5089 = vpop.f32.mrb[0].mxu0
    %5090 = vdwg.mxu0
    %5091 = vst.msk [vmem:[#allocation4] sm:$0xff] %vm384, %v5085
    %5092 = vst.msk [vmem:[#allocation4 + $0x8] sm:$0xff] %vm384, %v5088
    %v5093 = vpack.c.bf16 %v3457, %v3457
    %v5095 = vsel %vm384, %v5093, 0
    %5097 = vmatprep.subr.bf16.mxu0 0
    %5098 = vmatpush1.bf16.xpose.msra.mxu0 %v4971
    %5099 = vmatprep.subr.bf16.mxu0 0
    %5100 = vmatpush1.bf16.xpose.msra.mxu0 %v4974
    %5101 = vmatprep.subr.bf16.mxu0 0
    %5102 = vmatpush1.bf16.xpose.msra.mxu0 0
    %5103 = vmatprep.subr.bf16.mxu0 0
    %5104 = vmatpush1.bf16.xpose.msra.mxu0 0
    %5105 = vmatprep.subr.bf16.mxu0 0
    %5106 = vmatpush1.bf16.xpose.msra.mxu0 0
    %5107 = vmatprep.subr.bf16.mxu0 0
    %5108 = vmatpush1.bf16.xpose.msra.mxu0 0
    %5109 = vmatprep.subr.bf16.mxu0 0
    %5110 = vmatpush1.bf16.xpose.msra.mxu0 0
    %5111 = vmatprep.subr.bf16.mxu0 0
    %5112 = vmatpush1.bf16.xpose.msra.mxu0 0
    %5113 = vmatprep.subr.bf16.mxu0 0
    %5114 = vmatpush1.bf16.xpose.msra.mxu0 0
    %5115 = vmatprep.subr.bf16.mxu0 0
    %5116 = vmatpush1.bf16.xpose.msra.mxu0 0
    %5117 = vmatprep.subr.bf16.mxu0 0
    %5118 = vmatpush1.bf16.xpose.msra.mxu0 0
    %5119 = vmatprep.subr.bf16.mxu0 0
    %5120 = vmatpush1.bf16.xpose.msra.mxu0 0
    %5121 = vmatprep.subr.bf16.mxu0 0
    %5122 = vmatpush1.bf16.xpose.msra.mxu0 0
    %5123 = vmatprep.subr.bf16.mxu0 0
    %5124 = vmatpush1.bf16.xpose.msra.mxu0 0
    %5125 = vmatprep.subr.bf16.mxu0 0
    %5126 = vmatpush1.bf16.xpose.msra.mxu0 0
    %5127 = vmatprep.subr.bf16.mxu0 0
    %5128 = vmatpush1.bf16.xpose.msra.mxu0 0
    %5129 = vmatprep.mubr.bf16.mxu0 0
    %5130 = vmatmul.mubr.bf16.gmra.mrb[0].mxu0 %v5095
    %v5131 = vpop.f32.mrb[0].mxu0
    %v5132 = vadd.f32 0.0, %v5131
    %v5133 = vpop.f32.mrb[0].mxu0
    %v5134 = vpop.f32.mrb[0].mxu0
    %v5135 = vpop.f32.mrb[0].mxu0
    %5136 = vdwg.mxu0
    %v5137 = vmul.f32 %v5132, 0.25
    %v5138 = vsel %vm1193, %v5137, -inf
    %5139 = vmax.xlane.f32.xlu0 %v5138
    %v5140 = vpop.xlane.xlu0 %5139
    %v5141 = vsub.f32 %v5137, %v5140
    %v5142 = vmul.f32 %v5141, 1.442695
    %v5143 = vpow.pop %v5142
    %v5144 = vsel %vm1193, %v5143, 0.0
    %5145 = vadd.xlane.f32.xlu0 %v5144
    %v5146 = vpop.xlane.xlu0 %5145
    %v5147 = vrcp.pop %v5146
    %v5148 = vmul.f32 %v5143, %v5147
    %v5149 = vpack.c.bf16 %v5148, %v5148
    %v5151 = vsel %vm1193, %v5149, 0
    %5153 = vmatprep.subr.bf16.mxu0 0
    %5154 = vmatpush1.bf16.msra.mxu0 %v5042
    %5155 = vmatprep.subr.bf16.mxu0 0
    %5156 = vmatpush1.bf16.msra.mxu0 %v5048
    %5157 = vmatprep.subr.bf16.mxu0 0
    %5158 = vmatpush1.bf16.msra.mxu0 0
    %5159 = vmatprep.subr.bf16.mxu0 0
    %5160 = vmatpush1.bf16.msra.mxu0 0
    %5161 = vmatprep.subr.bf16.mxu0 0
    %5162 = vmatpush1.bf16.msra.mxu0 0
    %5163 = vmatprep.subr.bf16.mxu0 0
    %5164 = vmatpush1.bf16.msra.mxu0 0
    %5165 = vmatprep.subr.bf16.mxu0 0
    %5166 = vmatpush1.bf16.msra.mxu0 0
    %5167 = vmatprep.subr.bf16.mxu0 0
    %5168 = vmatpush1.bf16.msra.mxu0 0
    %5169 = vmatprep.subr.bf16.mxu0 0
    %5170 = vmatpush1.bf16.msra.mxu0 0
    %5171 = vmatprep.subr.bf16.mxu0 0
    %5172 = vmatpush1.bf16.msra.mxu0 0
    %5173 = vmatprep.subr.bf16.mxu0 0
    %5174 = vmatpush1.bf16.msra.mxu0 0
    %5175 = vmatprep.subr.bf16.mxu0 0
    %5176 = vmatpush1.bf16.msra.mxu0 0
    %5177 = vmatprep.subr.bf16.mxu0 0
    %5178 = vmatpush1.bf16.msra.mxu0 0
    %5179 = vmatprep.subr.bf16.mxu0 0
    %5180 = vmatpush1.bf16.msra.mxu0 0
    %5181 = vmatprep.subr.bf16.mxu0 0
    %5182 = vmatpush1.bf16.msra.mxu0 0
    %5183 = vmatprep.subr.bf16.mxu0 0
    %5184 = vmatpush1.bf16.msra.mxu0 0
    %5185 = vmatprep.mubr.bf16.mxu0 0
    %5186 = vmatmul.mubr.bf16.gmra.mrb[0].mxu0 %v5151
    %v5187 = vpop.f32.mrb[0].mxu0
    %v5188 = vadd.f32 0.0, %v5187
    %v5189 = vpop.f32.mrb[0].mxu0
    %v5190 = vpop.f32.mrb[0].mxu0
    %v5191 = vpop.f32.mrb[0].mxu0
    %5192 = vdwg.mxu0
    %5193 = vst.msk [vmem:[#allocation5] sm:$0xff] %vm384, %v5188
    %5194 = vrot.lane.b32.xlu0 %v4724, 112
    %v5195 = vpop.permute.xlu0 %5194
    %5196 = vrot.lane.b32.xlu0 %v4725, 112
    %v5197 = vpop.permute.xlu0 %5196
    %v5200 = vsel %vm384, %v5195, 0.0
    %5201 = vadd.xlane.f32.xlu0 %v5200
    %v5202 = vpop.xlane.xlu0 %5201
    %v5203 = vsel %vm384, %v5197, 0.0
    %5204 = vadd.xlane.f32.xlu0 %v5203
    %v5205 = vpop.xlane.xlu0 %5204
    %v5206 = vmul.f32 %v5202, %v388
    %v5207 = vmul.f32 %v5205, %v388
    %v5208 = vadd.f32 %v5206, 1e-06
    %v5209 = vadd.f32 %v5207, 1e-06
    %v5210 = vrsqrt.pop %v5208
    %v5211 = vrsqrt.pop %v5209
    %v5212 = vmul.f32 %v4718, %v5210
    %v5213 = vmul.f32 %v4721, %v5211
    %v5214 = vmul.f32 %v5212, %v1290
    %v5215 = vmul.f32 %v5213, %v1290
    %5218 = vrot.lane.b32.xlu0 %v5214, 112
    %v5219 = vpop.permute.xlu0 %5218
    %5220 = vrot.lane.b32.xlu0 %v5215, 112
    %v5221 = vpop.permute.xlu0 %5220
    %v5224 = vmul.f32 %v3276, %v5219
    %v5225 = vmul.f32 %v3277, %v5221
    %v5226 = vsel %vm384, %v5219, 0
    %v5228 = vsel %vm384, %v5221, 0
    %5230 = vmatprep.subr.mxu0 0.0
    %5231 = vmatpush1.msra.mxu0 %v132
    %5232 = vmatprep.subr.mxu0 0.0
    %5233 = vmatpush1.msra.mxu0 %v133
    %5234 = vmatprep.subr.mxu0 0.0
    %5235 = vmatpush1.msra.mxu0 0.0
    %5236 = vmatprep.subr.mxu0 0.0
    %5237 = vmatpush1.msra.mxu0 0.0
    %5238 = vmatprep.subr.mxu0 0.0
    %5239 = vmatpush1.msra.mxu0 0.0
    %5240 = vmatprep.subr.mxu0 0.0
    %5241 = vmatpush1.msra.mxu0 0.0
    %5242 = vmatprep.subr.mxu0 0.0
    %5243 = vmatpush1.msra.mxu0 0.0
    %5244 = vmatprep.subr.mxu0 0.0
    %5245 = vmatpush1.msra.mxu0 0.0
    %5246 = vmatprep.subr.mxu0 0.0
    %5247 = vmatpush1.msra.mxu0 0.0
    %5248 = vmatprep.subr.mxu0 0.0
    %5249 = vmatpush1.msra.mxu0 0.0
    %5250 = vmatprep.subr.mxu0 0.0
    %5251 = vmatpush1.msra.mxu0 0.0
    %5252 = vmatprep.subr.mxu0 0.0
    %5253 = vmatpush1.msra.mxu0 0.0
    %5254 = vmatprep.subr.mxu0 0.0
    %5255 = vmatpush1.msra.mxu0 0.0
    %5256 = vmatprep.subr.mxu0 0.0
    %5257 = vmatpush1.msra.mxu0 0.0
    %5258 = vmatprep.subr.mxu0 0.0
    %5259 = vmatpush1.msra.mxu0 0.0
    %5260 = vmatprep.subr.mxu0 0.0
    %5261 = vmatpush1.msra.mxu0 0.0
    %5262 = vmatprep.subr.mxu0 0.0
    %5263 = vmatpush1.msra.mxu0 0.0
    %5264 = vmatprep.subr.mxu0 0.0
    %5265 = vmatpush1.msra.mxu0 0.0
    %5266 = vmatprep.subr.mxu0 0.0
    %5267 = vmatpush1.msra.mxu0 0.0
    %5268 = vmatprep.subr.mxu0 0.0
    %5269 = vmatpush1.msra.mxu0 0.0
    %5270 = vmatprep.subr.mxu0 0.0
    %5271 = vmatpush1.msra.mxu0 0.0
    %5272 = vmatprep.subr.mxu0 0.0
    %5273 = vmatpush1.msra.mxu0 0.0
    %5274 = vmatprep.subr.mxu0 0.0
    %5275 = vmatpush1.msra.mxu0 0.0
    %5276 = vmatprep.subr.mxu0 0.0
    %5277 = vmatpush1.msra.mxu0 0.0
    %5278 = vmatprep.subr.mxu0 0.0
    %5279 = vmatpush1.msra.mxu0 0.0
    %5280 = vmatprep.subr.mxu0 0.0
    %5281 = vmatpush1.msra.mxu0 0.0
    %5282 = vmatprep.subr.mxu0 0.0
    %5283 = vmatpush1.msra.mxu0 0.0
    %5284 = vmatprep.subr.mxu0 0.0
    %5285 = vmatpush1.msra.mxu0 0.0
    %5286 = vmatprep.subr.mxu0 0.0
    %5287 = vmatpush1.msra.mxu0 0.0
    %5288 = vmatprep.subr.mxu0 0.0
    %5289 = vmatpush1.msra.mxu0 0.0
    %5290 = vmatprep.subr.mxu0 0.0
    %5291 = vmatpush1.msra.mxu0 0.0
    %5292 = vmatprep.subr.mxu0 0.0
    %5293 = vmatpush1.msra.mxu0 0.0
    %5294 = vmatprep.mubr.f32.mxu0 0.0
    %5295 = vmatmul.mubr.f32.gmra.mrb[0].mxu0 %v5226
    %v5296 = vpop.f32.mrb[0].mxu0
    %v5297 = vadd.f32 0.0, %v5296
    %v5298 = vpop.f32.mrb[0].mxu0
    %5299 = vmatprep.mubr.f32.mxu0 0.0
    %5300 = vmatmul.mubr.f32.gmra.mrb[0].mxu0 %v5228
    %v5301 = vpop.f32.mrb[0].mxu0
    %v5302 = vadd.f32 0.0, %v5301
    %v5303 = vpop.f32.mrb[0].mxu0
    %5304 = vdwg.mxu0
    %v5305 = vmul.f32 %v3280, %v5297
    %v5306 = vmul.f32 %v3281, %v5302
    %v5307 = vadd.f32 %v5224, %v5305
    %v5308 = vadd.f32 %v5225, %v5306
    %5309 = vrot.lane.b32.xlu0 %v4724, 80
    %v5310 = vpop.permute.xlu0 %5309
    %5311 = vrot.lane.b32.xlu0 %v4725, 80
    %v5312 = vpop.permute.xlu0 %5311
    %v5315 = vsel %vm384, %v5310, 0.0
    %5316 = vadd.xlane.f32.xlu0 %v5315
    %v5317 = vpop.xlane.xlu0 %5316
    %v5318 = vsel %vm384, %v5312, 0.0
    %5319 = vadd.xlane.f32.xlu0 %v5318
    %v5320 = vpop.xlane.xlu0 %5319
    %v5321 = vmul.f32 %v5317, %v388
    %v5322 = vmul.f32 %v5320, %v388
    %v5323 = vadd.f32 %v5321, 1e-06
    %v5324 = vadd.f32 %v5322, 1e-06
    %v5325 = vrsqrt.pop %v5323
    %v5326 = vrsqrt.pop %v5324
    %v5327 = vmul.f32 %v4718, %v5325
    %v5328 = vmul.f32 %v4721, %v5326
    %v5329 = vmul.f32 %v5327, %v1408
    %v5330 = vmul.f32 %v5328, %v1408
    %5333 = vrot.lane.b32.xlu0 %v5329, 80
    %v5334 = vpop.permute.xlu0 %5333
    %5335 = vrot.lane.b32.xlu0 %v5330, 80
    %v5336 = vpop.permute.xlu0 %5335
    %v5339 = vmul.f32 %v3276, %v5334
    %v5340 = vmul.f32 %v3277, %v5336
    %v5341 = vsel %vm384, %v5334, 0
    %v5343 = vsel %vm384, %v5336, 0
    %5345 = vmatprep.subr.mxu0 0.0
    %5346 = vmatpush1.msra.mxu0 %v132
    %5347 = vmatprep.subr.mxu0 0.0
    %5348 = vmatpush1.msra.mxu0 %v133
    %5349 = vmatprep.subr.mxu0 0.0
    %5350 = vmatpush1.msra.mxu0 0.0
    %5351 = vmatprep.subr.mxu0 0.0
    %5352 = vmatpush1.msra.mxu0 0.0
    %5353 = vmatprep.subr.mxu0 0.0
    %5354 = vmatpush1.msra.mxu0 0.0
    %5355 = vmatprep.subr.mxu0 0.0
    %5356 = vmatpush1.msra.mxu0 0.0
    %5357 = vmatprep.subr.mxu0 0.0
    %5358 = vmatpush1.msra.mxu0 0.0
    %5359 = vmatprep.subr.mxu0 0.0
    %5360 = vmatpush1.msra.mxu0 0.0
    %5361 = vmatprep.subr.mxu0 0.0
    %5362 = vmatpush1.msra.mxu0 0.0
    %5363 = vmatprep.subr.mxu0 0.0
    %5364 = vmatpush1.msra.mxu0 0.0
    %5365 = vmatprep.subr.mxu0 0.0
    %5366 = vmatpush1.msra.mxu0 0.0
    %5367 = vmatprep.subr.mxu0 0.0
    %5368 = vmatpush1.msra.mxu0 0.0
    %5369 = vmatprep.subr.mxu0 0.0
    %5370 = vmatpush1.msra.mxu0 0.0
    %5371 = vmatprep.subr.mxu0 0.0
    %5372 = vmatpush1.msra.mxu0 0.0
    %5373 = vmatprep.subr.mxu0 0.0
    %5374 = vmatpush1.msra.mxu0 0.0
    %5375 = vmatprep.subr.mxu0 0.0
    %5376 = vmatpush1.msra.mxu0 0.0
    %5377 = vmatprep.subr.mxu0 0.0
    %5378 = vmatpush1.msra.mxu0 0.0
    %5379 = vmatprep.subr.mxu0 0.0
    %5380 = vmatpush1.msra.mxu0 0.0
    %5381 = vmatprep.subr.mxu0 0.0
    %5382 = vmatpush1.msra.mxu0 0.0
    %5383 = vmatprep.subr.mxu0 0.0
    %5384 = vmatpush1.msra.mxu0 0.0
    %5385 = vmatprep.subr.mxu0 0.0
    %5386 = vmatpush1.msra.mxu0 0.0
    %5387 = vmatprep.subr.mxu0 0.0
    %5388 = vmatpush1.msra.mxu0 0.0
    %5389 = vmatprep.subr.mxu0 0.0
    %5390 = vmatpush1.msra.mxu0 0.0
    %5391 = vmatprep.subr.mxu0 0.0
    %5392 = vmatpush1.msra.mxu0 0.0
    %5393 = vmatprep.subr.mxu0 0.0
    %5394 = vmatpush1.msra.mxu0 0.0
    %5395 = vmatprep.subr.mxu0 0.0
    %5396 = vmatpush1.msra.mxu0 0.0
    %5397 = vmatprep.subr.mxu0 0.0
    %5398 = vmatpush1.msra.mxu0 0.0
    %5399 = vmatprep.subr.mxu0 0.0
    %5400 = vmatpush1.msra.mxu0 0.0
    %5401 = vmatprep.subr.mxu0 0.0
    %5402 = vmatpush1.msra.mxu0 0.0
    %5403 = vmatprep.subr.mxu0 0.0
    %5404 = vmatpush1.msra.mxu0 0.0
    %5405 = vmatprep.subr.mxu0 0.0
    %5406 = vmatpush1.msra.mxu0 0.0
    %5407 = vmatprep.subr.mxu0 0.0
    %5408 = vmatpush1.msra.mxu0 0.0
    %5409 = vmatprep.mubr.f32.mxu0 0.0
    %5410 = vmatmul.mubr.f32.gmra.mrb[0].mxu0 %v5341
    %v5411 = vpop.f32.mrb[0].mxu0
    %v5412 = vadd.f32 0.0, %v5411
    %v5413 = vpop.f32.mrb[0].mxu0
    %5414 = vmatprep.mubr.f32.mxu0 0.0
    %5415 = vmatmul.mubr.f32.gmra.mrb[0].mxu0 %v5343
    %v5416 = vpop.f32.mrb[0].mxu0
    %v5417 = vadd.f32 0.0, %v5416
    %v5418 = vpop.f32.mrb[0].mxu0
    %5419 = vdwg.mxu0
    %v5420 = vmul.f32 %v3280, %v5412
    %v5421 = vmul.f32 %v3281, %v5417
    %v5422 = vadd.f32 %v5339, %v5420
    %v5423 = vadd.f32 %v5340, %v5421
    %5424 = vst.msk [vmem:[#allocation2 + $0x20] sm:$0xff] %vm384, %v5422
    %5425 = vst.msk [vmem:[#allocation2 + $0x28] sm:$0xff] %vm384, %v5423
    %5426 = vrot.lane.b32.xlu0 %v4718, 48
    %v5427 = vpop.permute.xlu0 %5426
    %5428 = vrot.lane.b32.xlu0 %v4721, 48
    %v5429 = vpop.permute.xlu0 %5428
    %5432 = vst.msk [vmem:[#allocation3 + $0x20] sm:$0xff] %vm384, %v5427
    %5433 = vst.msk [vmem:[#allocation3 + $0x28] sm:$0xff] %vm384, %v5429
    %v5434 = vld [vmem:[#allocation2 + $0x18] sm:$0xff]
    %v5435 = vld [vmem:[#allocation2 + $0x20] sm:$0xff]
    %v5436 = vld [vmem:[#allocation2 + $0x28] sm:$0xff]
    %v5437 = vld [vmem:[#allocation3 + $0x18] sm:$0xff]
    %v5438 = vld [vmem:[#allocation3 + $0x20] sm:$0xff]
    %v5439 = vld [vmem:[#allocation3 + $0x28] sm:$0xff]
    %v5440 = vpack.c.bf16 %v5308, %v5307
    %v5441 = vpack.c.bf16 %v5435, %v5434
    %v5442 = vpack.c.bf16 %v5436, %v5436
    %v5444 = vsel %vm384, %v5440, 0
    %v5447 = vsel %vm384, %v5441, 0
    %v5450 = vsel %vm384, %v5442, 0
    %5452 = vmatprep.subr.bf16.mxu0 0
    %5453 = vmatpush1.bf16.xpose.msra.mxu0 %v5447
    %5454 = vmatprep.subr.bf16.mxu0 0
    %5455 = vmatpush1.bf16.xpose.msra.mxu0 %v5450
    %5456 = vmatprep.subr.bf16.mxu0 0
    %5457 = vmatpush1.bf16.xpose.msra.mxu0 0
    %5458 = vmatprep.subr.bf16.mxu0 0
    %5459 = vmatpush1.bf16.xpose.msra.mxu0 0
    %5460 = vmatprep.subr.bf16.mxu0 0
    %5461 = vmatpush1.bf16.xpose.msra.mxu0 0
    %5462 = vmatprep.subr.bf16.mxu0 0
    %5463 = vmatpush1.bf16.xpose.msra.mxu0 0
    %5464 = vmatprep.subr.bf16.mxu0 0
    %5465 = vmatpush1.bf16.xpose.msra.mxu0 0
    %5466 = vmatprep.subr.bf16.mxu0 0
    %5467 = vmatpush1.bf16.xpose.msra.mxu0 0
    %5468 = vmatprep.subr.bf16.mxu0 0
    %5469 = vmatpush1.bf16.xpose.msra.mxu0 0
    %5470 = vmatprep.subr.bf16.mxu0 0
    %5471 = vmatpush1.bf16.xpose.msra.mxu0 0
    %5472 = vmatprep.subr.bf16.mxu0 0
    %5473 = vmatpush1.bf16.xpose.msra.mxu0 0
    %5474 = vmatprep.subr.bf16.mxu0 0
    %5475 = vmatpush1.bf16.xpose.msra.mxu0 0
    %5476 = vmatprep.subr.bf16.mxu0 0
    %5477 = vmatpush1.bf16.xpose.msra.mxu0 0
    %5478 = vmatprep.subr.bf16.mxu0 0
    %5479 = vmatpush1.bf16.xpose.msra.mxu0 0
    %5480 = vmatprep.subr.bf16.mxu0 0
    %5481 = vmatpush1.bf16.xpose.msra.mxu0 0
    %5482 = vmatprep.subr.bf16.mxu0 0
    %5483 = vmatpush1.bf16.xpose.msra.mxu0 0
    %5484 = vmatprep.mubr.bf16.mxu0 0
    %5485 = vmatmul.mubr.bf16.gmra.mrb[0].mxu0 %v5444
    %v5486 = vpop.f32.mrb[0].mxu0
    %v5487 = vadd.f32 0.0, %v5486
    %v5488 = vpop.f32.mrb[0].mxu0
    %v5489 = vpop.f32.mrb[0].mxu0
    %v5490 = vadd.f32 0.0, %v5489
    %v5491 = vpop.f32.mrb[0].mxu0
    %5492 = vdwg.mxu0
    %v5493 = vmul.f32 %v5487, 0.25
    %v5494 = vmul.f32 %v5490, 0.25
    %v5495 = vsel %vm1193, %v5493, -inf
    %5496 = vmax.xlane.f32.xlu0 %v5495
    %v5497 = vpop.xlane.xlu0 %5496
    %v5498 = vsel %vm1193, %v5494, -inf
    %5499 = vmax.xlane.f32.xlu0 %v5498
    %v5500 = vpop.xlane.xlu0 %5499
    %v5501 = vsub.f32 %v5493, %v5497
    %v5502 = vsub.f32 %v5494, %v5500
    %v5503 = vmul.f32 %v5501, 1.442695
    %v5504 = vpow.pop %v5503
    %v5505 = vmul.f32 %v5502, 1.442695
    %v5506 = vpow.pop %v5505
    %v5507 = vsel %vm1193, %v5504, 0.0
    %5508 = vadd.xlane.f32.xlu0 %v5507
    %v5509 = vpop.xlane.xlu0 %5508
    %v5510 = vsel %vm1193, %v5506, 0.0
    %5511 = vadd.xlane.f32.xlu0 %v5510
    %v5512 = vpop.xlane.xlu0 %5511
    %v5513 = vrcp.pop %v5509
    %v5514 = vrcp.pop %v5512
    %v5515 = vmul.f32 %v5504, %v5513
    %v5516 = vmul.f32 %v5506, %v5514
    %v5517 = vpack.c.bf16 %v5516, %v5515
    %v5518 = vpack.c.bf16 %v5438, %v5437
    %v5519 = vpack.c.bf16 %v5439, %v5439
    %v5521 = vsel %vm1193, %v5517, 0
    %v5524 = vsel %vm1222, %v5519, 0
    %5526 = vmatprep.subr.bf16.mxu0 0
    %5527 = vmatpush1.bf16.msra.mxu0 %v5518
    %5528 = vmatprep.subr.bf16.mxu0 0
    %5529 = vmatpush1.bf16.msra.mxu0 %v5524
    %5530 = vmatprep.subr.bf16.mxu0 0
    %5531 = vmatpush1.bf16.msra.mxu0 0
    %5532 = vmatprep.subr.bf16.mxu0 0
    %5533 = vmatpush1.bf16.msra.mxu0 0
    %5534 = vmatprep.subr.bf16.mxu0 0
    %5535 = vmatpush1.bf16.msra.mxu0 0
    %5536 = vmatprep.subr.bf16.mxu0 0
    %5537 = vmatpush1.bf16.msra.mxu0 0
    %5538 = vmatprep.subr.bf16.mxu0 0
    %5539 = vmatpush1.bf16.msra.mxu0 0
    %5540 = vmatprep.subr.bf16.mxu0 0
    %5541 = vmatpush1.bf16.msra.mxu0 0
    %5542 = vmatprep.subr.bf16.mxu0 0
    %5543 = vmatpush1.bf16.msra.mxu0 0
    %5544 = vmatprep.subr.bf16.mxu0 0
    %5545 = vmatpush1.bf16.msra.mxu0 0
    %5546 = vmatprep.subr.bf16.mxu0 0
    %5547 = vmatpush1.bf16.msra.mxu0 0
    %5548 = vmatprep.subr.bf16.mxu0 0
    %5549 = vmatpush1.bf16.msra.mxu0 0
    %5550 = vmatprep.subr.bf16.mxu0 0
    %5551 = vmatpush1.bf16.msra.mxu0 0
    %5552 = vmatprep.subr.bf16.mxu0 0
    %5553 = vmatpush1.bf16.msra.mxu0 0
    %5554 = vmatprep.subr.bf16.mxu0 0
    %5555 = vmatpush1.bf16.msra.mxu0 0
    %5556 = vmatprep.subr.bf16.mxu0 0
    %5557 = vmatpush1.bf16.msra.mxu0 0
    %5558 = vmatprep.mubr.bf16.mxu0 0
    %5559 = vmatmul.mubr.bf16.gmra.mrb[0].mxu0 %v5521
    %v5560 = vpop.f32.mrb[0].mxu0
    %v5561 = vadd.f32 0.0, %v5560
    %v5562 = vpop.f32.mrb[0].mxu0
    %v5563 = vpop.f32.mrb[0].mxu0
    %v5564 = vadd.f32 0.0, %v5563
    %v5565 = vpop.f32.mrb[0].mxu0
    %5566 = vdwg.mxu0
    %5569 = vrot.lane.b32.xlu0 %v5561, 16
    %v5570 = vpop.permute.xlu0 %5569
    %5571 = vrot.lane.b32.xlu0 %v5564, 16
    %v5572 = vpop.permute.xlu0 %5571
    %5575 = vst.msk [vmem:[#allocation4] sm:$0xff] %vm1656, %v5570
    %5576 = vst.msk [vmem:[#allocation4 + $0x8] sm:$0xff] %vm1656, %v5572
    %v5577 = vpack.c.bf16 %v3644, %v3644
    %v5579 = vsel %vm384, %v5577, 0
    %5581 = vmatprep.subr.bf16.mxu0 0
    %5582 = vmatpush1.bf16.xpose.msra.mxu0 %v5447
    %5583 = vmatprep.subr.bf16.mxu0 0
    %5584 = vmatpush1.bf16.xpose.msra.mxu0 %v5450
    %5585 = vmatprep.subr.bf16.mxu0 0
    %5586 = vmatpush1.bf16.xpose.msra.mxu0 0
    %5587 = vmatprep.subr.bf16.mxu0 0
    %5588 = vmatpush1.bf16.xpose.msra.mxu0 0
    %5589 = vmatprep.subr.bf16.mxu0 0
    %5590 = vmatpush1.bf16.xpose.msra.mxu0 0
    %5591 = vmatprep.subr.bf16.mxu0 0
    %5592 = vmatpush1.bf16.xpose.msra.mxu0 0
    %5593 = vmatprep.subr.bf16.mxu0 0
    %5594 = vmatpush1.bf16.xpose.msra.mxu0 0
    %5595 = vmatprep.subr.bf16.mxu0 0
    %5596 = vmatpush1.bf16.xpose.msra.mxu0 0
    %5597 = vmatprep.subr.bf16.mxu0 0
    %5598 = vmatpush1.bf16.xpose.msra.mxu0 0
    %5599 = vmatprep.subr.bf16.mxu0 0
    %5600 = vmatpush1.bf16.xpose.msra.mxu0 0
    %5601 = vmatprep.subr.bf16.mxu0 0
    %5602 = vmatpush1.bf16.xpose.msra.mxu0 0
    %5603 = vmatprep.subr.bf16.mxu0 0
    %5604 = vmatpush1.bf16.xpose.msra.mxu0 0
    %5605 = vmatprep.subr.bf16.mxu0 0
    %5606 = vmatpush1.bf16.xpose.msra.mxu0 0
    %5607 = vmatprep.subr.bf16.mxu0 0
    %5608 = vmatpush1.bf16.xpose.msra.mxu0 0
    %5609 = vmatprep.subr.bf16.mxu0 0
    %5610 = vmatpush1.bf16.xpose.msra.mxu0 0
    %5611 = vmatprep.subr.bf16.mxu0 0
    %5612 = vmatpush1.bf16.xpose.msra.mxu0 0
    %5613 = vmatprep.mubr.bf16.mxu0 0
    %5614 = vmatmul.mubr.bf16.gmra.mrb[0].mxu0 %v5579
    %v5615 = vpop.f32.mrb[0].mxu0
    %v5616 = vadd.f32 0.0, %v5615
    %v5617 = vpop.f32.mrb[0].mxu0
    %v5618 = vpop.f32.mrb[0].mxu0
    %v5619 = vpop.f32.mrb[0].mxu0
    %5620 = vdwg.mxu0
    %v5621 = vmul.f32 %v5616, 0.25
    %v5622 = vsel %vm1193, %v5621, -inf
    %5623 = vmax.xlane.f32.xlu0 %v5622
    %v5624 = vpop.xlane.xlu0 %5623
    %v5625 = vsub.f32 %v5621, %v5624
    %v5626 = vmul.f32 %v5625, 1.442695
    %v5627 = vpow.pop %v5626
    %v5628 = vsel %vm1193, %v5627, 0.0
    %5629 = vadd.xlane.f32.xlu0 %v5628
    %v5630 = vpop.xlane.xlu0 %5629
    %v5631 = vrcp.pop %v5630
    %v5632 = vmul.f32 %v5627, %v5631
    %v5633 = vpack.c.bf16 %v5632, %v5632
    %v5635 = vsel %vm1193, %v5633, 0
    %5637 = vmatprep.subr.bf16.mxu0 0
    %5638 = vmatpush1.bf16.msra.mxu0 %v5518
    %5639 = vmatprep.subr.bf16.mxu0 0
    %5640 = vmatpush1.bf16.msra.mxu0 %v5524
    %5641 = vmatprep.subr.bf16.mxu0 0
    %5642 = vmatpush1.bf16.msra.mxu0 0
    %5643 = vmatprep.subr.bf16.mxu0 0
    %5644 = vmatpush1.bf16.msra.mxu0 0
    %5645 = vmatprep.subr.bf16.mxu0 0
    %5646 = vmatpush1.bf16.msra.mxu0 0
    %5647 = vmatprep.subr.bf16.mxu0 0
    %5648 = vmatpush1.bf16.msra.mxu0 0
    %5649 = vmatprep.subr.bf16.mxu0 0
    %5650 = vmatpush1.bf16.msra.mxu0 0
    %5651 = vmatprep.subr.bf16.mxu0 0
    %5652 = vmatpush1.bf16.msra.mxu0 0
    %5653 = vmatprep.subr.bf16.mxu0 0
    %5654 = vmatpush1.bf16.msra.mxu0 0
    %5655 = vmatprep.subr.bf16.mxu0 0
    %5656 = vmatpush1.bf16.msra.mxu0 0
    %5657 = vmatprep.subr.bf16.mxu0 0
    %5658 = vmatpush1.bf16.msra.mxu0 0
    %5659 = vmatprep.subr.bf16.mxu0 0
    %5660 = vmatpush1.bf16.msra.mxu0 0
    %5661 = vmatprep.subr.bf16.mxu0 0
    %5662 = vmatpush1.bf16.msra.mxu0 0
    %5663 = vmatprep.subr.bf16.mxu0 0
    %5664 = vmatpush1.bf16.msra.mxu0 0
    %5665 = vmatprep.subr.bf16.mxu0 0
    %5666 = vmatpush1.bf16.msra.mxu0 0
    %5667 = vmatprep.subr.bf16.mxu0 0
    %5668 = vmatpush1.bf16.msra.mxu0 0
    %5669 = vmatprep.mubr.bf16.mxu0 0
    %5670 = vmatmul.mubr.bf16.gmra.mrb[0].mxu0 %v5635
    %v5671 = vpop.f32.mrb[0].mxu0
    %v5672 = vadd.f32 0.0, %v5671
    %v5673 = vpop.f32.mrb[0].mxu0
    %v5674 = vpop.f32.mrb[0].mxu0
    %v5675 = vpop.f32.mrb[0].mxu0
    %5676 = vdwg.mxu0
    %5678 = vrot.lane.b32.xlu0 %v5672, 16
    %v5679 = vpop.permute.xlu0 %5678
    %5681 = vst.msk [vmem:[#allocation5] sm:$0xff] %vm1656, %v5679
    %v5682 = vld [vmem:[#allocation4] sm:$0xff]
    %v5683 = vld [vmem:[#allocation4 + $0x8] sm:$0xff]
    %v5684 = vld [vmem:[#allocation5] sm:$0xff]
    %v5685 = vld [vmem:[%s37] sm:$0xff]
    %v5686 = vld [vmem:[%s37 + $0x8] sm:$0xff]
    %v5687 = vld [vmem:[%s37 + $0x10] sm:$0xff]
    %v5688 = vld [vmem:[%s37 + $0x18] sm:$0xff]
    %v5689 = vpack.c.bf16 %v5683, %v5682
    %v5690 = vpack.c.bf16 %v5686, %v5685
    %v5691 = vpack.c.bf16 %v5688, %v5687
    %v5692 = vld [vmem:[%s39] sm:$0x1]
    %v5694 = vlaneseq
    %v5695 = vshrl.u32 %v5694, 7
    %v5696 = vsub.s32 0, %v5695
    %v5697 = vrot.slane %v5692, %v5696
    %v5700 = vsel %vm167, %v5689, 0
    %5702 = vmatprep.subr.bf16.mxu0 0
    %5703 = vmatpush1.bf16.msra.mxu0 %v5690
    %5704 = vmatprep.subr.bf16.mxu0 0
    %5705 = vmatpush1.bf16.msra.mxu0 %v5691
    %5706 = vmatprep.subr.bf16.mxu0 0
    %5707 = vmatpush1.bf16.msra.mxu0 0
    %5708 = vmatprep.subr.bf16.mxu0 0
    %5709 = vmatpush1.bf16.msra.mxu0 0
    %5710 = vmatprep.subr.bf16.mxu0 0
    %5711 = vmatpush1.bf16.msra.mxu0 0
    %5712 = vmatprep.subr.bf16.mxu0 0
    %5713 = vmatpush1.bf16.msra.mxu0 0
    %5714 = vmatprep.subr.bf16.mxu0 0
    %5715 = vmatpush1.bf16.msra.mxu0 0
    %5716 = vmatprep.subr.bf16.mxu0 0
    %5717 = vmatpush1.bf16.msra.mxu0 0
    %5718 = vmatprep.subr.bf16.mxu0 0
    %5719 = vmatpush1.bf16.msra.mxu0 0
    %5720 = vmatprep.subr.bf16.mxu0 0
    %5721 = vmatpush1.bf16.msra.mxu0 0
    %5722 = vmatprep.subr.bf16.mxu0 0
    %5723 = vmatpush1.bf16.msra.mxu0 0
    %5724 = vmatprep.subr.bf16.mxu0 0
    %5725 = vmatpush1.bf16.msra.mxu0 0
    %5726 = vmatprep.subr.bf16.mxu0 0
    %5727 = vmatpush1.bf16.msra.mxu0 0
    %5728 = vmatprep.subr.bf16.mxu0 0
    %5729 = vmatpush1.bf16.msra.mxu0 0
    %5730 = vmatprep.subr.bf16.mxu0 0
    %5731 = vmatpush1.bf16.msra.mxu0 0
    %5732 = vmatprep.subr.bf16.mxu0 0
    %5733 = vmatpush1.bf16.msra.mxu0 0
    %5734 = vmatprep.mubr.bf16.mxu0 0
    %5735 = vmatmul.mubr.bf16.gmra.mrb[0].mxu0 %v5700
    %v5736 = vpop.f32.mrb[0].mxu0
    %v5737 = vadd.f32 %v5697, %v5736
    %v5738 = vpop.f32.mrb[0].mxu0
    %v5739 = vpop.f32.mrb[0].mxu0
    %v5740 = vadd.f32 %v5697, %v5739
    %v5741 = vpop.f32.mrb[0].mxu0
    %5742 = vdwg.mxu0
    %5745 = vrot.lane.b32.xlu0 %v5737, 64
    %v5746 = vpop.permute.xlu0 %5745
    %5747 = vrot.lane.b32.xlu0 %v5740, 64
    %v5748 = vpop.permute.xlu0 %5747
    %v5751 = vmul.f32 %v3783, %v5746
    %v5752 = vmul.f32 %v3783, %v5748
    %5755 = vrot.lane.b32.xlu0 %v5751, 64
    %v5756 = vpop.permute.xlu0 %5755
    %5757 = vrot.lane.b32.xlu0 %v5752, 64
    %v5758 = vpop.permute.xlu0 %5757
    %v5761 = vadd.f32 %v4623, %v5756
    %v5762 = vadd.f32 %v4624, %v5758
    %v5763 = vsel %vm167, %v5761, 0.0
    %5764 = vadd.xlane.f32.xlu0 %v5763
    %v5765 = vpop.xlane.xlu0 %5764
    %v5766 = vsel %vm167, %v5762, 0.0
    %5767 = vadd.xlane.f32.xlu0 %v5766
    %v5768 = vpop.xlane.xlu0 %5767
    %v5769 = vmul.f32 %v5765, %v293
    %v5770 = vmul.f32 %v5768, %v293
    %v5771 = vsub.f32 %v5761, %v5769
    %v5772 = vsub.f32 %v5762, %v5770
    %v5773 = vmul.f32 %v5771, %v5771
    %v5774 = vmul.f32 %v5772, %v5772
    %v5775 = vsel %vm167, %v5773, 0.0
    %5776 = vadd.xlane.f32.xlu0 %v5775
    %v5777 = vpop.xlane.xlu0 %5776
    %v5778 = vsel %vm167, %v5774, 0.0
    %5779 = vadd.xlane.f32.xlu0 %v5778
    %v5780 = vpop.xlane.xlu0 %5779
    %v5781 = vmul.f32 %v5777, %v293
    %v5782 = vmul.f32 %v5780, %v293
    %v5783 = vadd.f32 %v5781, 1e-06
    %v5784 = vadd.f32 %v5782, 1e-06
    %v5785 = vrsqrt.pop %v5783
    %v5786 = vrsqrt.pop %v5784
    %v5787 = vmul.f32 %v5771, %v5785
    %v5788 = vmul.f32 %v5772, %v5786
    %v5789 = vlaneseq
    %v5790 = vshrl.u32 %v5789, 7
    %v5791 = vsub.s32 1, %v5790
    %v5792 = vrot.slane %v2845, %v5791
    %v5793 = vmul.f32 %v5792, %v5787
    %v5794 = vmul.f32 %v5792, %v5788
    %v5795 = vadd.f32 %v5793, %v3786
    %v5796 = vadd.f32 %v5794, %v3786
    %v5797 = vld [vmem:[%s45] sm:$0xff]
    %v5798 = vld [vmem:[%s45 + $0x8] sm:$0xff]
    %v5799 = vld [vmem:[%s45 + $0x10] sm:$0xff]
    %v5800 = vld [vmem:[%s45 + $0x18] sm:$0xff]
    %v5801 = vpack.c.bf16 %v5796, %v5795
    %v5802 = vpack.c.bf16 %v5798, %v5797
    %v5803 = vpack.c.bf16 %v5800, %v5799
    %v5804 = vld [vmem:[%s47] sm:$0x1]
    %v5806 = vlaneseq
    %v5807 = vshrl.u32 %v5806, 7
    %v5808 = vsub.s32 0, %v5807
    %v5809 = vrot.slane %v5804, %v5808
    %v5812 = vsel %vm167, %v5801, 0
    %5814 = vmatprep.subr.bf16.mxu0 0
    %5815 = vmatpush1.bf16.msra.mxu0 %v5802
    %5816 = vmatprep.subr.bf16.mxu0 0
    %5817 = vmatpush1.bf16.msra.mxu0 %v5803
    %5818 = vmatprep.subr.bf16.mxu0 0
    %5819 = vmatpush1.bf16.msra.mxu0 0
    %5820 = vmatprep.subr.bf16.mxu0 0
    %5821 = vmatpush1.bf16.msra.mxu0 0
    %5822 = vmatprep.subr.bf16.mxu0 0
    %5823 = vmatpush1.bf16.msra.mxu0 0
    %5824 = vmatprep.subr.bf16.mxu0 0
    %5825 = vmatpush1.bf16.msra.mxu0 0
    %5826 = vmatprep.subr.bf16.mxu0 0
    %5827 = vmatpush1.bf16.msra.mxu0 0
    %5828 = vmatprep.subr.bf16.mxu0 0
    %5829 = vmatpush1.bf16.msra.mxu0 0
    %5830 = vmatprep.subr.bf16.mxu0 0
    %5831 = vmatpush1.bf16.msra.mxu0 0
    %5832 = vmatprep.subr.bf16.mxu0 0
    %5833 = vmatpush1.bf16.msra.mxu0 0
    %5834 = vmatprep.subr.bf16.mxu0 0
    %5835 = vmatpush1.bf16.msra.mxu0 0
    %5836 = vmatprep.subr.bf16.mxu0 0
    %5837 = vmatpush1.bf16.msra.mxu0 0
    %5838 = vmatprep.subr.bf16.mxu0 0
    %5839 = vmatpush1.bf16.msra.mxu0 0
    %5840 = vmatprep.subr.bf16.mxu0 0
    %5841 = vmatpush1.bf16.msra.mxu0 0
    %5842 = vmatprep.subr.bf16.mxu0 0
    %5843 = vmatpush1.bf16.msra.mxu0 0
    %5844 = vmatprep.subr.bf16.mxu0 0
    %5845 = vmatpush1.bf16.msra.mxu0 0
    %5846 = vmatprep.mubr.bf16.mxu0 0
    %5847 = vmatmul.mubr.bf16.gmra.mrb[0].mxu0 %v5812
    %v5848 = vpop.f32.mrb[0].mxu0
    %v5849 = vadd.f32 %v5809, %v5848
    %v5850 = vpop.f32.mrb[0].mxu0
    %v5851 = vpop.f32.mrb[0].mxu0
    %v5852 = vadd.f32 %v5809, %v5851
    %v5853 = vpop.f32.mrb[0].mxu0
    %5854 = vdwg.mxu0
    %v5855 = vmul.f32 %v5849, %v5849
    %v5856 = vmul.f32 %v5852, %v5852
    %v5857 = vmul.f32 %v5849, %v5855
    %v5858 = vmul.f32 %v5852, %v5856
    %v5859 = vmul.f32 %v5857, 0.044715
    %v5860 = vmul.f32 %v5858, 0.044715
    %v5861 = vadd.f32 %v5849, %v5859
    %v5862 = vadd.f32 %v5852, %v5860
    %v5863 = vmul.f32 %v5861, 0.7978846
    %v5864 = vmul.f32 %v5862, 0.7978846
    %v5865 = vtanh.pop %v5863
    %v5866 = vtanh.pop %v5864
    %v5867 = vadd.f32 %v5865, 1.0
    %v5868 = vadd.f32 %v5866, 1.0
    %v5869 = vmul.f32 %v5867, 0.5
    %v5870 = vmul.f32 %v5868, 0.5
    %v5871 = vmul.f32 %v5849, %v5869
    %v5872 = vmul.f32 %v5852, %v5870
    %v5873 = vld [vmem:[%s49] sm:$0xff]
    %v5874 = vld [vmem:[%s49 + $0x8] sm:$0xff]
    %v5875 = vld [vmem:[%s49 + $0x10] sm:$0xff]
    %v5876 = vld [vmem:[%s49 + $0x18] sm:$0xff]
    %v5877 = vld [vmem:[%s49 + $0x20] sm:$0xff]
    %v5878 = vld [vmem:[%s49 + $0x28] sm:$0xff]
    %v5879 = vld [vmem:[%s49 + $0x30] sm:$0xff]
    %v5880 = vld [vmem:[%s49 + $0x38] sm:$0xff]
    %v5881 = vld [vmem:[%s49 + $0x40] sm:$0xff]
    %v5882 = vld [vmem:[%s49 + $0x48] sm:$0xff]
    %v5883 = vld [vmem:[%s49 + $0x50] sm:$0xff]
    %v5884 = vld [vmem:[%s49 + $0x58] sm:$0xff]
    %v5885 = vld [vmem:[%s49 + $0x60] sm:$0xff]
    %v5886 = vld [vmem:[%s49 + $0x68] sm:$0xff]
    %v5887 = vld [vmem:[%s49 + $0x70] sm:$0xff]
    %v5888 = vld [vmem:[%s49 + $0x78] sm:$0xff]
    %v5889 = vpack.c.bf16 %v5872, %v5871
    %v5890 = vpack.c.bf16 %v5874, %v5873
    %v5891 = vpack.c.bf16 %v5876, %v5875
    %v5892 = vpack.c.bf16 %v5878, %v5877
    %v5893 = vpack.c.bf16 %v5880, %v5879
    %v5894 = vpack.c.bf16 %v5882, %v5881
    %v5895 = vpack.c.bf16 %v5884, %v5883
    %v5896 = vpack.c.bf16 %v5886, %v5885
    %v5897 = vpack.c.bf16 %v5888, %v5887
    %v5898 = vld [vmem:[%s51] sm:$0x1]
    %v5900 = vlaneseq
    %v5901 = vshrl.u32 %v5900, 7
    %v5902 = vsub.s32 0, %v5901
    %v5903 = vrot.slane %v5898, %v5902
    %5905 = vmatprep.subr.bf16.mxu0 0
    %5906 = vmatpush1.bf16.msra.mxu0 %v5890
    %5907 = vmatprep.subr.bf16.mxu0 0
    %5908 = vmatpush1.bf16.msra.mxu0 %v5891
    %5909 = vmatprep.subr.bf16.mxu0 0
    %5910 = vmatpush1.bf16.msra.mxu0 %v5892
    %5911 = vmatprep.subr.bf16.mxu0 0
    %5912 = vmatpush1.bf16.msra.mxu0 %v5893
    %5913 = vmatprep.subr.bf16.mxu0 0
    %5914 = vmatpush1.bf16.msra.mxu0 %v5894
    %5915 = vmatprep.subr.bf16.mxu0 0
    %5916 = vmatpush1.bf16.msra.mxu0 %v5895
    %5917 = vmatprep.subr.bf16.mxu0 0
    %5918 = vmatpush1.bf16.msra.mxu0 %v5896
    %5919 = vmatprep.subr.bf16.mxu0 0
    %5920 = vmatpush1.bf16.msra.mxu0 %v5897
    %5921 = vmatprep.subr.bf16.mxu0 0
    %5922 = vmatpush1.bf16.msra.mxu0 0
    %5923 = vmatprep.subr.bf16.mxu0 0
    %5924 = vmatpush1.bf16.msra.mxu0 0
    %5925 = vmatprep.subr.bf16.mxu0 0
    %5926 = vmatpush1.bf16.msra.mxu0 0
    %5927 = vmatprep.subr.bf16.mxu0 0
    %5928 = vmatpush1.bf16.msra.mxu0 0
    %5929 = vmatprep.subr.bf16.mxu0 0
    %5930 = vmatpush1.bf16.msra.mxu0 0
    %5931 = vmatprep.subr.bf16.mxu0 0
    %5932 = vmatpush1.bf16.msra.mxu0 0
    %5933 = vmatprep.subr.bf16.mxu0 0
    %5934 = vmatpush1.bf16.msra.mxu0 0
    %5935 = vmatprep.subr.bf16.mxu0 0
    %5936 = vmatpush1.bf16.msra.mxu0 0
    %5937 = vmatprep.mubr.bf16.mxu0 0
    %5938 = vmatmul.mubr.bf16.gmra.mrb[0].mxu0 %v5889
    %v5939 = vpop.f32.mrb[0].mxu0
    %v5940 = vadd.f32 %v5903, %v5939
    %v5941 = vpop.f32.mrb[0].mxu0
    %v5942 = vpop.f32.mrb[0].mxu0
    %v5943 = vadd.f32 %v5903, %v5942
    %v5944 = vpop.f32.mrb[0].mxu0
    %5945 = vdwg.mxu0
    %v5946 = vlaneseq
    %v5947 = vshrl.u32 %v5946, 7
    %v5948 = vsub.s32 1, %v5947
    %v5949 = vrot.slane %v208, %v5948
    %5952 = vrot.lane.b32.xlu0 %v5940, 32
    %v5953 = vpop.permute.xlu0 %5952
    %5954 = vrot.lane.b32.xlu0 %v5943, 32
    %v5955 = vpop.permute.xlu0 %5954
    %v5958 = vmul.f32 %v5949, %v5953
    %v5959 = vmul.f32 %v5949, %v5955
    %5962 = vrot.lane.b32.xlu0 %v5958, 96
    %v5963 = vpop.permute.xlu0 %5962
    %5964 = vrot.lane.b32.xlu0 %v5959, 96
    %v5965 = vpop.permute.xlu0 %5964
    %v5968 = vadd.f32 %v5761, %v5963
    %v5969 = vadd.f32 %v5762, %v5965
    %s5970 = scalar_lea.vmem [#allocation6], 16
    %5971 = vst.msk [vmem:[%s5970] sm:$0xff] %vm167, %v5968
    %5972 = vst.msk [vmem:[%s5970 + $0x8] sm:$0xff] %vm167, %v5969
    %v5973 = vld [vmem:[%s41] sm:$0xff]
    %v5974 = vld [vmem:[%s41 + $0x8] sm:$0xff]
    %v5975 = vld [vmem:[%s41 + $0x10] sm:$0xff]
    %v5976 = vld [vmem:[%s41 + $0x18] sm:$0xff]
    %v5977 = vpack.c.bf16 %v5684, %v5684
    %v5978 = vpack.c.bf16 %v5974, %v5973
    %v5979 = vpack.c.bf16 %v5976, %v5975
    %v5980 = vld [vmem:[%s43] sm:$0x1]
    %v5982 = vlaneseq
    %v5983 = vshrl.u32 %v5982, 7
    %v5984 = vsub.s32 0, %v5983
    %v5985 = vrot.slane %v5980, %v5984
    %v5988 = vsel %vm167, %v5977, 0
    %5990 = vmatprep.subr.bf16.mxu0 0
    %5991 = vmatpush1.bf16.msra.mxu0 %v5978
    %5992 = vmatprep.subr.bf16.mxu0 0
    %5993 = vmatpush1.bf16.msra.mxu0 %v5979
    %5994 = vmatprep.subr.bf16.mxu0 0
    %5995 = vmatpush1.bf16.msra.mxu0 0
    %5996 = vmatprep.subr.bf16.mxu0 0
    %5997 = vmatpush1.bf16.msra.mxu0 0
    %5998 = vmatprep.subr.bf16.mxu0 0
    %5999 = vmatpush1.bf16.msra.mxu0 0
    %6000 = vmatprep.subr.bf16.mxu0 0
    %6001 = vmatpush1.bf16.msra.mxu0 0
    %6002 = vmatprep.subr.bf16.mxu0 0
    %6003 = vmatpush1.bf16.msra.mxu0 0
    %6004 = vmatprep.subr.bf16.mxu0 0
    %6005 = vmatpush1.bf16.msra.mxu0 0
    %6006 = vmatprep.subr.bf16.mxu0 0
    %6007 = vmatpush1.bf16.msra.mxu0 0
    %6008 = vmatprep.subr.bf16.mxu0 0
    %6009 = vmatpush1.bf16.msra.mxu0 0
    %6010 = vmatprep.subr.bf16.mxu0 0
    %6011 = vmatpush1.bf16.msra.mxu0 0
    %6012 = vmatprep.subr.bf16.mxu0 0
    %6013 = vmatpush1.bf16.msra.mxu0 0
    %6014 = vmatprep.subr.bf16.mxu0 0
    %6015 = vmatpush1.bf16.msra.mxu0 0
    %6016 = vmatprep.subr.bf16.mxu0 0
    %6017 = vmatpush1.bf16.msra.mxu0 0
    %6018 = vmatprep.subr.bf16.mxu0 0
    %6019 = vmatpush1.bf16.msra.mxu0 0
    %6020 = vmatprep.subr.bf16.mxu0 0
    %6021 = vmatpush1.bf16.msra.mxu0 0
    %6022 = vmatprep.mubr.bf16.mxu0 0
    %6023 = vmatmul.mubr.bf16.gmra.mrb[0].mxu0 %v5988
    %v6024 = vpop.f32.mrb[0].mxu0
    %v6025 = vadd.f32 %v5985, %v6024
    %v6026 = vpop.f32.mrb[0].mxu0
    %v6027 = vpop.f32.mrb[0].mxu0
    %v6028 = vpop.f32.mrb[0].mxu0
    %6029 = vdwg.mxu0
    %6031 = vrot.lane.b32.xlu0 %v6025, 64
    %v6032 = vpop.permute.xlu0 %6031
    %v6034 = vmul.f32 %v3307, %v6032
    %6036 = vrot.lane.b32.xlu0 %v6034, 64
    %v6037 = vpop.permute.xlu0 %6036
    %v6039 = vadd.f32 %v3273, %v6037
    %v6040 = vsel %vm167, %v6039, 0.0
    %6041 = vadd.xlane.f32.xlu0 %v6040
    %v6042 = vpop.xlane.xlu0 %6041
    %v6043 = vmul.f32 %v6042, %v293
    %v6044 = vsub.f32 %v6039, %v6043
    %v6045 = vmul.f32 %v6044, %v6044
    %v6046 = vsel %vm167, %v6045, 0.0
    %6047 = vadd.xlane.f32.xlu0 %v6046
    %v6048 = vpop.xlane.xlu0 %6047
    %v6049 = vmul.f32 %v6048, %v293
    %v6050 = vadd.f32 %v6049, 1e-06
    %v6051 = vrsqrt.pop %v6050
    %v6052 = vmul.f32 %v6044, %v6051
    %v6053 = vlaneseq
    %v6054 = vshrl.u32 %v6053, 7
    %v6055 = vsub.s32 1, %v6054
    %v6056 = vrot.slane %v3109, %v6055
    %v6057 = vmul.f32 %v6056, %v6052
    %v6058 = vadd.f32 %v6057, %v3310
    %v6059 = vld [vmem:[%s53] sm:$0xff]
    %v6060 = vld [vmem:[%s53 + $0x8] sm:$0xff]
    %v6061 = vld [vmem:[%s53 + $0x10] sm:$0xff]
    %v6062 = vld [vmem:[%s53 + $0x18] sm:$0xff]
    %v6063 = vpack.c.bf16 %v6058, %v6058
    %v6064 = vpack.c.bf16 %v6060, %v6059
    %v6065 = vpack.c.bf16 %v6062, %v6061
    %v6066 = vld [vmem:[%s55] sm:$0x1]
    %v6068 = vlaneseq
    %v6069 = vshrl.u32 %v6068, 7
    %v6070 = vsub.s32 0, %v6069
    %v6071 = vrot.slane %v6066, %v6070
    %v6074 = vsel %vm167, %v6063, 0
    %6076 = vmatprep.subr.bf16.mxu0 0
    %6077 = vmatpush1.bf16.msra.mxu0 %v6064
    %6078 = vmatprep.subr.bf16.mxu0 0
    %6079 = vmatpush1.bf16.msra.mxu0 %v6065
    %6080 = vmatprep.subr.bf16.mxu0 0
    %6081 = vmatpush1.bf16.msra.mxu0 0
    %6082 = vmatprep.subr.bf16.mxu0 0
    %6083 = vmatpush1.bf16.msra.mxu0 0
    %6084 = vmatprep.subr.bf16.mxu0 0
    %6085 = vmatpush1.bf16.msra.mxu0 0
    %6086 = vmatprep.subr.bf16.mxu0 0
    %6087 = vmatpush1.bf16.msra.mxu0 0
    %6088 = vmatprep.subr.bf16.mxu0 0
    %6089 = vmatpush1.bf16.msra.mxu0 0
    %6090 = vmatprep.subr.bf16.mxu0 0
    %6091 = vmatpush1.bf16.msra.mxu0 0
    %6092 = vmatprep.subr.bf16.mxu0 0
    %6093 = vmatpush1.bf16.msra.mxu0 0
    %6094 = vmatprep.subr.bf16.mxu0 0
    %6095 = vmatpush1.bf16.msra.mxu0 0
    %6096 = vmatprep.subr.bf16.mxu0 0
    %6097 = vmatpush1.bf16.msra.mxu0 0
    %6098 = vmatprep.subr.bf16.mxu0 0
    %6099 = vmatpush1.bf16.msra.mxu0 0
    %6100 = vmatprep.subr.bf16.mxu0 0
    %6101 = vmatpush1.bf16.msra.mxu0 0
    %6102 = vmatprep.subr.bf16.mxu0 0
    %6103 = vmatpush1.bf16.msra.mxu0 0
    %6104 = vmatprep.subr.bf16.mxu0 0
    %6105 = vmatpush1.bf16.msra.mxu0 0
    %6106 = vmatprep.subr.bf16.mxu0 0
    %6107 = vmatpush1.bf16.msra.mxu0 0
    %6108 = vmatprep.mubr.bf16.mxu0 0
    %6109 = vmatmul.mubr.bf16.gmra.mrb[0].mxu0 %v6074
    %v6110 = vpop.f32.mrb[0].mxu0
    %v6111 = vadd.f32 %v6071, %v6110
    %v6112 = vpop.f32.mrb[0].mxu0
    %v6113 = vpop.f32.mrb[0].mxu0
    %v6114 = vpop.f32.mrb[0].mxu0
    %6115 = vdwg.mxu0
    %v6116 = vmul.f32 %v6111, %v6111
    %v6117 = vmul.f32 %v6111, %v6116
    %v6118 = vmul.f32 %v6117, 0.044715
    %v6119 = vadd.f32 %v6111, %v6118
    %v6120 = vmul.f32 %v6119, 0.7978846
    %v6121 = vtanh.pop %v6120
    %v6122 = vadd.f32 %v6121, 1.0
    %v6123 = vmul.f32 %v6122, 0.5
    %v6124 = vmul.f32 %v6111, %v6123
    %v6125 = vld [vmem:[%s57] sm:$0xff]
    %v6126 = vld [vmem:[%s57 + $0x8] sm:$0xff]
    %v6127 = vld [vmem:[%s57 + $0x10] sm:$0xff]
    %v6128 = vld [vmem:[%s57 + $0x18] sm:$0xff]
    %v6129 = vld [vmem:[%s57 + $0x20] sm:$0xff]
    %v6130 = vld [vmem:[%s57 + $0x28] sm:$0xff]
    %v6131 = vld [vmem:[%s57 + $0x30] sm:$0xff]
    %v6132 = vld [vmem:[%s57 + $0x38] sm:$0xff]
    %v6133 = vld [vmem:[%s57 + $0x40] sm:$0xff]
    %v6134 = vld [vmem:[%s57 + $0x48] sm:$0xff]
    %v6135 = vld [vmem:[%s57 + $0x50] sm:$0xff]
    %v6136 = vld [vmem:[%s57 + $0x58] sm:$0xff]
    %v6137 = vld [vmem:[%s57 + $0x60] sm:$0xff]
    %v6138 = vld [vmem:[%s57 + $0x68] sm:$0xff]
    %v6139 = vld [vmem:[%s57 + $0x70] sm:$0xff]
    %v6140 = vld [vmem:[%s57 + $0x78] sm:$0xff]
    %v6141 = vpack.c.bf16 %v6124, %v6124
    %v6142 = vpack.c.bf16 %v6126, %v6125
    %v6143 = vpack.c.bf16 %v6128, %v6127
    %v6144 = vpack.c.bf16 %v6130, %v6129
    %v6145 = vpack.c.bf16 %v6132, %v6131
    %v6146 = vpack.c.bf16 %v6134, %v6133
    %v6147 = vpack.c.bf16 %v6136, %v6135
    %v6148 = vpack.c.bf16 %v6138, %v6137
    %v6149 = vpack.c.bf16 %v6140, %v6139
    %v6150 = vld [vmem:[%s59] sm:$0x1]
    %v6152 = vlaneseq
    %v6153 = vshrl.u32 %v6152, 7
    %v6154 = vsub.s32 0, %v6153
    %v6155 = vrot.slane %v6150, %v6154
    %6157 = vmatprep.subr.bf16.mxu0 0
    %6158 = vmatpush1.bf16.msra.mxu0 %v6142
    %6159 = vmatprep.subr.bf16.mxu0 0
    %6160 = vmatpush1.bf16.msra.mxu0 %v6143
    %6161 = vmatprep.subr.bf16.mxu0 0
    %6162 = vmatpush1.bf16.msra.mxu0 %v6144
    %6163 = vmatprep.subr.bf16.mxu0 0
    %6164 = vmatpush1.bf16.msra.mxu0 %v6145
    %6165 = vmatprep.subr.bf16.mxu0 0
    %6166 = vmatpush1.bf16.msra.mxu0 %v6146
    %6167 = vmatprep.subr.bf16.mxu0 0
    %6168 = vmatpush1.bf16.msra.mxu0 %v6147
    %6169 = vmatprep.subr.bf16.mxu0 0
    %6170 = vmatpush1.bf16.msra.mxu0 %v6148
    %6171 = vmatprep.subr.bf16.mxu0 0
    %6172 = vmatpush1.bf16.msra.mxu0 %v6149
    %6173 = vmatprep.subr.bf16.mxu0 0
    %6174 = vmatpush1.bf16.msra.mxu0 0
    %6175 = vmatprep.subr.bf16.mxu0 0
    %6176 = vmatpush1.bf16.msra.mxu0 0
    %6177 = vmatprep.subr.bf16.mxu0 0
    %6178 = vmatpush1.bf16.msra.mxu0 0
    %6179 = vmatprep.subr.bf16.mxu0 0
    %6180 = vmatpush1.bf16.msra.mxu0 0
    %6181 = vmatprep.subr.bf16.mxu0 0
    %6182 = vmatpush1.bf16.msra.mxu0 0
    %6183 = vmatprep.subr.bf16.mxu0 0
    %6184 = vmatpush1.bf16.msra.mxu0 0
    %6185 = vmatprep.subr.bf16.mxu0 0
    %6186 = vmatpush1.bf16.msra.mxu0 0
    %6187 = vmatprep.subr.bf16.mxu0 0
    %6188 = vmatpush1.bf16.msra.mxu0 0
    %6189 = vmatprep.mubr.bf16.mxu0 0
    %6190 = vmatmul.mubr.bf16.gmra.mrb[0].mxu0 %v6141
    %v6191 = vpop.f32.mrb[0].mxu0
    %v6192 = vadd.f32 %v6155, %v6191
    %v6193 = vpop.f32.mrb[0].mxu0
    %v6194 = vpop.f32.mrb[0].mxu0
    %v6195 = vpop.f32.mrb[0].mxu0
    %6196 = vdwg.mxu0
    %v6197 = vlaneseq
    %v6198 = vshrl.u32 %v6197, 7
    %v6199 = vsub.s32 1, %v6198
    %v6200 = vrot.slane %v273, %v6199
    %6202 = vrot.lane.b32.xlu0 %v6192, 32
    %v6203 = vpop.permute.xlu0 %6202
    %v6205 = vmul.f32 %v6200, %v6203
    %6207 = vrot.lane.b32.xlu0 %v6205, 96
    %v6208 = vpop.permute.xlu0 %6207
    %v6210 = vadd.f32 %v6039, %v6208
    %s6211 = scalar_lea.vmem [#allocation8], 8
    %6212 = vst.msk [vmem:[%s6211] sm:$0xff] %vm167, %v6210
    // Predicated region
    $region122: #{double_stream_mixer_forward.1} parent=1 // pred_check
      _
    $region123: #{double_stream_mixer_forward.1} parent=1 // pred_check_branch
      %6214 = sbr.rel (0) target = $region125
    $region124: #{double_stream_mixer_forward.1} parent=1 // pred_region
      %s6216 = ssub.s32 512, 512
      %6217 = vsyncadd [#allocation7], %s6216
      %s6218 = sshll.u32 [#allocation6], 4
      %s6219 = int_to_ptr.vmem [resolvable:$true] %s6218
      %6224 = dma.vmem_to_hbm [thread:$0]  %s6219, 512, %s61, [#allocation7], 128, 128, 8
    $region125: #{double_stream_mixer_forward.1} parent=1 // pred_fallthru
      _
    // Predicated region
    $region126: #{double_stream_mixer_forward.1} parent=1 // pred_check
      _
    $region127: #{double_stream_mixer_forward.1} parent=1 // pred_check_branch
      %6226 = sbr.rel (0) target = $region129
    $region128: #{double_stream_mixer_forward.1} parent=1 // pred_region
      %s6228 = ssub.s32 256, 256
      %6229 = vsyncadd [#allocation9], %s6228
      %s6230 = sshll.u32 [#allocation8], 4
      %s6231 = int_to_ptr.vmem [resolvable:$true] %s6230
      %6236 = dma.vmem_to_hbm [thread:$0]  %s6231, 256, %s63, [#allocation9], 128, 128, 8
    $region129: #{double_stream_mixer_forward.1} parent=1 // pred_fallthru
      _
    // Predicated region
    $region130: #{double_stream_mixer_forward.1} parent=1 // pred_check
      _
    $region131: #{double_stream_mixer_forward.1} parent=1 // pred_check_branch
      %6238 = sbr.rel (0) target = $region133
    $region132: #{double_stream_mixer_forward.1} parent=1 // pred_region
      %6239 = dma.done [#allocation7], 512
    $region133: #{double_stream_mixer_forward.1} parent=1 // pred_fallthru
      _
    // Predicated region
    $region134: #{double_stream_mixer_forward.1} parent=1 // pred_check
      _
    $region135: #{double_stream_mixer_forward.1} parent=1 // pred_check_branch
      %6241 = sbr.rel (0) target = $region137
    $region136: #{double_stream_mixer_forward.1} parent=1 // pred_region
      %6242 = dma.done [#allocation9], 256
    $region137: #{double_stream_mixer_forward.1} parent=1 // pred_fallthru
      _
    %6243 = vsyncpa [#allocation7], 1
    %6244 = vsyncpa [#allocation9], 1

</llo_original>
